<compile_context>
chip_gen: v6e
topology: v6e:2x2x1
jax: 0.10.0
libtpu: 0.0.40
codegen_flags: <defaults>
</compile_context>

<pallas_src>
import functools

import numpy as np
import jax
import jax.numpy as jnp
from jax.experimental import pallas as pl
from jax.experimental.pallas import tpu as pltpu

# ----------------------------- tiny T5 config -------------------------------
VOCAB = 64
D_MODEL = 32
D_FF = 64
N_HEADS = 4
D_KV = 8
N_LAYERS = 2
NUM_BUCKETS = 8
MAX_DISTANCE = 16
EPS = 1e-6
NEG_INF = -1e9

# TODO(synk): dropout (p=0.1) is stochastic in torch training mode; we implement
# the deterministic (eval) forward semantics.

# --------------------------- in-kernel helpers -------------------------------


def _rms(x, w):
    # T5LayerNorm: x * rsqrt(mean(x^2) + eps) * weight (no mean subtract / bias)
    var = jnp.mean(x * x, axis=-1, keepdims=True)
    return x * jax.lax.rsqrt(var + EPS) * w


def _multihead_attention(q, k, v, bias, key_mask_add, B, Lq, Lk):
    """All-head attention inside one kernel invocation.

    q: (B*Lq, H*dkv), k/v: (B*Lk, H*dkv), bias: (H, Lq, Lk) or None,
    key_mask_add: (B, Lk) additive mask or None. Returns (B*Lq, H*dkv).
    T5 does NOT scale scores by 1/sqrt(d).
    """
    rows = []
    for b in range(B):
        heads = []
        for h in range(N_HEADS):
            qh = q[b * Lq:(b + 1) * Lq, h * D_KV:(h + 1) * D_KV]
            kh = k[b * Lk:(b + 1) * Lk, h * D_KV:(h + 1) * D_KV]
            vh = v[b * Lk:(b + 1) * Lk, h * D_KV:(h + 1) * D_KV]
            s = jnp.dot(qh, kh.T, preferred_element_type=jnp.float32)
            if bias is not None:
                s = s + bias[h]
            if key_mask_add is not None:
                s = s + key_mask_add[b][None, :]
            s = s - jnp.max(s, axis=-1, keepdims=True)
            p = jnp.exp(s)
            p = p / jnp.sum(p, axis=-1, keepdims=True)
            heads.append(jnp.dot(p, vh, preferred_element_type=jnp.float32))
        rows.append(jnp.concatenate(heads, axis=1))          # (Lq, H*dkv)
    return jnp.concatenate(rows, axis=0)                     # (B*Lq, H*dkv)


# ----------------------------- Pallas kernels -------------------------------


def _enc_layer_kernel(x_ref, mask_ref, bias_ref, ln1_ref, wqkv_ref, wo_ref,
                      ln2_ref, wi_ref, wo_ff_ref, fin_ln_ref, o_ref,
                      *, B, L, apply_final_ln):
    inner = N_HEADS * D_KV
    x = x_ref[...]                                            # (B*L, D)
    bias = bias_ref[...]                                      # (H, L, L)
    key_mask_add = (1.0 - mask_ref[...]) * NEG_INF            # (B, L)

    # --- self-attention sub-layer (fused QKV projection) ---
    xn = _rms(x, ln1_ref[...])
    qkv = jnp.dot(xn, wqkv_ref[...], preferred_element_type=jnp.float32)
    q = qkv[:, :inner]
    k = qkv[:, inner:2 * inner]
    v = qkv[:, 2 * inner:]
    ctx = _multihead_attention(q, k, v, bias, key_mask_add, B, L, L)
    x = x + jnp.dot(ctx, wo_ref[...], preferred_element_type=jnp.float32)

    # --- FFN sub-layer ---
    xn = _rms(x, ln2_ref[...])
    h = jnp.maximum(jnp.dot(xn, wi_ref[...], preferred_element_type=jnp.float32), 0.0)
    x = x + jnp.dot(h, wo_ff_ref[...], preferred_element_type=jnp.float32)

    if apply_final_ln:                                        # fused encoder final RMSNorm
        x = _rms(x, fin_ln_ref[...])
    o_ref[...] = x


def _dec_layer_kernel(x_ref, enc_ref, smask_ref, sbias_ref,
                      ln1_ref, wqkv_ref, wo_s_ref,
                      ln2_ref, wq_c_ref, wkv_c_ref, wo_c_ref,
                      ln3_ref, wi_ref, wo_ff_ref, o_ref,
                      *, B, Lt, Ls):
    inner = N_HEADS * D_KV
    x = x_ref[...]                                            # (B*Lt, D)
    enc = enc_ref[...]                                        # (B*Ls, D)
    sbias = sbias_ref[...]                                    # (H, Lt, Lt): rel bias + causal
    cross_mask_add = (1.0 - smask_ref[...]) * NEG_INF         # (B, Ls)

    # --- causal self-attention (fused QKV) ---
    xn = _rms(x, ln1_ref[...])
    qkv = jnp.dot(xn, wqkv_ref[...], preferred_element_type=jnp.float32)
    q = qkv[:, :inner]
    k = qkv[:, inner:2 * inner]
    v = qkv[:, 2 * inner:]
    ctx = _multihead_attention(q, k, v, sbias, None, B, Lt, Lt)
    x = x + jnp.dot(ctx, wo_s_ref[...], preferred_element_type=jnp.float32)

    # --- cross-attention (fused KV projection of encoder states) ---
    xn = _rms(x, ln2_ref[...])
    qc = jnp.dot(xn, wq_c_ref[...], preferred_element_type=jnp.float32)
    kv = jnp.dot(enc, wkv_c_ref[...], preferred_element_type=jnp.float32)
    kc = kv[:, :inner]
    vc = kv[:, inner:]
    ctx = _multihead_attention(qc, kc, vc, None, cross_mask_add, B, Lt, Ls)
    x = x + jnp.dot(ctx, wo_c_ref[...], preferred_element_type=jnp.float32)

    # --- FFN ---
    xn = _rms(x, ln3_ref[...])
    h = jnp.maximum(jnp.dot(xn, wi_ref[...], preferred_element_type=jnp.float32), 0.0)
    x = x + jnp.dot(h, wo_ff_ref[...], preferred_element_type=jnp.float32)
    o_ref[...] = x


def _head_kernel(x_ref, ln_ref, lm_ref, labels_ref, loss_ref, pred_ref):
    # Fused: decoder final RMSNorm -> d_model**-0.5 scale -> tied lm_head matmul
    #        -> per-token CE (masked by ignore_index=-100) -> argmax token ids.
    xn = _rms(x_ref[...], ln_ref[...]) * (D_MODEL ** -0.5)
    logits = jnp.dot(xn, lm_ref[...], preferred_element_type=jnp.float32)   # (N, V)
    n, v = logits.shape
    m = jnp.max(logits, axis=-1, keepdims=True)
    shifted = logits - m
    lse = jnp.log(jnp.sum(jnp.exp(shifted), axis=-1, keepdims=True))
    logprobs = shifted - lse
    labels = labels_ref[...]                                                # (N, 1) int32
    col = jax.lax.broadcasted_iota(jnp.int32, (n, v), 1)
    onehot = (col == labels).astype(jnp.float32)
    valid = (labels != -100).astype(jnp.float32)
    loss_ref[...] = -jnp.sum(logprobs * onehot, axis=-1, keepdims=True) * valid
    is_max = logits >= m
    pred_ref[...] = jnp.min(jnp.where(is_max, col, v), axis=-1, keepdims=True).astype(jnp.int32)


# ----------------------------- Pallas wrappers ------------------------------


def pallas_encoder_layer(x, src_mask_f, pos_bias, layer, final_ln, *, B, L, apply_final_ln):
    N, D = x.shape
    inner = N_HEADS * D_KV
    kernel = functools.partial(_enc_layer_kernel, B=B, L=L, apply_final_ln=apply_final_ln)
    return pl.pallas_call(
        kernel,
        out_shape=jax.ShapeDtypeStruct((N, D), jnp.float32),
        grid=(1,),
        in_specs=[
            pl.BlockSpec((N, D), lambda i: (0, 0)),                 # x
            pl.BlockSpec((B, L), lambda i: (0, 0)),                 # padding mask
            pl.BlockSpec((N_HEADS, L, L), lambda i: (0, 0, 0)),     # rel-pos bias (per head)
            pl.BlockSpec((1, D), lambda i: (0, 0)),                 # ln1
            pl.BlockSpec((D, 3 * inner), lambda i: (0, 0)),         # fused Wqkv
            pl.BlockSpec((inner, D), lambda i: (0, 0)),             # Wo
            pl.BlockSpec((1, D), lambda i: (0, 0)),                 # ln2
            pl.BlockSpec((D, D_FF), lambda i: (0, 0)),              # wi
            pl.BlockSpec((D_FF, D), lambda i: (0, 0)),              # wo_ff
            pl.BlockSpec((1, D), lambda i: (0, 0)),                 # encoder final ln
        ],
        out_specs=pl.BlockSpec((N, D), lambda i: (0, 0)),
        compiler_params=pltpu.CompilerParams(dimension_semantics=("arbitrary",)),
    )(x, src_mask_f, pos_bias, layer['ln1'], layer['wqkv'], layer['wo'],
      layer['ln2'], layer['wi'], layer['wo_ff'], final_ln)


def pallas_decoder_layer(x, enc_out, src_mask_f, self_bias, layer, *, B, Lt, Ls):
    N, D = x.shape
    Ne = enc_out.shape[0]
    inner = N_HEADS * D_KV
    kernel = functools.partial(_dec_layer_kernel, B=B, Lt=Lt, Ls=Ls)
    return pl.pallas_call(
        kernel,
        out_shape=jax.ShapeDtypeStruct((N, D), jnp.float32),
        grid=(1,),
        in_specs=[
            pl.BlockSpec((N, D), lambda i: (0, 0)),                 # x
            pl.BlockSpec((Ne, D), lambda i: (0, 0)),                # encoder output
            pl.BlockSpec((B, Ls), lambda i: (0, 0)),                # src padding mask
            pl.BlockSpec((N_HEADS, Lt, Lt), lambda i: (0, 0, 0)),   # self bias (rel+causal)
            pl.BlockSpec((1, D), lambda i: (0, 0)),                 # ln1
            pl.BlockSpec((D, 3 * inner), lambda i: (0, 0)),         # fused Wqkv (self)
            pl.BlockSpec((inner, D), lambda i: (0, 0)),             # Wo (self)
            pl.BlockSpec((1, D), lambda i: (0, 0)),                 # ln2
            pl.BlockSpec((D, inner), lambda i: (0, 0)),             # Wq (cross)
            pl.BlockSpec((D, 2 * inner), lambda i: (0, 0)),         # fused Wkv (cross)
            pl.BlockSpec((inner, D), lambda i: (0, 0)),             # Wo (cross)
            pl.BlockSpec((1, D), lambda i: (0, 0)),                 # ln3
            pl.BlockSpec((D, D_FF), lambda i: (0, 0)),              # wi
            pl.BlockSpec((D_FF, D), lambda i: (0, 0)),              # wo_ff
        ],
        out_specs=pl.BlockSpec((N, D), lambda i: (0, 0)),
        compiler_params=pltpu.CompilerParams(dimension_semantics=("arbitrary",)),
    )(x, enc_out, src_mask_f, self_bias,
      layer['ln1'], layer['wqkv'], layer['wo_self'],
      layer['ln2'], layer['wq_c'], layer['wkv_c'], layer['wo_c'],
      layer['ln3'], layer['wi'], layer['wo_ff'])


def pallas_lm_head_loss(x, final_ln, lm_head_w, labels):
    N, D = x.shape
    V = lm_head_w.shape[1]
    tok_loss, pred = pl.pallas_call(
        _head_kernel,
        out_shape=(jax.ShapeDtypeStruct((N, 1), jnp.float32),
                   jax.ShapeDtypeStruct((N, 1), jnp.int32)),
        grid=(1,),
        in_specs=[pl.BlockSpec((N, D), lambda i: (0, 0)),
                  pl.BlockSpec((1, D), lambda i: (0, 0)),
                  pl.BlockSpec((D, V), lambda i: (0, 0)),
                  pl.BlockSpec((N, 1), lambda i: (0, 0))],
        out_specs=(pl.BlockSpec((N, 1), lambda i: (0, 0)),
                   pl.BlockSpec((N, 1), lambda i: (0, 0))),
        compiler_params=pltpu.CompilerParams(dimension_semantics=("arbitrary",)),
    )(x, final_ln, lm_head_w, labels.reshape(N, 1).astype(jnp.int32))
    return tok_loss[:, 0], pred[:, 0]


# --------------------------- T5 glue (plain JAX) ----------------------------


def _relative_position_bucket(relative_position, bidirectional, num_buckets, max_distance):
    relative_buckets = np.zeros_like(relative_position)
    if bidirectional:
        num_buckets //= 2
        relative_buckets += (relative_position > 0).astype(relative_position.dtype) * num_buckets
        relative_position = np.abs(relative_position)
    else:
        relative_position = -np.minimum(relative_position, 0)
    max_exact = num_buckets // 2
    is_small = relative_position < max_exact
    rp = np.maximum(relative_position, 1).astype(np.float32)
    rp_large = max_exact + (
        np.log(rp / max_exact) / np.log(max_distance / max_exact) * (num_buckets - max_exact)
    ).astype(relative_position.dtype)
    rp_large = np.minimum(rp_large, num_buckets - 1)
    relative_buckets += np.where(is_small, relative_position, rp_large)
    return relative_buckets


def compute_position_bias(q_len, k_len, rel_bias_weight, bidirectional):
    # Returns compact (H, Lq, Lk); broadcast over batch happens inside the kernel.
    ctx = np.arange(q_len, dtype=np.int64)[:, None]
    mem = np.arange(k_len, dtype=np.int64)[None, :]
    rel = mem - ctx
    buckets = _relative_position_bucket(rel, bidirectional, NUM_BUCKETS, MAX_DISTANCE)
    values = jnp.take(rel_bias_weight, jnp.asarray(buckets, dtype=jnp.int32), axis=0)  # (Lq, Lk, H)
    return jnp.transpose(values, (2, 0, 1))                                            # (H, Lq, Lk)


def t5gen_forward(src_input, src_mask, tgt_input, tgt_output, params):
    # mirrors T5Gen_Model.forward:
    #   src_mask = src_mask.type(src_input.type())
    #   outputs = model(input_ids, attention_mask, decoder_input_ids, labels)
    #   loss, argmax(logits)
    src_mask = src_mask.astype(src_input.dtype)
    src_mask_f = src_mask.astype(jnp.float32)
    B, Ls = src_input.shape
    _, Lt = tgt_input.shape

    # ---------------- encoder: one fused kernel per layer ----------------
    x = jnp.take(params['shared'], src_input, axis=0).reshape(B * Ls, D_MODEL)
    enc_bias = compute_position_bias(Ls, Ls, params['enc_rel_bias'], bidirectional=True)
    for li, layer in enumerate(params['enc_layers']):
        x = pallas_encoder_layer(x, src_mask_f, enc_bias, layer, params['enc_final_ln'],
                                 B=B, L=Ls, apply_final_ln=(li == N_LAYERS - 1))
    enc_out = x                                               # final RMSNorm already applied

    # ---------------- decoder: one fused kernel per layer ----------------
    y = jnp.take(params['shared'], tgt_input, axis=0).reshape(B * Lt, D_MODEL)
    causal_add = jnp.asarray(
        (1.0 - np.tril(np.ones((Lt, Lt), dtype=np.float32)))[None] * NEG_INF)
    dec_self_bias = compute_position_bias(Lt, Lt, params['dec_rel_bias'],
                                          bidirectional=False) + causal_add
    for layer in params['dec_layers']:
        y = pallas_decoder_layer(y, enc_out, src_mask_f, dec_self_bias, layer,
                                 B=B, Lt=Lt, Ls=Ls)

    # ------ fused final LN + tied lm_head + cross entropy + argmax -------
    labels = tgt_output.reshape(B * Lt)
    tok_loss, pred = pallas_lm_head_loss(y, params['dec_final_ln'], params['lm_head'], labels)
    valid = (labels != -100).astype(jnp.float32)              # CrossEntropyLoss(ignore_index=-100)
    loss = jnp.sum(tok_loss) / jnp.maximum(jnp.sum(valid), 1.0)
    # TODO(synk): parse_batch_text (tokenizer.decode + special-token filtering) is
    # string processing with no Pallas equivalent; we return the argmax token ids.
    pred_ids = pred.reshape(B, Lt)
    return loss, pred_ids


# ------------------------------ init & main ---------------------------------


def init_params(key):
    keys = iter(jax.random.split(key, 256))

    def nrm(shape, scale=0.05):
        return jax.random.normal(next(keys), shape, dtype=jnp.float32) * scale

    inner = N_HEADS * D_KV
    shared = nrm((VOCAB, D_MODEL), 1.0)
    params = {
        'shared': shared,
        'lm_head': shared.T,                                   # pre-transposed tied embedding
        'enc_rel_bias': nrm((NUM_BUCKETS, N_HEADS), 0.1),
        'dec_rel_bias': nrm((NUM_BUCKETS, N_HEADS), 0.1),
        'enc_final_ln': jnp.ones((1, D_MODEL), jnp.float32),
        'dec_final_ln': jnp.ones((1, D_MODEL), jnp.float32),
        'enc_layers': [],
        'dec_layers': [],
    }
    for _ in range(N_LAYERS):
        params['enc_layers'].append({
            'ln1': jnp.ones((1, D_MODEL), jnp.float32),
            'wqkv': nrm((D_MODEL, 3 * inner)),                 # fused Q|K|V
            'wo': nrm((inner, D_MODEL)),
            'ln2': jnp.ones((1, D_MODEL), jnp.float32),
            'wi': nrm((D_MODEL, D_FF)),
            'wo_ff': nrm((D_FF, D_MODEL)),
        })
        params['dec_layers'].append({
            'ln1': jnp.ones((1, D_MODEL), jnp.float32),
            'wqkv': nrm((D_MODEL, 3 * inner)),                 # fused Q|K|V (self)
            'wo_self': nrm((inner, D_MODEL)),
            'ln2': jnp.ones((1, D_MODEL), jnp.float32),
            'wq_c': nrm((D_MODEL, inner)),
            'wkv_c': nrm((D_MODEL, 2 * inner)),                # fused K|V (cross)
            'wo_c': nrm((inner, D_MODEL)),
            'ln3': jnp.ones((1, D_MODEL), jnp.float32),
            'wi': nrm((D_MODEL, D_FF)),
            'wo_ff': nrm((D_FF, D_MODEL)),
        })
    return params


if __name__ == "__main__":
    key = jax.random.PRNGKey(0)
    pkey, k1, k2, k3 = jax.random.split(key, 4)
    params = init_params(pkey)

    B, Ls, Lt = 2, 8, 8
    src_input = jax.random.randint(k1, (B, Ls), 0, VOCAB, dtype=jnp.int32)
    src_mask = jnp.ones((B, Ls), jnp.int32).at[1, 6:].set(0)   # second example has padding
    tgt_input = jax.random.randint(k2, (B, Lt), 0, VOCAB, dtype=jnp.int32)
    tgt_output = jax.random.randint(k3, (B, Lt), 0, VOCAB, dtype=jnp.int32)

    fwd = jax.jit(lambda a, b, c, d: t5gen_forward(a, b, c, d, params))
    loss, pred_ids = fwd(src_input, src_mask, tgt_input, tgt_output)
    jax.block_until_ready((loss, pred_ids))

    assert loss.shape == () and jnp.isfinite(loss)
    assert pred_ids.shape == (B, Lt)
    print("KERNEL_OK")
</pallas_src>

<mosaic_0001>
module attributes {stable_mosaic.version = 11 : i64} {
  func.func @_enc_layer_kernel(%arg0: i32, %arg1: memref<16x32xf32, #tpu.memory_space<vmem>>, %arg2: memref<2x8xf32, #tpu.memory_space<vmem>>, %arg3: memref<4x8x8xf32, #tpu.memory_space<vmem>>, %arg4: memref<1x32xf32, #tpu.memory_space<vmem>>, %arg5: memref<32x96xf32, #tpu.memory_space<vmem>>, %arg6: memref<32x32xf32, #tpu.memory_space<vmem>>, %arg7: memref<1x32xf32, #tpu.memory_space<vmem>>, %arg8: memref<32x64xf32, #tpu.memory_space<vmem>>, %arg9: memref<64x32xf32, #tpu.memory_space<vmem>>, %arg10: memref<1x32xf32, #tpu.memory_space<vmem>>, %arg11: memref<16x32xf32, #tpu.memory_space<vmem>>) attributes {dimension_semantics = [#tpu.dimension_semantics<arbitrary>], iteration_bounds = array<i64: 1>, scalar_prefetch = 0 : i64, scratch_operands = 0 : i64, tpu.core_type = #tpu.core_type<tc>, window_params = [{pipeline_mode = #tpu.pipeline_mode<synchronous>, transform_indices = @transform_0, window_bounds = array<i64: 16, 32>}, {pipeline_mode = #tpu.pipeline_mode<synchronous>, transform_indices = @transform_1, window_bounds = array<i64: 2, 8>}, {pipeline_mode = #tpu.pipeline_mode<synchronous>, transform_indices = @transform_2, window_bounds = array<i64: 4, 8, 8>}, {pipeline_mode = #tpu.pipeline_mode<synchronous>, transform_indices = @transform_3, window_bounds = array<i64: 1, 32>}, {pipeline_mode = #tpu.pipeline_mode<synchronous>, transform_indices = @transform_4, window_bounds = array<i64: 32, 96>}, {pipeline_mode = #tpu.pipeline_mode<synchronous>, transform_indices = @transform_5, window_bounds = array<i64: 32, 32>}, {pipeline_mode = #tpu.pipeline_mode<synchronous>, transform_indices = @transform_6, window_bounds = array<i64: 1, 32>}, {pipeline_mode = #tpu.pipeline_mode<synchronous>, transform_indices = @transform_7, window_bounds = array<i64: 32, 64>}, {pipeline_mode = #tpu.pipeline_mode<synchronous>, transform_indices = @transform_8, window_bounds = array<i64: 64, 32>}, {pipeline_mode = #tpu.pipeline_mode<synchronous>, transform_indices = @transform_9, window_bounds = array<i64: 1, 32>}, {pipeline_mode = #tpu.pipeline_mode<synchronous>, transform_indices = @transform_10, window_bounds = array<i64: 16, 32>}]} {
    %c0 = arith.constant 0 : index
    %c0_0 = arith.constant 0 : index
    %0 = vector.load %arg1[%c0, %c0_0] : memref<16x32xf32, #tpu.memory_space<vmem>>, vector<16x32xf32>
    %c0_1 = arith.constant 0 : index
    %c0_2 = arith.constant 0 : index
    %c0_3 = arith.constant 0 : index
    %1 = vector.load %arg3[%c0_1, %c0_2, %c0_3] : memref<4x8x8xf32, #tpu.memory_space<vmem>>, vector<4x8x8xf32>
    %c0_4 = arith.constant 0 : index
    %c0_5 = arith.constant 0 : index
    %2 = vector.load %arg2[%c0_4, %c0_5] : memref<2x8xf32, #tpu.memory_space<vmem>>, vector<2x8xf32>
    %cst = arith.constant 1.000000e+00 : f32
    %3 = vector.broadcast %cst : f32 to vector<2x8xf32>
    %4 = arith.subf %3, %2 : vector<2x8xf32>
    %cst_6 = arith.constant -1.000000e+09 : f32
    %5 = vector.broadcast %cst_6 : f32 to vector<2x8xf32>
    %6 = arith.mulf %4, %5 : vector<2x8xf32>
    %c0_7 = arith.constant 0 : index
    %c0_8 = arith.constant 0 : index
    %7 = vector.load %arg4[%c0_7, %c0_8] : memref<1x32xf32, #tpu.memory_space<vmem>>, vector<1x32xf32>
    %8 = arith.mulf %0, %0 : vector<16x32xf32>
    %cst_9 = arith.constant dense<0.000000e+00> : vector<16xf32>
    %9 = vector.multi_reduction <add>, %8, %cst_9 [1] : vector<16x32xf32> to vector<16xf32>
    %10 = vector.shape_cast %9 : vector<16xf32> to vector<16x1xf32>
    %cst_10 = arith.constant 3.200000e+01 : f32
    %11 = vector.broadcast %cst_10 : f32 to vector<16x1xf32>
    %12 = arith.divf %10, %11 : vector<16x1xf32>
    %cst_11 = arith.constant 9.99999997E-7 : f32
    %13 = vector.broadcast %cst_11 : f32 to vector<16x1xf32>
    %14 = arith.addf %12, %13 : vector<16x1xf32>
    %15 = math.rsqrt %14 : vector<16x1xf32>
    %16 = vector.broadcast %15 : vector<16x1xf32> to vector<16x32xf32>
    %17 = arith.mulf %0, %16 : vector<16x32xf32>
    %18 = vector.broadcast %7 : vector<1x32xf32> to vector<16x32xf32>
    %19 = arith.mulf %17, %18 : vector<16x32xf32>
    %c0_12 = arith.constant 0 : index
    %c0_13 = arith.constant 0 : index
    %20 = vector.load %arg5[%c0_12, %c0_13] : memref<32x96xf32, #tpu.memory_space<vmem>>, vector<32x96xf32>
    %cst_14 = arith.constant dense<0.000000e+00> : vector<16x96xf32>
    %21 = tpu.matmul %19, %20, %cst_14 {dimension_numbers = #tpu.dot_dimension_numbers<[1], [0], [0], [1], [0, 0, 1, 1], [], []>} : vector<16x32xf32>, vector<32x96xf32>, vector<16x96xf32> -> vector<16x96xf32>
    %22 = vector.extract_strided_slice %21 {offsets = [0, 0], sizes = [16, 32], strides = [1, 1]} : vector<16x96xf32> to vector<16x32xf32>
    %23 = vector.extract_strided_slice %21 {offsets = [0, 32], sizes = [16, 32], strides = [1, 1]} : vector<16x96xf32> to vector<16x32xf32>
    %24 = vector.extract_strided_slice %21 {offsets = [0, 64], sizes = [16, 32], strides = [1, 1]} : vector<16x96xf32> to vector<16x32xf32>
    %25 = vector.extract_strided_slice %22 {offsets = [0, 0], sizes = [8, 8], strides = [1, 1]} : vector<16x32xf32> to vector<8x8xf32>
    %26 = vector.extract_strided_slice %23 {offsets = [0, 0], sizes = [8, 8], strides = [1, 1]} : vector<16x32xf32> to vector<8x8xf32>
    %27 = vector.extract_strided_slice %24 {offsets = [0, 0], sizes = [8, 8], strides = [1, 1]} : vector<16x32xf32> to vector<8x8xf32>
    %28 = tpu.transpose %26, [1, 0] : vector<8x8xf32> -> vector<8x8xf32>
    %cst_15 = arith.constant dense<0.000000e+00> : vector<8x8xf32>
    %29 = tpu.matmul %25, %28, %cst_15 {dimension_numbers = #tpu.dot_dimension_numbers<[1], [0], [0], [1], [0, 0, 1, 1], [], []>} : vector<8x8xf32>, vector<8x8xf32>, vector<8x8xf32> -> vector<8x8xf32>
    %30 = vector.extract_strided_slice %1 {offsets = [0, 0, 0], sizes = [1, 8, 8], strides = [1, 1, 1]} : vector<4x8x8xf32> to vector<1x8x8xf32>
    %31 = vector.shape_cast %30 : vector<1x8x8xf32> to vector<8x8xf32>
    %32 = arith.addf %29, %31 : vector<8x8xf32>
    %33 = vector.extract_strided_slice %6 {offsets = [0, 0], sizes = [1, 8], strides = [1, 1]} : vector<2x8xf32> to vector<1x8xf32>
    %34 = vector.shape_cast %33 : vector<1x8xf32> to vector<8xf32>
    %35 = vector.shape_cast %34 : vector<8xf32> to vector<1x8xf32>
    %36 = vector.broadcast %35 : vector<1x8xf32> to vector<8x8xf32>
    %37 = arith.addf %32, %36 : vector<8x8xf32>
    %cst_16 = arith.constant dense<0xFF800000> : vector<8xf32>
    %38 = vector.multi_reduction <maximumf>, %37, %cst_16 [1] : vector<8x8xf32> to vector<8xf32>
    %39 = vector.shape_cast %38 : vector<8xf32> to vector<8x1xf32>
    %40 = vector.broadcast %39 : vector<8x1xf32> to vector<8x8xf32>
    %41 = arith.subf %37, %40 : vector<8x8xf32>
    %42 = math.exp %41 : vector<8x8xf32>
    %cst_17 = arith.constant dense<0.000000e+00> : vector<8xf32>
    %43 = vector.multi_reduction <add>, %42, %cst_17 [1] : vector<8x8xf32> to vector<8xf32>
    %44 = vector.shape_cast %43 : vector<8xf32> to vector<8x1xf32>
    %45 = vector.broadcast %44 : vector<8x1xf32> to vector<8x8xf32>
    %46 = arith.divf %42, %45 : vector<8x8xf32>
    %cst_18 = arith.constant dense<0.000000e+00> : vector<8x8xf32>
    %47 = tpu.matmul %46, %27, %cst_18 {dimension_numbers = #tpu.dot_dimension_numbers<[1], [0], [0], [1], [0, 0, 1, 1], [], []>} : vector<8x8xf32>, vector<8x8xf32>, vector<8x8xf32> -> vector<8x8xf32>
    %48 = vector.extract_strided_slice %22 {offsets = [0, 8], sizes = [8, 8], strides = [1, 1]} : vector<16x32xf32> to vector<8x8xf32>
    %49 = vector.extract_strided_slice %23 {offsets = [0, 8], sizes = [8, 8], strides = [1, 1]} : vector<16x32xf32> to vector<8x8xf32>
    %50 = vector.extract_strided_slice %24 {offsets = [0, 8], sizes = [8, 8], strides = [1, 1]} : vector<16x32xf32> to vector<8x8xf32>
    %51 = tpu.transpose %49, [1, 0] : vector<8x8xf32> -> vector<8x8xf32>
    %cst_19 = arith.constant dense<0.000000e+00> : vector<8x8xf32>
    %52 = tpu.matmul %48, %51, %cst_19 {dimension_numbers = #tpu.dot_dimension_numbers<[1], [0], [0], [1], [0, 0, 1, 1], [], []>} : vector<8x8xf32>, vector<8x8xf32>, vector<8x8xf32> -> vector<8x8xf32>
    %53 = vector.extract_strided_slice %1 {offsets = [1, 0, 0], sizes = [1, 8, 8], strides = [1, 1, 1]} : vector<4x8x8xf32> to vector<1x8x8xf32>
    %54 = vector.shape_cast %53 : vector<1x8x8xf32> to vector<8x8xf32>
    %55 = arith.addf %52, %54 : vector<8x8xf32>
    %56 = vector.extract_strided_slice %6 {offsets = [0, 0], sizes = [1, 8], strides = [1, 1]} : vector<2x8xf32> to vector<1x8xf32>
    %57 = vector.shape_cast %56 : vector<1x8xf32> to vector<8xf32>
    %58 = vector.shape_cast %57 : vector<8xf32> to vector<1x8xf32>
    %59 = vector.broadcast %58 : vector<1x8xf32> to vector<8x8xf32>
    %60 = arith.addf %55, %59 : vector<8x8xf32>
    %cst_20 = arith.constant dense<0xFF800000> : vector<8xf32>
    %61 = vector.multi_reduction <maximumf>, %60, %cst_20 [1] : vector<8x8xf32> to vector<8xf32>
    %62 = vector.shape_cast %61 : vector<8xf32> to vector<8x1xf32>
    %63 = vector.broadcast %62 : vector<8x1xf32> to vector<8x8xf32>
    %64 = arith.subf %60, %63 : vector<8x8xf32>
    %65 = math.exp %64 : vector<8x8xf32>
    %cst_21 = arith.constant dense<0.000000e+00> : vector<8xf32>
    %66 = vector.multi_reduction <add>, %65, %cst_21 [1] : vector<8x8xf32> to vector<8xf32>
    %67 = vector.shape_cast %66 : vector<8xf32> to vector<8x1xf32>
    %68 = vector.broadcast %67 : vector<8x1xf32> to vector<8x8xf32>
    %69 = arith.divf %65, %68 : vector<8x8xf32>
    %cst_22 = arith.constant dense<0.000000e+00> : vector<8x8xf32>
    %70 = tpu.matmul %69, %50, %cst_22 {dimension_numbers = #tpu.dot_dimension_numbers<[1], [0], [0], [1], [0, 0, 1, 1], [], []>} : vector<8x8xf32>, vector<8x8xf32>, vector<8x8xf32> -> vector<8x8xf32>
    %71 = vector.extract_strided_slice %22 {offsets = [0, 16], sizes = [8, 8], strides = [1, 1]} : vector<16x32xf32> to vector<8x8xf32>
    %72 = vector.extract_strided_slice %23 {offsets = [0, 16], sizes = [8, 8], strides = [1, 1]} : vector<16x32xf32> to vector<8x8xf32>
    %73 = vector.extract_strided_slice %24 {offsets = [0, 16], sizes = [8, 8], strides = [1, 1]} : vector<16x32xf32> to vector<8x8xf32>
    %74 = tpu.transpose %72, [1, 0] : vector<8x8xf32> -> vector<8x8xf32>
    %cst_23 = arith.constant dense<0.000000e+00> : vector<8x8xf32>
    %75 = tpu.matmul %71, %74, %cst_23 {dimension_numbers = #tpu.dot_dimension_numbers<[1], [0], [0], [1], [0, 0, 1, 1], [], []>} : vector<8x8xf32>, vector<8x8xf32>, vector<8x8xf32> -> vector<8x8xf32>
    %76 = vector.extract_strided_slice %1 {offsets = [2, 0, 0], sizes = [1, 8, 8], strides = [1, 1, 1]} : vector<4x8x8xf32> to vector<1x8x8xf32>
    %77 = vector.shape_cast %76 : vector<1x8x8xf32> to vector<8x8xf32>
    %78 = arith.addf %75, %77 : vector<8x8xf32>
    %79 = vector.extract_strided_slice %6 {offsets = [0, 0], sizes = [1, 8], strides = [1, 1]} : vector<2x8xf32> to vector<1x8xf32>
    %80 = vector.shape_cast %79 : vector<1x8xf32> to vector<8xf32>
    %81 = vector.shape_cast %80 : vector<8xf32> to vector<1x8xf32>
    %82 = vector.broadcast %81 : vector<1x8xf32> to vector<8x8xf32>
    %83 = arith.addf %78, %82 : vector<8x8xf32>
    %cst_24 = arith.constant dense<0xFF800000> : vector<8xf32>
    %84 = vector.multi_reduction <maximumf>, %83, %cst_24 [1] : vector<8x8xf32> to vector<8xf32>
    %85 = vector.shape_cast %84 : vector<8xf32> to vector<8x1xf32>
    %86 = vector.broadcast %85 : vector<8x1xf32> to vector<8x8xf32>
    %87 = arith.subf %83, %86 : vector<8x8xf32>
    %88 = math.exp %87 : vector<8x8xf32>
    %cst_25 = arith.constant dense<0.000000e+00> : vector<8xf32>
    %89 = vector.multi_reduction <add>, %88, %cst_25 [1] : vector<8x8xf32> to vector<8xf32>
    %90 = vector.shape_cast %89 : vector<8xf32> to vector<8x1xf32>
    %91 = vector.broadcast %90 : vector<8x1xf32> to vector<8x8xf32>
    %92 = arith.divf %88, %91 : vector<8x8xf32>
    %cst_26 = arith.constant dense<0.000000e+00> : vector<8x8xf32>
    %93 = tpu.matmul %92, %73, %cst_26 {dimension_numbers = #tpu.dot_dimension_numbers<[1], [0], [0], [1], [0, 0, 1, 1], [], []>} : vector<8x8xf32>, vector<8x8xf32>, vector<8x8xf32> -> vector<8x8xf32>
    %94 = vector.extract_strided_slice %22 {offsets = [0, 24], sizes = [8, 8], strides = [1, 1]} : vector<16x32xf32> to vector<8x8xf32>
    %95 = vector.extract_strided_slice %23 {offsets = [0, 24], sizes = [8, 8], strides = [1, 1]} : vector<16x32xf32> to vector<8x8xf32>
    %96 = vector.extract_strided_slice %24 {offsets = [0, 24], sizes = [8, 8], strides = [1, 1]} : vector<16x32xf32> to vector<8x8xf32>
    %97 = tpu.transpose %95, [1, 0] : vector<8x8xf32> -> vector<8x8xf32>
    %cst_27 = arith.constant dense<0.000000e+00> : vector<8x8xf32>
    %98 = tpu.matmul %94, %97, %cst_27 {dimension_numbers = #tpu.dot_dimension_numbers<[1], [0], [0], [1], [0, 0, 1, 1], [], []>} : vector<8x8xf32>, vector<8x8xf32>, vector<8x8xf32> -> vector<8x8xf32>
    %99 = vector.extract_strided_slice %1 {offsets = [3, 0, 0], sizes = [1, 8, 8], strides = [1, 1, 1]} : vector<4x8x8xf32> to vector<1x8x8xf32>
    %100 = vector.shape_cast %99 : vector<1x8x8xf32> to vector<8x8xf32>
    %101 = arith.addf %98, %100 : vector<8x8xf32>
    %102 = vector.extract_strided_slice %6 {offsets = [0, 0], sizes = [1, 8], strides = [1, 1]} : vector<2x8xf32> to vector<1x8xf32>
    %103 = vector.shape_cast %102 : vector<1x8xf32> to vector<8xf32>
    %104 = vector.shape_cast %103 : vector<8xf32> to vector<1x8xf32>
    %105 = vector.broadcast %104 : vector<1x8xf32> to vector<8x8xf32>
    %106 = arith.addf %101, %105 : vector<8x8xf32>
    %cst_28 = arith.constant dense<0xFF800000> : vector<8xf32>
    %107 = vector.multi_reduction <maximumf>, %106, %cst_28 [1] : vector<8x8xf32> to vector<8xf32>
    %108 = vector.shape_cast %107 : vector<8xf32> to vector<8x1xf32>
    %109 = vector.broadcast %108 : vector<8x1xf32> to vector<8x8xf32>
    %110 = arith.subf %106, %109 : vector<8x8xf32>
    %111 = math.exp %110 : vector<8x8xf32>
    %cst_29 = arith.constant dense<0.000000e+00> : vector<8xf32>
    %112 = vector.multi_reduction <add>, %111, %cst_29 [1] : vector<8x8xf32> to vector<8xf32>
    %113 = vector.shape_cast %112 : vector<8xf32> to vector<8x1xf32>
    %114 = vector.broadcast %113 : vector<8x1xf32> to vector<8x8xf32>
    %115 = arith.divf %111, %114 : vector<8x8xf32>
    %cst_30 = arith.constant dense<0.000000e+00> : vector<8x8xf32>
    %116 = tpu.matmul %115, %96, %cst_30 {dimension_numbers = #tpu.dot_dimension_numbers<[1], [0], [0], [1], [0, 0, 1, 1], [], []>} : vector<8x8xf32>, vector<8x8xf32>, vector<8x8xf32> -> vector<8x8xf32>
    %117 = tpu.concatenate %47, %70, %93, %116 in 1 : vector<8x8xf32>, vector<8x8xf32>, vector<8x8xf32>, vector<8x8xf32> -> vector<8x32xf32>
    %118 = vector.extract_strided_slice %22 {offsets = [8, 0], sizes = [8, 8], strides = [1, 1]} : vector<16x32xf32> to vector<8x8xf32>
    %119 = vector.extract_strided_slice %23 {offsets = [8, 0], sizes = [8, 8], strides = [1, 1]} : vector<16x32xf32> to vector<8x8xf32>
    %120 = vector.extract_strided_slice %24 {offsets = [8, 0], sizes = [8, 8], strides = [1, 1]} : vector<16x32xf32> to vector<8x8xf32>
    %121 = tpu.transpose %119, [1, 0] : vector<8x8xf32> -> vector<8x8xf32>
    %cst_31 = arith.constant dense<0.000000e+00> : vector<8x8xf32>
    %122 = tpu.matmul %118, %121, %cst_31 {dimension_numbers = #tpu.dot_dimension_numbers<[1], [0], [0], [1], [0, 0, 1, 1], [], []>} : vector<8x8xf32>, vector<8x8xf32>, vector<8x8xf32> -> vector<8x8xf32>
    %123 = vector.extract_strided_slice %1 {offsets = [0, 0, 0], sizes = [1, 8, 8], strides = [1, 1, 1]} : vector<4x8x8xf32> to vector<1x8x8xf32>
    %124 = vector.shape_cast %123 : vector<1x8x8xf32> to vector<8x8xf32>
    %125 = arith.addf %122, %124 : vector<8x8xf32>
    %126 = vector.extract_strided_slice %6 {offsets = [1, 0], sizes = [1, 8], strides = [1, 1]} : vector<2x8xf32> to vector<1x8xf32>
    %127 = vector.shape_cast %126 : vector<1x8xf32> to vector<8xf32>
    %128 = vector.shape_cast %127 : vector<8xf32> to vector<1x8xf32>
    %129 = vector.broadcast %128 : vector<1x8xf32> to vector<8x8xf32>
    %130 = arith.addf %125, %129 : vector<8x8xf32>
    %cst_32 = arith.constant dense<0xFF800000> : vector<8xf32>
    %131 = vector.multi_reduction <maximumf>, %130, %cst_32 [1] : vector<8x8xf32> to vector<8xf32>
    %132 = vector.shape_cast %131 : vector<8xf32> to vector<8x1xf32>
    %133 = vector.broadcast %132 : vector<8x1xf32> to vector<8x8xf32>
    %134 = arith.subf %130, %133 : vector<8x8xf32>
    %135 = math.exp %134 : vector<8x8xf32>
    %cst_33 = arith.constant dense<0.000000e+00> : vector<8xf32>
    %136 = vector.multi_reduction <add>, %135, %cst_33 [1] : vector<8x8xf32> to vector<8xf32>
    %137 = vector.shape_cast %136 : vector<8xf32> to vector<8x1xf32>
    %138 = vector.broadcast %137 : vector<8x1xf32> to vector<8x8xf32>
    %139 = arith.divf %135, %138 : vector<8x8xf32>
    %cst_34 = arith.constant dense<0.000000e+00> : vector<8x8xf32>
    %140 = tpu.matmul %139, %120, %cst_34 {dimension_numbers = #tpu.dot_dimension_numbers<[1], [0], [0], [1], [0, 0, 1, 1], [], []>} : vector<8x8xf32>, vector<8x8xf32>, vector<8x8xf32> -> vector<8x8xf32>
    %141 = vector.extract_strided_slice %22 {offsets = [8, 8], sizes = [8, 8], strides = [1, 1]} : vector<16x32xf32> to vector<8x8xf32>
    %142 = vector.extract_strided_slice %23 {offsets = [8, 8], sizes = [8, 8], strides = [1, 1]} : vector<16x32xf32> to vector<8x8xf32>
    %143 = vector.extract_strided_slice %24 {offsets = [8, 8], sizes = [8, 8], strides = [1, 1]} : vector<16x32xf32> to vector<8x8xf32>
    %144 = tpu.transpose %142, [1, 0] : vector<8x8xf32> -> vector<8x8xf32>
    %cst_35 = arith.constant dense<0.000000e+00> : vector<8x8xf32>
    %145 = tpu.matmul %141, %144, %cst_35 {dimension_numbers = #tpu.dot_dimension_numbers<[1], [0], [0], [1], [0, 0, 1, 1], [], []>} : vector<8x8xf32>, vector<8x8xf32>, vector<8x8xf32> -> vector<8x8xf32>
    %146 = vector.extract_strided_slice %1 {offsets = [1, 0, 0], sizes = [1, 8, 8], strides = [1, 1, 1]} : vector<4x8x8xf32> to vector<1x8x8xf32>
    %147 = vector.shape_cast %146 : vector<1x8x8xf32> to vector<8x8xf32>
    %148 = arith.addf %145, %147 : vector<8x8xf32>
    %149 = vector.extract_strided_slice %6 {offsets = [1, 0], sizes = [1, 8], strides = [1, 1]} : vector<2x8xf32> to vector<1x8xf32>
    %150 = vector.shape_cast %149 : vector<1x8xf32> to vector<8xf32>
    %151 = vector.shape_cast %150 : vector<8xf32> to vector<1x8xf32>
    %152 = vector.broadcast %151 : vector<1x8xf32> to vector<8x8xf32>
    %153 = arith.addf %148, %152 : vector<8x8xf32>
    %cst_36 = arith.constant dense<0xFF800000> : vector<8xf32>
    %154 = vector.multi_reduction <maximumf>, %153, %cst_36 [1] : vector<8x8xf32> to vector<8xf32>
    %155 = vector.shape_cast %154 : vector<8xf32> to vector<8x1xf32>
    %156 = vector.broadcast %155 : vector<8x1xf32> to vector<8x8xf32>
    %157 = arith.subf %153, %156 : vector<8x8xf32>
    %158 = math.exp %157 : vector<8x8xf32>
    %cst_37 = arith.constant dense<0.000000e+00> : vector<8xf32>
    %159 = vector.multi_reduction <add>, %158, %cst_37 [1] : vector<8x8xf32> to vector<8xf32>
    %160 = vector.shape_cast %159 : vector<8xf32> to vector<8x1xf32>
    %161 = vector.broadcast %160 : vector<8x1xf32> to vector<8x8xf32>
    %162 = arith.divf %158, %161 : vector<8x8xf32>
    %cst_38 = arith.constant dense<0.000000e+00> : vector<8x8xf32>
    %163 = tpu.matmul %162, %143, %cst_38 {dimension_numbers = #tpu.dot_dimension_numbers<[1], [0], [0], [1], [0, 0, 1, 1], [], []>} : vector<8x8xf32>, vector<8x8xf32>, vector<8x8xf32> -> vector<8x8xf32>
    %164 = vector.extract_strided_slice %22 {offsets = [8, 16], sizes = [8, 8], strides = [1, 1]} : vector<16x32xf32> to vector<8x8xf32>
    %165 = vector.extract_strided_slice %23 {offsets = [8, 16], sizes = [8, 8], strides = [1, 1]} : vector<16x32xf32> to vector<8x8xf32>
    %166 = vector.extract_strided_slice %24 {offsets = [8, 16], sizes = [8, 8], strides = [1, 1]} : vector<16x32xf32> to vector<8x8xf32>
    %167 = tpu.transpose %165, [1, 0] : vector<8x8xf32> -> vector<8x8xf32>
    %cst_39 = arith.constant dense<0.000000e+00> : vector<8x8xf32>
    %168 = tpu.matmul %164, %167, %cst_39 {dimension_numbers = #tpu.dot_dimension_numbers<[1], [0], [0], [1], [0, 0, 1, 1], [], []>} : vector<8x8xf32>, vector<8x8xf32>, vector<8x8xf32> -> vector<8x8xf32>
    %169 = vector.extract_strided_slice %1 {offsets = [2, 0, 0], sizes = [1, 8, 8], strides = [1, 1, 1]} : vector<4x8x8xf32> to vector<1x8x8xf32>
    %170 = vector.shape_cast %169 : vector<1x8x8xf32> to vector<8x8xf32>
    %171 = arith.addf %168, %170 : vector<8x8xf32>
    %172 = vector.extract_strided_slice %6 {offsets = [1, 0], sizes = [1, 8], strides = [1, 1]} : vector<2x8xf32> to vector<1x8xf32>
    %173 = vector.shape_cast %172 : vector<1x8xf32> to vector<8xf32>
    %174 = vector.shape_cast %173 : vector<8xf32> to vector<1x8xf32>
    %175 = vector.broadcast %174 : vector<1x8xf32> to vector<8x8xf32>
    %176 = arith.addf %171, %175 : vector<8x8xf32>
    %cst_40 = arith.constant dense<0xFF800000> : vector<8xf32>
    %177 = vector.multi_reduction <maximumf>, %176, %cst_40 [1] : vector<8x8xf32> to vector<8xf32>
    %178 = vector.shape_cast %177 : vector<8xf32> to vector<8x1xf32>
    %179 = vector.broadcast %178 : vector<8x1xf32> to vector<8x8xf32>
    %180 = arith.subf %176, %179 : vector<8x8xf32>
    %181 = math.exp %180 : vector<8x8xf32>
    %cst_41 = arith.constant dense<0.000000e+00> : vector<8xf32>
    %182 = vector.multi_reduction <add>, %181, %cst_41 [1] : vector<8x8xf32> to vector<8xf32>
    %183 = vector.shape_cast %182 : vector<8xf32> to vector<8x1xf32>
    %184 = vector.broadcast %183 : vector<8x1xf32> to vector<8x8xf32>
    %185 = arith.divf %181, %184 : vector<8x8xf32>
    %cst_42 = arith.constant dense<0.000000e+00> : vector<8x8xf32>
    %186 = tpu.matmul %185, %166, %cst_42 {dimension_numbers = #tpu.dot_dimension_numbers<[1], [0], [0], [1], [0, 0, 1, 1], [], []>} : vector<8x8xf32>, vector<8x8xf32>, vector<8x8xf32> -> vector<8x8xf32>
    %187 = vector.extract_strided_slice %22 {offsets = [8, 24], sizes = [8, 8], strides = [1, 1]} : vector<16x32xf32> to vector<8x8xf32>
    %188 = vector.extract_strided_slice %23 {offsets = [8, 24], sizes = [8, 8], strides = [1, 1]} : vector<16x32xf32> to vector<8x8xf32>
    %189 = vector.extract_strided_slice %24 {offsets = [8, 24], sizes = [8, 8], strides = [1, 1]} : vector<16x32xf32> to vector<8x8xf32>
    %190 = tpu.transpose %188, [1, 0] : vector<8x8xf32> -> vector<8x8xf32>
    %cst_43 = arith.constant dense<0.000000e+00> : vector<8x8xf32>
    %191 = tpu.matmul %187, %190, %cst_43 {dimension_numbers = #tpu.dot_dimension_numbers<[1], [0], [0], [1], [0, 0, 1, 1], [], []>} : vector<8x8xf32>, vector<8x8xf32>, vector<8x8xf32> -> vector<8x8xf32>
    %192 = vector.extract_strided_slice %1 {offsets = [3, 0, 0], sizes = [1, 8, 8], strides = [1, 1, 1]} : vector<4x8x8xf32> to vector<1x8x8xf32>
    %193 = vector.shape_cast %192 : vector<1x8x8xf32> to vector<8x8xf32>
    %194 = arith.addf %191, %193 : vector<8x8xf32>
    %195 = vector.extract_strided_slice %6 {offsets = [1, 0], sizes = [1, 8], strides = [1, 1]} : vector<2x8xf32> to vector<1x8xf32>
    %196 = vector.shape_cast %195 : vector<1x8xf32> to vector<8xf32>
    %197 = vector.shape_cast %196 : vector<8xf32> to vector<1x8xf32>
    %198 = vector.broadcast %197 : vector<1x8xf32> to vector<8x8xf32>
    %199 = arith.addf %194, %198 : vector<8x8xf32>
    %cst_44 = arith.constant dense<0xFF800000> : vector<8xf32>
    %200 = vector.multi_reduction <maximumf>, %199, %cst_44 [1] : vector<8x8xf32> to vector<8xf32>
    %201 = vector.shape_cast %200 : vector<8xf32> to vector<8x1xf32>
    %202 = vector.broadcast %201 : vector<8x1xf32> to vector<8x8xf32>
    %203 = arith.subf %199, %202 : vector<8x8xf32>
    %204 = math.exp %203 : vector<8x8xf32>
    %cst_45 = arith.constant dense<0.000000e+00> : vector<8xf32>
    %205 = vector.multi_reduction <add>, %204, %cst_45 [1] : vector<8x8xf32> to vector<8xf32>
    %206 = vector.shape_cast %205 : vector<8xf32> to vector<8x1xf32>
    %207 = vector.broadcast %206 : vector<8x1xf32> to vector<8x8xf32>
    %208 = arith.divf %204, %207 : vector<8x8xf32>
    %cst_46 = arith.constant dense<0.000000e+00> : vector<8x8xf32>
    %209 = tpu.matmul %208, %189, %cst_46 {dimension_numbers = #tpu.dot_dimension_numbers<[1], [0], [0], [1], [0, 0, 1, 1], [], []>} : vector<8x8xf32>, vector<8x8xf32>, vector<8x8xf32> -> vector<8x8xf32>
    %210 = tpu.concatenate %140, %163, %186, %209 in 1 : vector<8x8xf32>, vector<8x8xf32>, vector<8x8xf32>, vector<8x8xf32> -> vector<8x32xf32>
    %211 = tpu.concatenate %117, %210 in 0 : vector<8x32xf32>, vector<8x32xf32> -> vector<16x32xf32>
    %c0_47 = arith.constant 0 : index
    %c0_48 = arith.constant 0 : index
    %212 = vector.load %arg6[%c0_47, %c0_48] : memref<32x32xf32, #tpu.memory_space<vmem>>, vector<32x32xf32>
    %cst_49 = arith.constant dense<0.000000e+00> : vector<16x32xf32>
    %213 = tpu.matmul %211, %212, %cst_49 {dimension_numbers = #tpu.dot_dimension_numbers<[1], [0], [0], [1], [0, 0, 1, 1], [], []>} : vector<16x32xf32>, vector<32x32xf32>, vector<16x32xf32> -> vector<16x32xf32>
    %214 = arith.addf %0, %213 : vector<16x32xf32>
    %c0_50 = arith.constant 0 : index
    %c0_51 = arith.constant 0 : index
    %215 = vector.load %arg7[%c0_50, %c0_51] : memref<1x32xf32, #tpu.memory_space<vmem>>, vector<1x32xf32>
    %216 = arith.mulf %214, %214 : vector<16x32xf32>
    %cst_52 = arith.constant dense<0.000000e+00> : vector<16xf32>
    %217 = vector.multi_reduction <add>, %216, %cst_52 [1] : vector<16x32xf32> to vector<16xf32>
    %218 = vector.shape_cast %217 : vector<16xf32> to vector<16x1xf32>
    %cst_53 = arith.constant 3.200000e+01 : f32
    %219 = vector.broadcast %cst_53 : f32 to vector<16x1xf32>
    %220 = arith.divf %218, %219 : vector<16x1xf32>
    %cst_54 = arith.constant 9.99999997E-7 : f32
    %221 = vector.broadcast %cst_54 : f32 to vector<16x1xf32>
    %222 = arith.addf %220, %221 : vector<16x1xf32>
    %223 = math.rsqrt %222 : vector<16x1xf32>
    %224 = vector.broadcast %223 : vector<16x1xf32> to vector<16x32xf32>
    %225 = arith.mulf %214, %224 : vector<16x32xf32>
    %226 = vector.broadcast %215 : vector<1x32xf32> to vector<16x32xf32>
    %227 = arith.mulf %225, %226 : vector<16x32xf32>
    %c0_55 = arith.constant 0 : index
    %c0_56 = arith.constant 0 : index
    %228 = vector.load %arg8[%c0_55, %c0_56] : memref<32x64xf32, #tpu.memory_space<vmem>>, vector<32x64xf32>
    %cst_57 = arith.constant dense<0.000000e+00> : vector<16x64xf32>
    %229 = tpu.matmul %227, %228, %cst_57 {dimension_numbers = #tpu.dot_dimension_numbers<[1], [0], [0], [1], [0, 0, 1, 1], [], []>} : vector<16x32xf32>, vector<32x64xf32>, vector<16x64xf32> -> vector<16x64xf32>
    %cst_58 = arith.constant 0.000000e+00 : f32
    %230 = vector.broadcast %cst_58 : f32 to vector<16x64xf32>
    %231 = arith.maximumf %229, %230 : vector<16x64xf32>
    %c0_59 = arith.constant 0 : index
    %c0_60 = arith.constant 0 : index
    %232 = vector.load %arg9[%c0_59, %c0_60] : memref<64x32xf32, #tpu.memory_space<vmem>>, vector<64x32xf32>
    %cst_61 = arith.constant dense<0.000000e+00> : vector<16x32xf32>
    %233 = tpu.matmul %231, %232, %cst_61 {dimension_numbers = #tpu.dot_dimension_numbers<[1], [0], [0], [1], [0, 0, 1, 1], [], []>} : vector<16x64xf32>, vector<64x32xf32>, vector<16x32xf32> -> vector<16x32xf32>
    %234 = arith.addf %214, %233 : vector<16x32xf32>
    %c0_62 = arith.constant 0 : index
    %c0_63 = arith.constant 0 : index
    %235 = vector.load %arg11[%c0_62, %c0_63] : memref<16x32xf32, #tpu.memory_space<vmem>>, vector<16x32xf32>
    tpu.vector_store %arg11[%c0_62, %c0_63], %234 {strides = array<i32>} : memref<16x32xf32, #tpu.memory_space<vmem>>, vector<16x32xf32>,
    return
  }
  func.func @transform_0(%arg0: i32) -> (i32, i32) {
    %c0_i32 = arith.constant 0 : i32
    %c0_i32_0 = arith.constant 0 : i32
    %c0_i32_1 = arith.constant 0 : i32
    return %c0_i32, %c0_i32_0 : i32, i32
  }
  func.func @transform_1(%arg0: i32) -> (i32, i32) {
    %c0_i32 = arith.constant 0 : i32
    %c0_i32_0 = arith.constant 0 : i32
    %c0_i32_1 = arith.constant 0 : i32
    return %c0_i32, %c0_i32_0 : i32, i32
  }
  func.func @transform_2(%arg0: i32) -> (i32, i32, i32) {
    %c0_i32 = arith.constant 0 : i32
    %c0_i32_0 = arith.constant 0 : i32
    %c0_i32_1 = arith.constant 0 : i32
    %c0_i32_2 = arith.constant 0 : i32
    return %c0_i32, %c0_i32_0, %c0_i32_1 : i32, i32, i32
  }
  func.func @transform_3(%arg0: i32) -> (i32, i32) {
    %c0_i32 = arith.constant 0 : i32
    %c0_i32_0 = arith.constant 0 : i32
    %c0_i32_1 = arith.constant 0 : i32
    return %c0_i32, %c0_i32_0 : i32, i32
  }
  func.func @transform_4(%arg0: i32) -> (i32, i32) {
    %c0_i32 = arith.constant 0 : i32
    %c0_i32_0 = arith.constant 0 : i32
    %c0_i32_1 = arith.constant 0 : i32
    return %c0_i32, %c0_i32_0 : i32, i32
  }
  func.func @transform_5(%arg0: i32) -> (i32, i32) {
    %c0_i32 = arith.constant 0 : i32
    %c0_i32_0 = arith.constant 0 : i32
    %c0_i32_1 = arith.constant 0 : i32
    return %c0_i32, %c0_i32_0 : i32, i32
  }
  func.func @transform_6(%arg0: i32) -> (i32, i32) {
    %c0_i32 = arith.constant 0 : i32
    %c0_i32_0 = arith.constant 0 : i32
    %c0_i32_1 = arith.constant 0 : i32
    return %c0_i32, %c0_i32_0 : i32, i32
  }
  func.func @transform_7(%arg0: i32) -> (i32, i32) {
    %c0_i32 = arith.constant 0 : i32
    %c0_i32_0 = arith.constant 0 : i32
    %c0_i32_1 = arith.constant 0 : i32
    return %c0_i32, %c0_i32_0 : i32, i32
  }
  func.func @transform_8(%arg0: i32) -> (i32, i32) {
    %c0_i32 = arith.constant 0 : i32
    %c0_i32_0 = arith.constant 0 : i32
    %c0_i32_1 = arith.constant 0 : i32
    return %c0_i32, %c0_i32_0 : i32, i32
  }
  func.func @transform_9(%arg0: i32) -> (i32, i32) {
    %c0_i32 = arith.constant 0 : i32
    %c0_i32_0 = arith.constant 0 : i32
    %c0_i32_1 = arith.constant 0 : i32
    return %c0_i32, %c0_i32_0 : i32, i32
  }
  func.func @transform_10(%arg0: i32) -> (i32, i32) {
    %c0_i32 = arith.constant 0 : i32
    %c0_i32_0 = arith.constant 0 : i32
    %c0_i32_1 = arith.constant 0 : i32
    return %c0_i32, %c0_i32_0 : i32, i32
  }
}

module attributes {stable_mosaic.version = 11 : i64} {
  func.func @_head_kernel(%arg0: i32, %arg1: memref<16x32xf32, #tpu.memory_space<vmem>>, %arg2: memref<1x32xf32, #tpu.memory_space<vmem>>, %arg3: memref<32x64xf32, #tpu.memory_space<vmem>>, %arg4: memref<16x1xi32, #tpu.memory_space<vmem>>, %arg5: memref<16x1xf32, #tpu.memory_space<vmem>>, %arg6: memref<16x1xi32, #tpu.memory_space<vmem>>) attributes {dimension_semantics = [#tpu.dimension_semantics<arbitrary>], iteration_bounds = array<i64: 1>, scalar_prefetch = 0 : i64, scratch_operands = 0 : i64, tpu.core_type = #tpu.core_type<tc>, window_params = [{pipeline_mode = #tpu.pipeline_mode<synchronous>, transform_indices = @transform_0, window_bounds = array<i64: 16, 32>}, {pipeline_mode = #tpu.pipeline_mode<synchronous>, transform_indices = @transform_1, window_bounds = array<i64: 1, 32>}, {pipeline_mode = #tpu.pipeline_mode<synchronous>, transform_indices = @transform_2, window_bounds = array<i64: 32, 64>}, {pipeline_mode = #tpu.pipeline_mode<synchronous>, transform_indices = @transform_3, window_bounds = array<i64: 16, 1>}, {pipeline_mode = #tpu.pipeline_mode<synchronous>, transform_indices = @transform_4, window_bounds = array<i64: 16, 1>}, {pipeline_mode = #tpu.pipeline_mode<synchronous>, transform_indices = @transform_5, window_bounds = array<i64: 16, 1>}]} {
    %c0 = arith.constant 0 : index
    %c0_0 = arith.constant 0 : index
    %0 = vector.load %arg1[%c0, %c0_0] : memref<16x32xf32, #tpu.memory_space<vmem>>, vector<16x32xf32>
    %c0_1 = arith.constant 0 : index
    %c0_2 = arith.constant 0 : index
    %1 = vector.load %arg2[%c0_1, %c0_2] : memref<1x32xf32, #tpu.memory_space<vmem>>, vector<1x32xf32>
    %2 = arith.mulf %0, %0 : vector<16x32xf32>
    %cst = arith.constant dense<0.000000e+00> : vector<16xf32>
    %3 = vector.multi_reduction <add>, %2, %cst [1] : vector<16x32xf32> to vector<16xf32>
    %4 = vector.shape_cast %3 : vector<16xf32> to vector<16x1xf32>
    %cst_3 = arith.constant 3.200000e+01 : f32
    %5 = vector.broadcast %cst_3 : f32 to vector<16x1xf32>
    %6 = arith.divf %4, %5 : vector<16x1xf32>
    %cst_4 = arith.constant 9.99999997E-7 : f32
    %7 = vector.broadcast %cst_4 : f32 to vector<16x1xf32>
    %8 = arith.addf %6, %7 : vector<16x1xf32>
    %9 = math.rsqrt %8 : vector<16x1xf32>
    %10 = vector.broadcast %9 : vector<16x1xf32> to vector<16x32xf32>
    %11 = arith.mulf %0, %10 : vector<16x32xf32>
    %12 = vector.broadcast %1 : vector<1x32xf32> to vector<16x32xf32>
    %13 = arith.mulf %11, %12 : vector<16x32xf32>
    %cst_5 = arith.constant 0.176776692 : f32
    %14 = vector.broadcast %cst_5 : f32 to vector<16x32xf32>
    %15 = arith.mulf %13, %14 : vector<16x32xf32>
    %c0_6 = arith.constant 0 : index
    %c0_7 = arith.constant 0 : index
    %16 = vector.load %arg3[%c0_6, %c0_7] : memref<32x64xf32, #tpu.memory_space<vmem>>, vector<32x64xf32>
    %cst_8 = arith.constant dense<0.000000e+00> : vector<16x64xf32>
    %17 = tpu.matmul %15, %16, %cst_8 {dimension_numbers = #tpu.dot_dimension_numbers<[1], [0], [0], [1], [0, 0, 1, 1], [], []>} : vector<16x32xf32>, vector<32x64xf32>, vector<16x64xf32> -> vector<16x64xf32>
    %cst_9 = arith.constant dense<0xFF800000> : vector<16xf32>
    %18 = vector.multi_reduction <maximumf>, %17, %cst_9 [1] : vector<16x64xf32> to vector<16xf32>
    %19 = vector.shape_cast %18 : vector<16xf32> to vector<16x1xf32>
    %20 = vector.broadcast %19 : vector<16x1xf32> to vector<16x64xf32>
    %21 = arith.subf %17, %20 : vector<16x64xf32>
    %22 = math.exp %21 : vector<16x64xf32>
    %cst_10 = arith.constant dense<0.000000e+00> : vector<16xf32>
    %23 = vector.multi_reduction <add>, %22, %cst_10 [1] : vector<16x64xf32> to vector<16xf32>
    %24 = vector.shape_cast %23 : vector<16xf32> to vector<16x1xf32>
    %25 = math.log %24 : vector<16x1xf32>
    %26 = vector.broadcast %25 : vector<16x1xf32> to vector<16x64xf32>
    %27 = arith.subf %21, %26 : vector<16x64xf32>
    %c0_11 = arith.constant 0 : index
    %c0_12 = arith.constant 0 : index
    %28 = vector.load %arg4[%c0_11, %c0_12] : memref<16x1xi32, #tpu.memory_space<vmem>>, vector<16x1xi32>
    %29 = tpu.iota {dimensions = array<i32: 1>} : vector<16x64xi32>
    %30 = vector.broadcast %28 : vector<16x1xi32> to vector<16x64xi32>
    %31 = arith.cmpi eq, %29, %30 : vector<16x64xi32>
    %32 = arith.extui %31 : vector<16x64xi1> to vector<16x64xi32>
    %33 = arith.sitofp %32 : vector<16x64xi32> to vector<16x64xf32>
    %c-100_i32 = arith.constant -100 : i32
    %34 = vector.broadcast %c-100_i32 : i32 to vector<16x1xi32>
    %35 = arith.cmpi ne, %28, %34 : vector<16x1xi32>
    %36 = arith.extui %35 : vector<16x1xi1> to vector<16x1xi32>
    %37 = arith.sitofp %36 : vector<16x1xi32> to vector<16x1xf32>
    %38 = arith.mulf %27, %33 : vector<16x64xf32>
    %cst_13 = arith.constant dense<0.000000e+00> : vector<16xf32>
    %39 = vector.multi_reduction <add>, %38, %cst_13 [1] : vector<16x64xf32> to vector<16xf32>
    %40 = vector.shape_cast %39 : vector<16xf32> to vector<16x1xf32>
    %cst_14 = arith.constant 0.000000e+00 : f32
    %41 = vector.broadcast %cst_14 : f32 to vector<16x1xf32>
    %42 = arith.subf %41, %40 : vector<16x1xf32>
    %43 = arith.mulf %42, %37 : vector<16x1xf32>
    %c0_15 = arith.constant 0 : index
    %c0_16 = arith.constant 0 : index
    %44 = vector.load %arg5[%c0_15, %c0_16] : memref<16x1xf32, #tpu.memory_space<vmem>>, vector<16x1xf32>
    tpu.vector_store %arg5[%c0_15, %c0_16], %43 {strides = array<i32>} : memref<16x1xf32, #tpu.memory_space<vmem>>, vector<16x1xf32>,
    %45 = vector.broadcast %19 : vector<16x1xf32> to vector<16x64xf32>
    %46 = arith.cmpf oge, %17, %45 : vector<16x64xf32>
    %c64_i32 = arith.constant 64 : i32
    %47 = vector.broadcast %c64_i32 : i32 to vector<16x64xi32>
    %48 = arith.select %46, %29, %47 : vector<16x64xi1>, vector<16x64xi32>
    %cst_17 = arith.constant dense<2147483647> : vector<16xi32>
    %49 = vector.multi_reduction <minsi>, %48, %cst_17 [1] : vector<16x64xi32> to vector<16xi32>
    %50 = vector.shape_cast %49 : vector<16xi32> to vector<16x1xi32>
    %c0_18 = arith.constant 0 : index
    %c0_19 = arith.constant 0 : index
    %51 = vector.load %arg6[%c0_18, %c0_19] : memref<16x1xi32, #tpu.memory_space<vmem>>, vector<16x1xi32>
    tpu.vector_store %arg6[%c0_18, %c0_19], %50 {strides = array<i32>} : memref<16x1xi32, #tpu.memory_space<vmem>>, vector<16x1xi32>,
    return
  }
  func.func @transform_0(%arg0: i32) -> (i32, i32) {
    %c0_i32 = arith.constant 0 : i32
    %c0_i32_0 = arith.constant 0 : i32
    %c0_i32_1 = arith.constant 0 : i32
    return %c0_i32, %c0_i32_0 : i32, i32
  }
  func.func @transform_1(%arg0: i32) -> (i32, i32) {
    %c0_i32 = arith.constant 0 : i32
    %c0_i32_0 = arith.constant 0 : i32
    %c0_i32_1 = arith.constant 0 : i32
    return %c0_i32, %c0_i32_0 : i32, i32
  }
  func.func @transform_2(%arg0: i32) -> (i32, i32) {
    %c0_i32 = arith.constant 0 : i32
    %c0_i32_0 = arith.constant 0 : i32
    %c0_i32_1 = arith.constant 0 : i32
    return %c0_i32, %c0_i32_0 : i32, i32
  }
  func.func @transform_3(%arg0: i32) -> (i32, i32) {
    %c0_i32 = arith.constant 0 : i32
    %c0_i32_0 = arith.constant 0 : i32
    %c0_i32_1 = arith.constant 0 : i32
    return %c0_i32, %c0_i32_0 : i32, i32
  }
  func.func @transform_4(%arg0: i32) -> (i32, i32) {
    %c0_i32 = arith.constant 0 : i32
    %c0_i32_0 = arith.constant 0 : i32
    %c0_i32_1 = arith.constant 0 : i32
    return %c0_i32, %c0_i32_0 : i32, i32
  }
  func.func @transform_5(%arg0: i32) -> (i32, i32) {
    %c0_i32 = arith.constant 0 : i32
    %c0_i32_0 = arith.constant 0 : i32
    %c0_i32_1 = arith.constant 0 : i32
    return %c0_i32, %c0_i32_0 : i32, i32
  }
}

module attributes {stable_mosaic.version = 11 : i64} {
  func.func @_enc_layer_kernel(%arg0: i32, %arg1: memref<16x32xf32, #tpu.memory_space<vmem>>, %arg2: memref<2x8xf32, #tpu.memory_space<vmem>>, %arg3: memref<4x8x8xf32, #tpu.memory_space<vmem>>, %arg4: memref<1x32xf32, #tpu.memory_space<vmem>>, %arg5: memref<32x96xf32, #tpu.memory_space<vmem>>, %arg6: memref<32x32xf32, #tpu.memory_space<vmem>>, %arg7: memref<1x32xf32, #tpu.memory_space<vmem>>, %arg8: memref<32x64xf32, #tpu.memory_space<vmem>>, %arg9: memref<64x32xf32, #tpu.memory_space<vmem>>, %arg10: memref<1x32xf32, #tpu.memory_space<vmem>>, %arg11: memref<16x32xf32, #tpu.memory_space<vmem>>) attributes {dimension_semantics = [#tpu.dimension_semantics<arbitrary>], iteration_bounds = array<i64: 1>, scalar_prefetch = 0 : i64, scratch_operands = 0 : i64, tpu.core_type = #tpu.core_type<tc>, window_params = [{pipeline_mode = #tpu.pipeline_mode<synchronous>, transform_indices = @transform_0, window_bounds = array<i64: 16, 32>}, {pipeline_mode = #tpu.pipeline_mode<synchronous>, transform_indices = @transform_1, window_bounds = array<i64: 2, 8>}, {pipeline_mode = #tpu.pipeline_mode<synchronous>, transform_indices = @transform_2, window_bounds = array<i64: 4, 8, 8>}, {pipeline_mode = #tpu.pipeline_mode<synchronous>, transform_indices = @transform_3, window_bounds = array<i64: 1, 32>}, {pipeline_mode = #tpu.pipeline_mode<synchronous>, transform_indices = @transform_4, window_bounds = array<i64: 32, 96>}, {pipeline_mode = #tpu.pipeline_mode<synchronous>, transform_indices = @transform_5, window_bounds = array<i64: 32, 32>}, {pipeline_mode = #tpu.pipeline_mode<synchronous>, transform_indices = @transform_6, window_bounds = array<i64: 1, 32>}, {pipeline_mode = #tpu.pipeline_mode<synchronous>, transform_indices = @transform_7, window_bounds = array<i64: 32, 64>}, {pipeline_mode = #tpu.pipeline_mode<synchronous>, transform_indices = @transform_8, window_bounds = array<i64: 64, 32>}, {pipeline_mode = #tpu.pipeline_mode<synchronous>, transform_indices = @transform_9, window_bounds = array<i64: 1, 32>}, {pipeline_mode = #tpu.pipeline_mode<synchronous>, transform_indices = @transform_10, window_bounds = array<i64: 16, 32>}]} {
    %c0 = arith.constant 0 : index
    %c0_0 = arith.constant 0 : index
    %0 = vector.load %arg1[%c0, %c0_0] : memref<16x32xf32, #tpu.memory_space<vmem>>, vector<16x32xf32>
    %c0_1 = arith.constant 0 : index
    %c0_2 = arith.constant 0 : index
    %c0_3 = arith.constant 0 : index
    %1 = vector.load %arg3[%c0_1, %c0_2, %c0_3] : memref<4x8x8xf32, #tpu.memory_space<vmem>>, vector<4x8x8xf32>
    %c0_4 = arith.constant 0 : index
    %c0_5 = arith.constant 0 : index
    %2 = vector.load %arg2[%c0_4, %c0_5] : memref<2x8xf32, #tpu.memory_space<vmem>>, vector<2x8xf32>
    %cst = arith.constant 1.000000e+00 : f32
    %3 = vector.broadcast %cst : f32 to vector<2x8xf32>
    %4 = arith.subf %3, %2 : vector<2x8xf32>
    %cst_6 = arith.constant -1.000000e+09 : f32
    %5 = vector.broadcast %cst_6 : f32 to vector<2x8xf32>
    %6 = arith.mulf %4, %5 : vector<2x8xf32>
    %c0_7 = arith.constant 0 : index
    %c0_8 = arith.constant 0 : index
    %7 = vector.load %arg4[%c0_7, %c0_8] : memref<1x32xf32, #tpu.memory_space<vmem>>, vector<1x32xf32>
    %8 = arith.mulf %0, %0 : vector<16x32xf32>
    %cst_9 = arith.constant dense<0.000000e+00> : vector<16xf32>
    %9 = vector.multi_reduction <add>, %8, %cst_9 [1] : vector<16x32xf32> to vector<16xf32>
    %10 = vector.shape_cast %9 : vector<16xf32> to vector<16x1xf32>
    %cst_10 = arith.constant 3.200000e+01 : f32
    %11 = vector.broadcast %cst_10 : f32 to vector<16x1xf32>
    %12 = arith.divf %10, %11 : vector<16x1xf32>
    %cst_11 = arith.constant 9.99999997E-7 : f32
    %13 = vector.broadcast %cst_11 : f32 to vector<16x1xf32>
    %14 = arith.addf %12, %13 : vector<16x1xf32>
    %15 = math.rsqrt %14 : vector<16x1xf32>
    %16 = vector.broadcast %15 : vector<16x1xf32> to vector<16x32xf32>
    %17 = arith.mulf %0, %16 : vector<16x32xf32>
    %18 = vector.broadcast %7 : vector<1x32xf32> to vector<16x32xf32>
    %19 = arith.mulf %17, %18 : vector<16x32xf32>
    %c0_12 = arith.constant 0 : index
    %c0_13 = arith.constant 0 : index
    %20 = vector.load %arg5[%c0_12, %c0_13] : memref<32x96xf32, #tpu.memory_space<vmem>>, vector<32x96xf32>
    %cst_14 = arith.constant dense<0.000000e+00> : vector<16x96xf32>
    %21 = tpu.matmul %19, %20, %cst_14 {dimension_numbers = #tpu.dot_dimension_numbers<[1], [0], [0], [1], [0, 0, 1, 1], [], []>} : vector<16x32xf32>, vector<32x96xf32>, vector<16x96xf32> -> vector<16x96xf32>
    %22 = vector.extract_strided_slice %21 {offsets = [0, 0], sizes = [16, 32], strides = [1, 1]} : vector<16x96xf32> to vector<16x32xf32>
    %23 = vector.extract_strided_slice %21 {offsets = [0, 32], sizes = [16, 32], strides = [1, 1]} : vector<16x96xf32> to vector<16x32xf32>
    %24 = vector.extract_strided_slice %21 {offsets = [0, 64], sizes = [16, 32], strides = [1, 1]} : vector<16x96xf32> to vector<16x32xf32>
    %25 = vector.extract_strided_slice %22 {offsets = [0, 0], sizes = [8, 8], strides = [1, 1]} : vector<16x32xf32> to vector<8x8xf32>
    %26 = vector.extract_strided_slice %23 {offsets = [0, 0], sizes = [8, 8], strides = [1, 1]} : vector<16x32xf32> to vector<8x8xf32>
    %27 = vector.extract_strided_slice %24 {offsets = [0, 0], sizes = [8, 8], strides = [1, 1]} : vector<16x32xf32> to vector<8x8xf32>
    %28 = tpu.transpose %26, [1, 0] : vector<8x8xf32> -> vector<8x8xf32>
    %cst_15 = arith.constant dense<0.000000e+00> : vector<8x8xf32>
    %29 = tpu.matmul %25, %28, %cst_15 {dimension_numbers = #tpu.dot_dimension_numbers<[1], [0], [0], [1], [0, 0, 1, 1], [], []>} : vector<8x8xf32>, vector<8x8xf32>, vector<8x8xf32> -> vector<8x8xf32>
    %30 = vector.extract_strided_slice %1 {offsets = [0, 0, 0], sizes = [1, 8, 8], strides = [1, 1, 1]} : vector<4x8x8xf32> to vector<1x8x8xf32>
    %31 = vector.shape_cast %30 : vector<1x8x8xf32> to vector<8x8xf32>
    %32 = arith.addf %29, %31 : vector<8x8xf32>
    %33 = vector.extract_strided_slice %6 {offsets = [0, 0], sizes = [1, 8], strides = [1, 1]} : vector<2x8xf32> to vector<1x8xf32>
    %34 = vector.shape_cast %33 : vector<1x8xf32> to vector<8xf32>
    %35 = vector.shape_cast %34 : vector<8xf32> to vector<1x8xf32>
    %36 = vector.broadcast %35 : vector<1x8xf32> to vector<8x8xf32>
    %37 = arith.addf %32, %36 : vector<8x8xf32>
    %cst_16 = arith.constant dense<0xFF800000> : vector<8xf32>
    %38 = vector.multi_reduction <maximumf>, %37, %cst_16 [1] : vector<8x8xf32> to vector<8xf32>
    %39 = vector.shape_cast %38 : vector<8xf32> to vector<8x1xf32>
    %40 = vector.broadcast %39 : vector<8x1xf32> to vector<8x8xf32>
    %41 = arith.subf %37, %40 : vector<8x8xf32>
    %42 = math.exp %41 : vector<8x8xf32>
    %cst_17 = arith.constant dense<0.000000e+00> : vector<8xf32>
    %43 = vector.multi_reduction <add>, %42, %cst_17 [1] : vector<8x8xf32> to vector<8xf32>
    %44 = vector.shape_cast %43 : vector<8xf32> to vector<8x1xf32>
    %45 = vector.broadcast %44 : vector<8x1xf32> to vector<8x8xf32>
    %46 = arith.divf %42, %45 : vector<8x8xf32>
    %cst_18 = arith.constant dense<0.000000e+00> : vector<8x8xf32>
    %47 = tpu.matmul %46, %27, %cst_18 {dimension_numbers = #tpu.dot_dimension_numbers<[1], [0], [0], [1], [0, 0, 1, 1], [], []>} : vector<8x8xf32>, vector<8x8xf32>, vector<8x8xf32> -> vector<8x8xf32>
    %48 = vector.extract_strided_slice %22 {offsets = [0, 8], sizes = [8, 8], strides = [1, 1]} : vector<16x32xf32> to vector<8x8xf32>
    %49 = vector.extract_strided_slice %23 {offsets = [0, 8], sizes = [8, 8], strides = [1, 1]} : vector<16x32xf32> to vector<8x8xf32>
    %50 = vector.extract_strided_slice %24 {offsets = [0, 8], sizes = [8, 8], strides = [1, 1]} : vector<16x32xf32> to vector<8x8xf32>
    %51 = tpu.transpose %49, [1, 0] : vector<8x8xf32> -> vector<8x8xf32>
    %cst_19 = arith.constant dense<0.000000e+00> : vector<8x8xf32>
    %52 = tpu.matmul %48, %51, %cst_19 {dimension_numbers = #tpu.dot_dimension_numbers<[1], [0], [0], [1], [0, 0, 1, 1], [], []>} : vector<8x8xf32>, vector<8x8xf32>, vector<8x8xf32> -> vector<8x8xf32>
    %53 = vector.extract_strided_slice %1 {offsets = [1, 0, 0], sizes = [1, 8, 8], strides = [1, 1, 1]} : vector<4x8x8xf32> to vector<1x8x8xf32>
    %54 = vector.shape_cast %53 : vector<1x8x8xf32> to vector<8x8xf32>
    %55 = arith.addf %52, %54 : vector<8x8xf32>
    %56 = vector.extract_strided_slice %6 {offsets = [0, 0], sizes = [1, 8], strides = [1, 1]} : vector<2x8xf32> to vector<1x8xf32>
    %57 = vector.shape_cast %56 : vector<1x8xf32> to vector<8xf32>
    %58 = vector.shape_cast %57 : vector<8xf32> to vector<1x8xf32>
    %59 = vector.broadcast %58 : vector<1x8xf32> to vector<8x8xf32>
    %60 = arith.addf %55, %59 : vector<8x8xf32>
    %cst_20 = arith.constant dense<0xFF800000> : vector<8xf32>
    %61 = vector.multi_reduction <maximumf>, %60, %cst_20 [1] : vector<8x8xf32> to vector<8xf32>
    %62 = vector.shape_cast %61 : vector<8xf32> to vector<8x1xf32>
    %63 = vector.broadcast %62 : vector<8x1xf32> to vector<8x8xf32>
    %64 = arith.subf %60, %63 : vector<8x8xf32>
    %65 = math.exp %64 : vector<8x8xf32>
    %cst_21 = arith.constant dense<0.000000e+00> : vector<8xf32>
    %66 = vector.multi_reduction <add>, %65, %cst_21 [1] : vector<8x8xf32> to vector<8xf32>
    %67 = vector.shape_cast %66 : vector<8xf32> to vector<8x1xf32>
    %68 = vector.broadcast %67 : vector<8x1xf32> to vector<8x8xf32>
    %69 = arith.divf %65, %68 : vector<8x8xf32>
    %cst_22 = arith.constant dense<0.000000e+00> : vector<8x8xf32>
    %70 = tpu.matmul %69, %50, %cst_22 {dimension_numbers = #tpu.dot_dimension_numbers<[1], [0], [0], [1], [0, 0, 1, 1], [], []>} : vector<8x8xf32>, vector<8x8xf32>, vector<8x8xf32> -> vector<8x8xf32>
    %71 = vector.extract_strided_slice %22 {offsets = [0, 16], sizes = [8, 8], strides = [1, 1]} : vector<16x32xf32> to vector<8x8xf32>
    %72 = vector.extract_strided_slice %23 {offsets = [0, 16], sizes = [8, 8], strides = [1, 1]} : vector<16x32xf32> to vector<8x8xf32>
    %73 = vector.extract_strided_slice %24 {offsets = [0, 16], sizes = [8, 8], strides = [1, 1]} : vector<16x32xf32> to vector<8x8xf32>
    %74 = tpu.transpose %72, [1, 0] : vector<8x8xf32> -> vector<8x8xf32>
    %cst_23 = arith.constant dense<0.000000e+00> : vector<8x8xf32>
    %75 = tpu.matmul %71, %74, %cst_23 {dimension_numbers = #tpu.dot_dimension_numbers<[1], [0], [0], [1], [0, 0, 1, 1], [], []>} : vector<8x8xf32>, vector<8x8xf32>, vector<8x8xf32> -> vector<8x8xf32>
    %76 = vector.extract_strided_slice %1 {offsets = [2, 0, 0], sizes = [1, 8, 8], strides = [1, 1, 1]} : vector<4x8x8xf32> to vector<1x8x8xf32>
    %77 = vector.shape_cast %76 : vector<1x8x8xf32> to vector<8x8xf32>
    %78 = arith.addf %75, %77 : vector<8x8xf32>
    %79 = vector.extract_strided_slice %6 {offsets = [0, 0], sizes = [1, 8], strides = [1, 1]} : vector<2x8xf32> to vector<1x8xf32>
    %80 = vector.shape_cast %79 : vector<1x8xf32> to vector<8xf32>
    %81 = vector.shape_cast %80 : vector<8xf32> to vector<1x8xf32>
    %82 = vector.broadcast %81 : vector<1x8xf32> to vector<8x8xf32>
    %83 = arith.addf %78, %82 : vector<8x8xf32>
    %cst_24 = arith.constant dense<0xFF800000> : vector<8xf32>
    %84 = vector.multi_reduction <maximumf>, %83, %cst_24 [1] : vector<8x8xf32> to vector<8xf32>
    %85 = vector.shape_cast %84 : vector<8xf32> to vector<8x1xf32>
    %86 = vector.broadcast %85 : vector<8x1xf32> to vector<8x8xf32>
    %87 = arith.subf %83, %86 : vector<8x8xf32>
    %88 = math.exp %87 : vector<8x8xf32>
    %cst_25 = arith.constant dense<0.000000e+00> : vector<8xf32>
    %89 = vector.multi_reduction <add>, %88, %cst_25 [1] : vector<8x8xf32> to vector<8xf32>
    %90 = vector.shape_cast %89 : vector<8xf32> to vector<8x1xf32>
    %91 = vector.broadcast %90 : vector<8x1xf32> to vector<8x8xf32>
    %92 = arith.divf %88, %91 : vector<8x8xf32>
    %cst_26 = arith.constant dense<0.000000e+00> : vector<8x8xf32>
    %93 = tpu.matmul %92, %73, %cst_26 {dimension_numbers = #tpu.dot_dimension_numbers<[1], [0], [0], [1], [0, 0, 1, 1], [], []>} : vector<8x8xf32>, vector<8x8xf32>, vector<8x8xf32> -> vector<8x8xf32>
    %94 = vector.extract_strided_slice %22 {offsets = [0, 24], sizes = [8, 8], strides = [1, 1]} : vector<16x32xf32> to vector<8x8xf32>
    %95 = vector.extract_strided_slice %23 {offsets = [0, 24], sizes = [8, 8], strides = [1, 1]} : vector<16x32xf32> to vector<8x8xf32>
    %96 = vector.extract_strided_slice %24 {offsets = [0, 24], sizes = [8, 8], strides = [1, 1]} : vector<16x32xf32> to vector<8x8xf32>
    %97 = tpu.transpose %95, [1, 0] : vector<8x8xf32> -> vector<8x8xf32>
    %cst_27 = arith.constant dense<0.000000e+00> : vector<8x8xf32>
    %98 = tpu.matmul %94, %97, %cst_27 {dimension_numbers = #tpu.dot_dimension_numbers<[1], [0], [0], [1], [0, 0, 1, 1], [], []>} : vector<8x8xf32>, vector<8x8xf32>, vector<8x8xf32> -> vector<8x8xf32>
    %99 = vector.extract_strided_slice %1 {offsets = [3, 0, 0], sizes = [1, 8, 8], strides = [1, 1, 1]} : vector<4x8x8xf32> to vector<1x8x8xf32>
    %100 = vector.shape_cast %99 : vector<1x8x8xf32> to vector<8x8xf32>
    %101 = arith.addf %98, %100 : vector<8x8xf32>
    %102 = vector.extract_strided_slice %6 {offsets = [0, 0], sizes = [1, 8], strides = [1, 1]} : vector<2x8xf32> to vector<1x8xf32>
    %103 = vector.shape_cast %102 : vector<1x8xf32> to vector<8xf32>
    %104 = vector.shape_cast %103 : vector<8xf32> to vector<1x8xf32>
    %105 = vector.broadcast %104 : vector<1x8xf32> to vector<8x8xf32>
    %106 = arith.addf %101, %105 : vector<8x8xf32>
    %cst_28 = arith.constant dense<0xFF800000> : vector<8xf32>
    %107 = vector.multi_reduction <maximumf>, %106, %cst_28 [1] : vector<8x8xf32> to vector<8xf32>
    %108 = vector.shape_cast %107 : vector<8xf32> to vector<8x1xf32>
    %109 = vector.broadcast %108 : vector<8x1xf32> to vector<8x8xf32>
    %110 = arith.subf %106, %109 : vector<8x8xf32>
    %111 = math.exp %110 : vector<8x8xf32>
    %cst_29 = arith.constant dense<0.000000e+00> : vector<8xf32>
    %112 = vector.multi_reduction <add>, %111, %cst_29 [1] : vector<8x8xf32> to vector<8xf32>
    %113 = vector.shape_cast %112 : vector<8xf32> to vector<8x1xf32>
    %114 = vector.broadcast %113 : vector<8x1xf32> to vector<8x8xf32>
    %115 = arith.divf %111, %114 : vector<8x8xf32>
    %cst_30 = arith.constant dense<0.000000e+00> : vector<8x8xf32>
    %116 = tpu.matmul %115, %96, %cst_30 {dimension_numbers = #tpu.dot_dimension_numbers<[1], [0], [0], [1], [0, 0, 1, 1], [], []>} : vector<8x8xf32>, vector<8x8xf32>, vector<8x8xf32> -> vector<8x8xf32>
    %117 = tpu.concatenate %47, %70, %93, %116 in 1 : vector<8x8xf32>, vector<8x8xf32>, vector<8x8xf32>, vector<8x8xf32> -> vector<8x32xf32>
    %118 = vector.extract_strided_slice %22 {offsets = [8, 0], sizes = [8, 8], strides = [1, 1]} : vector<16x32xf32> to vector<8x8xf32>
    %119 = vector.extract_strided_slice %23 {offsets = [8, 0], sizes = [8, 8], strides = [1, 1]} : vector<16x32xf32> to vector<8x8xf32>
    %120 = vector.extract_strided_slice %24 {offsets = [8, 0], sizes = [8, 8], strides = [1, 1]} : vector<16x32xf32> to vector<8x8xf32>
    %121 = tpu.transpose %119, [1, 0] : vector<8x8xf32> -> vector<8x8xf32>
    %cst_31 = arith.constant dense<0.000000e+00> : vector<8x8xf32>
    %122 = tpu.matmul %118, %121, %cst_31 {dimension_numbers = #tpu.dot_dimension_numbers<[1], [0], [0], [1], [0, 0, 1, 1], [], []>} : vector<8x8xf32>, vector<8x8xf32>, vector<8x8xf32> -> vector<8x8xf32>
    %123 = vector.extract_strided_slice %1 {offsets = [0, 0, 0], sizes = [1, 8, 8], strides = [1, 1, 1]} : vector<4x8x8xf32> to vector<1x8x8xf32>
    %124 = vector.shape_cast %123 : vector<1x8x8xf32> to vector<8x8xf32>
    %125 = arith.addf %122, %124 : vector<8x8xf32>
    %126 = vector.extract_strided_slice %6 {offsets = [1, 0], sizes = [1, 8], strides = [1, 1]} : vector<2x8xf32> to vector<1x8xf32>
    %127 = vector.shape_cast %126 : vector<1x8xf32> to vector<8xf32>
    %128 = vector.shape_cast %127 : vector<8xf32> to vector<1x8xf32>
    %129 = vector.broadcast %128 : vector<1x8xf32> to vector<8x8xf32>
    %130 = arith.addf %125, %129 : vector<8x8xf32>
    %cst_32 = arith.constant dense<0xFF800000> : vector<8xf32>
    %131 = vector.multi_reduction <maximumf>, %130, %cst_32 [1] : vector<8x8xf32> to vector<8xf32>
    %132 = vector.shape_cast %131 : vector<8xf32> to vector<8x1xf32>
    %133 = vector.broadcast %132 : vector<8x1xf32> to vector<8x8xf32>
    %134 = arith.subf %130, %133 : vector<8x8xf32>
    %135 = math.exp %134 : vector<8x8xf32>
    %cst_33 = arith.constant dense<0.000000e+00> : vector<8xf32>
    %136 = vector.multi_reduction <add>, %135, %cst_33 [1] : vector<8x8xf32> to vector<8xf32>
    %137 = vector.shape_cast %136 : vector<8xf32> to vector<8x1xf32>
    %138 = vector.broadcast %137 : vector<8x1xf32> to vector<8x8xf32>
    %139 = arith.divf %135, %138 : vector<8x8xf32>
    %cst_34 = arith.constant dense<0.000000e+00> : vector<8x8xf32>
    %140 = tpu.matmul %139, %120, %cst_34 {dimension_numbers = #tpu.dot_dimension_numbers<[1], [0], [0], [1], [0, 0, 1, 1], [], []>} : vector<8x8xf32>, vector<8x8xf32>, vector<8x8xf32> -> vector<8x8xf32>
    %141 = vector.extract_strided_slice %22 {offsets = [8, 8], sizes = [8, 8], strides = [1, 1]} : vector<16x32xf32> to vector<8x8xf32>
    %142 = vector.extract_strided_slice %23 {offsets = [8, 8], sizes = [8, 8], strides = [1, 1]} : vector<16x32xf32> to vector<8x8xf32>
    %143 = vector.extract_strided_slice %24 {offsets = [8, 8], sizes = [8, 8], strides = [1, 1]} : vector<16x32xf32> to vector<8x8xf32>
    %144 = tpu.transpose %142, [1, 0] : vector<8x8xf32> -> vector<8x8xf32>
    %cst_35 = arith.constant dense<0.000000e+00> : vector<8x8xf32>
    %145 = tpu.matmul %141, %144, %cst_35 {dimension_numbers = #tpu.dot_dimension_numbers<[1], [0], [0], [1], [0, 0, 1, 1], [], []>} : vector<8x8xf32>, vector<8x8xf32>, vector<8x8xf32> -> vector<8x8xf32>
    %146 = vector.extract_strided_slice %1 {offsets = [1, 0, 0], sizes = [1, 8, 8], strides = [1, 1, 1]} : vector<4x8x8xf32> to vector<1x8x8xf32>
    %147 = vector.shape_cast %146 : vector<1x8x8xf32> to vector<8x8xf32>
    %148 = arith.addf %145, %147 : vector<8x8xf32>
    %149 = vector.extract_strided_slice %6 {offsets = [1, 0], sizes = [1, 8], strides = [1, 1]} : vector<2x8xf32> to vector<1x8xf32>
    %150 = vector.shape_cast %149 : vector<1x8xf32> to vector<8xf32>
    %151 = vector.shape_cast %150 : vector<8xf32> to vector<1x8xf32>
    %152 = vector.broadcast %151 : vector<1x8xf32> to vector<8x8xf32>
    %153 = arith.addf %148, %152 : vector<8x8xf32>
    %cst_36 = arith.constant dense<0xFF800000> : vector<8xf32>
    %154 = vector.multi_reduction <maximumf>, %153, %cst_36 [1] : vector<8x8xf32> to vector<8xf32>
    %155 = vector.shape_cast %154 : vector<8xf32> to vector<8x1xf32>
    %156 = vector.broadcast %155 : vector<8x1xf32> to vector<8x8xf32>
    %157 = arith.subf %153, %156 : vector<8x8xf32>
    %158 = math.exp %157 : vector<8x8xf32>
    %cst_37 = arith.constant dense<0.000000e+00> : vector<8xf32>
    %159 = vector.multi_reduction <add>, %158, %cst_37 [1] : vector<8x8xf32> to vector<8xf32>
    %160 = vector.shape_cast %159 : vector<8xf32> to vector<8x1xf32>
    %161 = vector.broadcast %160 : vector<8x1xf32> to vector<8x8xf32>
    %162 = arith.divf %158, %161 : vector<8x8xf32>
    %cst_38 = arith.constant dense<0.000000e+00> : vector<8x8xf32>
    %163 = tpu.matmul %162, %143, %cst_38 {dimension_numbers = #tpu.dot_dimension_numbers<[1], [0], [0], [1], [0, 0, 1, 1], [], []>} : vector<8x8xf32>, vector<8x8xf32>, vector<8x8xf32> -> vector<8x8xf32>
    %164 = vector.extract_strided_slice %22 {offsets = [8, 16], sizes = [8, 8], strides = [1, 1]} : vector<16x32xf32> to vector<8x8xf32>
    %165 = vector.extract_strided_slice %23 {offsets = [8, 16], sizes = [8, 8], strides = [1, 1]} : vector<16x32xf32> to vector<8x8xf32>
    %166 = vector.extract_strided_slice %24 {offsets = [8, 16], sizes = [8, 8], strides = [1, 1]} : vector<16x32xf32> to vector<8x8xf32>
    %167 = tpu.transpose %165, [1, 0] : vector<8x8xf32> -> vector<8x8xf32>
    %cst_39 = arith.constant dense<0.000000e+00> : vector<8x8xf32>
    %168 = tpu.matmul %164, %167, %cst_39 {dimension_numbers = #tpu.dot_dimension_numbers<[1], [0], [0], [1], [0, 0, 1, 1], [], []>} : vector<8x8xf32>, vector<8x8xf32>, vector<8x8xf32> -> vector<8x8xf32>
    %169 = vector.extract_strided_slice %1 {offsets = [2, 0, 0], sizes = [1, 8, 8], strides = [1, 1, 1]} : vector<4x8x8xf32> to vector<1x8x8xf32>
    %170 = vector.shape_cast %169 : vector<1x8x8xf32> to vector<8x8xf32>
    %171 = arith.addf %168, %170 : vector<8x8xf32>
    %172 = vector.extract_strided_slice %6 {offsets = [1, 0], sizes = [1, 8], strides = [1, 1]} : vector<2x8xf32> to vector<1x8xf32>
    %173 = vector.shape_cast %172 : vector<1x8xf32> to vector<8xf32>
    %174 = vector.shape_cast %173 : vector<8xf32> to vector<1x8xf32>
    %175 = vector.broadcast %174 : vector<1x8xf32> to vector<8x8xf32>
    %176 = arith.addf %171, %175 : vector<8x8xf32>
    %cst_40 = arith.constant dense<0xFF800000> : vector<8xf32>
    %177 = vector.multi_reduction <maximumf>, %176, %cst_40 [1] : vector<8x8xf32> to vector<8xf32>
    %178 = vector.shape_cast %177 : vector<8xf32> to vector<8x1xf32>
    %179 = vector.broadcast %178 : vector<8x1xf32> to vector<8x8xf32>
    %180 = arith.subf %176, %179 : vector<8x8xf32>
    %181 = math.exp %180 : vector<8x8xf32>
    %cst_41 = arith.constant dense<0.000000e+00> : vector<8xf32>
    %182 = vector.multi_reduction <add>, %181, %cst_41 [1] : vector<8x8xf32> to vector<8xf32>
    %183 = vector.shape_cast %182 : vector<8xf32> to vector<8x1xf32>
    %184 = vector.broadcast %183 : vector<8x1xf32> to vector<8x8xf32>
    %185 = arith.divf %181, %184 : vector<8x8xf32>
    %cst_42 = arith.constant dense<0.000000e+00> : vector<8x8xf32>
    %186 = tpu.matmul %185, %166, %cst_42 {dimension_numbers = #tpu.dot_dimension_numbers<[1], [0], [0], [1], [0, 0, 1, 1], [], []>} : vector<8x8xf32>, vector<8x8xf32>, vector<8x8xf32> -> vector<8x8xf32>
    %187 = vector.extract_strided_slice %22 {offsets = [8, 24], sizes = [8, 8], strides = [1, 1]} : vector<16x32xf32> to vector<8x8xf32>
    %188 = vector.extract_strided_slice %23 {offsets = [8, 24], sizes = [8, 8], strides = [1, 1]} : vector<16x32xf32> to vector<8x8xf32>
    %189 = vector.extract_strided_slice %24 {offsets = [8, 24], sizes = [8, 8], strides = [1, 1]} : vector<16x32xf32> to vector<8x8xf32>
    %190 = tpu.transpose %188, [1, 0] : vector<8x8xf32> -> vector<8x8xf32>
    %cst_43 = arith.constant dense<0.000000e+00> : vector<8x8xf32>
    %191 = tpu.matmul %187, %190, %cst_43 {dimension_numbers = #tpu.dot_dimension_numbers<[1], [0], [0], [1], [0, 0, 1, 1], [], []>} : vector<8x8xf32>, vector<8x8xf32>, vector<8x8xf32> -> vector<8x8xf32>
    %192 = vector.extract_strided_slice %1 {offsets = [3, 0, 0], sizes = [1, 8, 8], strides = [1, 1, 1]} : vector<4x8x8xf32> to vector<1x8x8xf32>
    %193 = vector.shape_cast %192 : vector<1x8x8xf32> to vector<8x8xf32>
    %194 = arith.addf %191, %193 : vector<8x8xf32>
    %195 = vector.extract_strided_slice %6 {offsets = [1, 0], sizes = [1, 8], strides = [1, 1]} : vector<2x8xf32> to vector<1x8xf32>
    %196 = vector.shape_cast %195 : vector<1x8xf32> to vector<8xf32>
    %197 = vector.shape_cast %196 : vector<8xf32> to vector<1x8xf32>
    %198 = vector.broadcast %197 : vector<1x8xf32> to vector<8x8xf32>
    %199 = arith.addf %194, %198 : vector<8x8xf32>
    %cst_44 = arith.constant dense<0xFF800000> : vector<8xf32>
    %200 = vector.multi_reduction <maximumf>, %199, %cst_44 [1] : vector<8x8xf32> to vector<8xf32>
    %201 = vector.shape_cast %200 : vector<8xf32> to vector<8x1xf32>
    %202 = vector.broadcast %201 : vector<8x1xf32> to vector<8x8xf32>
    %203 = arith.subf %199, %202 : vector<8x8xf32>
    %204 = math.exp %203 : vector<8x8xf32>
    %cst_45 = arith.constant dense<0.000000e+00> : vector<8xf32>
    %205 = vector.multi_reduction <add>, %204, %cst_45 [1] : vector<8x8xf32> to vector<8xf32>
    %206 = vector.shape_cast %205 : vector<8xf32> to vector<8x1xf32>
    %207 = vector.broadcast %206 : vector<8x1xf32> to vector<8x8xf32>
    %208 = arith.divf %204, %207 : vector<8x8xf32>
    %cst_46 = arith.constant dense<0.000000e+00> : vector<8x8xf32>
    %209 = tpu.matmul %208, %189, %cst_46 {dimension_numbers = #tpu.dot_dimension_numbers<[1], [0], [0], [1], [0, 0, 1, 1], [], []>} : vector<8x8xf32>, vector<8x8xf32>, vector<8x8xf32> -> vector<8x8xf32>
    %210 = tpu.concatenate %140, %163, %186, %209 in 1 : vector<8x8xf32>, vector<8x8xf32>, vector<8x8xf32>, vector<8x8xf32> -> vector<8x32xf32>
    %211 = tpu.concatenate %117, %210 in 0 : vector<8x32xf32>, vector<8x32xf32> -> vector<16x32xf32>
    %c0_47 = arith.constant 0 : index
    %c0_48 = arith.constant 0 : index
    %212 = vector.load %arg6[%c0_47, %c0_48] : memref<32x32xf32, #tpu.memory_space<vmem>>, vector<32x32xf32>
    %cst_49 = arith.constant dense<0.000000e+00> : vector<16x32xf32>
    %213 = tpu.matmul %211, %212, %cst_49 {dimension_numbers = #tpu.dot_dimension_numbers<[1], [0], [0], [1], [0, 0, 1, 1], [], []>} : vector<16x32xf32>, vector<32x32xf32>, vector<16x32xf32> -> vector<16x32xf32>
    %214 = arith.addf %0, %213 : vector<16x32xf32>
    %c0_50 = arith.constant 0 : index
    %c0_51 = arith.constant 0 : index
    %215 = vector.load %arg7[%c0_50, %c0_51] : memref<1x32xf32, #tpu.memory_space<vmem>>, vector<1x32xf32>
    %216 = arith.mulf %214, %214 : vector<16x32xf32>
    %cst_52 = arith.constant dense<0.000000e+00> : vector<16xf32>
    %217 = vector.multi_reduction <add>, %216, %cst_52 [1] : vector<16x32xf32> to vector<16xf32>
    %218 = vector.shape_cast %217 : vector<16xf32> to vector<16x1xf32>
    %cst_53 = arith.constant 3.200000e+01 : f32
    %219 = vector.broadcast %cst_53 : f32 to vector<16x1xf32>
    %220 = arith.divf %218, %219 : vector<16x1xf32>
    %cst_54 = arith.constant 9.99999997E-7 : f32
    %221 = vector.broadcast %cst_54 : f32 to vector<16x1xf32>
    %222 = arith.addf %220, %221 : vector<16x1xf32>
    %223 = math.rsqrt %222 : vector<16x1xf32>
    %224 = vector.broadcast %223 : vector<16x1xf32> to vector<16x32xf32>
    %225 = arith.mulf %214, %224 : vector<16x32xf32>
    %226 = vector.broadcast %215 : vector<1x32xf32> to vector<16x32xf32>
    %227 = arith.mulf %225, %226 : vector<16x32xf32>
    %c0_55 = arith.constant 0 : index
    %c0_56 = arith.constant 0 : index
    %228 = vector.load %arg8[%c0_55, %c0_56] : memref<32x64xf32, #tpu.memory_space<vmem>>, vector<32x64xf32>
    %cst_57 = arith.constant dense<0.000000e+00> : vector<16x64xf32>
    %229 = tpu.matmul %227, %228, %cst_57 {dimension_numbers = #tpu.dot_dimension_numbers<[1], [0], [0], [1], [0, 0, 1, 1], [], []>} : vector<16x32xf32>, vector<32x64xf32>, vector<16x64xf32> -> vector<16x64xf32>
    %cst_58 = arith.constant 0.000000e+00 : f32
    %230 = vector.broadcast %cst_58 : f32 to vector<16x64xf32>
    %231 = arith.maximumf %229, %230 : vector<16x64xf32>
    %c0_59 = arith.constant 0 : index
    %c0_60 = arith.constant 0 : index
    %232 = vector.load %arg9[%c0_59, %c0_60] : memref<64x32xf32, #tpu.memory_space<vmem>>, vector<64x32xf32>
    %cst_61 = arith.constant dense<0.000000e+00> : vector<16x32xf32>
    %233 = tpu.matmul %231, %232, %cst_61 {dimension_numbers = #tpu.dot_dimension_numbers<[1], [0], [0], [1], [0, 0, 1, 1], [], []>} : vector<16x64xf32>, vector<64x32xf32>, vector<16x32xf32> -> vector<16x32xf32>
    %234 = arith.addf %214, %233 : vector<16x32xf32>
    %c0_62 = arith.constant 0 : index
    %c0_63 = arith.constant 0 : index
    %235 = vector.load %arg10[%c0_62, %c0_63] : memref<1x32xf32, #tpu.memory_space<vmem>>, vector<1x32xf32>
    %236 = arith.mulf %234, %234 : vector<16x32xf32>
    %cst_64 = arith.constant dense<0.000000e+00> : vector<16xf32>
    %237 = vector.multi_reduction <add>, %236, %cst_64 [1] : vector<16x32xf32> to vector<16xf32>
    %238 = vector.shape_cast %237 : vector<16xf32> to vector<16x1xf32>
    %cst_65 = arith.constant 3.200000e+01 : f32
    %239 = vector.broadcast %cst_65 : f32 to vector<16x1xf32>
    %240 = arith.divf %238, %239 : vector<16x1xf32>
    %cst_66 = arith.constant 9.99999997E-7 : f32
    %241 = vector.broadcast %cst_66 : f32 to vector<16x1xf32>
    %242 = arith.addf %240, %241 : vector<16x1xf32>
    %243 = math.rsqrt %242 : vector<16x1xf32>
    %244 = vector.broadcast %243 : vector<16x1xf32> to vector<16x32xf32>
    %245 = arith.mulf %234, %244 : vector<16x32xf32>
    %246 = vector.broadcast %235 : vector<1x32xf32> to vector<16x32xf32>
    %247 = arith.mulf %245, %246 : vector<16x32xf32>
    %c0_67 = arith.constant 0 : index
    %c0_68 = arith.constant 0 : index
    %248 = vector.load %arg11[%c0_67, %c0_68] : memref<16x32xf32, #tpu.memory_space<vmem>>, vector<16x32xf32>
    tpu.vector_store %arg11[%c0_67, %c0_68], %247 {strides = array<i32>} : memref<16x32xf32, #tpu.memory_space<vmem>>, vector<16x32xf32>,
    return
  }
  func.func @transform_0(%arg0: i32) -> (i32, i32) {
    %c0_i32 = arith.constant 0 : i32
    %c0_i32_0 = arith.constant 0 : i32
    %c0_i32_1 = arith.constant 0 : i32
    return %c0_i32, %c0_i32_0 : i32, i32
  }
  func.func @transform_1(%arg0: i32) -> (i32, i32) {
    %c0_i32 = arith.constant 0 : i32
    %c0_i32_0 = arith.constant 0 : i32
    %c0_i32_1 = arith.constant 0 : i32
    return %c0_i32, %c0_i32_0 : i32, i32
  }
  func.func @transform_2(%arg0: i32) -> (i32, i32, i32) {
    %c0_i32 = arith.constant 0 : i32
    %c0_i32_0 = arith.constant 0 : i32
    %c0_i32_1 = arith.constant 0 : i32
    %c0_i32_2 = arith.constant 0 : i32
    return %c0_i32, %c0_i32_0, %c0_i32_1 : i32, i32, i32
  }
  func.func @transform_3(%arg0: i32) -> (i32, i32) {
    %c0_i32 = arith.constant 0 : i32
    %c0_i32_0 = arith.constant 0 : i32
    %c0_i32_1 = arith.constant 0 : i32
    return %c0_i32, %c0_i32_0 : i32, i32
  }
  func.func @transform_4(%arg0: i32) -> (i32, i32) {
    %c0_i32 = arith.constant 0 : i32
    %c0_i32_0 = arith.constant 0 : i32
    %c0_i32_1 = arith.constant 0 : i32
    return %c0_i32, %c0_i32_0 : i32, i32
  }
  func.func @transform_5(%arg0: i32) -> (i32, i32) {
    %c0_i32 = arith.constant 0 : i32
    %c0_i32_0 = arith.constant 0 : i32
    %c0_i32_1 = arith.constant 0 : i32
    return %c0_i32, %c0_i32_0 : i32, i32
  }
  func.func @transform_6(%arg0: i32) -> (i32, i32) {
    %c0_i32 = arith.constant 0 : i32
    %c0_i32_0 = arith.constant 0 : i32
    %c0_i32_1 = arith.constant 0 : i32
    return %c0_i32, %c0_i32_0 : i32, i32
  }
  func.func @transform_7(%arg0: i32) -> (i32, i32) {
    %c0_i32 = arith.constant 0 : i32
    %c0_i32_0 = arith.constant 0 : i32
    %c0_i32_1 = arith.constant 0 : i32
    return %c0_i32, %c0_i32_0 : i32, i32
  }
  func.func @transform_8(%arg0: i32) -> (i32, i32) {
    %c0_i32 = arith.constant 0 : i32
    %c0_i32_0 = arith.constant 0 : i32
    %c0_i32_1 = arith.constant 0 : i32
    return %c0_i32, %c0_i32_0 : i32, i32
  }
  func.func @transform_9(%arg0: i32) -> (i32, i32) {
    %c0_i32 = arith.constant 0 : i32
    %c0_i32_0 = arith.constant 0 : i32
    %c0_i32_1 = arith.constant 0 : i32
    return %c0_i32, %c0_i32_0 : i32, i32
  }
  func.func @transform_10(%arg0: i32) -> (i32, i32) {
    %c0_i32 = arith.constant 0 : i32
    %c0_i32_0 = arith.constant 0 : i32
    %c0_i32_1 = arith.constant 0 : i32
    return %c0_i32, %c0_i32_0 : i32, i32
  }
}

module attributes {stable_mosaic.version = 11 : i64} {
  func.func @_dec_layer_kernel(%arg0: i32, %arg1: memref<16x32xf32, #tpu.memory_space<vmem>>, %arg2: memref<16x32xf32, #tpu.memory_space<vmem>>, %arg3: memref<2x8xf32, #tpu.memory_space<vmem>>, %arg4: memref<4x8x8xf32, #tpu.memory_space<vmem>>, %arg5: memref<1x32xf32, #tpu.memory_space<vmem>>, %arg6: memref<32x96xf32, #tpu.memory_space<vmem>>, %arg7: memref<32x32xf32, #tpu.memory_space<vmem>>, %arg8: memref<1x32xf32, #tpu.memory_space<vmem>>, %arg9: memref<32x32xf32, #tpu.memory_space<vmem>>, %arg10: memref<32x64xf32, #tpu.memory_space<vmem>>, %arg11: memref<32x32xf32, #tpu.memory_space<vmem>>, %arg12: memref<1x32xf32, #tpu.memory_space<vmem>>, %arg13: memref<32x64xf32, #tpu.memory_space<vmem>>, %arg14: memref<64x32xf32, #tpu.memory_space<vmem>>, %arg15: memref<16x32xf32, #tpu.memory_space<vmem>>) attributes {dimension_semantics = [#tpu.dimension_semantics<arbitrary>], iteration_bounds = array<i64: 1>, scalar_prefetch = 0 : i64, scratch_operands = 0 : i64, tpu.core_type = #tpu.core_type<tc>, window_params = [{pipeline_mode = #tpu.pipeline_mode<synchronous>, transform_indices = @transform_0, window_bounds = array<i64: 16, 32>}, {pipeline_mode = #tpu.pipeline_mode<synchronous>, transform_indices = @transform_1, window_bounds = array<i64: 16, 32>}, {pipeline_mode = #tpu.pipeline_mode<synchronous>, transform_indices = @transform_2, window_bounds = array<i64: 2, 8>}, {pipeline_mode = #tpu.pipeline_mode<synchronous>, transform_indices = @transform_3, window_bounds = array<i64: 4, 8, 8>}, {pipeline_mode = #tpu.pipeline_mode<synchronous>, transform_indices = @transform_4, window_bounds = array<i64: 1, 32>}, {pipeline_mode = #tpu.pipeline_mode<synchronous>, transform_indices = @transform_5, window_bounds = array<i64: 32, 96>}, {pipeline_mode = #tpu.pipeline_mode<synchronous>, transform_indices = @transform_6, window_bounds = array<i64: 32, 32>}, {pipeline_mode = #tpu.pipeline_mode<synchronous>, transform_indices = @transform_7, window_bounds = array<i64: 1, 32>}, {pipeline_mode = #tpu.pipeline_mode<synchronous>, transform_indices = @transform_8, window_bounds = array<i64: 32, 32>}, {pipeline_mode = #tpu.pipeline_mode<synchronous>, transform_indices = @transform_9, window_bounds = array<i64: 32, 64>}, {pipeline_mode = #tpu.pipeline_mode<synchronous>, transform_indices = @transform_10, window_bounds = array<i64: 32, 32>}, {pipeline_mode = #tpu.pipeline_mode<synchronous>, transform_indices = @transform_11, window_bounds = array<i64: 1, 32>}, {pipeline_mode = #tpu.pipeline_mode<synchronous>, transform_indices = @transform_12, window_bounds = array<i64: 32, 64>}, {pipeline_mode = #tpu.pipeline_mode<synchronous>, transform_indices = @transform_13, window_bounds = array<i64: 64, 32>}, {pipeline_mode = #tpu.pipeline_mode<synchronous>, transform_indices = @transform_14, window_bounds = array<i64: 16, 32>}]} {
    %c0 = arith.constant 0 : index
    %c0_0 = arith.constant 0 : index
    %0 = vector.load %arg1[%c0, %c0_0] : memref<16x32xf32, #tpu.memory_space<vmem>>, vector<16x32xf32>
    %c0_1 = arith.constant 0 : index
    %c0_2 = arith.constant 0 : index
    %1 = vector.load %arg2[%c0_1, %c0_2] : memref<16x32xf32, #tpu.memory_space<vmem>>, vector<16x32xf32>
    %c0_3 = arith.constant 0 : index
    %c0_4 = arith.constant 0 : index
    %c0_5 = arith.constant 0 : index
    %2 = vector.load %arg4[%c0_3, %c0_4, %c0_5] : memref<4x8x8xf32, #tpu.memory_space<vmem>>, vector<4x8x8xf32>
    %c0_6 = arith.constant 0 : index
    %c0_7 = arith.constant 0 : index
    %3 = vector.load %arg3[%c0_6, %c0_7] : memref<2x8xf32, #tpu.memory_space<vmem>>, vector<2x8xf32>
    %cst = arith.constant 1.000000e+00 : f32
    %4 = vector.broadcast %cst : f32 to vector<2x8xf32>
    %5 = arith.subf %4, %3 : vector<2x8xf32>
    %cst_8 = arith.constant -1.000000e+09 : f32
    %6 = vector.broadcast %cst_8 : f32 to vector<2x8xf32>
    %7 = arith.mulf %5, %6 : vector<2x8xf32>
    %c0_9 = arith.constant 0 : index
    %c0_10 = arith.constant 0 : index
    %8 = vector.load %arg5[%c0_9, %c0_10] : memref<1x32xf32, #tpu.memory_space<vmem>>, vector<1x32xf32>
    %9 = arith.mulf %0, %0 : vector<16x32xf32>
    %cst_11 = arith.constant dense<0.000000e+00> : vector<16xf32>
    %10 = vector.multi_reduction <add>, %9, %cst_11 [1] : vector<16x32xf32> to vector<16xf32>
    %11 = vector.shape_cast %10 : vector<16xf32> to vector<16x1xf32>
    %cst_12 = arith.constant 3.200000e+01 : f32
    %12 = vector.broadcast %cst_12 : f32 to vector<16x1xf32>
    %13 = arith.divf %11, %12 : vector<16x1xf32>
    %cst_13 = arith.constant 9.99999997E-7 : f32
    %14 = vector.broadcast %cst_13 : f32 to vector<16x1xf32>
    %15 = arith.addf %13, %14 : vector<16x1xf32>
    %16 = math.rsqrt %15 : vector<16x1xf32>
    %17 = vector.broadcast %16 : vector<16x1xf32> to vector<16x32xf32>
    %18 = arith.mulf %0, %17 : vector<16x32xf32>
    %19 = vector.broadcast %8 : vector<1x32xf32> to vector<16x32xf32>
    %20 = arith.mulf %18, %19 : vector<16x32xf32>
    %c0_14 = arith.constant 0 : index
    %c0_15 = arith.constant 0 : index
    %21 = vector.load %arg6[%c0_14, %c0_15] : memref<32x96xf32, #tpu.memory_space<vmem>>, vector<32x96xf32>
    %cst_16 = arith.constant dense<0.000000e+00> : vector<16x96xf32>
    %22 = tpu.matmul %20, %21, %cst_16 {dimension_numbers = #tpu.dot_dimension_numbers<[1], [0], [0], [1], [0, 0, 1, 1], [], []>} : vector<16x32xf32>, vector<32x96xf32>, vector<16x96xf32> -> vector<16x96xf32>
    %23 = vector.extract_strided_slice %22 {offsets = [0, 0], sizes = [16, 32], strides = [1, 1]} : vector<16x96xf32> to vector<16x32xf32>
    %24 = vector.extract_strided_slice %22 {offsets = [0, 32], sizes = [16, 32], strides = [1, 1]} : vector<16x96xf32> to vector<16x32xf32>
    %25 = vector.extract_strided_slice %22 {offsets = [0, 64], sizes = [16, 32], strides = [1, 1]} : vector<16x96xf32> to vector<16x32xf32>
    %26 = vector.extract_strided_slice %23 {offsets = [0, 0], sizes = [8, 8], strides = [1, 1]} : vector<16x32xf32> to vector<8x8xf32>
    %27 = vector.extract_strided_slice %24 {offsets = [0, 0], sizes = [8, 8], strides = [1, 1]} : vector<16x32xf32> to vector<8x8xf32>
    %28 = vector.extract_strided_slice %25 {offsets = [0, 0], sizes = [8, 8], strides = [1, 1]} : vector<16x32xf32> to vector<8x8xf32>
    %29 = tpu.transpose %27, [1, 0] : vector<8x8xf32> -> vector<8x8xf32>
    %cst_17 = arith.constant dense<0.000000e+00> : vector<8x8xf32>
    %30 = tpu.matmul %26, %29, %cst_17 {dimension_numbers = #tpu.dot_dimension_numbers<[1], [0], [0], [1], [0, 0, 1, 1], [], []>} : vector<8x8xf32>, vector<8x8xf32>, vector<8x8xf32> -> vector<8x8xf32>
    %31 = vector.extract_strided_slice %2 {offsets = [0, 0, 0], sizes = [1, 8, 8], strides = [1, 1, 1]} : vector<4x8x8xf32> to vector<1x8x8xf32>
    %32 = vector.shape_cast %31 : vector<1x8x8xf32> to vector<8x8xf32>
    %33 = arith.addf %30, %32 : vector<8x8xf32>
    %cst_18 = arith.constant dense<0xFF800000> : vector<8xf32>
    %34 = vector.multi_reduction <maximumf>, %33, %cst_18 [1] : vector<8x8xf32> to vector<8xf32>
    %35 = vector.shape_cast %34 : vector<8xf32> to vector<8x1xf32>
    %36 = vector.broadcast %35 : vector<8x1xf32> to vector<8x8xf32>
    %37 = arith.subf %33, %36 : vector<8x8xf32>
    %38 = math.exp %37 : vector<8x8xf32>
    %cst_19 = arith.constant dense<0.000000e+00> : vector<8xf32>
    %39 = vector.multi_reduction <add>, %38, %cst_19 [1] : vector<8x8xf32> to vector<8xf32>
    %40 = vector.shape_cast %39 : vector<8xf32> to vector<8x1xf32>
    %41 = vector.broadcast %40 : vector<8x1xf32> to vector<8x8xf32>
    %42 = arith.divf %38, %41 : vector<8x8xf32>
    %cst_20 = arith.constant dense<0.000000e+00> : vector<8x8xf32>
    %43 = tpu.matmul %42, %28, %cst_20 {dimension_numbers = #tpu.dot_dimension_numbers<[1], [0], [0], [1], [0, 0, 1, 1], [], []>} : vector<8x8xf32>, vector<8x8xf32>, vector<8x8xf32> -> vector<8x8xf32>
    %44 = vector.extract_strided_slice %23 {offsets = [0, 8], sizes = [8, 8], strides = [1, 1]} : vector<16x32xf32> to vector<8x8xf32>
    %45 = vector.extract_strided_slice %24 {offsets = [0, 8], sizes = [8, 8], strides = [1, 1]} : vector<16x32xf32> to vector<8x8xf32>
    %46 = vector.extract_strided_slice %25 {offsets = [0, 8], sizes = [8, 8], strides = [1, 1]} : vector<16x32xf32> to vector<8x8xf32>
    %47 = tpu.transpose %45, [1, 0] : vector<8x8xf32> -> vector<8x8xf32>
    %cst_21 = arith.constant dense<0.000000e+00> : vector<8x8xf32>
    %48 = tpu.matmul %44, %47, %cst_21 {dimension_numbers = #tpu.dot_dimension_numbers<[1], [0], [0], [1], [0, 0, 1, 1], [], []>} : vector<8x8xf32>, vector<8x8xf32>, vector<8x8xf32> -> vector<8x8xf32>
    %49 = vector.extract_strided_slice %2 {offsets = [1, 0, 0], sizes = [1, 8, 8], strides = [1, 1, 1]} : vector<4x8x8xf32> to vector<1x8x8xf32>
    %50 = vector.shape_cast %49 : vector<1x8x8xf32> to vector<8x8xf32>
    %51 = arith.addf %48, %50 : vector<8x8xf32>
    %cst_22 = arith.constant dense<0xFF800000> : vector<8xf32>
    %52 = vector.multi_reduction <maximumf>, %51, %cst_22 [1] : vector<8x8xf32> to vector<8xf32>
    %53 = vector.shape_cast %52 : vector<8xf32> to vector<8x1xf32>
    %54 = vector.broadcast %53 : vector<8x1xf32> to vector<8x8xf32>
    %55 = arith.subf %51, %54 : vector<8x8xf32>
    %56 = math.exp %55 : vector<8x8xf32>
    %cst_23 = arith.constant dense<0.000000e+00> : vector<8xf32>
    %57 = vector.multi_reduction <add>, %56, %cst_23 [1] : vector<8x8xf32> to vector<8xf32>
    %58 = vector.shape_cast %57 : vector<8xf32> to vector<8x1xf32>
    %59 = vector.broadcast %58 : vector<8x1xf32> to vector<8x8xf32>
    %60 = arith.divf %56, %59 : vector<8x8xf32>
    %cst_24 = arith.constant dense<0.000000e+00> : vector<8x8xf32>
    %61 = tpu.matmul %60, %46, %cst_24 {dimension_numbers = #tpu.dot_dimension_numbers<[1], [0], [0], [1], [0, 0, 1, 1], [], []>} : vector<8x8xf32>, vector<8x8xf32>, vector<8x8xf32> -> vector<8x8xf32>
    %62 = vector.extract_strided_slice %23 {offsets = [0, 16], sizes = [8, 8], strides = [1, 1]} : vector<16x32xf32> to vector<8x8xf32>
    %63 = vector.extract_strided_slice %24 {offsets = [0, 16], sizes = [8, 8], strides = [1, 1]} : vector<16x32xf32> to vector<8x8xf32>
    %64 = vector.extract_strided_slice %25 {offsets = [0, 16], sizes = [8, 8], strides = [1, 1]} : vector<16x32xf32> to vector<8x8xf32>
    %65 = tpu.transpose %63, [1, 0] : vector<8x8xf32> -> vector<8x8xf32>
    %cst_25 = arith.constant dense<0.000000e+00> : vector<8x8xf32>
    %66 = tpu.matmul %62, %65, %cst_25 {dimension_numbers = #tpu.dot_dimension_numbers<[1], [0], [0], [1], [0, 0, 1, 1], [], []>} : vector<8x8xf32>, vector<8x8xf32>, vector<8x8xf32> -> vector<8x8xf32>
    %67 = vector.extract_strided_slice %2 {offsets = [2, 0, 0], sizes = [1, 8, 8], strides = [1, 1, 1]} : vector<4x8x8xf32> to vector<1x8x8xf32>
    %68 = vector.shape_cast %67 : vector<1x8x8xf32> to vector<8x8xf32>
    %69 = arith.addf %66, %68 : vector<8x8xf32>
    %cst_26 = arith.constant dense<0xFF800000> : vector<8xf32>
    %70 = vector.multi_reduction <maximumf>, %69, %cst_26 [1] : vector<8x8xf32> to vector<8xf32>
    %71 = vector.shape_cast %70 : vector<8xf32> to vector<8x1xf32>
    %72 = vector.broadcast %71 : vector<8x1xf32> to vector<8x8xf32>
    %73 = arith.subf %69, %72 : vector<8x8xf32>
    %74 = math.exp %73 : vector<8x8xf32>
    %cst_27 = arith.constant dense<0.000000e+00> : vector<8xf32>
    %75 = vector.multi_reduction <add>, %74, %cst_27 [1] : vector<8x8xf32> to vector<8xf32>
    %76 = vector.shape_cast %75 : vector<8xf32> to vector<8x1xf32>
    %77 = vector.broadcast %76 : vector<8x1xf32> to vector<8x8xf32>
    %78 = arith.divf %74, %77 : vector<8x8xf32>
    %cst_28 = arith.constant dense<0.000000e+00> : vector<8x8xf32>
    %79 = tpu.matmul %78, %64, %cst_28 {dimension_numbers = #tpu.dot_dimension_numbers<[1], [0], [0], [1], [0, 0, 1, 1], [], []>} : vector<8x8xf32>, vector<8x8xf32>, vector<8x8xf32> -> vector<8x8xf32>
    %80 = vector.extract_strided_slice %23 {offsets = [0, 24], sizes = [8, 8], strides = [1, 1]} : vector<16x32xf32> to vector<8x8xf32>
    %81 = vector.extract_strided_slice %24 {offsets = [0, 24], sizes = [8, 8], strides = [1, 1]} : vector<16x32xf32> to vector<8x8xf32>
    %82 = vector.extract_strided_slice %25 {offsets = [0, 24], sizes = [8, 8], strides = [1, 1]} : vector<16x32xf32> to vector<8x8xf32>
    %83 = tpu.transpose %81, [1, 0] : vector<8x8xf32> -> vector<8x8xf32>
    %cst_29 = arith.constant dense<0.000000e+00> : vector<8x8xf32>
    %84 = tpu.matmul %80, %83, %cst_29 {dimension_numbers = #tpu.dot_dimension_numbers<[1], [0], [0], [1], [0, 0, 1, 1], [], []>} : vector<8x8xf32>, vector<8x8xf32>, vector<8x8xf32> -> vector<8x8xf32>
    %85 = vector.extract_strided_slice %2 {offsets = [3, 0, 0], sizes = [1, 8, 8], strides = [1, 1, 1]} : vector<4x8x8xf32> to vector<1x8x8xf32>
    %86 = vector.shape_cast %85 : vector<1x8x8xf32> to vector<8x8xf32>
    %87 = arith.addf %84, %86 : vector<8x8xf32>
    %cst_30 = arith.constant dense<0xFF800000> : vector<8xf32>
    %88 = vector.multi_reduction <maximumf>, %87, %cst_30 [1] : vector<8x8xf32> to vector<8xf32>
    %89 = vector.shape_cast %88 : vector<8xf32> to vector<8x1xf32>
    %90 = vector.broadcast %89 : vector<8x1xf32> to vector<8x8xf32>
    %91 = arith.subf %87, %90 : vector<8x8xf32>
    %92 = math.exp %91 : vector<8x8xf32>
    %cst_31 = arith.constant dense<0.000000e+00> : vector<8xf32>
    %93 = vector.multi_reduction <add>, %92, %cst_31 [1] : vector<8x8xf32> to vector<8xf32>
    %94 = vector.shape_cast %93 : vector<8xf32> to vector<8x1xf32>
    %95 = vector.broadcast %94 : vector<8x1xf32> to vector<8x8xf32>
    %96 = arith.divf %92, %95 : vector<8x8xf32>
    %cst_32 = arith.constant dense<0.000000e+00> : vector<8x8xf32>
    %97 = tpu.matmul %96, %82, %cst_32 {dimension_numbers = #tpu.dot_dimension_numbers<[1], [0], [0], [1], [0, 0, 1, 1], [], []>} : vector<8x8xf32>, vector<8x8xf32>, vector<8x8xf32> -> vector<8x8xf32>
    %98 = tpu.concatenate %43, %61, %79, %97 in 1 : vector<8x8xf32>, vector<8x8xf32>, vector<8x8xf32>, vector<8x8xf32> -> vector<8x32xf32>
    %99 = vector.extract_strided_slice %23 {offsets = [8, 0], sizes = [8, 8], strides = [1, 1]} : vector<16x32xf32> to vector<8x8xf32>
    %100 = vector.extract_strided_slice %24 {offsets = [8, 0], sizes = [8, 8], strides = [1, 1]} : vector<16x32xf32> to vector<8x8xf32>
    %101 = vector.extract_strided_slice %25 {offsets = [8, 0], sizes = [8, 8], strides = [1, 1]} : vector<16x32xf32> to vector<8x8xf32>
    %102 = tpu.transpose %100, [1, 0] : vector<8x8xf32> -> vector<8x8xf32>
    %cst_33 = arith.constant dense<0.000000e+00> : vector<8x8xf32>
    %103 = tpu.matmul %99, %102, %cst_33 {dimension_numbers = #tpu.dot_dimension_numbers<[1], [0], [0], [1], [0, 0, 1, 1], [], []>} : vector<8x8xf32>, vector<8x8xf32>, vector<8x8xf32> -> vector<8x8xf32>
    %104 = vector.extract_strided_slice %2 {offsets = [0, 0, 0], sizes = [1, 8, 8], strides = [1, 1, 1]} : vector<4x8x8xf32> to vector<1x8x8xf32>
    %105 = vector.shape_cast %104 : vector<1x8x8xf32> to vector<8x8xf32>
    %106 = arith.addf %103, %105 : vector<8x8xf32>
    %cst_34 = arith.constant dense<0xFF800000> : vector<8xf32>
    %107 = vector.multi_reduction <maximumf>, %106, %cst_34 [1] : vector<8x8xf32> to vector<8xf32>
    %108 = vector.shape_cast %107 : vector<8xf32> to vector<8x1xf32>
    %109 = vector.broadcast %108 : vector<8x1xf32> to vector<8x8xf32>
    %110 = arith.subf %106, %109 : vector<8x8xf32>
    %111 = math.exp %110 : vector<8x8xf32>
    %cst_35 = arith.constant dense<0.000000e+00> : vector<8xf32>
    %112 = vector.multi_reduction <add>, %111, %cst_35 [1] : vector<8x8xf32> to vector<8xf32>
    %113 = vector.shape_cast %112 : vector<8xf32> to vector<8x1xf32>
    %114 = vector.broadcast %113 : vector<8x1xf32> to vector<8x8xf32>
    %115 = arith.divf %111, %114 : vector<8x8xf32>
    %cst_36 = arith.constant dense<0.000000e+00> : vector<8x8xf32>
    %116 = tpu.matmul %115, %101, %cst_36 {dimension_numbers = #tpu.dot_dimension_numbers<[1], [0], [0], [1], [0, 0, 1, 1], [], []>} : vector<8x8xf32>, vector<8x8xf32>, vector<8x8xf32> -> vector<8x8xf32>
    %117 = vector.extract_strided_slice %23 {offsets = [8, 8], sizes = [8, 8], strides = [1, 1]} : vector<16x32xf32> to vector<8x8xf32>
    %118 = vector.extract_strided_slice %24 {offsets = [8, 8], sizes = [8, 8], strides = [1, 1]} : vector<16x32xf32> to vector<8x8xf32>
    %119 = vector.extract_strided_slice %25 {offsets = [8, 8], sizes = [8, 8], strides = [1, 1]} : vector<16x32xf32> to vector<8x8xf32>
    %120 = tpu.transpose %118, [1, 0] : vector<8x8xf32> -> vector<8x8xf32>
    %cst_37 = arith.constant dense<0.000000e+00> : vector<8x8xf32>
    %121 = tpu.matmul %117, %120, %cst_37 {dimension_numbers = #tpu.dot_dimension_numbers<[1], [0], [0], [1], [0, 0, 1, 1], [], []>} : vector<8x8xf32>, vector<8x8xf32>, vector<8x8xf32> -> vector<8x8xf32>
    %122 = vector.extract_strided_slice %2 {offsets = [1, 0, 0], sizes = [1, 8, 8], strides = [1, 1, 1]} : vector<4x8x8xf32> to vector<1x8x8xf32>
    %123 = vector.shape_cast %122 : vector<1x8x8xf32> to vector<8x8xf32>
    %124 = arith.addf %121, %123 : vector<8x8xf32>
    %cst_38 = arith.constant dense<0xFF800000> : vector<8xf32>
    %125 = vector.multi_reduction <maximumf>, %124, %cst_38 [1] : vector<8x8xf32> to vector<8xf32>
    %126 = vector.shape_cast %125 : vector<8xf32> to vector<8x1xf32>
    %127 = vector.broadcast %126 : vector<8x1xf32> to vector<8x8xf32>
    %128 = arith.subf %124, %127 : vector<8x8xf32>
    %129 = math.exp %128 : vector<8x8xf32>
    %cst_39 = arith.constant dense<0.000000e+00> : vector<8xf32>
    %130 = vector.multi_reduction <add>, %129, %cst_39 [1] : vector<8x8xf32> to vector<8xf32>
    %131 = vector.shape_cast %130 : vector<8xf32> to vector<8x1xf32>
    %132 = vector.broadcast %131 : vector<8x1xf32> to vector<8x8xf32>
    %133 = arith.divf %129, %132 : vector<8x8xf32>
    %cst_40 = arith.constant dense<0.000000e+00> : vector<8x8xf32>
    %134 = tpu.matmul %133, %119, %cst_40 {dimension_numbers = #tpu.dot_dimension_numbers<[1], [0], [0], [1], [0, 0, 1, 1], [], []>} : vector<8x8xf32>, vector<8x8xf32>, vector<8x8xf32> -> vector<8x8xf32>
    %135 = vector.extract_strided_slice %23 {offsets = [8, 16], sizes = [8, 8], strides = [1, 1]} : vector<16x32xf32> to vector<8x8xf32>
    %136 = vector.extract_strided_slice %24 {offsets = [8, 16], sizes = [8, 8], strides = [1, 1]} : vector<16x32xf32> to vector<8x8xf32>
    %137 = vector.extract_strided_slice %25 {offsets = [8, 16], sizes = [8, 8], strides = [1, 1]} : vector<16x32xf32> to vector<8x8xf32>
    %138 = tpu.transpose %136, [1, 0] : vector<8x8xf32> -> vector<8x8xf32>
    %cst_41 = arith.constant dense<0.000000e+00> : vector<8x8xf32>
    %139 = tpu.matmul %135, %138, %cst_41 {dimension_numbers = #tpu.dot_dimension_numbers<[1], [0], [0], [1], [0, 0, 1, 1], [], []>} : vector<8x8xf32>, vector<8x8xf32>, vector<8x8xf32> -> vector<8x8xf32>
    %140 = vector.extract_strided_slice %2 {offsets = [2, 0, 0], sizes = [1, 8, 8], strides = [1, 1, 1]} : vector<4x8x8xf32> to vector<1x8x8xf32>
    %141 = vector.shape_cast %140 : vector<1x8x8xf32> to vector<8x8xf32>
    %142 = arith.addf %139, %141 : vector<8x8xf32>
    %cst_42 = arith.constant dense<0xFF800000> : vector<8xf32>
    %143 = vector.multi_reduction <maximumf>, %142, %cst_42 [1] : vector<8x8xf32> to vector<8xf32>
    %144 = vector.shape_cast %143 : vector<8xf32> to vector<8x1xf32>
    %145 = vector.broadcast %144 : vector<8x1xf32> to vector<8x8xf32>
    %146 = arith.subf %142, %145 : vector<8x8xf32>
    %147 = math.exp %146 : vector<8x8xf32>
    %cst_43 = arith.constant dense<0.000000e+00> : vector<8xf32>
    %148 = vector.multi_reduction <add>, %147, %cst_43 [1] : vector<8x8xf32> to vector<8xf32>
    %149 = vector.shape_cast %148 : vector<8xf32> to vector<8x1xf32>
    %150 = vector.broadcast %149 : vector<8x1xf32> to vector<8x8xf32>
    %151 = arith.divf %147, %150 : vector<8x8xf32>
    %cst_44 = arith.constant dense<0.000000e+00> : vector<8x8xf32>
    %152 = tpu.matmul %151, %137, %cst_44 {dimension_numbers = #tpu.dot_dimension_numbers<[1], [0], [0], [1], [0, 0, 1, 1], [], []>} : vector<8x8xf32>, vector<8x8xf32>, vector<8x8xf32> -> vector<8x8xf32>
    %153 = vector.extract_strided_slice %23 {offsets = [8, 24], sizes = [8, 8], strides = [1, 1]} : vector<16x32xf32> to vector<8x8xf32>
    %154 = vector.extract_strided_slice %24 {offsets = [8, 24], sizes = [8, 8], strides = [1, 1]} : vector<16x32xf32> to vector<8x8xf32>
    %155 = vector.extract_strided_slice %25 {offsets = [8, 24], sizes = [8, 8], strides = [1, 1]} : vector<16x32xf32> to vector<8x8xf32>
    %156 = tpu.transpose %154, [1, 0] : vector<8x8xf32> -> vector<8x8xf32>
    %cst_45 = arith.constant dense<0.000000e+00> : vector<8x8xf32>
    %157 = tpu.matmul %153, %156, %cst_45 {dimension_numbers = #tpu.dot_dimension_numbers<[1], [0], [0], [1], [0, 0, 1, 1], [], []>} : vector<8x8xf32>, vector<8x8xf32>, vector<8x8xf32> -> vector<8x8xf32>
    %158 = vector.extract_strided_slice %2 {offsets = [3, 0, 0], sizes = [1, 8, 8], strides = [1, 1, 1]} : vector<4x8x8xf32> to vector<1x8x8xf32>
    %159 = vector.shape_cast %158 : vector<1x8x8xf32> to vector<8x8xf32>
    %160 = arith.addf %157, %159 : vector<8x8xf32>
    %cst_46 = arith.constant dense<0xFF800000> : vector<8xf32>
    %161 = vector.multi_reduction <maximumf>, %160, %cst_46 [1] : vector<8x8xf32> to vector<8xf32>
    %162 = vector.shape_cast %161 : vector<8xf32> to vector<8x1xf32>
    %163 = vector.broadcast %162 : vector<8x1xf32> to vector<8x8xf32>
    %164 = arith.subf %160, %163 : vector<8x8xf32>
    %165 = math.exp %164 : vector<8x8xf32>
    %cst_47 = arith.constant dense<0.000000e+00> : vector<8xf32>
    %166 = vector.multi_reduction <add>, %165, %cst_47 [1] : vector<8x8xf32> to vector<8xf32>
    %167 = vector.shape_cast %166 : vector<8xf32> to vector<8x1xf32>
    %168 = vector.broadcast %167 : vector<8x1xf32> to vector<8x8xf32>
    %169 = arith.divf %165, %168 : vector<8x8xf32>
    %cst_48 = arith.constant dense<0.000000e+00> : vector<8x8xf32>
    %170 = tpu.matmul %169, %155, %cst_48 {dimension_numbers = #tpu.dot_dimension_numbers<[1], [0], [0], [1], [0, 0, 1, 1], [], []>} : vector<8x8xf32>, vector<8x8xf32>, vector<8x8xf32> -> vector<8x8xf32>
    %171 = tpu.concatenate %116, %134, %152, %170 in 1 : vector<8x8xf32>, vector<8x8xf32>, vector<8x8xf32>, vector<8x8xf32> -> vector<8x32xf32>
    %172 = tpu.concatenate %98, %171 in 0 : vector<8x32xf32>, vector<8x32xf32> -> vector<16x32xf32>
    %c0_49 = arith.constant 0 : index
    %c0_50 = arith.constant 0 : index
    %173 = vector.load %arg7[%c0_49, %c0_50] : memref<32x32xf32, #tpu.memory_space<vmem>>, vector<32x32xf32>
    %cst_51 = arith.constant dense<0.000000e+00> : vector<16x32xf32>
    %174 = tpu.matmul %172, %173, %cst_51 {dimension_numbers = #tpu.dot_dimension_numbers<[1], [0], [0], [1], [0, 0, 1, 1], [], []>} : vector<16x32xf32>, vector<32x32xf32>, vector<16x32xf32> -> vector<16x32xf32>
    %175 = arith.addf %0, %174 : vector<16x32xf32>
    %c0_52 = arith.constant 0 : index
    %c0_53 = arith.constant 0 : index
    %176 = vector.load %arg8[%c0_52, %c0_53] : memref<1x32xf32, #tpu.memory_space<vmem>>, vector<1x32xf32>
    %177 = arith.mulf %175, %175 : vector<16x32xf32>
    %cst_54 = arith.constant dense<0.000000e+00> : vector<16xf32>
    %178 = vector.multi_reduction <add>, %177, %cst_54 [1] : vector<16x32xf32> to vector<16xf32>
    %179 = vector.shape_cast %178 : vector<16xf32> to vector<16x1xf32>
    %cst_55 = arith.constant 3.200000e+01 : f32
    %180 = vector.broadcast %cst_55 : f32 to vector<16x1xf32>
    %181 = arith.divf %179, %180 : vector<16x1xf32>
    %cst_56 = arith.constant 9.99999997E-7 : f32
    %182 = vector.broadcast %cst_56 : f32 to vector<16x1xf32>
    %183 = arith.addf %181, %182 : vector<16x1xf32>
    %184 = math.rsqrt %183 : vector<16x1xf32>
    %185 = vector.broadcast %184 : vector<16x1xf32> to vector<16x32xf32>
    %186 = arith.mulf %175, %185 : vector<16x32xf32>
    %187 = vector.broadcast %176 : vector<1x32xf32> to vector<16x32xf32>
    %188 = arith.mulf %186, %187 : vector<16x32xf32>
    %c0_57 = arith.constant 0 : index
    %c0_58 = arith.constant 0 : index
    %189 = vector.load %arg9[%c0_57, %c0_58] : memref<32x32xf32, #tpu.memory_space<vmem>>, vector<32x32xf32>
    %cst_59 = arith.constant dense<0.000000e+00> : vector<16x32xf32>
    %190 = tpu.matmul %188, %189, %cst_59 {dimension_numbers = #tpu.dot_dimension_numbers<[1], [0], [0], [1], [0, 0, 1, 1], [], []>} : vector<16x32xf32>, vector<32x32xf32>, vector<16x32xf32> -> vector<16x32xf32>
    %c0_60 = arith.constant 0 : index
    %c0_61 = arith.constant 0 : index
    %191 = vector.load %arg10[%c0_60, %c0_61] : memref<32x64xf32, #tpu.memory_space<vmem>>, vector<32x64xf32>
    %cst_62 = arith.constant dense<0.000000e+00> : vector<16x64xf32>
    %192 = tpu.matmul %1, %191, %cst_62 {dimension_numbers = #tpu.dot_dimension_numbers<[1], [0], [0], [1], [0, 0, 1, 1], [], []>} : vector<16x32xf32>, vector<32x64xf32>, vector<16x64xf32> -> vector<16x64xf32>
    %193 = vector.extract_strided_slice %192 {offsets = [0, 0], sizes = [16, 32], strides = [1, 1]} : vector<16x64xf32> to vector<16x32xf32>
    %194 = vector.extract_strided_slice %192 {offsets = [0, 32], sizes = [16, 32], strides = [1, 1]} : vector<16x64xf32> to vector<16x32xf32>
    %195 = vector.extract_strided_slice %190 {offsets = [0, 0], sizes = [8, 8], strides = [1, 1]} : vector<16x32xf32> to vector<8x8xf32>
    %196 = vector.extract_strided_slice %193 {offsets = [0, 0], sizes = [8, 8], strides = [1, 1]} : vector<16x32xf32> to vector<8x8xf32>
    %197 = vector.extract_strided_slice %194 {offsets = [0, 0], sizes = [8, 8], strides = [1, 1]} : vector<16x32xf32> to vector<8x8xf32>
    %198 = tpu.transpose %196, [1, 0] : vector<8x8xf32> -> vector<8x8xf32>
    %cst_63 = arith.constant dense<0.000000e+00> : vector<8x8xf32>
    %199 = tpu.matmul %195, %198, %cst_63 {dimension_numbers = #tpu.dot_dimension_numbers<[1], [0], [0], [1], [0, 0, 1, 1], [], []>} : vector<8x8xf32>, vector<8x8xf32>, vector<8x8xf32> -> vector<8x8xf32>
    %200 = vector.extract_strided_slice %7 {offsets = [0, 0], sizes = [1, 8], strides = [1, 1]} : vector<2x8xf32> to vector<1x8xf32>
    %201 = vector.shape_cast %200 : vector<1x8xf32> to vector<8xf32>
    %202 = vector.shape_cast %201 : vector<8xf32> to vector<1x8xf32>
    %203 = vector.broadcast %202 : vector<1x8xf32> to vector<8x8xf32>
    %204 = arith.addf %199, %203 : vector<8x8xf32>
    %cst_64 = arith.constant dense<0xFF800000> : vector<8xf32>
    %205 = vector.multi_reduction <maximumf>, %204, %cst_64 [1] : vector<8x8xf32> to vector<8xf32>
    %206 = vector.shape_cast %205 : vector<8xf32> to vector<8x1xf32>
    %207 = vector.broadcast %206 : vector<8x1xf32> to vector<8x8xf32>
    %208 = arith.subf %204, %207 : vector<8x8xf32>
    %209 = math.exp %208 : vector<8x8xf32>
    %cst_65 = arith.constant dense<0.000000e+00> : vector<8xf32>
    %210 = vector.multi_reduction <add>, %209, %cst_65 [1] : vector<8x8xf32> to vector<8xf32>
    %211 = vector.shape_cast %210 : vector<8xf32> to vector<8x1xf32>
    %212 = vector.broadcast %211 : vector<8x1xf32> to vector<8x8xf32>
    %213 = arith.divf %209, %212 : vector<8x8xf32>
    %cst_66 = arith.constant dense<0.000000e+00> : vector<8x8xf32>
    %214 = tpu.matmul %213, %197, %cst_66 {dimension_numbers = #tpu.dot_dimension_numbers<[1], [0], [0], [1], [0, 0, 1, 1], [], []>} : vector<8x8xf32>, vector<8x8xf32>, vector<8x8xf32> -> vector<8x8xf32>
    %215 = vector.extract_strided_slice %190 {offsets = [0, 8], sizes = [8, 8], strides = [1, 1]} : vector<16x32xf32> to vector<8x8xf32>
    %216 = vector.extract_strided_slice %193 {offsets = [0, 8], sizes = [8, 8], strides = [1, 1]} : vector<16x32xf32> to vector<8x8xf32>
    %217 = vector.extract_strided_slice %194 {offsets = [0, 8], sizes = [8, 8], strides = [1, 1]} : vector<16x32xf32> to vector<8x8xf32>
    %218 = tpu.transpose %216, [1, 0] : vector<8x8xf32> -> vector<8x8xf32>
    %cst_67 = arith.constant dense<0.000000e+00> : vector<8x8xf32>
    %219 = tpu.matmul %215, %218, %cst_67 {dimension_numbers = #tpu.dot_dimension_numbers<[1], [0], [0], [1], [0, 0, 1, 1], [], []>} : vector<8x8xf32>, vector<8x8xf32>, vector<8x8xf32> -> vector<8x8xf32>
    %220 = vector.extract_strided_slice %7 {offsets = [0, 0], sizes = [1, 8], strides = [1, 1]} : vector<2x8xf32> to vector<1x8xf32>
    %221 = vector.shape_cast %220 : vector<1x8xf32> to vector<8xf32>
    %222 = vector.shape_cast %221 : vector<8xf32> to vector<1x8xf32>
    %223 = vector.broadcast %222 : vector<1x8xf32> to vector<8x8xf32>
    %224 = arith.addf %219, %223 : vector<8x8xf32>
    %cst_68 = arith.constant dense<0xFF800000> : vector<8xf32>
    %225 = vector.multi_reduction <maximumf>, %224, %cst_68 [1] : vector<8x8xf32> to vector<8xf32>
    %226 = vector.shape_cast %225 : vector<8xf32> to vector<8x1xf32>
    %227 = vector.broadcast %226 : vector<8x1xf32> to vector<8x8xf32>
    %228 = arith.subf %224, %227 : vector<8x8xf32>
    %229 = math.exp %228 : vector<8x8xf32>
    %cst_69 = arith.constant dense<0.000000e+00> : vector<8xf32>
    %230 = vector.multi_reduction <add>, %229, %cst_69 [1] : vector<8x8xf32> to vector<8xf32>
    %231 = vector.shape_cast %230 : vector<8xf32> to vector<8x1xf32>
    %232 = vector.broadcast %231 : vector<8x1xf32> to vector<8x8xf32>
    %233 = arith.divf %229, %232 : vector<8x8xf32>
    %cst_70 = arith.constant dense<0.000000e+00> : vector<8x8xf32>
    %234 = tpu.matmul %233, %217, %cst_70 {dimension_numbers = #tpu.dot_dimension_numbers<[1], [0], [0], [1], [0, 0, 1, 1], [], []>} : vector<8x8xf32>, vector<8x8xf32>, vector<8x8xf32> -> vector<8x8xf32>
    %235 = vector.extract_strided_slice %190 {offsets = [0, 16], sizes = [8, 8], strides = [1, 1]} : vector<16x32xf32> to vector<8x8xf32>
    %236 = vector.extract_strided_slice %193 {offsets = [0, 16], sizes = [8, 8], strides = [1, 1]} : vector<16x32xf32> to vector<8x8xf32>
    %237 = vector.extract_strided_slice %194 {offsets = [0, 16], sizes = [8, 8], strides = [1, 1]} : vector<16x32xf32> to vector<8x8xf32>
    %238 = tpu.transpose %236, [1, 0] : vector<8x8xf32> -> vector<8x8xf32>
    %cst_71 = arith.constant dense<0.000000e+00> : vector<8x8xf32>
    %239 = tpu.matmul %235, %238, %cst_71 {dimension_numbers = #tpu.dot_dimension_numbers<[1], [0], [0], [1], [0, 0, 1, 1], [], []>} : vector<8x8xf32>, vector<8x8xf32>, vector<8x8xf32> -> vector<8x8xf32>
    %240 = vector.extract_strided_slice %7 {offsets = [0, 0], sizes = [1, 8], strides = [1, 1]} : vector<2x8xf32> to vector<1x8xf32>
    %241 = vector.shape_cast %240 : vector<1x8xf32> to vector<8xf32>
    %242 = vector.shape_cast %241 : vector<8xf32> to vector<1x8xf32>
    %243 = vector.broadcast %242 : vector<1x8xf32> to vector<8x8xf32>
    %244 = arith.addf %239, %243 : vector<8x8xf32>
    %cst_72 = arith.constant dense<0xFF800000> : vector<8xf32>
    %245 = vector.multi_reduction <maximumf>, %244, %cst_72 [1] : vector<8x8xf32> to vector<8xf32>
    %246 = vector.shape_cast %245 : vector<8xf32> to vector<8x1xf32>
    %247 = vector.broadcast %246 : vector<8x1xf32> to vector<8x8xf32>
    %248 = arith.subf %244, %247 : vector<8x8xf32>
    %249 = math.exp %248 : vector<8x8xf32>
    %cst_73 = arith.constant dense<0.000000e+00> : vector<8xf32>
    %250 = vector.multi_reduction <add>, %249, %cst_73 [1] : vector<8x8xf32> to vector<8xf32>
    %251 = vector.shape_cast %250 : vector<8xf32> to vector<8x1xf32>
    %252 = vector.broadcast %251 : vector<8x1xf32> to vector<8x8xf32>
    %253 = arith.divf %249, %252 : vector<8x8xf32>
    %cst_74 = arith.constant dense<0.000000e+00> : vector<8x8xf32>
    %254 = tpu.matmul %253, %237, %cst_74 {dimension_numbers = #tpu.dot_dimension_numbers<[1], [0], [0], [1], [0, 0, 1, 1], [], []>} : vector<8x8xf32>, vector<8x8xf32>, vector<8x8xf32> -> vector<8x8xf32>
    %255 = vector.extract_strided_slice %190 {offsets = [0, 24], sizes = [8, 8], strides = [1, 1]} : vector<16x32xf32> to vector<8x8xf32>
    %256 = vector.extract_strided_slice %193 {offsets = [0, 24], sizes = [8, 8], strides = [1, 1]} : vector<16x32xf32> to vector<8x8xf32>
    %257 = vector.extract_strided_slice %194 {offsets = [0, 24], sizes = [8, 8], strides = [1, 1]} : vector<16x32xf32> to vector<8x8xf32>
    %258 = tpu.transpose %256, [1, 0] : vector<8x8xf32> -> vector<8x8xf32>
    %cst_75 = arith.constant dense<0.000000e+00> : vector<8x8xf32>
    %259 = tpu.matmul %255, %258, %cst_75 {dimension_numbers = #tpu.dot_dimension_numbers<[1], [0], [0], [1], [0, 0, 1, 1], [], []>} : vector<8x8xf32>, vector<8x8xf32>, vector<8x8xf32> -> vector<8x8xf32>
    %260 = vector.extract_strided_slice %7 {offsets = [0, 0], sizes = [1, 8], strides = [1, 1]} : vector<2x8xf32> to vector<1x8xf32>
    %261 = vector.shape_cast %260 : vector<1x8xf32> to vector<8xf32>
    %262 = vector.shape_cast %261 : vector<8xf32> to vector<1x8xf32>
    %263 = vector.broadcast %262 : vector<1x8xf32> to vector<8x8xf32>
    %264 = arith.addf %259, %263 : vector<8x8xf32>
    %cst_76 = arith.constant dense<0xFF800000> : vector<8xf32>
    %265 = vector.multi_reduction <maximumf>, %264, %cst_76 [1] : vector<8x8xf32> to vector<8xf32>
    %266 = vector.shape_cast %265 : vector<8xf32> to vector<8x1xf32>
    %267 = vector.broadcast %266 : vector<8x1xf32> to vector<8x8xf32>
    %268 = arith.subf %264, %267 : vector<8x8xf32>
    %269 = math.exp %268 : vector<8x8xf32>
    %cst_77 = arith.constant dense<0.000000e+00> : vector<8xf32>
    %270 = vector.multi_reduction <add>, %269, %cst_77 [1] : vector<8x8xf32> to vector<8xf32>
    %271 = vector.shape_cast %270 : vector<8xf32> to vector<8x1xf32>
    %272 = vector.broadcast %271 : vector<8x1xf32> to vector<8x8xf32>
    %273 = arith.divf %269, %272 : vector<8x8xf32>
    %cst_78 = arith.constant dense<0.000000e+00> : vector<8x8xf32>
    %274 = tpu.matmul %273, %257, %cst_78 {dimension_numbers = #tpu.dot_dimension_numbers<[1], [0], [0], [1], [0, 0, 1, 1], [], []>} : vector<8x8xf32>, vector<8x8xf32>, vector<8x8xf32> -> vector<8x8xf32>
    %275 = tpu.concatenate %214, %234, %254, %274 in 1 : vector<8x8xf32>, vector<8x8xf32>, vector<8x8xf32>, vector<8x8xf32> -> vector<8x32xf32>
    %276 = vector.extract_strided_slice %190 {offsets = [8, 0], sizes = [8, 8], strides = [1, 1]} : vector<16x32xf32> to vector<8x8xf32>
    %277 = vector.extract_strided_slice %193 {offsets = [8, 0], sizes = [8, 8], strides = [1, 1]} : vector<16x32xf32> to vector<8x8xf32>
    %278 = vector.extract_strided_slice %194 {offsets = [8, 0], sizes = [8, 8], strides = [1, 1]} : vector<16x32xf32> to vector<8x8xf32>
    %279 = tpu.transpose %277, [1, 0] : vector<8x8xf32> -> vector<8x8xf32>
    %cst_79 = arith.constant dense<0.000000e+00> : vector<8x8xf32>
    %280 = tpu.matmul %276, %279, %cst_79 {dimension_numbers = #tpu.dot_dimension_numbers<[1], [0], [0], [1], [0, 0, 1, 1], [], []>} : vector<8x8xf32>, vector<8x8xf32>, vector<8x8xf32> -> vector<8x8xf32>
    %281 = vector.extract_strided_slice %7 {offsets = [1, 0], sizes = [1, 8], strides = [1, 1]} : vector<2x8xf32> to vector<1x8xf32>
    %282 = vector.shape_cast %281 : vector<1x8xf32> to vector<8xf32>
    %283 = vector.shape_cast %282 : vector<8xf32> to vector<1x8xf32>
    %284 = vector.broadcast %283 : vector<1x8xf32> to vector<8x8xf32>
    %285 = arith.addf %280, %284 : vector<8x8xf32>
    %cst_80 = arith.constant dense<0xFF800000> : vector<8xf32>
    %286 = vector.multi_reduction <maximumf>, %285, %cst_80 [1] : vector<8x8xf32> to vector<8xf32>
    %287 = vector.shape_cast %286 : vector<8xf32> to vector<8x1xf32>
    %288 = vector.broadcast %287 : vector<8x1xf32> to vector<8x8xf32>
    %289 = arith.subf %285, %288 : vector<8x8xf32>
    %290 = math.exp %289 : vector<8x8xf32>
    %cst_81 = arith.constant dense<0.000000e+00> : vector<8xf32>
    %291 = vector.multi_reduction <add>, %290, %cst_81 [1] : vector<8x8xf32> to vector<8xf32>
    %292 = vector.shape_cast %291 : vector<8xf32> to vector<8x1xf32>
    %293 = vector.broadcast %292 : vector<8x1xf32> to vector<8x8xf32>
    %294 = arith.divf %290, %293 : vector<8x8xf32>
    %cst_82 = arith.constant dense<0.000000e+00> : vector<8x8xf32>
    %295 = tpu.matmul %294, %278, %cst_82 {dimension_numbers = #tpu.dot_dimension_numbers<[1], [0], [0], [1], [0, 0, 1, 1], [], []>} : vector<8x8xf32>, vector<8x8xf32>, vector<8x8xf32> -> vector<8x8xf32>
    %296 = vector.extract_strided_slice %190 {offsets = [8, 8], sizes = [8, 8], strides = [1, 1]} : vector<16x32xf32> to vector<8x8xf32>
    %297 = vector.extract_strided_slice %193 {offsets = [8, 8], sizes = [8, 8], strides = [1, 1]} : vector<16x32xf32> to vector<8x8xf32>
    %298 = vector.extract_strided_slice %194 {offsets = [8, 8], sizes = [8, 8], strides = [1, 1]} : vector<16x32xf32> to vector<8x8xf32>
    %299 = tpu.transpose %297, [1, 0] : vector<8x8xf32> -> vector<8x8xf32>
    %cst_83 = arith.constant dense<0.000000e+00> : vector<8x8xf32>
    %300 = tpu.matmul %296, %299, %cst_83 {dimension_numbers = #tpu.dot_dimension_numbers<[1], [0], [0], [1], [0, 0, 1, 1], [], []>} : vector<8x8xf32>, vector<8x8xf32>, vector<8x8xf32> -> vector<8x8xf32>
    %301 = vector.extract_strided_slice %7 {offsets = [1, 0], sizes = [1, 8], strides = [1, 1]} : vector<2x8xf32> to vector<1x8xf32>
    %302 = vector.shape_cast %301 : vector<1x8xf32> to vector<8xf32>
    %303 = vector.shape_cast %302 : vector<8xf32> to vector<1x8xf32>
    %304 = vector.broadcast %303 : vector<1x8xf32> to vector<8x8xf32>
    %305 = arith.addf %300, %304 : vector<8x8xf32>
    %cst_84 = arith.constant dense<0xFF800000> : vector<8xf32>
    %306 = vector.multi_reduction <maximumf>, %305, %cst_84 [1] : vector<8x8xf32> to vector<8xf32>
    %307 = vector.shape_cast %306 : vector<8xf32> to vector<8x1xf32>
    %308 = vector.broadcast %307 : vector<8x1xf32> to vector<8x8xf32>
    %309 = arith.subf %305, %308 : vector<8x8xf32>
    %310 = math.exp %309 : vector<8x8xf32>
    %cst_85 = arith.constant dense<0.000000e+00> : vector<8xf32>
    %311 = vector.multi_reduction <add>, %310, %cst_85 [1] : vector<8x8xf32> to vector<8xf32>
    %312 = vector.shape_cast %311 : vector<8xf32> to vector<8x1xf32>
    %313 = vector.broadcast %312 : vector<8x1xf32> to vector<8x8xf32>
    %314 = arith.divf %310, %313 : vector<8x8xf32>
    %cst_86 = arith.constant dense<0.000000e+00> : vector<8x8xf32>
    %315 = tpu.matmul %314, %298, %cst_86 {dimension_numbers = #tpu.dot_dimension_numbers<[1], [0], [0], [1], [0, 0, 1, 1], [], []>} : vector<8x8xf32>, vector<8x8xf32>, vector<8x8xf32> -> vector<8x8xf32>
    %316 = vector.extract_strided_slice %190 {offsets = [8, 16], sizes = [8, 8], strides = [1, 1]} : vector<16x32xf32> to vector<8x8xf32>
    %317 = vector.extract_strided_slice %193 {offsets = [8, 16], sizes = [8, 8], strides = [1, 1]} : vector<16x32xf32> to vector<8x8xf32>
    %318 = vector.extract_strided_slice %194 {offsets = [8, 16], sizes = [8, 8], strides = [1, 1]} : vector<16x32xf32> to vector<8x8xf32>
    %319 = tpu.transpose %317, [1, 0] : vector<8x8xf32> -> vector<8x8xf32>
    %cst_87 = arith.constant dense<0.000000e+00> : vector<8x8xf32>
    %320 = tpu.matmul %316, %319, %cst_87 {dimension_numbers = #tpu.dot_dimension_numbers<[1], [0], [0], [1], [0, 0, 1, 1], [], []>} : vector<8x8xf32>, vector<8x8xf32>, vector<8x8xf32> -> vector<8x8xf32>
    %321 = vector.extract_strided_slice %7 {offsets = [1, 0], sizes = [1, 8], strides = [1, 1]} : vector<2x8xf32> to vector<1x8xf32>
    %322 = vector.shape_cast %321 : vector<1x8xf32> to vector<8xf32>
    %323 = vector.shape_cast %322 : vector<8xf32> to vector<1x8xf32>
    %324 = vector.broadcast %323 : vector<1x8xf32> to vector<8x8xf32>
    %325 = arith.addf %320, %324 : vector<8x8xf32>
    %cst_88 = arith.constant dense<0xFF800000> : vector<8xf32>
    %326 = vector.multi_reduction <maximumf>, %325, %cst_88 [1] : vector<8x8xf32> to vector<8xf32>
    %327 = vector.shape_cast %326 : vector<8xf32> to vector<8x1xf32>
    %328 = vector.broadcast %327 : vector<8x1xf32> to vector<8x8xf32>
    %329 = arith.subf %325, %328 : vector<8x8xf32>
    %330 = math.exp %329 : vector<8x8xf32>
    %cst_89 = arith.constant dense<0.000000e+00> : vector<8xf32>
    %331 = vector.multi_reduction <add>, %330, %cst_89 [1] : vector<8x8xf32> to vector<8xf32>
    %332 = vector.shape_cast %331 : vector<8xf32> to vector<8x1xf32>
    %333 = vector.broadcast %332 : vector<8x1xf32> to vector<8x8xf32>
    %334 = arith.divf %330, %333 : vector<8x8xf32>
    %cst_90 = arith.constant dense<0.000000e+00> : vector<8x8xf32>
    %335 = tpu.matmul %334, %318, %cst_90 {dimension_numbers = #tpu.dot_dimension_numbers<[1], [0], [0], [1], [0, 0, 1, 1], [], []>} : vector<8x8xf32>, vector<8x8xf32>, vector<8x8xf32> -> vector<8x8xf32>
    %336 = vector.extract_strided_slice %190 {offsets = [8, 24], sizes = [8, 8], strides = [1, 1]} : vector<16x32xf32> to vector<8x8xf32>
    %337 = vector.extract_strided_slice %193 {offsets = [8, 24], sizes = [8, 8], strides = [1, 1]} : vector<16x32xf32> to vector<8x8xf32>
    %338 = vector.extract_strided_slice %194 {offsets = [8, 24], sizes = [8, 8], strides = [1, 1]} : vector<16x32xf32> to vector<8x8xf32>
    %339 = tpu.transpose %337, [1, 0] : vector<8x8xf32> -> vector<8x8xf32>
    %cst_91 = arith.constant dense<0.000000e+00> : vector<8x8xf32>
    %340 = tpu.matmul %336, %339, %cst_91 {dimension_numbers = #tpu.dot_dimension_numbers<[1], [0], [0], [1], [0, 0, 1, 1], [], []>} : vector<8x8xf32>, vector<8x8xf32>, vector<8x8xf32> -> vector<8x8xf32>
    %341 = vector.extract_strided_slice %7 {offsets = [1, 0], sizes = [1, 8], strides = [1, 1]} : vector<2x8xf32> to vector<1x8xf32>
    %342 = vector.shape_cast %341 : vector<1x8xf32> to vector<8xf32>
    %343 = vector.shape_cast %342 : vector<8xf32> to vector<1x8xf32>
    %344 = vector.broadcast %343 : vector<1x8xf32> to vector<8x8xf32>
    %345 = arith.addf %340, %344 : vector<8x8xf32>
    %cst_92 = arith.constant dense<0xFF800000> : vector<8xf32>
    %346 = vector.multi_reduction <maximumf>, %345, %cst_92 [1] : vector<8x8xf32> to vector<8xf32>
    %347 = vector.shape_cast %346 : vector<8xf32> to vector<8x1xf32>
    %348 = vector.broadcast %347 : vector<8x1xf32> to vector<8x8xf32>
    %349 = arith.subf %345, %348 : vector<8x8xf32>
    %350 = math.exp %349 : vector<8x8xf32>
    %cst_93 = arith.constant dense<0.000000e+00> : vector<8xf32>
    %351 = vector.multi_reduction <add>, %350, %cst_93 [1] : vector<8x8xf32> to vector<8xf32>
    %352 = vector.shape_cast %351 : vector<8xf32> to vector<8x1xf32>
    %353 = vector.broadcast %352 : vector<8x1xf32> to vector<8x8xf32>
    %354 = arith.divf %350, %353 : vector<8x8xf32>
    %cst_94 = arith.constant dense<0.000000e+00> : vector<8x8xf32>
    %355 = tpu.matmul %354, %338, %cst_94 {dimension_numbers = #tpu.dot_dimension_numbers<[1], [0], [0], [1], [0, 0, 1, 1], [], []>} : vector<8x8xf32>, vector<8x8xf32>, vector<8x8xf32> -> vector<8x8xf32>
    %356 = tpu.concatenate %295, %315, %335, %355 in 1 : vector<8x8xf32>, vector<8x8xf32>, vector<8x8xf32>, vector<8x8xf32> -> vector<8x32xf32>
    %357 = tpu.concatenate %275, %356 in 0 : vector<8x32xf32>, vector<8x32xf32> -> vector<16x32xf32>
    %c0_95 = arith.constant 0 : index
    %c0_96 = arith.constant 0 : index
    %358 = vector.load %arg11[%c0_95, %c0_96] : memref<32x32xf32, #tpu.memory_space<vmem>>, vector<32x32xf32>
    %cst_97 = arith.constant dense<0.000000e+00> : vector<16x32xf32>
    %359 = tpu.matmul %357, %358, %cst_97 {dimension_numbers = #tpu.dot_dimension_numbers<[1], [0], [0], [1], [0, 0, 1, 1], [], []>} : vector<16x32xf32>, vector<32x32xf32>, vector<16x32xf32> -> vector<16x32xf32>
    %360 = arith.addf %175, %359 : vector<16x32xf32>
    %c0_98 = arith.constant 0 : index
    %c0_99 = arith.constant 0 : index
    %361 = vector.load %arg12[%c0_98, %c0_99] : memref<1x32xf32, #tpu.memory_space<vmem>>, vector<1x32xf32>
    %362 = arith.mulf %360, %360 : vector<16x32xf32>
    %cst_100 = arith.constant dense<0.000000e+00> : vector<16xf32>
    %363 = vector.multi_reduction <add>, %362, %cst_100 [1] : vector<16x32xf32> to vector<16xf32>
    %364 = vector.shape_cast %363 : vector<16xf32> to vector<16x1xf32>
    %cst_101 = arith.constant 3.200000e+01 : f32
    %365 = vector.broadcast %cst_101 : f32 to vector<16x1xf32>
    %366 = arith.divf %364, %365 : vector<16x1xf32>
    %cst_102 = arith.constant 9.99999997E-7 : f32
    %367 = vector.broadcast %cst_102 : f32 to vector<16x1xf32>
    %368 = arith.addf %366, %367 : vector<16x1xf32>
    %369 = math.rsqrt %368 : vector<16x1xf32>
    %370 = vector.broadcast %369 : vector<16x1xf32> to vector<16x32xf32>
    %371 = arith.mulf %360, %370 : vector<16x32xf32>
    %372 = vector.broadcast %361 : vector<1x32xf32> to vector<16x32xf32>
    %373 = arith.mulf %371, %372 : vector<16x32xf32>
    %c0_103 = arith.constant 0 : index
    %c0_104 = arith.constant 0 : index
    %374 = vector.load %arg13[%c0_103, %c0_104] : memref<32x64xf32, #tpu.memory_space<vmem>>, vector<32x64xf32>
    %cst_105 = arith.constant dense<0.000000e+00> : vector<16x64xf32>
    %375 = tpu.matmul %373, %374, %cst_105 {dimension_numbers = #tpu.dot_dimension_numbers<[1], [0], [0], [1], [0, 0, 1, 1], [], []>} : vector<16x32xf32>, vector<32x64xf32>, vector<16x64xf32> -> vector<16x64xf32>
    %cst_106 = arith.constant 0.000000e+00 : f32
    %376 = vector.broadcast %cst_106 : f32 to vector<16x64xf32>
    %377 = arith.maximumf %375, %376 : vector<16x64xf32>
    %c0_107 = arith.constant 0 : index
    %c0_108 = arith.constant 0 : index
    %378 = vector.load %arg14[%c0_107, %c0_108] : memref<64x32xf32, #tpu.memory_space<vmem>>, vector<64x32xf32>
    %cst_109 = arith.constant dense<0.000000e+00> : vector<16x32xf32>
    %379 = tpu.matmul %377, %378, %cst_109 {dimension_numbers = #tpu.dot_dimension_numbers<[1], [0], [0], [1], [0, 0, 1, 1], [], []>} : vector<16x64xf32>, vector<64x32xf32>, vector<16x32xf32> -> vector<16x32xf32>
    %380 = arith.addf %360, %379 : vector<16x32xf32>
    %c0_110 = arith.constant 0 : index
    %c0_111 = arith.constant 0 : index
    %381 = vector.load %arg15[%c0_110, %c0_111] : memref<16x32xf32, #tpu.memory_space<vmem>>, vector<16x32xf32>
    tpu.vector_store %arg15[%c0_110, %c0_111], %380 {strides = array<i32>} : memref<16x32xf32, #tpu.memory_space<vmem>>, vector<16x32xf32>,
    return
  }
  func.func @transform_0(%arg0: i32) -> (i32, i32) {
    %c0_i32 = arith.constant 0 : i32
    %c0_i32_0 = arith.constant 0 : i32
    %c0_i32_1 = arith.constant 0 : i32
    return %c0_i32, %c0_i32_0 : i32, i32
  }
  func.func @transform_1(%arg0: i32) -> (i32, i32) {
    %c0_i32 = arith.constant 0 : i32
    %c0_i32_0 = arith.constant 0 : i32
    %c0_i32_1 = arith.constant 0 : i32
    return %c0_i32, %c0_i32_0 : i32, i32
  }
  func.func @transform_2(%arg0: i32) -> (i32, i32) {
    %c0_i32 = arith.constant 0 : i32
    %c0_i32_0 = arith.constant 0 : i32
    %c0_i32_1 = arith.constant 0 : i32
    return %c0_i32, %c0_i32_0 : i32, i32
  }
  func.func @transform_3(%arg0: i32) -> (i32, i32, i32) {
    %c0_i32 = arith.constant 0 : i32
    %c0_i32_0 = arith.constant 0 : i32
    %c0_i32_1 = arith.constant 0 : i32
    %c0_i32_2 = arith.constant 0 : i32
    return %c0_i32, %c0_i32_0, %c0_i32_1 : i32, i32, i32
  }
  func.func @transform_4(%arg0: i32) -> (i32, i32) {
    %c0_i32 = arith.constant 0 : i32
    %c0_i32_0 = arith.constant 0 : i32
    %c0_i32_1 = arith.constant 0 : i32
    return %c0_i32, %c0_i32_0 : i32, i32
  }
  func.func @transform_5(%arg0: i32) -> (i32, i32) {
    %c0_i32 = arith.constant 0 : i32
    %c0_i32_0 = arith.constant 0 : i32
    %c0_i32_1 = arith.constant 0 : i32
    return %c0_i32, %c0_i32_0 : i32, i32
  }
  func.func @transform_6(%arg0: i32) -> (i32, i32) {
    %c0_i32 = arith.constant 0 : i32
    %c0_i32_0 = arith.constant 0 : i32
    %c0_i32_1 = arith.constant 0 : i32
    return %c0_i32, %c0_i32_0 : i32, i32
  }
  func.func @transform_7(%arg0: i32) -> (i32, i32) {
    %c0_i32 = arith.constant 0 : i32
    %c0_i32_0 = arith.constant 0 : i32
    %c0_i32_1 = arith.constant 0 : i32
    return %c0_i32, %c0_i32_0 : i32, i32
  }
  func.func @transform_8(%arg0: i32) -> (i32, i32) {
    %c0_i32 = arith.constant 0 : i32
    %c0_i32_0 = arith.constant 0 : i32
    %c0_i32_1 = arith.constant 0 : i32
    return %c0_i32, %c0_i32_0 : i32, i32
  }
  func.func @transform_9(%arg0: i32) -> (i32, i32) {
    %c0_i32 = arith.constant 0 : i32
    %c0_i32_0 = arith.constant 0 : i32
    %c0_i32_1 = arith.constant 0 : i32
    return %c0_i32, %c0_i32_0 : i32, i32
  }
  func.func @transform_10(%arg0: i32) -> (i32, i32) {
    %c0_i32 = arith.constant 0 : i32
    %c0_i32_0 = arith.constant 0 : i32
    %c0_i32_1 = arith.constant 0 : i32
    return %c0_i32, %c0_i32_0 : i32, i32
  }
  func.func @transform_11(%arg0: i32) -> (i32, i32) {
    %c0_i32 = arith.constant 0 : i32
    %c0_i32_0 = arith.constant 0 : i32
    %c0_i32_1 = arith.constant 0 : i32
    return %c0_i32, %c0_i32_0 : i32, i32
  }
  func.func @transform_12(%arg0: i32) -> (i32, i32) {
    %c0_i32 = arith.constant 0 : i32
    %c0_i32_0 = arith.constant 0 : i32
    %c0_i32_1 = arith.constant 0 : i32
    return %c0_i32, %c0_i32_0 : i32, i32
  }
  func.func @transform_13(%arg0: i32) -> (i32, i32) {
    %c0_i32 = arith.constant 0 : i32
    %c0_i32_0 = arith.constant 0 : i32
    %c0_i32_1 = arith.constant 0 : i32
    return %c0_i32, %c0_i32_0 : i32, i32
  }
  func.func @transform_14(%arg0: i32) -> (i32, i32) {
    %c0_i32 = arith.constant 0 : i32
    %c0_i32_0 = arith.constant 0 : i32
    %c0_i32_1 = arith.constant 0 : i32
    return %c0_i32, %c0_i32_0 : i32, i32
  }
}

</mosaic_0001>

<llo_original>
// kernel: _lambda_.9
$region0: #{_lambda_.9}
  #allocation0 [shape = 'u32[]', space=smem, size = 0x4, offset = 0x4, fixed_abs, tag = 'smem constant byte address 0x4 - core index']
  #allocation1 [shape = 'u32[144,128]{1,0:T(1,128)}', space=vmem, size = 0x12000, scoped, tag = 'internal scratch']
  %s0 = inlined_call_operand.vmem [shape: f32[16,32], index: 0, kind: input, shape index: {}]
  %s1 = inlined_call_operand.vmem [shape: f32[1,32], index: 1, kind: input, shape index: {}]
  %s2 = inlined_call_operand.vmem [shape: f32[32,64], index: 2, kind: input, shape index: {}]
  %s3 = inlined_call_operand.vmem [shape: s32[16,1], index: 3, kind: input, shape index: {}]
  %s4 = inlined_call_operand.vmem [shape: f32[16,1], index: 4, kind: output, shape index: {0}]
  %s5 = inlined_call_operand.vmem [shape: s32[16,1], index: 5, kind: output, shape index: {1}]
  %6 = xla_tuple %s4, %s5
  %s7 = sld [smem:[#allocation0]]
  $region34: #{_lambda_.9} parent=0
    _
  %s9 = ssub.s32 1, %s7
  %s10 = scalar_select 0, %s9, %s7
  // Predicated region
  $region2: #{_lambda_.9} parent=0 // pred_check
    _
  $region3: #{_lambda_.9} parent=0 // pred_check_branch
    %12 = sbr.rel (0) target = $region5
  $region4: #{_lambda_.9} parent=0 // pred_region
    _
  $region5: #{_lambda_.9} parent=0 // pred_fallthru
    _
  // Predicated region
  $region6: #{_lambda_.9} parent=0 // pred_check
    _
  $region7: #{_lambda_.9} parent=0 // pred_check_branch
    %14 = sbr.rel (0) target = $region9
  $region8: #{_lambda_.9} parent=0 // pred_region
    _
  $region9: #{_lambda_.9} parent=0 // pred_fallthru
    _
  // Predicated region
  $region10: #{_lambda_.9} parent=0 // pred_check
    _
  $region11: #{_lambda_.9} parent=0 // pred_check_branch
    %16 = sbr.rel (0) target = $region13
  $region12: #{_lambda_.9} parent=0 // pred_region
    _
  $region13: #{_lambda_.9} parent=0 // pred_fallthru
    _
  // Predicated region
  $region14: #{_lambda_.9} parent=0 // pred_check
    _
  $region15: #{_lambda_.9} parent=0 // pred_check_branch
    %18 = sbr.rel (0) target = $region17
  $region16: #{_lambda_.9} parent=0 // pred_region
    _
  $region17: #{_lambda_.9} parent=0 // pred_fallthru
    _
  %v19 = vld [vmem:[%s0] sm:$0xff]
  %v20 = vld [vmem:[%s0 + $0x8] sm:$0xff]
  %v21 = vld [vmem:[%s1] sm:$0x1]
  %v22 = vmul.f32 %v19, %v19
  %v23 = vmul.f32 %v20, %v20
  %vm24 = vcmask 261120
  %v25 = vsel %vm24, %v22, 0.0
  %26 = vadd.xlane.f32.xlu0 %v25
  %v27 = vpop.xlane.xlu0 %26
  %v28 = vsel %vm24, %v23, 0.0
  %29 = vadd.xlane.f32.xlu0 %v28
  %v30 = vpop.xlane.xlu0 %29
  %v31 = vrcp.pop 32.0
  %v32 = vmul.f32 %v27, %v31
  %v33 = vmul.f32 %v30, %v31
  %v34 = vadd.f32 %v32, 1e-06
  %v35 = vadd.f32 %v33, 1e-06
  %v36 = vrsqrt.pop %v34
  %v37 = vrsqrt.pop %v35
  %v38 = vmul.f32 %v19, %v36
  %v39 = vmul.f32 %v20, %v37
  %v41 = vlaneseq
  %v42 = vshrl.u32 %v41, 7
  %v43 = vsub.s32 0, %v42
  %v44 = vrot.slane %v21, %v43
  %v46 = vmul.f32 %v38, %v44
  %v47 = vmul.f32 %v39, %v44
  %v48 = vmul.f32 %v46, 0.17677669
  %v49 = vmul.f32 %v47, 0.17677669
  %v50 = vld [vmem:[%s2] sm:$0xff]
  %v51 = vld [vmem:[%s2 + $0x8] sm:$0xff]
  %v52 = vld [vmem:[%s2 + $0x10] sm:$0xff]
  %v53 = vld [vmem:[%s2 + $0x18] sm:$0xff]
  %v55 = vsel %vm24, %v48, 0
  %v58 = vsel %vm24, %v49, 0
  %60 = vmatprep.subr.mxu0 0.0
  %61 = vmatpush1.msra.mxu0 0.0
  %62 = vmatprep.subr.mxu0 0.0
  %63 = vmatpush1.msra.mxu0 0.0
  %64 = vmatprep.subr.mxu0 0.0
  %65 = vmatpush1.msra.mxu0 0.0
  %66 = vmatprep.subr.mxu0 0.0
  %67 = vmatpush1.msra.mxu0 0.0
  %68 = vmatprep.subr.mxu0 0.0
  %69 = vmatpush1.msra.mxu0 0.0
  %70 = vmatprep.subr.mxu0 0.0
  %71 = vmatpush1.msra.mxu0 0.0
  %72 = vmatprep.subr.mxu0 0.0
  %73 = vmatpush1.msra.mxu0 0.0
  %74 = vmatprep.subr.mxu0 0.0
  %75 = vmatpush1.msra.mxu0 0.0
  %76 = vmatprep.subr.mxu0 0.0
  %77 = vmatpush1.msra.mxu0 0.0
  %78 = vmatprep.subr.mxu0 0.0
  %79 = vmatpush1.msra.mxu0 0.0
  %80 = vmatprep.subr.mxu0 0.0
  %81 = vmatpush1.msra.mxu0 0.0
  %82 = vmatprep.subr.mxu0 0.0
  %83 = vmatpush1.msra.mxu0 0.0
  %84 = vmatprep.subr.mxu0 0.0
  %85 = vmatpush1.msra.mxu0 %v53
  %86 = vmatprep.subr.mxu0 0.0
  %87 = vmatpush1.msra.mxu0 %v52
  %88 = vmatprep.subr.mxu0 0.0
  %89 = vmatpush1.msra.mxu0 %v51
  %90 = vmatprep.subr.mxu0 0.0
  %91 = vmatpush1.msra.mxu0 %v50
  %92 = vmatprep.subr.mxu0 0.0
  %93 = vmatpush2.msra.mxu0 0.0
  %94 = vmatprep.subr.mxu0 0.0
  %95 = vmatpush2.msra.mxu0 0.0
  %96 = vmatprep.subr.mxu0 0.0
  %97 = vmatpush2.msra.mxu0 0.0
  %98 = vmatprep.subr.mxu0 0.0
  %99 = vmatpush2.msra.mxu0 0.0
  %100 = vmatprep.subr.mxu0 0.0
  %101 = vmatpush2.msra.mxu0 0.0
  %102 = vmatprep.subr.mxu0 0.0
  %103 = vmatpush2.msra.mxu0 0.0
  %104 = vmatprep.subr.mxu0 0.0
  %105 = vmatpush2.msra.mxu0 0.0
  %106 = vmatprep.subr.mxu0 0.0
  %107 = vmatpush2.msra.mxu0 0.0
  %108 = vmatprep.subr.mxu0 0.0
  %109 = vmatpush2.msra.mxu0 0.0
  %110 = vmatprep.subr.mxu0 0.0
  %111 = vmatpush2.msra.mxu0 0.0
  %112 = vmatprep.subr.mxu0 0.0
  %113 = vmatpush2.msra.mxu0 0.0
  %114 = vmatprep.subr.mxu0 0.0
  %115 = vmatpush2.msra.mxu0 0.0
  %116 = vmatprep.subr.mxu0 0.0
  %117 = vmatpush2.msra.mxu0 0.0
  %118 = vmatprep.subr.mxu0 0.0
  %119 = vmatpush2.msra.mxu0 0.0
  %120 = vmatprep.subr.mxu0 0.0
  %121 = vmatpush2.msra.mxu0 0.0
  %122 = vmatprep.subr.mxu0 0.0
  %123 = vmatpush2.msra.mxu0 0.0
  %124 = vmatprep.mubr.f32.mxu0 0.0
  %125 = vmatmul.mubr.f32.gmra.mxu0 %v55
  %v126 = vpop.f32.mrf.mxu0
  %v127 = vadd.f32 0.0, %v126
  %v128 = vpop.f32.mrf.mxu0
  %129 = vmatprep.mubr.f32.mxu0 0.0
  %130 = vmatmul.mubr.f32.gmra.mxu0 %v58
  %v131 = vpop.f32.mrf.mxu0
  %v132 = vadd.f32 0.0, %v131
  %v133 = vpop.f32.mrf.mxu0
  %134 = vdwg.mxu0
  %vm135 = vcmask 523264
  %v136 = vsel %vm135, %v127, -inf
  %137 = vmax.xlane.f32.xlu0 %v136
  %v138 = vpop.xlane.xlu0 %137
  %v139 = vsel %vm135, %v132, -inf
  %140 = vmax.xlane.f32.xlu0 %v139
  %v141 = vpop.xlane.xlu0 %140
  %v142 = vsub.f32 %v127, %v138
  %v143 = vsub.f32 %v132, %v141
  %v144 = vmul.f32 %v142, 1.442695
  %v145 = vpow.pop %v144
  %v146 = vmul.f32 %v143, 1.442695
  %v147 = vpow.pop %v146
  %v148 = vsel %vm135, %v145, 0.0
  %149 = vadd.xlane.f32.xlu0 %v148
  %v150 = vpop.xlane.xlu0 %149
  %v151 = vsel %vm135, %v147, 0.0
  %152 = vadd.xlane.f32.xlu0 %v151
  %v153 = vpop.xlane.xlu0 %152
  %v154 = vlog2.pop %v150
  %v155 = vmul.f32 %v154, 0.6931472
  %v156 = vlog2.pop %v153
  %v157 = vmul.f32 %v156, 0.6931472
  %v158 = vsub.f32 %v142, %v155
  %v159 = vsub.f32 %v143, %v157
  %v160 = vld [vmem:[%s3] sm:$0xff]
  %v161 = vld [vmem:[%s3 + $0x8] sm:$0xff]
  %v162 = vlaneseq
  %v163 = vand.u32 %v162, 127
  %164 = vset.pattern.permute.xlu0 0
  %165 = vperm.xlu0 %164, %v160
  %v166 = vpop.permute.xlu0 %165
  %167 = vset.pattern.permute.xlu0 0
  %168 = vperm.xlu0 %167, %v161
  %v169 = vpop.permute.xlu0 %168
  %vm170 = vcmp.eq.s32.totalorder %v163, %v166
  %vm171 = vcmp.eq.s32.totalorder %v163, %v169
  %v172 = vsel %vm170, 1, 0
  %v173 = vsel %vm171, 1, 0
  %v174 = vcvt.s32.f32 %v172
  %v175 = vcvt.s32.f32 %v173
  %vm176 = vcmp.ne.s32.totalorder %v160, 4294967196
  %vm177 = vcmp.ne.s32.totalorder %v161, 4294967196
  %v178 = vsel %vm176, 1, 0
  %v179 = vsel %vm177, 1, 0
  %v180 = vcvt.s32.f32 %v178
  %v181 = vcvt.s32.f32 %v179
  %v182 = vmul.f32 %v158, %v174
  %v183 = vmul.f32 %v159, %v175
  %v184 = vsel %vm135, %v182, 0.0
  %185 = vadd.xlane.f32.xlu0 %v184
  %v186 = vpop.xlane.xlu0 %185
  %v187 = vsel %vm135, %v183, 0.0
  %188 = vadd.xlane.f32.xlu0 %v187
  %v189 = vpop.xlane.xlu0 %188
  %v190 = vsub.f32 0.0, %v186
  %v191 = vsub.f32 0.0, %v189
  %v192 = vmul.f32 %v190, %v180
  %v193 = vmul.f32 %v191, %v181
  %vm194 = vcmask 7168
  %195 = vst.msk [vmem:[%s4] sm:$0xff] %vm194, %v192
  %196 = vst.msk [vmem:[%s4 + $0x8] sm:$0xff] %vm194, %v193
  %vm197 = vcmp.ge.f32.partialorder %v127, %v138
  %vm198 = vcmp.ge.f32.partialorder %v132, %v141
  %v199 = vsel %vm197, %v163, 64
  %v200 = vsel %vm198, %v163, 64
  %v201 = vsel %vm135, %v199, 2147483647
  %v202 = vand.u32 %v201, 65535
  %v203 = vshra.s32 %v201, 16
  %v204 = vcvt.s32.f32 %v202
  %v205 = vcvt.s32.f32 %v203
  %206 = vmin.xlane.f32.xlu0 %v205
  %v207 = vpop.xlane.xlu0 %206
  %vm208 = vcmp.eq.f32.partialorder %v205, %v207
  %v209 = vsel %vm208, %v204, inf
  %210 = vmin.xlane.f32.xlu0 %v209
  %v211 = vpop.xlane.xlu0 %210
  %v212 = vcvt.f32.s32 %v211
  %v213 = vcvt.f32.s32 %v207
  %v214 = vshll.u32 %v213, 16
  %v215 = vadd.s32 %v214, %v212
  %v216 = vsel %vm135, %v200, 2147483647
  %v217 = vand.u32 %v216, 65535
  %v218 = vshra.s32 %v216, 16
  %v219 = vcvt.s32.f32 %v217
  %v220 = vcvt.s32.f32 %v218
  %221 = vmin.xlane.f32.xlu0 %v220
  %v222 = vpop.xlane.xlu0 %221
  %vm223 = vcmp.eq.f32.partialorder %v220, %v222
  %v224 = vsel %vm223, %v219, inf
  %225 = vmin.xlane.f32.xlu0 %v224
  %v226 = vpop.xlane.xlu0 %225
  %v227 = vcvt.f32.s32 %v226
  %v228 = vcvt.f32.s32 %v222
  %v229 = vshll.u32 %v228, 16
  %v230 = vadd.s32 %v229, %v227
  %231 = vst.msk [vmem:[%s5] sm:$0xff] %vm194, %v215
  %232 = vst.msk [vmem:[%s5 + $0x8] sm:$0xff] %vm194, %v230
  // Predicated region
  $region18: #{_lambda_.9} parent=0 // pred_check
    _
  $region19: #{_lambda_.9} parent=0 // pred_check_branch
    %234 = sbr.rel (0) target = $region21
  $region20: #{_lambda_.9} parent=0 // pred_region
    _
  $region21: #{_lambda_.9} parent=0 // pred_fallthru
    _
  // Predicated region
  $region22: #{_lambda_.9} parent=0 // pred_check
    _
  $region23: #{_lambda_.9} parent=0 // pred_check_branch
    %236 = sbr.rel (0) target = $region25
  $region24: #{_lambda_.9} parent=0 // pred_region
    _
  $region25: #{_lambda_.9} parent=0 // pred_fallthru
    _
  // Predicated region
  $region26: #{_lambda_.9} parent=0 // pred_check
    _
  $region27: #{_lambda_.9} parent=0 // pred_check_branch
    %238 = sbr.rel (0) target = $region29
  $region28: #{_lambda_.9} parent=0 // pred_region
    _
  $region29: #{_lambda_.9} parent=0 // pred_fallthru
    _
  // Predicated region
  $region30: #{_lambda_.9} parent=0 // pred_check
    _
  $region31: #{_lambda_.9} parent=0 // pred_check_branch
    %240 = sbr.rel (0) target = $region33
  $region32: #{_lambda_.9} parent=0 // pred_region
    _
  $region33: #{_lambda_.9} parent=0 // pred_fallthru
    _

// kernel: _lambda_.5
$region0: #{_lambda_.5}
  #allocation0 [shape = 'u32[]', space=smem, size = 0x4, offset = 0x4, fixed_abs, tag = 'smem constant byte address 0x4 - core index']
  #allocation1 [shape = 'u32[144,128]{1,0:T(1,128)}', space=vmem, size = 0x12000, scoped, tag = 'internal scratch']
  %s0 = inlined_call_operand.vmem [shape: f32[16,32], index: 0, kind: input, shape index: {}]
  %s1 = inlined_call_operand.vmem [shape: f32[2,8], index: 1, kind: input, shape index: {}]
  %s2 = inlined_call_operand.vmem [shape: f32[4,8,8], index: 2, kind: input, shape index: {}]
  %s3 = inlined_call_operand.vmem [shape: f32[1,32], index: 3, kind: input, shape index: {}, may-alias: {3,6,9}]
  %s4 = inlined_call_operand.vmem [shape: f32[32,96], index: 4, kind: input, shape index: {}]
  %s5 = inlined_call_operand.vmem [shape: f32[32,32], index: 5, kind: input, shape index: {}]
  %s6 = inlined_call_operand.vmem [shape: f32[1,32], index: 6, kind: input, shape index: {}, may-alias: {3,6,9}]
  %s7 = inlined_call_operand.vmem [shape: f32[32,64], index: 7, kind: input, shape index: {}]
  %s8 = inlined_call_operand.vmem [shape: f32[64,32], index: 8, kind: input, shape index: {}]
  %s9 = inlined_call_operand.vmem [shape: f32[1,32], index: 9, kind: input, shape index: {}, may-alias: {3,6,9}]
  %s10 = inlined_call_operand.vmem [shape: f32[16,32], index: 10, kind: output, shape index: {}]
  %s11 = sld [smem:[#allocation0]]
  $region50: #{_lambda_.5} parent=0
    _
  %s13 = ssub.s32 1, %s11
  %s14 = scalar_select 0, %s13, %s11
  // Predicated region
  $region2: #{_lambda_.5} parent=0 // pred_check
    _
  $region3: #{_lambda_.5} parent=0 // pred_check_branch
    %16 = sbr.rel (0) target = $region5
  $region4: #{_lambda_.5} parent=0 // pred_region
    _
  $region5: #{_lambda_.5} parent=0 // pred_fallthru
    _
  // Predicated region
  $region6: #{_lambda_.5} parent=0 // pred_check
    _
  $region7: #{_lambda_.5} parent=0 // pred_check_branch
    %18 = sbr.rel (0) target = $region9
  $region8: #{_lambda_.5} parent=0 // pred_region
    _
  $region9: #{_lambda_.5} parent=0 // pred_fallthru
    _
  // Predicated region
  $region10: #{_lambda_.5} parent=0 // pred_check
    _
  $region11: #{_lambda_.5} parent=0 // pred_check_branch
    %20 = sbr.rel (0) target = $region13
  $region12: #{_lambda_.5} parent=0 // pred_region
    _
  $region13: #{_lambda_.5} parent=0 // pred_fallthru
    _
  // Predicated region
  $region14: #{_lambda_.5} parent=0 // pred_check
    _
  $region15: #{_lambda_.5} parent=0 // pred_check_branch
    %22 = sbr.rel (0) target = $region17
  $region16: #{_lambda_.5} parent=0 // pred_region
    _
  $region17: #{_lambda_.5} parent=0 // pred_fallthru
    _
  // Predicated region
  $region18: #{_lambda_.5} parent=0 // pred_check
    _
  $region19: #{_lambda_.5} parent=0 // pred_check_branch
    %24 = sbr.rel (0) target = $region21
  $region20: #{_lambda_.5} parent=0 // pred_region
    _
  $region21: #{_lambda_.5} parent=0 // pred_fallthru
    _
  // Predicated region
  $region22: #{_lambda_.5} parent=0 // pred_check
    _
  $region23: #{_lambda_.5} parent=0 // pred_check_branch
    %26 = sbr.rel (0) target = $region25
  $region24: #{_lambda_.5} parent=0 // pred_region
    _
  $region25: #{_lambda_.5} parent=0 // pred_fallthru
    _
  // Predicated region
  $region26: #{_lambda_.5} parent=0 // pred_check
    _
  $region27: #{_lambda_.5} parent=0 // pred_check_branch
    %28 = sbr.rel (0) target = $region29
  $region28: #{_lambda_.5} parent=0 // pred_region
    _
  $region29: #{_lambda_.5} parent=0 // pred_fallthru
    _
  // Predicated region
  $region30: #{_lambda_.5} parent=0 // pred_check
    _
  $region31: #{_lambda_.5} parent=0 // pred_check_branch
    %30 = sbr.rel (0) target = $region33
  $region32: #{_lambda_.5} parent=0 // pred_region
    _
  $region33: #{_lambda_.5} parent=0 // pred_fallthru
    _
  // Predicated region
  $region34: #{_lambda_.5} parent=0 // pred_check
    _
  $region35: #{_lambda_.5} parent=0 // pred_check_branch
    %32 = sbr.rel (0) target = $region37
  $region36: #{_lambda_.5} parent=0 // pred_region
    _
  $region37: #{_lambda_.5} parent=0 // pred_fallthru
    _
  // Predicated region
  $region38: #{_lambda_.5} parent=0 // pred_check
    _
  $region39: #{_lambda_.5} parent=0 // pred_check_branch
    %34 = sbr.rel (0) target = $region41
  $region40: #{_lambda_.5} parent=0 // pred_region
    _
  $region41: #{_lambda_.5} parent=0 // pred_fallthru
    _
  %v35 = vld [vmem:[%s0] sm:$0xff]
  %v36 = vld [vmem:[%s0 + $0x8] sm:$0xff]
  %v37 = vld [vmem:[%s2] sm:$0xff]
  %v38 = vld [vmem:[%s2 + $0x8] sm:$0xff]
  %v39 = vld [vmem:[%s2 + $0x10] sm:$0xff]
  %v40 = vld [vmem:[%s2 + $0x18] sm:$0xff]
  %v41 = vld [vmem:[%s1] sm:$0x3]
  %v42 = vsub.f32 1.0, %v41
  %v43 = vmul.f32 %v42, -1e+09
  %v44 = vld [vmem:[%s3] sm:$0x1]
  %v45 = vmul.f32 %v35, %v35
  %v46 = vmul.f32 %v36, %v36
  %vm47 = vcmask 261120
  %v48 = vsel %vm47, %v45, 0.0
  %49 = vadd.xlane.f32.xlu0 %v48
  %v50 = vpop.xlane.xlu0 %49
  %v51 = vsel %vm47, %v46, 0.0
  %52 = vadd.xlane.f32.xlu0 %v51
  %v53 = vpop.xlane.xlu0 %52
  %v54 = vrcp.pop 32.0
  %v55 = vmul.f32 %v50, %v54
  %v56 = vmul.f32 %v53, %v54
  %v57 = vadd.f32 %v55, 1e-06
  %v58 = vadd.f32 %v56, 1e-06
  %v59 = vrsqrt.pop %v57
  %v60 = vrsqrt.pop %v58
  %v61 = vmul.f32 %v35, %v59
  %v62 = vmul.f32 %v36, %v60
  %v64 = vlaneseq
  %v65 = vshrl.u32 %v64, 7
  %v66 = vsub.s32 0, %v65
  %v67 = vrot.slane %v44, %v66
  %v69 = vmul.f32 %v61, %v67
  %v70 = vmul.f32 %v62, %v67
  %v71 = vld [vmem:[%s4] sm:$0xff]
  %v72 = vld [vmem:[%s4 + $0x8] sm:$0xff]
  %v73 = vld [vmem:[%s4 + $0x10] sm:$0xff]
  %v74 = vld [vmem:[%s4 + $0x18] sm:$0xff]
  %v76 = vsel %vm47, %v69, 0
  %v79 = vsel %vm47, %v70, 0
  %81 = vmatprep.subr.mxu0 0.0
  %82 = vmatpush1.msra.mxu0 0.0
  %83 = vmatprep.subr.mxu0 0.0
  %84 = vmatpush1.msra.mxu0 0.0
  %85 = vmatprep.subr.mxu0 0.0
  %86 = vmatpush1.msra.mxu0 0.0
  %87 = vmatprep.subr.mxu0 0.0
  %88 = vmatpush1.msra.mxu0 0.0
  %89 = vmatprep.subr.mxu0 0.0
  %90 = vmatpush1.msra.mxu0 0.0
  %91 = vmatprep.subr.mxu0 0.0
  %92 = vmatpush1.msra.mxu0 0.0
  %93 = vmatprep.subr.mxu0 0.0
  %94 = vmatpush1.msra.mxu0 0.0
  %95 = vmatprep.subr.mxu0 0.0
  %96 = vmatpush1.msra.mxu0 0.0
  %97 = vmatprep.subr.mxu0 0.0
  %98 = vmatpush1.msra.mxu0 0.0
  %99 = vmatprep.subr.mxu0 0.0
  %100 = vmatpush1.msra.mxu0 0.0
  %101 = vmatprep.subr.mxu0 0.0
  %102 = vmatpush1.msra.mxu0 0.0
  %103 = vmatprep.subr.mxu0 0.0
  %104 = vmatpush1.msra.mxu0 0.0
  %105 = vmatprep.subr.mxu0 0.0
  %106 = vmatpush1.msra.mxu0 %v74
  %107 = vmatprep.subr.mxu0 0.0
  %108 = vmatpush1.msra.mxu0 %v73
  %109 = vmatprep.subr.mxu0 0.0
  %110 = vmatpush1.msra.mxu0 %v72
  %111 = vmatprep.subr.mxu0 0.0
  %112 = vmatpush1.msra.mxu0 %v71
  %113 = vmatprep.subr.mxu0 0.0
  %114 = vmatpush2.msra.mxu0 0.0
  %115 = vmatprep.subr.mxu0 0.0
  %116 = vmatpush2.msra.mxu0 0.0
  %117 = vmatprep.subr.mxu0 0.0
  %118 = vmatpush2.msra.mxu0 0.0
  %119 = vmatprep.subr.mxu0 0.0
  %120 = vmatpush2.msra.mxu0 0.0
  %121 = vmatprep.subr.mxu0 0.0
  %122 = vmatpush2.msra.mxu0 0.0
  %123 = vmatprep.subr.mxu0 0.0
  %124 = vmatpush2.msra.mxu0 0.0
  %125 = vmatprep.subr.mxu0 0.0
  %126 = vmatpush2.msra.mxu0 0.0
  %127 = vmatprep.subr.mxu0 0.0
  %128 = vmatpush2.msra.mxu0 0.0
  %129 = vmatprep.subr.mxu0 0.0
  %130 = vmatpush2.msra.mxu0 0.0
  %131 = vmatprep.subr.mxu0 0.0
  %132 = vmatpush2.msra.mxu0 0.0
  %133 = vmatprep.subr.mxu0 0.0
  %134 = vmatpush2.msra.mxu0 0.0
  %135 = vmatprep.subr.mxu0 0.0
  %136 = vmatpush2.msra.mxu0 0.0
  %137 = vmatprep.subr.mxu0 0.0
  %138 = vmatpush2.msra.mxu0 0.0
  %139 = vmatprep.subr.mxu0 0.0
  %140 = vmatpush2.msra.mxu0 0.0
  %141 = vmatprep.subr.mxu0 0.0
  %142 = vmatpush2.msra.mxu0 0.0
  %143 = vmatprep.subr.mxu0 0.0
  %144 = vmatpush2.msra.mxu0 0.0
  %145 = vmatprep.mubr.f32.mxu0 0.0
  %146 = vmatmul.mubr.f32.gmra.mxu0 %v76
  %v147 = vpop.f32.mrf.mxu0
  %v148 = vadd.f32 0.0, %v147
  %v149 = vpop.f32.mrf.mxu0
  %150 = vmatprep.mubr.f32.mxu0 0.0
  %151 = vmatmul.mubr.f32.gmra.mxu0 %v79
  %v152 = vpop.f32.mrf.mxu0
  %v153 = vadd.f32 0.0, %v152
  %v154 = vpop.f32.mrf.mxu0
  %155 = vdwg.mxu0
  %157 = vrot.lane.b32.xlu0 %v148, 96
  %v158 = vpop.permute.xlu0 %157
  %vm159 = vcmask 64512
  %v160 = vsel %vm159, %v148, 0
  %v162 = vsel %vm159, %v158, 0
  %164 = vmatprep.subr.mxu0 0.0
  %165 = vmatpush1.xpose.msra.mxu0 0.0
  %166 = vmatprep.subr.mxu0 0.0
  %167 = vmatpush1.xpose.msra.mxu0 0.0
  %168 = vmatprep.subr.mxu0 0.0
  %169 = vmatpush1.xpose.msra.mxu0 0.0
  %170 = vmatprep.subr.mxu0 0.0
  %171 = vmatpush1.xpose.msra.mxu0 0.0
  %172 = vmatprep.subr.mxu0 0.0
  %173 = vmatpush1.xpose.msra.mxu0 0.0
  %174 = vmatprep.subr.mxu0 0.0
  %175 = vmatpush1.xpose.msra.mxu0 0.0
  %176 = vmatprep.subr.mxu0 0.0
  %177 = vmatpush1.xpose.msra.mxu0 0.0
  %178 = vmatprep.subr.mxu0 0.0
  %179 = vmatpush1.xpose.msra.mxu0 0.0
  %180 = vmatprep.subr.mxu0 0.0
  %181 = vmatpush1.xpose.msra.mxu0 0.0
  %182 = vmatprep.subr.mxu0 0.0
  %183 = vmatpush1.xpose.msra.mxu0 0.0
  %184 = vmatprep.subr.mxu0 0.0
  %185 = vmatpush1.xpose.msra.mxu0 0.0
  %186 = vmatprep.subr.mxu0 0.0
  %187 = vmatpush1.xpose.msra.mxu0 0.0
  %188 = vmatprep.subr.mxu0 0.0
  %189 = vmatpush1.xpose.msra.mxu0 0.0
  %190 = vmatprep.subr.mxu0 0.0
  %191 = vmatpush1.xpose.msra.mxu0 0.0
  %192 = vmatprep.subr.mxu0 0.0
  %193 = vmatpush1.xpose.msra.mxu0 0.0
  %194 = vmatprep.subr.mxu0 0.0
  %195 = vmatpush1.xpose.msra.mxu0 %v162
  %196 = vmatprep.subr.mxu0 0.0
  %197 = vmatpush2.xpose.msra.mxu0 0.0
  %198 = vmatprep.subr.mxu0 0.0
  %199 = vmatpush2.xpose.msra.mxu0 0.0
  %200 = vmatprep.subr.mxu0 0.0
  %201 = vmatpush2.xpose.msra.mxu0 0.0
  %202 = vmatprep.subr.mxu0 0.0
  %203 = vmatpush2.xpose.msra.mxu0 0.0
  %204 = vmatprep.subr.mxu0 0.0
  %205 = vmatpush2.xpose.msra.mxu0 0.0
  %206 = vmatprep.subr.mxu0 0.0
  %207 = vmatpush2.xpose.msra.mxu0 0.0
  %208 = vmatprep.subr.mxu0 0.0
  %209 = vmatpush2.xpose.msra.mxu0 0.0
  %210 = vmatprep.subr.mxu0 0.0
  %211 = vmatpush2.xpose.msra.mxu0 0.0
  %212 = vmatprep.subr.mxu0 0.0
  %213 = vmatpush2.xpose.msra.mxu0 0.0
  %214 = vmatprep.subr.mxu0 0.0
  %215 = vmatpush2.xpose.msra.mxu0 0.0
  %216 = vmatprep.subr.mxu0 0.0
  %217 = vmatpush2.xpose.msra.mxu0 0.0
  %218 = vmatprep.subr.mxu0 0.0
  %219 = vmatpush2.xpose.msra.mxu0 0.0
  %220 = vmatprep.subr.mxu0 0.0
  %221 = vmatpush2.xpose.msra.mxu0 0.0
  %222 = vmatprep.subr.mxu0 0.0
  %223 = vmatpush2.xpose.msra.mxu0 0.0
  %224 = vmatprep.subr.mxu0 0.0
  %225 = vmatpush2.xpose.msra.mxu0 0.0
  %226 = vmatprep.subr.mxu0 0.0
  %227 = vmatpush2.xpose.msra.mxu0 0.0
  %228 = vmatprep.mubr.f32.mxu0 0.0
  %229 = vmatmul.mubr.f32.gmra.mxu0 %v160
  %v230 = vpop.f32.mrf.mxu0
  %v231 = vadd.f32 %v37, %v230
  %v232 = vpop.f32.mrf.mxu0
  %233 = vdwg.mxu0
  %v234 = vlaneseq
  %v235 = vshrl.u32 %v234, 7
  %v236 = vsub.s32 0, %v235
  %v237 = vrot.slane %v43, %v236
  %v238 = vadd.f32 %v231, %v237
  %v239 = vsel %vm159, %v238, -inf
  %240 = vmax.xlane.f32.xlu0 %v239
  %v241 = vpop.xlane.xlu0 %240
  %v242 = vsub.f32 %v238, %v241
  %v243 = vmul.f32 %v242, 1.442695
  %v244 = vpow.pop %v243
  %v245 = vsel %vm159, %v244, 0.0
  %246 = vadd.xlane.f32.xlu0 %v245
  %v247 = vpop.xlane.xlu0 %246
  %v248 = vrcp.pop %v247
  %v249 = vmul.f32 %v244, %v248
  %250 = vrot.lane.b32.xlu0 %v148, 64
  %v251 = vpop.permute.xlu0 %250
  %v254 = vsel %vm159, %v249, 0
  %256 = vmatprep.subr.mxu0 0.0
  %257 = vmatpush1.msra.mxu0 0.0
  %258 = vmatprep.subr.mxu0 0.0
  %259 = vmatpush1.msra.mxu0 0.0
  %260 = vmatprep.subr.mxu0 0.0
  %261 = vmatpush1.msra.mxu0 0.0
  %262 = vmatprep.subr.mxu0 0.0
  %263 = vmatpush1.msra.mxu0 0.0
  %264 = vmatprep.subr.mxu0 0.0
  %265 = vmatpush1.msra.mxu0 0.0
  %266 = vmatprep.subr.mxu0 0.0
  %267 = vmatpush1.msra.mxu0 0.0
  %268 = vmatprep.subr.mxu0 0.0
  %269 = vmatpush1.msra.mxu0 0.0
  %270 = vmatprep.subr.mxu0 0.0
  %271 = vmatpush1.msra.mxu0 0.0
  %272 = vmatprep.subr.mxu0 0.0
  %273 = vmatpush1.msra.mxu0 0.0
  %274 = vmatprep.subr.mxu0 0.0
  %275 = vmatpush1.msra.mxu0 0.0
  %276 = vmatprep.subr.mxu0 0.0
  %277 = vmatpush1.msra.mxu0 0.0
  %278 = vmatprep.subr.mxu0 0.0
  %279 = vmatpush1.msra.mxu0 0.0
  %280 = vmatprep.subr.mxu0 0.0
  %281 = vmatpush1.msra.mxu0 0.0
  %282 = vmatprep.subr.mxu0 0.0
  %283 = vmatpush1.msra.mxu0 0.0
  %284 = vmatprep.subr.mxu0 0.0
  %285 = vmatpush1.msra.mxu0 0.0
  %286 = vmatprep.subr.mxu0 0.0
  %287 = vmatpush1.msra.mxu0 %v251
  %288 = vmatprep.subr.mxu0 0.0
  %289 = vmatpush2.msra.mxu0 0.0
  %290 = vmatprep.subr.mxu0 0.0
  %291 = vmatpush2.msra.mxu0 0.0
  %292 = vmatprep.subr.mxu0 0.0
  %293 = vmatpush2.msra.mxu0 0.0
  %294 = vmatprep.subr.mxu0 0.0
  %295 = vmatpush2.msra.mxu0 0.0
  %296 = vmatprep.subr.mxu0 0.0
  %297 = vmatpush2.msra.mxu0 0.0
  %298 = vmatprep.subr.mxu0 0.0
  %299 = vmatpush2.msra.mxu0 0.0
  %300 = vmatprep.subr.mxu0 0.0
  %301 = vmatpush2.msra.mxu0 0.0
  %302 = vmatprep.subr.mxu0 0.0
  %303 = vmatpush2.msra.mxu0 0.0
  %304 = vmatprep.subr.mxu0 0.0
  %305 = vmatpush2.msra.mxu0 0.0
  %306 = vmatprep.subr.mxu0 0.0
  %307 = vmatpush2.msra.mxu0 0.0
  %308 = vmatprep.subr.mxu0 0.0
  %309 = vmatpush2.msra.mxu0 0.0
  %310 = vmatprep.subr.mxu0 0.0
  %311 = vmatpush2.msra.mxu0 0.0
  %312 = vmatprep.subr.mxu0 0.0
  %313 = vmatpush2.msra.mxu0 0.0
  %314 = vmatprep.subr.mxu0 0.0
  %315 = vmatpush2.msra.mxu0 0.0
  %316 = vmatprep.subr.mxu0 0.0
  %317 = vmatpush2.msra.mxu0 0.0
  %318 = vmatprep.subr.mxu0 0.0
  %319 = vmatpush2.msra.mxu0 0.0
  %320 = vmatprep.mubr.f32.mxu0 0.0
  %321 = vmatmul.mubr.f32.gmra.mxu0 %v254
  %v322 = vpop.f32.mrf.mxu0
  %v323 = vadd.f32 0.0, %v322
  %v324 = vpop.f32.mrf.mxu0
  %325 = vdwg.mxu0
  %326 = vrot.lane.b32.xlu0 %v148, 120
  %v327 = vpop.permute.xlu0 %326
  %328 = vrot.lane.b32.xlu0 %v148, 88
  %v329 = vpop.permute.xlu0 %328
  %v330 = vsel %vm159, %v327, 0
  %v332 = vsel %vm159, %v329, 0
  %334 = vmatprep.subr.mxu0 0.0
  %335 = vmatpush1.xpose.msra.mxu0 0.0
  %336 = vmatprep.subr.mxu0 0.0
  %337 = vmatpush1.xpose.msra.mxu0 0.0
  %338 = vmatprep.subr.mxu0 0.0
  %339 = vmatpush1.xpose.msra.mxu0 0.0
  %340 = vmatprep.subr.mxu0 0.0
  %341 = vmatpush1.xpose.msra.mxu0 0.0
  %342 = vmatprep.subr.mxu0 0.0
  %343 = vmatpush1.xpose.msra.mxu0 0.0
  %344 = vmatprep.subr.mxu0 0.0
  %345 = vmatpush1.xpose.msra.mxu0 0.0
  %346 = vmatprep.subr.mxu0 0.0
  %347 = vmatpush1.xpose.msra.mxu0 0.0
  %348 = vmatprep.subr.mxu0 0.0
  %349 = vmatpush1.xpose.msra.mxu0 0.0
  %350 = vmatprep.subr.mxu0 0.0
  %351 = vmatpush1.xpose.msra.mxu0 0.0
  %352 = vmatprep.subr.mxu0 0.0
  %353 = vmatpush1.xpose.msra.mxu0 0.0
  %354 = vmatprep.subr.mxu0 0.0
  %355 = vmatpush1.xpose.msra.mxu0 0.0
  %356 = vmatprep.subr.mxu0 0.0
  %357 = vmatpush1.xpose.msra.mxu0 0.0
  %358 = vmatprep.subr.mxu0 0.0
  %359 = vmatpush1.xpose.msra.mxu0 0.0
  %360 = vmatprep.subr.mxu0 0.0
  %361 = vmatpush1.xpose.msra.mxu0 0.0
  %362 = vmatprep.subr.mxu0 0.0
  %363 = vmatpush1.xpose.msra.mxu0 0.0
  %364 = vmatprep.subr.mxu0 0.0
  %365 = vmatpush1.xpose.msra.mxu0 %v332
  %366 = vmatprep.subr.mxu0 0.0
  %367 = vmatpush2.xpose.msra.mxu0 0.0
  %368 = vmatprep.subr.mxu0 0.0
  %369 = vmatpush2.xpose.msra.mxu0 0.0
  %370 = vmatprep.subr.mxu0 0.0
  %371 = vmatpush2.xpose.msra.mxu0 0.0
  %372 = vmatprep.subr.mxu0 0.0
  %373 = vmatpush2.xpose.msra.mxu0 0.0
  %374 = vmatprep.subr.mxu0 0.0
  %375 = vmatpush2.xpose.msra.mxu0 0.0
  %376 = vmatprep.subr.mxu0 0.0
  %377 = vmatpush2.xpose.msra.mxu0 0.0
  %378 = vmatprep.subr.mxu0 0.0
  %379 = vmatpush2.xpose.msra.mxu0 0.0
  %380 = vmatprep.subr.mxu0 0.0
  %381 = vmatpush2.xpose.msra.mxu0 0.0
  %382 = vmatprep.subr.mxu0 0.0
  %383 = vmatpush2.xpose.msra.mxu0 0.0
  %384 = vmatprep.subr.mxu0 0.0
  %385 = vmatpush2.xpose.msra.mxu0 0.0
  %386 = vmatprep.subr.mxu0 0.0
  %387 = vmatpush2.xpose.msra.mxu0 0.0
  %388 = vmatprep.subr.mxu0 0.0
  %389 = vmatpush2.xpose.msra.mxu0 0.0
  %390 = vmatprep.subr.mxu0 0.0
  %391 = vmatpush2.xpose.msra.mxu0 0.0
  %392 = vmatprep.subr.mxu0 0.0
  %393 = vmatpush2.xpose.msra.mxu0 0.0
  %394 = vmatprep.subr.mxu0 0.0
  %395 = vmatpush2.xpose.msra.mxu0 0.0
  %396 = vmatprep.subr.mxu0 0.0
  %397 = vmatpush2.xpose.msra.mxu0 0.0
  %398 = vmatprep.mubr.f32.mxu0 0.0
  %399 = vmatmul.mubr.f32.gmra.mxu0 %v330
  %v400 = vpop.f32.mrf.mxu0
  %v401 = vadd.f32 %v38, %v400
  %v402 = vpop.f32.mrf.mxu0
  %403 = vdwg.mxu0
  %v404 = vadd.f32 %v401, %v237
  %v405 = vsel %vm159, %v404, -inf
  %406 = vmax.xlane.f32.xlu0 %v405
  %v407 = vpop.xlane.xlu0 %406
  %v408 = vsub.f32 %v404, %v407
  %v409 = vmul.f32 %v408, 1.442695
  %v410 = vpow.pop %v409
  %v411 = vsel %vm159, %v410, 0.0
  %412 = vadd.xlane.f32.xlu0 %v411
  %v413 = vpop.xlane.xlu0 %412
  %v414 = vrcp.pop %v413
  %v415 = vmul.f32 %v410, %v414
  %416 = vrot.lane.b32.xlu0 %v148, 56
  %v417 = vpop.permute.xlu0 %416
  %v420 = vsel %vm159, %v415, 0
  %422 = vmatprep.subr.mxu0 0.0
  %423 = vmatpush1.msra.mxu0 0.0
  %424 = vmatprep.subr.mxu0 0.0
  %425 = vmatpush1.msra.mxu0 0.0
  %426 = vmatprep.subr.mxu0 0.0
  %427 = vmatpush1.msra.mxu0 0.0
  %428 = vmatprep.subr.mxu0 0.0
  %429 = vmatpush1.msra.mxu0 0.0
  %430 = vmatprep.subr.mxu0 0.0
  %431 = vmatpush1.msra.mxu0 0.0
  %432 = vmatprep.subr.mxu0 0.0
  %433 = vmatpush1.msra.mxu0 0.0
  %434 = vmatprep.subr.mxu0 0.0
  %435 = vmatpush1.msra.mxu0 0.0
  %436 = vmatprep.subr.mxu0 0.0
  %437 = vmatpush1.msra.mxu0 0.0
  %438 = vmatprep.subr.mxu0 0.0
  %439 = vmatpush1.msra.mxu0 0.0
  %440 = vmatprep.subr.mxu0 0.0
  %441 = vmatpush1.msra.mxu0 0.0
  %442 = vmatprep.subr.mxu0 0.0
  %443 = vmatpush1.msra.mxu0 0.0
  %444 = vmatprep.subr.mxu0 0.0
  %445 = vmatpush1.msra.mxu0 0.0
  %446 = vmatprep.subr.mxu0 0.0
  %447 = vmatpush1.msra.mxu0 0.0
  %448 = vmatprep.subr.mxu0 0.0
  %449 = vmatpush1.msra.mxu0 0.0
  %450 = vmatprep.subr.mxu0 0.0
  %451 = vmatpush1.msra.mxu0 0.0
  %452 = vmatprep.subr.mxu0 0.0
  %453 = vmatpush1.msra.mxu0 %v417
  %454 = vmatprep.subr.mxu0 0.0
  %455 = vmatpush2.msra.mxu0 0.0
  %456 = vmatprep.subr.mxu0 0.0
  %457 = vmatpush2.msra.mxu0 0.0
  %458 = vmatprep.subr.mxu0 0.0
  %459 = vmatpush2.msra.mxu0 0.0
  %460 = vmatprep.subr.mxu0 0.0
  %461 = vmatpush2.msra.mxu0 0.0
  %462 = vmatprep.subr.mxu0 0.0
  %463 = vmatpush2.msra.mxu0 0.0
  %464 = vmatprep.subr.mxu0 0.0
  %465 = vmatpush2.msra.mxu0 0.0
  %466 = vmatprep.subr.mxu0 0.0
  %467 = vmatpush2.msra.mxu0 0.0
  %468 = vmatprep.subr.mxu0 0.0
  %469 = vmatpush2.msra.mxu0 0.0
  %470 = vmatprep.subr.mxu0 0.0
  %471 = vmatpush2.msra.mxu0 0.0
  %472 = vmatprep.subr.mxu0 0.0
  %473 = vmatpush2.msra.mxu0 0.0
  %474 = vmatprep.subr.mxu0 0.0
  %475 = vmatpush2.msra.mxu0 0.0
  %476 = vmatprep.subr.mxu0 0.0
  %477 = vmatpush2.msra.mxu0 0.0
  %478 = vmatprep.subr.mxu0 0.0
  %479 = vmatpush2.msra.mxu0 0.0
  %480 = vmatprep.subr.mxu0 0.0
  %481 = vmatpush2.msra.mxu0 0.0
  %482 = vmatprep.subr.mxu0 0.0
  %483 = vmatpush2.msra.mxu0 0.0
  %484 = vmatprep.subr.mxu0 0.0
  %485 = vmatpush2.msra.mxu0 0.0
  %486 = vmatprep.mubr.f32.mxu0 0.0
  %487 = vmatmul.mubr.f32.gmra.mxu0 %v420
  %v488 = vpop.f32.mrf.mxu0
  %v489 = vadd.f32 0.0, %v488
  %v490 = vpop.f32.mrf.mxu0
  %491 = vdwg.mxu0
  %492 = vrot.lane.b32.xlu0 %v148, 112
  %v493 = vpop.permute.xlu0 %492
  %494 = vrot.lane.b32.xlu0 %v148, 80
  %v495 = vpop.permute.xlu0 %494
  %v496 = vsel %vm159, %v493, 0
  %v498 = vsel %vm159, %v495, 0
  %500 = vmatprep.subr.mxu0 0.0
  %501 = vmatpush1.xpose.msra.mxu0 0.0
  %502 = vmatprep.subr.mxu0 0.0
  %503 = vmatpush1.xpose.msra.mxu0 0.0
  %504 = vmatprep.subr.mxu0 0.0
  %505 = vmatpush1.xpose.msra.mxu0 0.0
  %506 = vmatprep.subr.mxu0 0.0
  %507 = vmatpush1.xpose.msra.mxu0 0.0
  %508 = vmatprep.subr.mxu0 0.0
  %509 = vmatpush1.xpose.msra.mxu0 0.0
  %510 = vmatprep.subr.mxu0 0.0
  %511 = vmatpush1.xpose.msra.mxu0 0.0
  %512 = vmatprep.subr.mxu0 0.0
  %513 = vmatpush1.xpose.msra.mxu0 0.0
  %514 = vmatprep.subr.mxu0 0.0
  %515 = vmatpush1.xpose.msra.mxu0 0.0
  %516 = vmatprep.subr.mxu0 0.0
  %517 = vmatpush1.xpose.msra.mxu0 0.0
  %518 = vmatprep.subr.mxu0 0.0
  %519 = vmatpush1.xpose.msra.mxu0 0.0
  %520 = vmatprep.subr.mxu0 0.0
  %521 = vmatpush1.xpose.msra.mxu0 0.0
  %522 = vmatprep.subr.mxu0 0.0
  %523 = vmatpush1.xpose.msra.mxu0 0.0
  %524 = vmatprep.subr.mxu0 0.0
  %525 = vmatpush1.xpose.msra.mxu0 0.0
  %526 = vmatprep.subr.mxu0 0.0
  %527 = vmatpush1.xpose.msra.mxu0 0.0
  %528 = vmatprep.subr.mxu0 0.0
  %529 = vmatpush1.xpose.msra.mxu0 0.0
  %530 = vmatprep.subr.mxu0 0.0
  %531 = vmatpush1.xpose.msra.mxu0 %v498
  %532 = vmatprep.subr.mxu0 0.0
  %533 = vmatpush2.xpose.msra.mxu0 0.0
  %534 = vmatprep.subr.mxu0 0.0
  %535 = vmatpush2.xpose.msra.mxu0 0.0
  %536 = vmatprep.subr.mxu0 0.0
  %537 = vmatpush2.xpose.msra.mxu0 0.0
  %538 = vmatprep.subr.mxu0 0.0
  %539 = vmatpush2.xpose.msra.mxu0 0.0
  %540 = vmatprep.subr.mxu0 0.0
  %541 = vmatpush2.xpose.msra.mxu0 0.0
  %542 = vmatprep.subr.mxu0 0.0
  %543 = vmatpush2.xpose.msra.mxu0 0.0
  %544 = vmatprep.subr.mxu0 0.0
  %545 = vmatpush2.xpose.msra.mxu0 0.0
  %546 = vmatprep.subr.mxu0 0.0
  %547 = vmatpush2.xpose.msra.mxu0 0.0
  %548 = vmatprep.subr.mxu0 0.0
  %549 = vmatpush2.xpose.msra.mxu0 0.0
  %550 = vmatprep.subr.mxu0 0.0
  %551 = vmatpush2.xpose.msra.mxu0 0.0
  %552 = vmatprep.subr.mxu0 0.0
  %553 = vmatpush2.xpose.msra.mxu0 0.0
  %554 = vmatprep.subr.mxu0 0.0
  %555 = vmatpush2.xpose.msra.mxu0 0.0
  %556 = vmatprep.subr.mxu0 0.0
  %557 = vmatpush2.xpose.msra.mxu0 0.0
  %558 = vmatprep.subr.mxu0 0.0
  %559 = vmatpush2.xpose.msra.mxu0 0.0
  %560 = vmatprep.subr.mxu0 0.0
  %561 = vmatpush2.xpose.msra.mxu0 0.0
  %562 = vmatprep.subr.mxu0 0.0
  %563 = vmatpush2.xpose.msra.mxu0 0.0
  %564 = vmatprep.mubr.f32.mxu0 0.0
  %565 = vmatmul.mubr.f32.gmra.mxu0 %v496
  %v566 = vpop.f32.mrf.mxu0
  %v567 = vadd.f32 %v39, %v566
  %v568 = vpop.f32.mrf.mxu0
  %569 = vdwg.mxu0
  %v570 = vadd.f32 %v567, %v237
  %v571 = vsel %vm159, %v570, -inf
  %572 = vmax.xlane.f32.xlu0 %v571
  %v573 = vpop.xlane.xlu0 %572
  %v574 = vsub.f32 %v570, %v573
  %v575 = vmul.f32 %v574, 1.442695
  %v576 = vpow.pop %v575
  %v577 = vsel %vm159, %v576, 0.0
  %578 = vadd.xlane.f32.xlu0 %v577
  %v579 = vpop.xlane.xlu0 %578
  %v580 = vrcp.pop %v579
  %v581 = vmul.f32 %v576, %v580
  %582 = vrot.lane.b32.xlu0 %v148, 48
  %v583 = vpop.permute.xlu0 %582
  %v586 = vsel %vm159, %v581, 0
  %588 = vmatprep.subr.mxu0 0.0
  %589 = vmatpush1.msra.mxu0 0.0
  %590 = vmatprep.subr.mxu0 0.0
  %591 = vmatpush1.msra.mxu0 0.0
  %592 = vmatprep.subr.mxu0 0.0
  %593 = vmatpush1.msra.mxu0 0.0
  %594 = vmatprep.subr.mxu0 0.0
  %595 = vmatpush1.msra.mxu0 0.0
  %596 = vmatprep.subr.mxu0 0.0
  %597 = vmatpush1.msra.mxu0 0.0
  %598 = vmatprep.subr.mxu0 0.0
  %599 = vmatpush1.msra.mxu0 0.0
  %600 = vmatprep.subr.mxu0 0.0
  %601 = vmatpush1.msra.mxu0 0.0
  %602 = vmatprep.subr.mxu0 0.0
  %603 = vmatpush1.msra.mxu0 0.0
  %604 = vmatprep.subr.mxu0 0.0
  %605 = vmatpush1.msra.mxu0 0.0
  %606 = vmatprep.subr.mxu0 0.0
  %607 = vmatpush1.msra.mxu0 0.0
  %608 = vmatprep.subr.mxu0 0.0
  %609 = vmatpush1.msra.mxu0 0.0
  %610 = vmatprep.subr.mxu0 0.0
  %611 = vmatpush1.msra.mxu0 0.0
  %612 = vmatprep.subr.mxu0 0.0
  %613 = vmatpush1.msra.mxu0 0.0
  %614 = vmatprep.subr.mxu0 0.0
  %615 = vmatpush1.msra.mxu0 0.0
  %616 = vmatprep.subr.mxu0 0.0
  %617 = vmatpush1.msra.mxu0 0.0
  %618 = vmatprep.subr.mxu0 0.0
  %619 = vmatpush1.msra.mxu0 %v583
  %620 = vmatprep.subr.mxu0 0.0
  %621 = vmatpush2.msra.mxu0 0.0
  %622 = vmatprep.subr.mxu0 0.0
  %623 = vmatpush2.msra.mxu0 0.0
  %624 = vmatprep.subr.mxu0 0.0
  %625 = vmatpush2.msra.mxu0 0.0
  %626 = vmatprep.subr.mxu0 0.0
  %627 = vmatpush2.msra.mxu0 0.0
  %628 = vmatprep.subr.mxu0 0.0
  %629 = vmatpush2.msra.mxu0 0.0
  %630 = vmatprep.subr.mxu0 0.0
  %631 = vmatpush2.msra.mxu0 0.0
  %632 = vmatprep.subr.mxu0 0.0
  %633 = vmatpush2.msra.mxu0 0.0
  %634 = vmatprep.subr.mxu0 0.0
  %635 = vmatpush2.msra.mxu0 0.0
  %636 = vmatprep.subr.mxu0 0.0
  %637 = vmatpush2.msra.mxu0 0.0
  %638 = vmatprep.subr.mxu0 0.0
  %639 = vmatpush2.msra.mxu0 0.0
  %640 = vmatprep.subr.mxu0 0.0
  %641 = vmatpush2.msra.mxu0 0.0
  %642 = vmatprep.subr.mxu0 0.0
  %643 = vmatpush2.msra.mxu0 0.0
  %644 = vmatprep.subr.mxu0 0.0
  %645 = vmatpush2.msra.mxu0 0.0
  %646 = vmatprep.subr.mxu0 0.0
  %647 = vmatpush2.msra.mxu0 0.0
  %648 = vmatprep.subr.mxu0 0.0
  %649 = vmatpush2.msra.mxu0 0.0
  %650 = vmatprep.subr.mxu0 0.0
  %651 = vmatpush2.msra.mxu0 0.0
  %652 = vmatprep.mubr.f32.mxu0 0.0
  %653 = vmatmul.mubr.f32.gmra.mxu0 %v586
  %v654 = vpop.f32.mrf.mxu0
  %v655 = vadd.f32 0.0, %v654
  %v656 = vpop.f32.mrf.mxu0
  %657 = vdwg.mxu0
  %658 = vrot.lane.b32.xlu0 %v148, 104
  %v659 = vpop.permute.xlu0 %658
  %660 = vrot.lane.b32.xlu0 %v148, 72
  %v661 = vpop.permute.xlu0 %660
  %v662 = vsel %vm159, %v659, 0
  %v664 = vsel %vm159, %v661, 0
  %666 = vmatprep.subr.mxu0 0.0
  %667 = vmatpush1.xpose.msra.mxu0 0.0
  %668 = vmatprep.subr.mxu0 0.0
  %669 = vmatpush1.xpose.msra.mxu0 0.0
  %670 = vmatprep.subr.mxu0 0.0
  %671 = vmatpush1.xpose.msra.mxu0 0.0
  %672 = vmatprep.subr.mxu0 0.0
  %673 = vmatpush1.xpose.msra.mxu0 0.0
  %674 = vmatprep.subr.mxu0 0.0
  %675 = vmatpush1.xpose.msra.mxu0 0.0
  %676 = vmatprep.subr.mxu0 0.0
  %677 = vmatpush1.xpose.msra.mxu0 0.0
  %678 = vmatprep.subr.mxu0 0.0
  %679 = vmatpush1.xpose.msra.mxu0 0.0
  %680 = vmatprep.subr.mxu0 0.0
  %681 = vmatpush1.xpose.msra.mxu0 0.0
  %682 = vmatprep.subr.mxu0 0.0
  %683 = vmatpush1.xpose.msra.mxu0 0.0
  %684 = vmatprep.subr.mxu0 0.0
  %685 = vmatpush1.xpose.msra.mxu0 0.0
  %686 = vmatprep.subr.mxu0 0.0
  %687 = vmatpush1.xpose.msra.mxu0 0.0
  %688 = vmatprep.subr.mxu0 0.0
  %689 = vmatpush1.xpose.msra.mxu0 0.0
  %690 = vmatprep.subr.mxu0 0.0
  %691 = vmatpush1.xpose.msra.mxu0 0.0
  %692 = vmatprep.subr.mxu0 0.0
  %693 = vmatpush1.xpose.msra.mxu0 0.0
  %694 = vmatprep.subr.mxu0 0.0
  %695 = vmatpush1.xpose.msra.mxu0 0.0
  %696 = vmatprep.subr.mxu0 0.0
  %697 = vmatpush1.xpose.msra.mxu0 %v664
  %698 = vmatprep.subr.mxu0 0.0
  %699 = vmatpush2.xpose.msra.mxu0 0.0
  %700 = vmatprep.subr.mxu0 0.0
  %701 = vmatpush2.xpose.msra.mxu0 0.0
  %702 = vmatprep.subr.mxu0 0.0
  %703 = vmatpush2.xpose.msra.mxu0 0.0
  %704 = vmatprep.subr.mxu0 0.0
  %705 = vmatpush2.xpose.msra.mxu0 0.0
  %706 = vmatprep.subr.mxu0 0.0
  %707 = vmatpush2.xpose.msra.mxu0 0.0
  %708 = vmatprep.subr.mxu0 0.0
  %709 = vmatpush2.xpose.msra.mxu0 0.0
  %710 = vmatprep.subr.mxu0 0.0
  %711 = vmatpush2.xpose.msra.mxu0 0.0
  %712 = vmatprep.subr.mxu0 0.0
  %713 = vmatpush2.xpose.msra.mxu0 0.0
  %714 = vmatprep.subr.mxu0 0.0
  %715 = vmatpush2.xpose.msra.mxu0 0.0
  %716 = vmatprep.subr.mxu0 0.0
  %717 = vmatpush2.xpose.msra.mxu0 0.0
  %718 = vmatprep.subr.mxu0 0.0
  %719 = vmatpush2.xpose.msra.mxu0 0.0
  %720 = vmatprep.subr.mxu0 0.0
  %721 = vmatpush2.xpose.msra.mxu0 0.0
  %722 = vmatprep.subr.mxu0 0.0
  %723 = vmatpush2.xpose.msra.mxu0 0.0
  %724 = vmatprep.subr.mxu0 0.0
  %725 = vmatpush2.xpose.msra.mxu0 0.0
  %726 = vmatprep.subr.mxu0 0.0
  %727 = vmatpush2.xpose.msra.mxu0 0.0
  %728 = vmatprep.subr.mxu0 0.0
  %729 = vmatpush2.xpose.msra.mxu0 0.0
  %730 = vmatprep.mubr.f32.mxu0 0.0
  %731 = vmatmul.mubr.f32.gmra.mxu0 %v662
  %v732 = vpop.f32.mrf.mxu0
  %v733 = vadd.f32 %v40, %v732
  %v734 = vpop.f32.mrf.mxu0
  %735 = vdwg.mxu0
  %v736 = vadd.f32 %v733, %v237
  %v737 = vsel %vm159, %v736, -inf
  %738 = vmax.xlane.f32.xlu0 %v737
  %v739 = vpop.xlane.xlu0 %738
  %v740 = vsub.f32 %v736, %v739
  %v741 = vmul.f32 %v740, 1.442695
  %v742 = vpow.pop %v741
  %v743 = vsel %vm159, %v742, 0.0
  %744 = vadd.xlane.f32.xlu0 %v743
  %v745 = vpop.xlane.xlu0 %744
  %v746 = vrcp.pop %v745
  %v747 = vmul.f32 %v742, %v746
  %748 = vrot.lane.b32.xlu0 %v148, 40
  %v749 = vpop.permute.xlu0 %748
  %v752 = vsel %vm159, %v747, 0
  %754 = vmatprep.subr.mxu0 0.0
  %755 = vmatpush1.msra.mxu0 0.0
  %756 = vmatprep.subr.mxu0 0.0
  %757 = vmatpush1.msra.mxu0 0.0
  %758 = vmatprep.subr.mxu0 0.0
  %759 = vmatpush1.msra.mxu0 0.0
  %760 = vmatprep.subr.mxu0 0.0
  %761 = vmatpush1.msra.mxu0 0.0
  %762 = vmatprep.subr.mxu0 0.0
  %763 = vmatpush1.msra.mxu0 0.0
  %764 = vmatprep.subr.mxu0 0.0
  %765 = vmatpush1.msra.mxu0 0.0
  %766 = vmatprep.subr.mxu0 0.0
  %767 = vmatpush1.msra.mxu0 0.0
  %768 = vmatprep.subr.mxu0 0.0
  %769 = vmatpush1.msra.mxu0 0.0
  %770 = vmatprep.subr.mxu0 0.0
  %771 = vmatpush1.msra.mxu0 0.0
  %772 = vmatprep.subr.mxu0 0.0
  %773 = vmatpush1.msra.mxu0 0.0
  %774 = vmatprep.subr.mxu0 0.0
  %775 = vmatpush1.msra.mxu0 0.0
  %776 = vmatprep.subr.mxu0 0.0
  %777 = vmatpush1.msra.mxu0 0.0
  %778 = vmatprep.subr.mxu0 0.0
  %779 = vmatpush1.msra.mxu0 0.0
  %780 = vmatprep.subr.mxu0 0.0
  %781 = vmatpush1.msra.mxu0 0.0
  %782 = vmatprep.subr.mxu0 0.0
  %783 = vmatpush1.msra.mxu0 0.0
  %784 = vmatprep.subr.mxu0 0.0
  %785 = vmatpush1.msra.mxu0 %v749
  %786 = vmatprep.subr.mxu0 0.0
  %787 = vmatpush2.msra.mxu0 0.0
  %788 = vmatprep.subr.mxu0 0.0
  %789 = vmatpush2.msra.mxu0 0.0
  %790 = vmatprep.subr.mxu0 0.0
  %791 = vmatpush2.msra.mxu0 0.0
  %792 = vmatprep.subr.mxu0 0.0
  %793 = vmatpush2.msra.mxu0 0.0
  %794 = vmatprep.subr.mxu0 0.0
  %795 = vmatpush2.msra.mxu0 0.0
  %796 = vmatprep.subr.mxu0 0.0
  %797 = vmatpush2.msra.mxu0 0.0
  %798 = vmatprep.subr.mxu0 0.0
  %799 = vmatpush2.msra.mxu0 0.0
  %800 = vmatprep.subr.mxu0 0.0
  %801 = vmatpush2.msra.mxu0 0.0
  %802 = vmatprep.subr.mxu0 0.0
  %803 = vmatpush2.msra.mxu0 0.0
  %804 = vmatprep.subr.mxu0 0.0
  %805 = vmatpush2.msra.mxu0 0.0
  %806 = vmatprep.subr.mxu0 0.0
  %807 = vmatpush2.msra.mxu0 0.0
  %808 = vmatprep.subr.mxu0 0.0
  %809 = vmatpush2.msra.mxu0 0.0
  %810 = vmatprep.subr.mxu0 0.0
  %811 = vmatpush2.msra.mxu0 0.0
  %812 = vmatprep.subr.mxu0 0.0
  %813 = vmatpush2.msra.mxu0 0.0
  %814 = vmatprep.subr.mxu0 0.0
  %815 = vmatpush2.msra.mxu0 0.0
  %816 = vmatprep.subr.mxu0 0.0
  %817 = vmatpush2.msra.mxu0 0.0
  %818 = vmatprep.mubr.f32.mxu0 0.0
  %819 = vmatmul.mubr.f32.gmra.mxu0 %v752
  %v820 = vpop.f32.mrf.mxu0
  %v821 = vadd.f32 0.0, %v820
  %v822 = vpop.f32.mrf.mxu0
  %823 = vdwg.mxu0
  %825 = vrot.lane.b32.xlu0 %v489, 8
  %v826 = vpop.permute.xlu0 %825
  %829 = vrot.lane.b32.xlu0 %v655, 16
  %v830 = vpop.permute.xlu0 %829
  %833 = vrot.lane.b32.xlu0 %v821, 24
  %v834 = vpop.permute.xlu0 %833
  %v836 = vsel %vm159, %v323, %v826
  %vm837 = vcmask 130048
  %v838 = vsel %vm837, %v836, %v830
  %vm839 = vcmask 195584
  %v840 = vsel %vm839, %v838, %v834
  %842 = vrot.lane.b32.xlu0 %v153, 96
  %v843 = vpop.permute.xlu0 %842
  %v844 = vsel %vm159, %v153, 0
  %v846 = vsel %vm159, %v843, 0
  %848 = vmatprep.subr.mxu0 0.0
  %849 = vmatpush1.xpose.msra.mxu0 0.0
  %850 = vmatprep.subr.mxu0 0.0
  %851 = vmatpush1.xpose.msra.mxu0 0.0
  %852 = vmatprep.subr.mxu0 0.0
  %853 = vmatpush1.xpose.msra.mxu0 0.0
  %854 = vmatprep.subr.mxu0 0.0
  %855 = vmatpush1.xpose.msra.mxu0 0.0
  %856 = vmatprep.subr.mxu0 0.0
  %857 = vmatpush1.xpose.msra.mxu0 0.0
  %858 = vmatprep.subr.mxu0 0.0
  %859 = vmatpush1.xpose.msra.mxu0 0.0
  %860 = vmatprep.subr.mxu0 0.0
  %861 = vmatpush1.xpose.msra.mxu0 0.0
  %862 = vmatprep.subr.mxu0 0.0
  %863 = vmatpush1.xpose.msra.mxu0 0.0
  %864 = vmatprep.subr.mxu0 0.0
  %865 = vmatpush1.xpose.msra.mxu0 0.0
  %866 = vmatprep.subr.mxu0 0.0
  %867 = vmatpush1.xpose.msra.mxu0 0.0
  %868 = vmatprep.subr.mxu0 0.0
  %869 = vmatpush1.xpose.msra.mxu0 0.0
  %870 = vmatprep.subr.mxu0 0.0
  %871 = vmatpush1.xpose.msra.mxu0 0.0
  %872 = vmatprep.subr.mxu0 0.0
  %873 = vmatpush1.xpose.msra.mxu0 0.0
  %874 = vmatprep.subr.mxu0 0.0
  %875 = vmatpush1.xpose.msra.mxu0 0.0
  %876 = vmatprep.subr.mxu0 0.0
  %877 = vmatpush1.xpose.msra.mxu0 0.0
  %878 = vmatprep.subr.mxu0 0.0
  %879 = vmatpush1.xpose.msra.mxu0 %v846
  %880 = vmatprep.subr.mxu0 0.0
  %881 = vmatpush2.xpose.msra.mxu0 0.0
  %882 = vmatprep.subr.mxu0 0.0
  %883 = vmatpush2.xpose.msra.mxu0 0.0
  %884 = vmatprep.subr.mxu0 0.0
  %885 = vmatpush2.xpose.msra.mxu0 0.0
  %886 = vmatprep.subr.mxu0 0.0
  %887 = vmatpush2.xpose.msra.mxu0 0.0
  %888 = vmatprep.subr.mxu0 0.0
  %889 = vmatpush2.xpose.msra.mxu0 0.0
  %890 = vmatprep.subr.mxu0 0.0
  %891 = vmatpush2.xpose.msra.mxu0 0.0
  %892 = vmatprep.subr.mxu0 0.0
  %893 = vmatpush2.xpose.msra.mxu0 0.0
  %894 = vmatprep.subr.mxu0 0.0
  %895 = vmatpush2.xpose.msra.mxu0 0.0
  %896 = vmatprep.subr.mxu0 0.0
  %897 = vmatpush2.xpose.msra.mxu0 0.0
  %898 = vmatprep.subr.mxu0 0.0
  %899 = vmatpush2.xpose.msra.mxu0 0.0
  %900 = vmatprep.subr.mxu0 0.0
  %901 = vmatpush2.xpose.msra.mxu0 0.0
  %902 = vmatprep.subr.mxu0 0.0
  %903 = vmatpush2.xpose.msra.mxu0 0.0
  %904 = vmatprep.subr.mxu0 0.0
  %905 = vmatpush2.xpose.msra.mxu0 0.0
  %906 = vmatprep.subr.mxu0 0.0
  %907 = vmatpush2.xpose.msra.mxu0 0.0
  %908 = vmatprep.subr.mxu0 0.0
  %909 = vmatpush2.xpose.msra.mxu0 0.0
  %910 = vmatprep.subr.mxu0 0.0
  %911 = vmatpush2.xpose.msra.mxu0 0.0
  %912 = vmatprep.mubr.f32.mxu0 0.0
  %913 = vmatmul.mubr.f32.gmra.mxu0 %v844
  %v914 = vpop.f32.mrf.mxu0
  %v915 = vadd.f32 %v37, %v914
  %v916 = vpop.f32.mrf.mxu0
  %917 = vdwg.mxu0
  %v918 = vlaneseq
  %v919 = vshrl.u32 %v918, 7
  %v920 = vsub.s32 1, %v919
  %v921 = vrot.slane %v43, %v920
  %v922 = vadd.f32 %v915, %v921
  %v923 = vsel %vm159, %v922, -inf
  %924 = vmax.xlane.f32.xlu0 %v923
  %v925 = vpop.xlane.xlu0 %924
  %v926 = vsub.f32 %v922, %v925
  %v927 = vmul.f32 %v926, 1.442695
  %v928 = vpow.pop %v927
  %v929 = vsel %vm159, %v928, 0.0
  %930 = vadd.xlane.f32.xlu0 %v929
  %v931 = vpop.xlane.xlu0 %930
  %v932 = vrcp.pop %v931
  %v933 = vmul.f32 %v928, %v932
  %934 = vrot.lane.b32.xlu0 %v153, 64
  %v935 = vpop.permute.xlu0 %934
  %v938 = vsel %vm159, %v933, 0
  %940 = vmatprep.subr.mxu0 0.0
  %941 = vmatpush1.msra.mxu0 0.0
  %942 = vmatprep.subr.mxu0 0.0
  %943 = vmatpush1.msra.mxu0 0.0
  %944 = vmatprep.subr.mxu0 0.0
  %945 = vmatpush1.msra.mxu0 0.0
  %946 = vmatprep.subr.mxu0 0.0
  %947 = vmatpush1.msra.mxu0 0.0
  %948 = vmatprep.subr.mxu0 0.0
  %949 = vmatpush1.msra.mxu0 0.0
  %950 = vmatprep.subr.mxu0 0.0
  %951 = vmatpush1.msra.mxu0 0.0
  %952 = vmatprep.subr.mxu0 0.0
  %953 = vmatpush1.msra.mxu0 0.0
  %954 = vmatprep.subr.mxu0 0.0
  %955 = vmatpush1.msra.mxu0 0.0
  %956 = vmatprep.subr.mxu0 0.0
  %957 = vmatpush1.msra.mxu0 0.0
  %958 = vmatprep.subr.mxu0 0.0
  %959 = vmatpush1.msra.mxu0 0.0
  %960 = vmatprep.subr.mxu0 0.0
  %961 = vmatpush1.msra.mxu0 0.0
  %962 = vmatprep.subr.mxu0 0.0
  %963 = vmatpush1.msra.mxu0 0.0
  %964 = vmatprep.subr.mxu0 0.0
  %965 = vmatpush1.msra.mxu0 0.0
  %966 = vmatprep.subr.mxu0 0.0
  %967 = vmatpush1.msra.mxu0 0.0
  %968 = vmatprep.subr.mxu0 0.0
  %969 = vmatpush1.msra.mxu0 0.0
  %970 = vmatprep.subr.mxu0 0.0
  %971 = vmatpush1.msra.mxu0 %v935
  %972 = vmatprep.subr.mxu0 0.0
  %973 = vmatpush2.msra.mxu0 0.0
  %974 = vmatprep.subr.mxu0 0.0
  %975 = vmatpush2.msra.mxu0 0.0
  %976 = vmatprep.subr.mxu0 0.0
  %977 = vmatpush2.msra.mxu0 0.0
  %978 = vmatprep.subr.mxu0 0.0
  %979 = vmatpush2.msra.mxu0 0.0
  %980 = vmatprep.subr.mxu0 0.0
  %981 = vmatpush2.msra.mxu0 0.0
  %982 = vmatprep.subr.mxu0 0.0
  %983 = vmatpush2.msra.mxu0 0.0
  %984 = vmatprep.subr.mxu0 0.0
  %985 = vmatpush2.msra.mxu0 0.0
  %986 = vmatprep.subr.mxu0 0.0
  %987 = vmatpush2.msra.mxu0 0.0
  %988 = vmatprep.subr.mxu0 0.0
  %989 = vmatpush2.msra.mxu0 0.0
  %990 = vmatprep.subr.mxu0 0.0
  %991 = vmatpush2.msra.mxu0 0.0
  %992 = vmatprep.subr.mxu0 0.0
  %993 = vmatpush2.msra.mxu0 0.0
  %994 = vmatprep.subr.mxu0 0.0
  %995 = vmatpush2.msra.mxu0 0.0
  %996 = vmatprep.subr.mxu0 0.0
  %997 = vmatpush2.msra.mxu0 0.0
  %998 = vmatprep.subr.mxu0 0.0
  %999 = vmatpush2.msra.mxu0 0.0
  %1000 = vmatprep.subr.mxu0 0.0
  %1001 = vmatpush2.msra.mxu0 0.0
  %1002 = vmatprep.subr.mxu0 0.0
  %1003 = vmatpush2.msra.mxu0 0.0
  %1004 = vmatprep.mubr.f32.mxu0 0.0
  %1005 = vmatmul.mubr.f32.gmra.mxu0 %v938
  %v1006 = vpop.f32.mrf.mxu0
  %v1007 = vadd.f32 0.0, %v1006
  %v1008 = vpop.f32.mrf.mxu0
  %1009 = vdwg.mxu0
  %1010 = vrot.lane.b32.xlu0 %v153, 120
  %v1011 = vpop.permute.xlu0 %1010
  %1012 = vrot.lane.b32.xlu0 %v153, 88
  %v1013 = vpop.permute.xlu0 %1012
  %v1014 = vsel %vm159, %v1011, 0
  %v1016 = vsel %vm159, %v1013, 0
  %1018 = vmatprep.subr.mxu0 0.0
  %1019 = vmatpush1.xpose.msra.mxu0 0.0
  %1020 = vmatprep.subr.mxu0 0.0
  %1021 = vmatpush1.xpose.msra.mxu0 0.0
  %1022 = vmatprep.subr.mxu0 0.0
  %1023 = vmatpush1.xpose.msra.mxu0 0.0
  %1024 = vmatprep.subr.mxu0 0.0
  %1025 = vmatpush1.xpose.msra.mxu0 0.0
  %1026 = vmatprep.subr.mxu0 0.0
  %1027 = vmatpush1.xpose.msra.mxu0 0.0
  %1028 = vmatprep.subr.mxu0 0.0
  %1029 = vmatpush1.xpose.msra.mxu0 0.0
  %1030 = vmatprep.subr.mxu0 0.0
  %1031 = vmatpush1.xpose.msra.mxu0 0.0
  %1032 = vmatprep.subr.mxu0 0.0
  %1033 = vmatpush1.xpose.msra.mxu0 0.0
  %1034 = vmatprep.subr.mxu0 0.0
  %1035 = vmatpush1.xpose.msra.mxu0 0.0
  %1036 = vmatprep.subr.mxu0 0.0
  %1037 = vmatpush1.xpose.msra.mxu0 0.0
  %1038 = vmatprep.subr.mxu0 0.0
  %1039 = vmatpush1.xpose.msra.mxu0 0.0
  %1040 = vmatprep.subr.mxu0 0.0
  %1041 = vmatpush1.xpose.msra.mxu0 0.0
  %1042 = vmatprep.subr.mxu0 0.0
  %1043 = vmatpush1.xpose.msra.mxu0 0.0
  %1044 = vmatprep.subr.mxu0 0.0
  %1045 = vmatpush1.xpose.msra.mxu0 0.0
  %1046 = vmatprep.subr.mxu0 0.0
  %1047 = vmatpush1.xpose.msra.mxu0 0.0
  %1048 = vmatprep.subr.mxu0 0.0
  %1049 = vmatpush1.xpose.msra.mxu0 %v1016
  %1050 = vmatprep.subr.mxu0 0.0
  %1051 = vmatpush2.xpose.msra.mxu0 0.0
  %1052 = vmatprep.subr.mxu0 0.0
  %1053 = vmatpush2.xpose.msra.mxu0 0.0
  %1054 = vmatprep.subr.mxu0 0.0
  %1055 = vmatpush2.xpose.msra.mxu0 0.0
  %1056 = vmatprep.subr.mxu0 0.0
  %1057 = vmatpush2.xpose.msra.mxu0 0.0
  %1058 = vmatprep.subr.mxu0 0.0
  %1059 = vmatpush2.xpose.msra.mxu0 0.0
  %1060 = vmatprep.subr.mxu0 0.0
  %1061 = vmatpush2.xpose.msra.mxu0 0.0
  %1062 = vmatprep.subr.mxu0 0.0
  %1063 = vmatpush2.xpose.msra.mxu0 0.0
  %1064 = vmatprep.subr.mxu0 0.0
  %1065 = vmatpush2.xpose.msra.mxu0 0.0
  %1066 = vmatprep.subr.mxu0 0.0
  %1067 = vmatpush2.xpose.msra.mxu0 0.0
  %1068 = vmatprep.subr.mxu0 0.0
  %1069 = vmatpush2.xpose.msra.mxu0 0.0
  %1070 = vmatprep.subr.mxu0 0.0
  %1071 = vmatpush2.xpose.msra.mxu0 0.0
  %1072 = vmatprep.subr.mxu0 0.0
  %1073 = vmatpush2.xpose.msra.mxu0 0.0
  %1074 = vmatprep.subr.mxu0 0.0
  %1075 = vmatpush2.xpose.msra.mxu0 0.0
  %1076 = vmatprep.subr.mxu0 0.0
  %1077 = vmatpush2.xpose.msra.mxu0 0.0
  %1078 = vmatprep.subr.mxu0 0.0
  %1079 = vmatpush2.xpose.msra.mxu0 0.0
  %1080 = vmatprep.subr.mxu0 0.0
  %1081 = vmatpush2.xpose.msra.mxu0 0.0
  %1082 = vmatprep.mubr.f32.mxu0 0.0
  %1083 = vmatmul.mubr.f32.gmra.mxu0 %v1014
  %v1084 = vpop.f32.mrf.mxu0
  %v1085 = vadd.f32 %v38, %v1084
  %v1086 = vpop.f32.mrf.mxu0
  %1087 = vdwg.mxu0
  %v1088 = vadd.f32 %v1085, %v921
  %v1089 = vsel %vm159, %v1088, -inf
  %1090 = vmax.xlane.f32.xlu0 %v1089
  %v1091 = vpop.xlane.xlu0 %1090
  %v1092 = vsub.f32 %v1088, %v1091
  %v1093 = vmul.f32 %v1092, 1.442695
  %v1094 = vpow.pop %v1093
  %v1095 = vsel %vm159, %v1094, 0.0
  %1096 = vadd.xlane.f32.xlu0 %v1095
  %v1097 = vpop.xlane.xlu0 %1096
  %v1098 = vrcp.pop %v1097
  %v1099 = vmul.f32 %v1094, %v1098
  %1100 = vrot.lane.b32.xlu0 %v153, 56
  %v1101 = vpop.permute.xlu0 %1100
  %v1104 = vsel %vm159, %v1099, 0
  %1106 = vmatprep.subr.mxu0 0.0
  %1107 = vmatpush1.msra.mxu0 0.0
  %1108 = vmatprep.subr.mxu0 0.0
  %1109 = vmatpush1.msra.mxu0 0.0
  %1110 = vmatprep.subr.mxu0 0.0
  %1111 = vmatpush1.msra.mxu0 0.0
  %1112 = vmatprep.subr.mxu0 0.0
  %1113 = vmatpush1.msra.mxu0 0.0
  %1114 = vmatprep.subr.mxu0 0.0
  %1115 = vmatpush1.msra.mxu0 0.0
  %1116 = vmatprep.subr.mxu0 0.0
  %1117 = vmatpush1.msra.mxu0 0.0
  %1118 = vmatprep.subr.mxu0 0.0
  %1119 = vmatpush1.msra.mxu0 0.0
  %1120 = vmatprep.subr.mxu0 0.0
  %1121 = vmatpush1.msra.mxu0 0.0
  %1122 = vmatprep.subr.mxu0 0.0
  %1123 = vmatpush1.msra.mxu0 0.0
  %1124 = vmatprep.subr.mxu0 0.0
  %1125 = vmatpush1.msra.mxu0 0.0
  %1126 = vmatprep.subr.mxu0 0.0
  %1127 = vmatpush1.msra.mxu0 0.0
  %1128 = vmatprep.subr.mxu0 0.0
  %1129 = vmatpush1.msra.mxu0 0.0
  %1130 = vmatprep.subr.mxu0 0.0
  %1131 = vmatpush1.msra.mxu0 0.0
  %1132 = vmatprep.subr.mxu0 0.0
  %1133 = vmatpush1.msra.mxu0 0.0
  %1134 = vmatprep.subr.mxu0 0.0
  %1135 = vmatpush1.msra.mxu0 0.0
  %1136 = vmatprep.subr.mxu0 0.0
  %1137 = vmatpush1.msra.mxu0 %v1101
  %1138 = vmatprep.subr.mxu0 0.0
  %1139 = vmatpush2.msra.mxu0 0.0
  %1140 = vmatprep.subr.mxu0 0.0
  %1141 = vmatpush2.msra.mxu0 0.0
  %1142 = vmatprep.subr.mxu0 0.0
  %1143 = vmatpush2.msra.mxu0 0.0
  %1144 = vmatprep.subr.mxu0 0.0
  %1145 = vmatpush2.msra.mxu0 0.0
  %1146 = vmatprep.subr.mxu0 0.0
  %1147 = vmatpush2.msra.mxu0 0.0
  %1148 = vmatprep.subr.mxu0 0.0
  %1149 = vmatpush2.msra.mxu0 0.0
  %1150 = vmatprep.subr.mxu0 0.0
  %1151 = vmatpush2.msra.mxu0 0.0
  %1152 = vmatprep.subr.mxu0 0.0
  %1153 = vmatpush2.msra.mxu0 0.0
  %1154 = vmatprep.subr.mxu0 0.0
  %1155 = vmatpush2.msra.mxu0 0.0
  %1156 = vmatprep.subr.mxu0 0.0
  %1157 = vmatpush2.msra.mxu0 0.0
  %1158 = vmatprep.subr.mxu0 0.0
  %1159 = vmatpush2.msra.mxu0 0.0
  %1160 = vmatprep.subr.mxu0 0.0
  %1161 = vmatpush2.msra.mxu0 0.0
  %1162 = vmatprep.subr.mxu0 0.0
  %1163 = vmatpush2.msra.mxu0 0.0
  %1164 = vmatprep.subr.mxu0 0.0
  %1165 = vmatpush2.msra.mxu0 0.0
  %1166 = vmatprep.subr.mxu0 0.0
  %1167 = vmatpush2.msra.mxu0 0.0
  %1168 = vmatprep.subr.mxu0 0.0
  %1169 = vmatpush2.msra.mxu0 0.0
  %1170 = vmatprep.mubr.f32.mxu0 0.0
  %1171 = vmatmul.mubr.f32.gmra.mxu0 %v1104
  %v1172 = vpop.f32.mrf.mxu0
  %v1173 = vadd.f32 0.0, %v1172
  %v1174 = vpop.f32.mrf.mxu0
  %1175 = vdwg.mxu0
  %1176 = vrot.lane.b32.xlu0 %v153, 112
  %v1177 = vpop.permute.xlu0 %1176
  %1178 = vrot.lane.b32.xlu0 %v153, 80
  %v1179 = vpop.permute.xlu0 %1178
  %v1180 = vsel %vm159, %v1177, 0
  %v1182 = vsel %vm159, %v1179, 0
  %1184 = vmatprep.subr.mxu0 0.0
  %1185 = vmatpush1.xpose.msra.mxu0 0.0
  %1186 = vmatprep.subr.mxu0 0.0
  %1187 = vmatpush1.xpose.msra.mxu0 0.0
  %1188 = vmatprep.subr.mxu0 0.0
  %1189 = vmatpush1.xpose.msra.mxu0 0.0
  %1190 = vmatprep.subr.mxu0 0.0
  %1191 = vmatpush1.xpose.msra.mxu0 0.0
  %1192 = vmatprep.subr.mxu0 0.0
  %1193 = vmatpush1.xpose.msra.mxu0 0.0
  %1194 = vmatprep.subr.mxu0 0.0
  %1195 = vmatpush1.xpose.msra.mxu0 0.0
  %1196 = vmatprep.subr.mxu0 0.0
  %1197 = vmatpush1.xpose.msra.mxu0 0.0
  %1198 = vmatprep.subr.mxu0 0.0
  %1199 = vmatpush1.xpose.msra.mxu0 0.0
  %1200 = vmatprep.subr.mxu0 0.0
  %1201 = vmatpush1.xpose.msra.mxu0 0.0
  %1202 = vmatprep.subr.mxu0 0.0
  %1203 = vmatpush1.xpose.msra.mxu0 0.0
  %1204 = vmatprep.subr.mxu0 0.0
  %1205 = vmatpush1.xpose.msra.mxu0 0.0
  %1206 = vmatprep.subr.mxu0 0.0
  %1207 = vmatpush1.xpose.msra.mxu0 0.0
  %1208 = vmatprep.subr.mxu0 0.0
  %1209 = vmatpush1.xpose.msra.mxu0 0.0
  %1210 = vmatprep.subr.mxu0 0.0
  %1211 = vmatpush1.xpose.msra.mxu0 0.0
  %1212 = vmatprep.subr.mxu0 0.0
  %1213 = vmatpush1.xpose.msra.mxu0 0.0
  %1214 = vmatprep.subr.mxu0 0.0
  %1215 = vmatpush1.xpose.msra.mxu0 %v1182
  %1216 = vmatprep.subr.mxu0 0.0
  %1217 = vmatpush2.xpose.msra.mxu0 0.0
  %1218 = vmatprep.subr.mxu0 0.0
  %1219 = vmatpush2.xpose.msra.mxu0 0.0
  %1220 = vmatprep.subr.mxu0 0.0
  %1221 = vmatpush2.xpose.msra.mxu0 0.0
  %1222 = vmatprep.subr.mxu0 0.0
  %1223 = vmatpush2.xpose.msra.mxu0 0.0
  %1224 = vmatprep.subr.mxu0 0.0
  %1225 = vmatpush2.xpose.msra.mxu0 0.0
  %1226 = vmatprep.subr.mxu0 0.0
  %1227 = vmatpush2.xpose.msra.mxu0 0.0
  %1228 = vmatprep.subr.mxu0 0.0
  %1229 = vmatpush2.xpose.msra.mxu0 0.0
  %1230 = vmatprep.subr.mxu0 0.0
  %1231 = vmatpush2.xpose.msra.mxu0 0.0
  %1232 = vmatprep.subr.mxu0 0.0
  %1233 = vmatpush2.xpose.msra.mxu0 0.0
  %1234 = vmatprep.subr.mxu0 0.0
  %1235 = vmatpush2.xpose.msra.mxu0 0.0
  %1236 = vmatprep.subr.mxu0 0.0
  %1237 = vmatpush2.xpose.msra.mxu0 0.0
  %1238 = vmatprep.subr.mxu0 0.0
  %1239 = vmatpush2.xpose.msra.mxu0 0.0
  %1240 = vmatprep.subr.mxu0 0.0
  %1241 = vmatpush2.xpose.msra.mxu0 0.0
  %1242 = vmatprep.subr.mxu0 0.0
  %1243 = vmatpush2.xpose.msra.mxu0 0.0
  %1244 = vmatprep.subr.mxu0 0.0
  %1245 = vmatpush2.xpose.msra.mxu0 0.0
  %1246 = vmatprep.subr.mxu0 0.0
  %1247 = vmatpush2.xpose.msra.mxu0 0.0
  %1248 = vmatprep.mubr.f32.mxu0 0.0
  %1249 = vmatmul.mubr.f32.gmra.mxu0 %v1180
  %v1250 = vpop.f32.mrf.mxu0
  %v1251 = vadd.f32 %v39, %v1250
  %v1252 = vpop.f32.mrf.mxu0
  %1253 = vdwg.mxu0
  %v1254 = vadd.f32 %v1251, %v921
  %v1255 = vsel %vm159, %v1254, -inf
  %1256 = vmax.xlane.f32.xlu0 %v1255
  %v1257 = vpop.xlane.xlu0 %1256
  %v1258 = vsub.f32 %v1254, %v1257
  %v1259 = vmul.f32 %v1258, 1.442695
  %v1260 = vpow.pop %v1259
  %v1261 = vsel %vm159, %v1260, 0.0
  %1262 = vadd.xlane.f32.xlu0 %v1261
  %v1263 = vpop.xlane.xlu0 %1262
  %v1264 = vrcp.pop %v1263
  %v1265 = vmul.f32 %v1260, %v1264
  %1266 = vrot.lane.b32.xlu0 %v153, 48
  %v1267 = vpop.permute.xlu0 %1266
  %v1270 = vsel %vm159, %v1265, 0
  %1272 = vmatprep.subr.mxu0 0.0
  %1273 = vmatpush1.msra.mxu0 0.0
  %1274 = vmatprep.subr.mxu0 0.0
  %1275 = vmatpush1.msra.mxu0 0.0
  %1276 = vmatprep.subr.mxu0 0.0
  %1277 = vmatpush1.msra.mxu0 0.0
  %1278 = vmatprep.subr.mxu0 0.0
  %1279 = vmatpush1.msra.mxu0 0.0
  %1280 = vmatprep.subr.mxu0 0.0
  %1281 = vmatpush1.msra.mxu0 0.0
  %1282 = vmatprep.subr.mxu0 0.0
  %1283 = vmatpush1.msra.mxu0 0.0
  %1284 = vmatprep.subr.mxu0 0.0
  %1285 = vmatpush1.msra.mxu0 0.0
  %1286 = vmatprep.subr.mxu0 0.0
  %1287 = vmatpush1.msra.mxu0 0.0
  %1288 = vmatprep.subr.mxu0 0.0
  %1289 = vmatpush1.msra.mxu0 0.0
  %1290 = vmatprep.subr.mxu0 0.0
  %1291 = vmatpush1.msra.mxu0 0.0
  %1292 = vmatprep.subr.mxu0 0.0
  %1293 = vmatpush1.msra.mxu0 0.0
  %1294 = vmatprep.subr.mxu0 0.0
  %1295 = vmatpush1.msra.mxu0 0.0
  %1296 = vmatprep.subr.mxu0 0.0
  %1297 = vmatpush1.msra.mxu0 0.0
  %1298 = vmatprep.subr.mxu0 0.0
  %1299 = vmatpush1.msra.mxu0 0.0
  %1300 = vmatprep.subr.mxu0 0.0
  %1301 = vmatpush1.msra.mxu0 0.0
  %1302 = vmatprep.subr.mxu0 0.0
  %1303 = vmatpush1.msra.mxu0 %v1267
  %1304 = vmatprep.subr.mxu0 0.0
  %1305 = vmatpush2.msra.mxu0 0.0
  %1306 = vmatprep.subr.mxu0 0.0
  %1307 = vmatpush2.msra.mxu0 0.0
  %1308 = vmatprep.subr.mxu0 0.0
  %1309 = vmatpush2.msra.mxu0 0.0
  %1310 = vmatprep.subr.mxu0 0.0
  %1311 = vmatpush2.msra.mxu0 0.0
  %1312 = vmatprep.subr.mxu0 0.0
  %1313 = vmatpush2.msra.mxu0 0.0
  %1314 = vmatprep.subr.mxu0 0.0
  %1315 = vmatpush2.msra.mxu0 0.0
  %1316 = vmatprep.subr.mxu0 0.0
  %1317 = vmatpush2.msra.mxu0 0.0
  %1318 = vmatprep.subr.mxu0 0.0
  %1319 = vmatpush2.msra.mxu0 0.0
  %1320 = vmatprep.subr.mxu0 0.0
  %1321 = vmatpush2.msra.mxu0 0.0
  %1322 = vmatprep.subr.mxu0 0.0
  %1323 = vmatpush2.msra.mxu0 0.0
  %1324 = vmatprep.subr.mxu0 0.0
  %1325 = vmatpush2.msra.mxu0 0.0
  %1326 = vmatprep.subr.mxu0 0.0
  %1327 = vmatpush2.msra.mxu0 0.0
  %1328 = vmatprep.subr.mxu0 0.0
  %1329 = vmatpush2.msra.mxu0 0.0
  %1330 = vmatprep.subr.mxu0 0.0
  %1331 = vmatpush2.msra.mxu0 0.0
  %1332 = vmatprep.subr.mxu0 0.0
  %1333 = vmatpush2.msra.mxu0 0.0
  %1334 = vmatprep.subr.mxu0 0.0
  %1335 = vmatpush2.msra.mxu0 0.0
  %1336 = vmatprep.mubr.f32.mxu0 0.0
  %1337 = vmatmul.mubr.f32.gmra.mxu0 %v1270
  %v1338 = vpop.f32.mrf.mxu0
  %v1339 = vadd.f32 0.0, %v1338
  %v1340 = vpop.f32.mrf.mxu0
  %1341 = vdwg.mxu0
  %1342 = vrot.lane.b32.xlu0 %v153, 104
  %v1343 = vpop.permute.xlu0 %1342
  %1344 = vrot.lane.b32.xlu0 %v153, 72
  %v1345 = vpop.permute.xlu0 %1344
  %v1346 = vsel %vm159, %v1343, 0
  %v1348 = vsel %vm159, %v1345, 0
  %1350 = vmatprep.subr.mxu0 0.0
  %1351 = vmatpush1.xpose.msra.mxu0 0.0
  %1352 = vmatprep.subr.mxu0 0.0
  %1353 = vmatpush1.xpose.msra.mxu0 0.0
  %1354 = vmatprep.subr.mxu0 0.0
  %1355 = vmatpush1.xpose.msra.mxu0 0.0
  %1356 = vmatprep.subr.mxu0 0.0
  %1357 = vmatpush1.xpose.msra.mxu0 0.0
  %1358 = vmatprep.subr.mxu0 0.0
  %1359 = vmatpush1.xpose.msra.mxu0 0.0
  %1360 = vmatprep.subr.mxu0 0.0
  %1361 = vmatpush1.xpose.msra.mxu0 0.0
  %1362 = vmatprep.subr.mxu0 0.0
  %1363 = vmatpush1.xpose.msra.mxu0 0.0
  %1364 = vmatprep.subr.mxu0 0.0
  %1365 = vmatpush1.xpose.msra.mxu0 0.0
  %1366 = vmatprep.subr.mxu0 0.0
  %1367 = vmatpush1.xpose.msra.mxu0 0.0
  %1368 = vmatprep.subr.mxu0 0.0
  %1369 = vmatpush1.xpose.msra.mxu0 0.0
  %1370 = vmatprep.subr.mxu0 0.0
  %1371 = vmatpush1.xpose.msra.mxu0 0.0
  %1372 = vmatprep.subr.mxu0 0.0
  %1373 = vmatpush1.xpose.msra.mxu0 0.0
  %1374 = vmatprep.subr.mxu0 0.0
  %1375 = vmatpush1.xpose.msra.mxu0 0.0
  %1376 = vmatprep.subr.mxu0 0.0
  %1377 = vmatpush1.xpose.msra.mxu0 0.0
  %1378 = vmatprep.subr.mxu0 0.0
  %1379 = vmatpush1.xpose.msra.mxu0 0.0
  %1380 = vmatprep.subr.mxu0 0.0
  %1381 = vmatpush1.xpose.msra.mxu0 %v1348
  %1382 = vmatprep.subr.mxu0 0.0
  %1383 = vmatpush2.xpose.msra.mxu0 0.0
  %1384 = vmatprep.subr.mxu0 0.0
  %1385 = vmatpush2.xpose.msra.mxu0 0.0
  %1386 = vmatprep.subr.mxu0 0.0
  %1387 = vmatpush2.xpose.msra.mxu0 0.0
  %1388 = vmatprep.subr.mxu0 0.0
  %1389 = vmatpush2.xpose.msra.mxu0 0.0
  %1390 = vmatprep.subr.mxu0 0.0
  %1391 = vmatpush2.xpose.msra.mxu0 0.0
  %1392 = vmatprep.subr.mxu0 0.0
  %1393 = vmatpush2.xpose.msra.mxu0 0.0
  %1394 = vmatprep.subr.mxu0 0.0
  %1395 = vmatpush2.xpose.msra.mxu0 0.0
  %1396 = vmatprep.subr.mxu0 0.0
  %1397 = vmatpush2.xpose.msra.mxu0 0.0
  %1398 = vmatprep.subr.mxu0 0.0
  %1399 = vmatpush2.xpose.msra.mxu0 0.0
  %1400 = vmatprep.subr.mxu0 0.0
  %1401 = vmatpush2.xpose.msra.mxu0 0.0
  %1402 = vmatprep.subr.mxu0 0.0
  %1403 = vmatpush2.xpose.msra.mxu0 0.0
  %1404 = vmatprep.subr.mxu0 0.0
  %1405 = vmatpush2.xpose.msra.mxu0 0.0
  %1406 = vmatprep.subr.mxu0 0.0
  %1407 = vmatpush2.xpose.msra.mxu0 0.0
  %1408 = vmatprep.subr.mxu0 0.0
  %1409 = vmatpush2.xpose.msra.mxu0 0.0
  %1410 = vmatprep.subr.mxu0 0.0
  %1411 = vmatpush2.xpose.msra.mxu0 0.0
  %1412 = vmatprep.subr.mxu0 0.0
  %1413 = vmatpush2.xpose.msra.mxu0 0.0
  %1414 = vmatprep.mubr.f32.mxu0 0.0
  %1415 = vmatmul.mubr.f32.gmra.mxu0 %v1346
  %v1416 = vpop.f32.mrf.mxu0
  %v1417 = vadd.f32 %v40, %v1416
  %v1418 = vpop.f32.mrf.mxu0
  %1419 = vdwg.mxu0
  %v1420 = vadd.f32 %v1417, %v921
  %v1421 = vsel %vm159, %v1420, -inf
  %1422 = vmax.xlane.f32.xlu0 %v1421
  %v1423 = vpop.xlane.xlu0 %1422
  %v1424 = vsub.f32 %v1420, %v1423
  %v1425 = vmul.f32 %v1424, 1.442695
  %v1426 = vpow.pop %v1425
  %v1427 = vsel %vm159, %v1426, 0.0
  %1428 = vadd.xlane.f32.xlu0 %v1427
  %v1429 = vpop.xlane.xlu0 %1428
  %v1430 = vrcp.pop %v1429
  %v1431 = vmul.f32 %v1426, %v1430
  %1432 = vrot.lane.b32.xlu0 %v153, 40
  %v1433 = vpop.permute.xlu0 %1432
  %v1436 = vsel %vm159, %v1431, 0
  %1438 = vmatprep.subr.mxu0 0.0
  %1439 = vmatpush1.msra.mxu0 0.0
  %1440 = vmatprep.subr.mxu0 0.0
  %1441 = vmatpush1.msra.mxu0 0.0
  %1442 = vmatprep.subr.mxu0 0.0
  %1443 = vmatpush1.msra.mxu0 0.0
  %1444 = vmatprep.subr.mxu0 0.0
  %1445 = vmatpush1.msra.mxu0 0.0
  %1446 = vmatprep.subr.mxu0 0.0
  %1447 = vmatpush1.msra.mxu0 0.0
  %1448 = vmatprep.subr.mxu0 0.0
  %1449 = vmatpush1.msra.mxu0 0.0
  %1450 = vmatprep.subr.mxu0 0.0
  %1451 = vmatpush1.msra.mxu0 0.0
  %1452 = vmatprep.subr.mxu0 0.0
  %1453 = vmatpush1.msra.mxu0 0.0
  %1454 = vmatprep.subr.mxu0 0.0
  %1455 = vmatpush1.msra.mxu0 0.0
  %1456 = vmatprep.subr.mxu0 0.0
  %1457 = vmatpush1.msra.mxu0 0.0
  %1458 = vmatprep.subr.mxu0 0.0
  %1459 = vmatpush1.msra.mxu0 0.0
  %1460 = vmatprep.subr.mxu0 0.0
  %1461 = vmatpush1.msra.mxu0 0.0
  %1462 = vmatprep.subr.mxu0 0.0
  %1463 = vmatpush1.msra.mxu0 0.0
  %1464 = vmatprep.subr.mxu0 0.0
  %1465 = vmatpush1.msra.mxu0 0.0
  %1466 = vmatprep.subr.mxu0 0.0
  %1467 = vmatpush1.msra.mxu0 0.0
  %1468 = vmatprep.subr.mxu0 0.0
  %1469 = vmatpush1.msra.mxu0 %v1433
  %1470 = vmatprep.subr.mxu0 0.0
  %1471 = vmatpush2.msra.mxu0 0.0
  %1472 = vmatprep.subr.mxu0 0.0
  %1473 = vmatpush2.msra.mxu0 0.0
  %1474 = vmatprep.subr.mxu0 0.0
  %1475 = vmatpush2.msra.mxu0 0.0
  %1476 = vmatprep.subr.mxu0 0.0
  %1477 = vmatpush2.msra.mxu0 0.0
  %1478 = vmatprep.subr.mxu0 0.0
  %1479 = vmatpush2.msra.mxu0 0.0
  %1480 = vmatprep.subr.mxu0 0.0
  %1481 = vmatpush2.msra.mxu0 0.0
  %1482 = vmatprep.subr.mxu0 0.0
  %1483 = vmatpush2.msra.mxu0 0.0
  %1484 = vmatprep.subr.mxu0 0.0
  %1485 = vmatpush2.msra.mxu0 0.0
  %1486 = vmatprep.subr.mxu0 0.0
  %1487 = vmatpush2.msra.mxu0 0.0
  %1488 = vmatprep.subr.mxu0 0.0
  %1489 = vmatpush2.msra.mxu0 0.0
  %1490 = vmatprep.subr.mxu0 0.0
  %1491 = vmatpush2.msra.mxu0 0.0
  %1492 = vmatprep.subr.mxu0 0.0
  %1493 = vmatpush2.msra.mxu0 0.0
  %1494 = vmatprep.subr.mxu0 0.0
  %1495 = vmatpush2.msra.mxu0 0.0
  %1496 = vmatprep.subr.mxu0 0.0
  %1497 = vmatpush2.msra.mxu0 0.0
  %1498 = vmatprep.subr.mxu0 0.0
  %1499 = vmatpush2.msra.mxu0 0.0
  %1500 = vmatprep.subr.mxu0 0.0
  %1501 = vmatpush2.msra.mxu0 0.0
  %1502 = vmatprep.mubr.f32.mxu0 0.0
  %1503 = vmatmul.mubr.f32.gmra.mxu0 %v1436
  %v1504 = vpop.f32.mrf.mxu0
  %v1505 = vadd.f32 0.0, %v1504
  %v1506 = vpop.f32.mrf.mxu0
  %1507 = vdwg.mxu0
  %1509 = vrot.lane.b32.xlu0 %v1173, 8
  %v1510 = vpop.permute.xlu0 %1509
  %1513 = vrot.lane.b32.xlu0 %v1339, 16
  %v1514 = vpop.permute.xlu0 %1513
  %1517 = vrot.lane.b32.xlu0 %v1505, 24
  %v1518 = vpop.permute.xlu0 %1517
  %v1520 = vsel %vm159, %v1007, %v1510
  %v1521 = vsel %vm837, %v1520, %v1514
  %v1522 = vsel %vm839, %v1521, %v1518
  %v1523 = vld [vmem:[%s5] sm:$0xff]
  %v1524 = vld [vmem:[%s5 + $0x8] sm:$0xff]
  %v1525 = vld [vmem:[%s5 + $0x10] sm:$0xff]
  %v1526 = vld [vmem:[%s5 + $0x18] sm:$0xff]
  %v1528 = vsel %vm47, %v840, 0
  %v1531 = vsel %vm47, %v1522, 0
  %1533 = vmatprep.subr.mxu0 0.0
  %1534 = vmatpush1.msra.mxu0 0.0
  %1535 = vmatprep.subr.mxu0 0.0
  %1536 = vmatpush1.msra.mxu0 0.0
  %1537 = vmatprep.subr.mxu0 0.0
  %1538 = vmatpush1.msra.mxu0 0.0
  %1539 = vmatprep.subr.mxu0 0.0
  %1540 = vmatpush1.msra.mxu0 0.0
  %1541 = vmatprep.subr.mxu0 0.0
  %1542 = vmatpush1.msra.mxu0 0.0
  %1543 = vmatprep.subr.mxu0 0.0
  %1544 = vmatpush1.msra.mxu0 0.0
  %1545 = vmatprep.subr.mxu0 0.0
  %1546 = vmatpush1.msra.mxu0 0.0
  %1547 = vmatprep.subr.mxu0 0.0
  %1548 = vmatpush1.msra.mxu0 0.0
  %1549 = vmatprep.subr.mxu0 0.0
  %1550 = vmatpush1.msra.mxu0 0.0
  %1551 = vmatprep.subr.mxu0 0.0
  %1552 = vmatpush1.msra.mxu0 0.0
  %1553 = vmatprep.subr.mxu0 0.0
  %1554 = vmatpush1.msra.mxu0 0.0
  %1555 = vmatprep.subr.mxu0 0.0
  %1556 = vmatpush1.msra.mxu0 0.0
  %1557 = vmatprep.subr.mxu0 0.0
  %1558 = vmatpush1.msra.mxu0 %v1526
  %1559 = vmatprep.subr.mxu0 0.0
  %1560 = vmatpush1.msra.mxu0 %v1525
  %1561 = vmatprep.subr.mxu0 0.0
  %1562 = vmatpush1.msra.mxu0 %v1524
  %1563 = vmatprep.subr.mxu0 0.0
  %1564 = vmatpush1.msra.mxu0 %v1523
  %1565 = vmatprep.subr.mxu0 0.0
  %1566 = vmatpush2.msra.mxu0 0.0
  %1567 = vmatprep.subr.mxu0 0.0
  %1568 = vmatpush2.msra.mxu0 0.0
  %1569 = vmatprep.subr.mxu0 0.0
  %1570 = vmatpush2.msra.mxu0 0.0
  %1571 = vmatprep.subr.mxu0 0.0
  %1572 = vmatpush2.msra.mxu0 0.0
  %1573 = vmatprep.subr.mxu0 0.0
  %1574 = vmatpush2.msra.mxu0 0.0
  %1575 = vmatprep.subr.mxu0 0.0
  %1576 = vmatpush2.msra.mxu0 0.0
  %1577 = vmatprep.subr.mxu0 0.0
  %1578 = vmatpush2.msra.mxu0 0.0
  %1579 = vmatprep.subr.mxu0 0.0
  %1580 = vmatpush2.msra.mxu0 0.0
  %1581 = vmatprep.subr.mxu0 0.0
  %1582 = vmatpush2.msra.mxu0 0.0
  %1583 = vmatprep.subr.mxu0 0.0
  %1584 = vmatpush2.msra.mxu0 0.0
  %1585 = vmatprep.subr.mxu0 0.0
  %1586 = vmatpush2.msra.mxu0 0.0
  %1587 = vmatprep.subr.mxu0 0.0
  %1588 = vmatpush2.msra.mxu0 0.0
  %1589 = vmatprep.subr.mxu0 0.0
  %1590 = vmatpush2.msra.mxu0 0.0
  %1591 = vmatprep.subr.mxu0 0.0
  %1592 = vmatpush2.msra.mxu0 0.0
  %1593 = vmatprep.subr.mxu0 0.0
  %1594 = vmatpush2.msra.mxu0 0.0
  %1595 = vmatprep.subr.mxu0 0.0
  %1596 = vmatpush2.msra.mxu0 0.0
  %1597 = vmatprep.mubr.f32.mxu0 0.0
  %1598 = vmatmul.mubr.f32.gmra.mxu0 %v1528
  %v1599 = vpop.f32.mrf.mxu0
  %v1600 = vadd.f32 0.0, %v1599
  %v1601 = vpop.f32.mrf.mxu0
  %1602 = vmatprep.mubr.f32.mxu0 0.0
  %1603 = vmatmul.mubr.f32.gmra.mxu0 %v1531
  %v1604 = vpop.f32.mrf.mxu0
  %v1605 = vadd.f32 0.0, %v1604
  %v1606 = vpop.f32.mrf.mxu0
  %1607 = vdwg.mxu0
  %v1608 = vadd.f32 %v35, %v1600
  %v1609 = vadd.f32 %v36, %v1605
  %v1610 = vld [vmem:[%s6] sm:$0x1]
  %v1611 = vmul.f32 %v1608, %v1608
  %v1612 = vmul.f32 %v1609, %v1609
  %v1613 = vsel %vm47, %v1611, 0.0
  %1614 = vadd.xlane.f32.xlu0 %v1613
  %v1615 = vpop.xlane.xlu0 %1614
  %v1616 = vsel %vm47, %v1612, 0.0
  %1617 = vadd.xlane.f32.xlu0 %v1616
  %v1618 = vpop.xlane.xlu0 %1617
  %v1619 = vmul.f32 %v1615, %v54
  %v1620 = vmul.f32 %v1618, %v54
  %v1621 = vadd.f32 %v1619, 1e-06
  %v1622 = vadd.f32 %v1620, 1e-06
  %v1623 = vrsqrt.pop %v1621
  %v1624 = vrsqrt.pop %v1622
  %v1625 = vmul.f32 %v1608, %v1623
  %v1626 = vmul.f32 %v1609, %v1624
  %v1628 = vlaneseq
  %v1629 = vshrl.u32 %v1628, 7
  %v1630 = vsub.s32 0, %v1629
  %v1631 = vrot.slane %v1610, %v1630
  %v1633 = vmul.f32 %v1625, %v1631
  %v1634 = vmul.f32 %v1626, %v1631
  %v1635 = vld [vmem:[%s7] sm:$0xff]
  %v1636 = vld [vmem:[%s7 + $0x8] sm:$0xff]
  %v1637 = vld [vmem:[%s7 + $0x10] sm:$0xff]
  %v1638 = vld [vmem:[%s7 + $0x18] sm:$0xff]
  %v1640 = vsel %vm47, %v1633, 0
  %v1643 = vsel %vm47, %v1634, 0
  %1645 = vmatprep.subr.mxu0 0.0
  %1646 = vmatpush1.msra.mxu0 0.0
  %1647 = vmatprep.subr.mxu0 0.0
  %1648 = vmatpush1.msra.mxu0 0.0
  %1649 = vmatprep.subr.mxu0 0.0
  %1650 = vmatpush1.msra.mxu0 0.0
  %1651 = vmatprep.subr.mxu0 0.0
  %1652 = vmatpush1.msra.mxu0 0.0
  %1653 = vmatprep.subr.mxu0 0.0
  %1654 = vmatpush1.msra.mxu0 0.0
  %1655 = vmatprep.subr.mxu0 0.0
  %1656 = vmatpush1.msra.mxu0 0.0
  %1657 = vmatprep.subr.mxu0 0.0
  %1658 = vmatpush1.msra.mxu0 0.0
  %1659 = vmatprep.subr.mxu0 0.0
  %1660 = vmatpush1.msra.mxu0 0.0
  %1661 = vmatprep.subr.mxu0 0.0
  %1662 = vmatpush1.msra.mxu0 0.0
  %1663 = vmatprep.subr.mxu0 0.0
  %1664 = vmatpush1.msra.mxu0 0.0
  %1665 = vmatprep.subr.mxu0 0.0
  %1666 = vmatpush1.msra.mxu0 0.0
  %1667 = vmatprep.subr.mxu0 0.0
  %1668 = vmatpush1.msra.mxu0 0.0
  %1669 = vmatprep.subr.mxu0 0.0
  %1670 = vmatpush1.msra.mxu0 %v1638
  %1671 = vmatprep.subr.mxu0 0.0
  %1672 = vmatpush1.msra.mxu0 %v1637
  %1673 = vmatprep.subr.mxu0 0.0
  %1674 = vmatpush1.msra.mxu0 %v1636
  %1675 = vmatprep.subr.mxu0 0.0
  %1676 = vmatpush1.msra.mxu0 %v1635
  %1677 = vmatprep.subr.mxu0 0.0
  %1678 = vmatpush2.msra.mxu0 0.0
  %1679 = vmatprep.subr.mxu0 0.0
  %1680 = vmatpush2.msra.mxu0 0.0
  %1681 = vmatprep.subr.mxu0 0.0
  %1682 = vmatpush2.msra.mxu0 0.0
  %1683 = vmatprep.subr.mxu0 0.0
  %1684 = vmatpush2.msra.mxu0 0.0
  %1685 = vmatprep.subr.mxu0 0.0
  %1686 = vmatpush2.msra.mxu0 0.0
  %1687 = vmatprep.subr.mxu0 0.0
  %1688 = vmatpush2.msra.mxu0 0.0
  %1689 = vmatprep.subr.mxu0 0.0
  %1690 = vmatpush2.msra.mxu0 0.0
  %1691 = vmatprep.subr.mxu0 0.0
  %1692 = vmatpush2.msra.mxu0 0.0
  %1693 = vmatprep.subr.mxu0 0.0
  %1694 = vmatpush2.msra.mxu0 0.0
  %1695 = vmatprep.subr.mxu0 0.0
  %1696 = vmatpush2.msra.mxu0 0.0
  %1697 = vmatprep.subr.mxu0 0.0
  %1698 = vmatpush2.msra.mxu0 0.0
  %1699 = vmatprep.subr.mxu0 0.0
  %1700 = vmatpush2.msra.mxu0 0.0
  %1701 = vmatprep.subr.mxu0 0.0
  %1702 = vmatpush2.msra.mxu0 0.0
  %1703 = vmatprep.subr.mxu0 0.0
  %1704 = vmatpush2.msra.mxu0 0.0
  %1705 = vmatprep.subr.mxu0 0.0
  %1706 = vmatpush2.msra.mxu0 0.0
  %1707 = vmatprep.subr.mxu0 0.0
  %1708 = vmatpush2.msra.mxu0 0.0
  %1709 = vmatprep.mubr.f32.mxu0 0.0
  %1710 = vmatmul.mubr.f32.gmra.mxu0 %v1640
  %v1711 = vpop.f32.mrf.mxu0
  %v1712 = vadd.f32 0.0, %v1711
  %v1713 = vpop.f32.mrf.mxu0
  %1714 = vmatprep.mubr.f32.mxu0 0.0
  %1715 = vmatmul.mubr.f32.gmra.mxu0 %v1643
  %v1716 = vpop.f32.mrf.mxu0
  %v1717 = vadd.f32 0.0, %v1716
  %v1718 = vpop.f32.mrf.mxu0
  %1719 = vdwg.mxu0
  %v1720 = vmax.f32 %v1712, 0.0
  %v1721 = vmax.f32 %v1717, 0.0
  %v1722 = vld [vmem:[%s8] sm:$0xff]
  %v1723 = vld [vmem:[%s8 + $0x8] sm:$0xff]
  %v1724 = vld [vmem:[%s8 + $0x10] sm:$0xff]
  %v1725 = vld [vmem:[%s8 + $0x18] sm:$0xff]
  %v1726 = vld [vmem:[%s8 + $0x20] sm:$0xff]
  %v1727 = vld [vmem:[%s8 + $0x28] sm:$0xff]
  %v1728 = vld [vmem:[%s8 + $0x30] sm:$0xff]
  %v1729 = vld [vmem:[%s8 + $0x38] sm:$0xff]
  %vm1730 = vcmask 523264
  %v1732 = vsel %vm1730, %v1720, 0
  %v1735 = vsel %vm1730, %v1721, 0
  %1737 = vmatprep.subr.mxu0 0.0
  %1738 = vmatpush1.msra.mxu0 0.0
  %1739 = vmatprep.subr.mxu0 0.0
  %1740 = vmatpush1.msra.mxu0 0.0
  %1741 = vmatprep.subr.mxu0 0.0
  %1742 = vmatpush1.msra.mxu0 0.0
  %1743 = vmatprep.subr.mxu0 0.0
  %1744 = vmatpush1.msra.mxu0 0.0
  %1745 = vmatprep.subr.mxu0 0.0
  %1746 = vmatpush1.msra.mxu0 0.0
  %1747 = vmatprep.subr.mxu0 0.0
  %1748 = vmatpush1.msra.mxu0 0.0
  %1749 = vmatprep.subr.mxu0 0.0
  %1750 = vmatpush1.msra.mxu0 0.0
  %1751 = vmatprep.subr.mxu0 0.0
  %1752 = vmatpush1.msra.mxu0 0.0
  %1753 = vmatprep.subr.mxu0 0.0
  %1754 = vmatpush1.msra.mxu0 %v1729
  %1755 = vmatprep.subr.mxu0 0.0
  %1756 = vmatpush1.msra.mxu0 %v1728
  %1757 = vmatprep.subr.mxu0 0.0
  %1758 = vmatpush1.msra.mxu0 %v1727
  %1759 = vmatprep.subr.mxu0 0.0
  %1760 = vmatpush1.msra.mxu0 %v1726
  %1761 = vmatprep.subr.mxu0 0.0
  %1762 = vmatpush1.msra.mxu0 %v1725
  %1763 = vmatprep.subr.mxu0 0.0
  %1764 = vmatpush1.msra.mxu0 %v1724
  %1765 = vmatprep.subr.mxu0 0.0
  %1766 = vmatpush1.msra.mxu0 %v1723
  %1767 = vmatprep.subr.mxu0 0.0
  %1768 = vmatpush1.msra.mxu0 %v1722
  %1769 = vmatprep.subr.mxu0 0.0
  %1770 = vmatpush2.msra.mxu0 0.0
  %1771 = vmatprep.subr.mxu0 0.0
  %1772 = vmatpush2.msra.mxu0 0.0
  %1773 = vmatprep.subr.mxu0 0.0
  %1774 = vmatpush2.msra.mxu0 0.0
  %1775 = vmatprep.subr.mxu0 0.0
  %1776 = vmatpush2.msra.mxu0 0.0
  %1777 = vmatprep.subr.mxu0 0.0
  %1778 = vmatpush2.msra.mxu0 0.0
  %1779 = vmatprep.subr.mxu0 0.0
  %1780 = vmatpush2.msra.mxu0 0.0
  %1781 = vmatprep.subr.mxu0 0.0
  %1782 = vmatpush2.msra.mxu0 0.0
  %1783 = vmatprep.subr.mxu0 0.0
  %1784 = vmatpush2.msra.mxu0 0.0
  %1785 = vmatprep.subr.mxu0 0.0
  %1786 = vmatpush2.msra.mxu0 0.0
  %1787 = vmatprep.subr.mxu0 0.0
  %1788 = vmatpush2.msra.mxu0 0.0
  %1789 = vmatprep.subr.mxu0 0.0
  %1790 = vmatpush2.msra.mxu0 0.0
  %1791 = vmatprep.subr.mxu0 0.0
  %1792 = vmatpush2.msra.mxu0 0.0
  %1793 = vmatprep.subr.mxu0 0.0
  %1794 = vmatpush2.msra.mxu0 0.0
  %1795 = vmatprep.subr.mxu0 0.0
  %1796 = vmatpush2.msra.mxu0 0.0
  %1797 = vmatprep.subr.mxu0 0.0
  %1798 = vmatpush2.msra.mxu0 0.0
  %1799 = vmatprep.subr.mxu0 0.0
  %1800 = vmatpush2.msra.mxu0 0.0
  %1801 = vmatprep.mubr.f32.mxu0 0.0
  %1802 = vmatmul.mubr.f32.gmra.mxu0 %v1732
  %v1803 = vpop.f32.mrf.mxu0
  %v1804 = vadd.f32 0.0, %v1803
  %v1805 = vpop.f32.mrf.mxu0
  %1806 = vmatprep.mubr.f32.mxu0 0.0
  %1807 = vmatmul.mubr.f32.gmra.mxu0 %v1735
  %v1808 = vpop.f32.mrf.mxu0
  %v1809 = vadd.f32 0.0, %v1808
  %v1810 = vpop.f32.mrf.mxu0
  %1811 = vdwg.mxu0
  %v1812 = vadd.f32 %v1608, %v1804
  %v1813 = vadd.f32 %v1609, %v1809
  %1814 = vst.msk [vmem:[%s10] sm:$0xff] %vm47, %v1812
  %1815 = vst.msk [vmem:[%s10 + $0x8] sm:$0xff] %vm47, %v1813
  // Predicated region
  $region42: #{_lambda_.5} parent=0 // pred_check
    _
  $region43: #{_lambda_.5} parent=0 // pred_check_branch
    %1817 = sbr.rel (0) target = $region45
  $region44: #{_lambda_.5} parent=0 // pred_region
    _
  $region45: #{_lambda_.5} parent=0 // pred_fallthru
    _
  // Predicated region
  $region46: #{_lambda_.5} parent=0 // pred_check
    _
  $region47: #{_lambda_.5} parent=0 // pred_check_branch
    %1819 = sbr.rel (0) target = $region49
  $region48: #{_lambda_.5} parent=0 // pred_region
    _
  $region49: #{_lambda_.5} parent=0 // pred_fallthru
    _

// kernel: squeeze.3
$region0: #{squeeze.3}
  %s0 = inlined_call_operand.vmem [shape: s32[16], index: 0, kind: input, shape index: {}]
  %s1 = inlined_call_operand.hbm [shape: s32[2,8], index: 1, kind: output, shape index: {}]
  $region1: #{squeeze.3} parent=0
    #allocation0 [shape = 'u8[1024]{0}', space=vmem, size = 0x400, scoped, tag = 'operand span for operand 1']
    #allocation1 [shape = 's32[1]{0}', space=sflag, size = 0x4, scoped, tag = 'scoped memory for squeeze.3']
    #allocation2 [shape = 'u8[4096]{0}', space=vmem, size = 0x1000, scoped, tag = 'scoped mem for output reshape']
    #allocation3 [shape = 'u8[4096]{0}', space=vmem, size = 0x1000, scoped, tag = 'scoped mem for input reshape']
    %2 = vsyncpa [#allocation1], 0
    %s4 = sshll.u32 1, 1
    %s5 = ssub.s32 %s4, 1
    %v6 = vld [vmem:[%s0] sm:%s5]
    %7 = vst [vmem:[#allocation3] sm:%s5] %v6
    %v8 = vld [vmem:[#allocation3] sm:$0x1]
    %vm9 = vcmask 64512
    %10 = vst.msk [vmem:[#allocation2] sm:$0x1] %vm9, %v8
    %v11 = vld [vmem:[#allocation3] sm:$0x1]
    %12 = vrot.lane.b32.xlu0 %v11, 120
    %v13 = vpop.permute.xlu0 %12
    %vm14 = vcmask 64512
    %s15 = scalar_lea.vmem [#allocation2], 1
    %16 = vst.msk [vmem:[%s15] sm:$0x1] %vm14, %v13
    %s18 = sshll.u32 1, 2
    %s19 = ssub.s32 %s18, 1
    %v21 = vld [vmem:[#allocation2] sm:%s19]
    %s22 = sshll.u32 1, 2
    %s23 = ssub.s32 %s22, 1
    %24 = vst [vmem:[#allocation0] sm:%s23] %v21
    %s26 = ssub.s32 32, 32
    %27 = vsyncadd [#allocation1], %s26
    %s29 = sshll.u32 [#allocation0], 4
    %s30 = int_to_ptr.vmem [resolvable:$true] %s29
    %32 = dma.vmem_to_hbm [thread:$0]  %s30, 32, %s1, [#allocation1]
    %33 = dma.done [#allocation1], 32
    %34 = vsyncpa [#allocation1], 1

// kernel: _lambda_.6
$region0: #{_lambda_.6}
  #allocation0 [shape = 'u32[]', space=smem, size = 0x4, offset = 0x4, fixed_abs, tag = 'smem constant byte address 0x4 - core index']
  #allocation1 [shape = 'u32[144,128]{1,0:T(1,128)}', space=vmem, size = 0x12000, scoped, tag = 'internal scratch']
  %s0 = inlined_call_operand.vmem [shape: f32[16,32], index: 0, kind: input, shape index: {}]
  %s1 = inlined_call_operand.vmem [shape: f32[2,8], index: 1, kind: input, shape index: {}]
  %s2 = inlined_call_operand.vmem [shape: f32[4,8,8], index: 2, kind: input, shape index: {}]
  %s3 = inlined_call_operand.vmem [shape: f32[1,32], index: 3, kind: input, shape index: {}, may-alias: {3,6,9}]
  %s4 = inlined_call_operand.vmem [shape: f32[32,96], index: 4, kind: input, shape index: {}]
  %s5 = inlined_call_operand.vmem [shape: f32[32,32], index: 5, kind: input, shape index: {}]
  %s6 = inlined_call_operand.vmem [shape: f32[1,32], index: 6, kind: input, shape index: {}, may-alias: {3,6,9}]
  %s7 = inlined_call_operand.vmem [shape: f32[32,64], index: 7, kind: input, shape index: {}]
  %s8 = inlined_call_operand.vmem [shape: f32[64,32], index: 8, kind: input, shape index: {}]
  %s9 = inlined_call_operand.vmem [shape: f32[1,32], index: 9, kind: input, shape index: {}, may-alias: {3,6,9}]
  %s10 = inlined_call_operand.vmem [shape: f32[16,32], index: 10, kind: output, shape index: {}]
  %s11 = sld [smem:[#allocation0]]
  $region50: #{_lambda_.6} parent=0
    _
  %s13 = ssub.s32 1, %s11
  %s14 = scalar_select 0, %s13, %s11
  // Predicated region
  $region2: #{_lambda_.6} parent=0 // pred_check
    _
  $region3: #{_lambda_.6} parent=0 // pred_check_branch
    %16 = sbr.rel (0) target = $region5
  $region4: #{_lambda_.6} parent=0 // pred_region
    _
  $region5: #{_lambda_.6} parent=0 // pred_fallthru
    _
  // Predicated region
  $region6: #{_lambda_.6} parent=0 // pred_check
    _
  $region7: #{_lambda_.6} parent=0 // pred_check_branch
    %18 = sbr.rel (0) target = $region9
  $region8: #{_lambda_.6} parent=0 // pred_region
    _
  $region9: #{_lambda_.6} parent=0 // pred_fallthru
    _
  // Predicated region
  $region10: #{_lambda_.6} parent=0 // pred_check
    _
  $region11: #{_lambda_.6} parent=0 // pred_check_branch
    %20 = sbr.rel (0) target = $region13
  $region12: #{_lambda_.6} parent=0 // pred_region
    _
  $region13: #{_lambda_.6} parent=0 // pred_fallthru
    _
  // Predicated region
  $region14: #{_lambda_.6} parent=0 // pred_check
    _
  $region15: #{_lambda_.6} parent=0 // pred_check_branch
    %22 = sbr.rel (0) target = $region17
  $region16: #{_lambda_.6} parent=0 // pred_region
    _
  $region17: #{_lambda_.6} parent=0 // pred_fallthru
    _
  // Predicated region
  $region18: #{_lambda_.6} parent=0 // pred_check
    _
  $region19: #{_lambda_.6} parent=0 // pred_check_branch
    %24 = sbr.rel (0) target = $region21
  $region20: #{_lambda_.6} parent=0 // pred_region
    _
  $region21: #{_lambda_.6} parent=0 // pred_fallthru
    _
  // Predicated region
  $region22: #{_lambda_.6} parent=0 // pred_check
    _
  $region23: #{_lambda_.6} parent=0 // pred_check_branch
    %26 = sbr.rel (0) target = $region25
  $region24: #{_lambda_.6} parent=0 // pred_region
    _
  $region25: #{_lambda_.6} parent=0 // pred_fallthru
    _
  // Predicated region
  $region26: #{_lambda_.6} parent=0 // pred_check
    _
  $region27: #{_lambda_.6} parent=0 // pred_check_branch
    %28 = sbr.rel (0) target = $region29
  $region28: #{_lambda_.6} parent=0 // pred_region
    _
  $region29: #{_lambda_.6} parent=0 // pred_fallthru
    _
  // Predicated region
  $region30: #{_lambda_.6} parent=0 // pred_check
    _
  $region31: #{_lambda_.6} parent=0 // pred_check_branch
    %30 = sbr.rel (0) target = $region33
  $region32: #{_lambda_.6} parent=0 // pred_region
    _
  $region33: #{_lambda_.6} parent=0 // pred_fallthru
    _
  // Predicated region
  $region34: #{_lambda_.6} parent=0 // pred_check
    _
  $region35: #{_lambda_.6} parent=0 // pred_check_branch
    %32 = sbr.rel (0) target = $region37
  $region36: #{_lambda_.6} parent=0 // pred_region
    _
  $region37: #{_lambda_.6} parent=0 // pred_fallthru
    _
  // Predicated region
  $region38: #{_lambda_.6} parent=0 // pred_check
    _
  $region39: #{_lambda_.6} parent=0 // pred_check_branch
    %34 = sbr.rel (0) target = $region41
  $region40: #{_lambda_.6} parent=0 // pred_region
    _
  $region41: #{_lambda_.6} parent=0 // pred_fallthru
    _
  %v35 = vld [vmem:[%s0] sm:$0xff]
  %v36 = vld [vmem:[%s0 + $0x8] sm:$0xff]
  %v37 = vld [vmem:[%s2] sm:$0xff]
  %v38 = vld [vmem:[%s2 + $0x8] sm:$0xff]
  %v39 = vld [vmem:[%s2 + $0x10] sm:$0xff]
  %v40 = vld [vmem:[%s2 + $0x18] sm:$0xff]
  %v41 = vld [vmem:[%s1] sm:$0x3]
  %v42 = vsub.f32 1.0, %v41
  %v43 = vmul.f32 %v42, -1e+09
  %v44 = vld [vmem:[%s3] sm:$0x1]
  %v45 = vmul.f32 %v35, %v35
  %v46 = vmul.f32 %v36, %v36
  %vm47 = vcmask 261120
  %v48 = vsel %vm47, %v45, 0.0
  %49 = vadd.xlane.f32.xlu0 %v48
  %v50 = vpop.xlane.xlu0 %49
  %v51 = vsel %vm47, %v46, 0.0
  %52 = vadd.xlane.f32.xlu0 %v51
  %v53 = vpop.xlane.xlu0 %52
  %v54 = vrcp.pop 32.0
  %v55 = vmul.f32 %v50, %v54
  %v56 = vmul.f32 %v53, %v54
  %v57 = vadd.f32 %v55, 1e-06
  %v58 = vadd.f32 %v56, 1e-06
  %v59 = vrsqrt.pop %v57
  %v60 = vrsqrt.pop %v58
  %v61 = vmul.f32 %v35, %v59
  %v62 = vmul.f32 %v36, %v60
  %v64 = vlaneseq
  %v65 = vshrl.u32 %v64, 7
  %v66 = vsub.s32 0, %v65
  %v67 = vrot.slane %v44, %v66
  %v69 = vmul.f32 %v61, %v67
  %v70 = vmul.f32 %v62, %v67
  %v71 = vld [vmem:[%s4] sm:$0xff]
  %v72 = vld [vmem:[%s4 + $0x8] sm:$0xff]
  %v73 = vld [vmem:[%s4 + $0x10] sm:$0xff]
  %v74 = vld [vmem:[%s4 + $0x18] sm:$0xff]
  %v76 = vsel %vm47, %v69, 0
  %v79 = vsel %vm47, %v70, 0
  %81 = vmatprep.subr.mxu0 0.0
  %82 = vmatpush1.msra.mxu0 0.0
  %83 = vmatprep.subr.mxu0 0.0
  %84 = vmatpush1.msra.mxu0 0.0
  %85 = vmatprep.subr.mxu0 0.0
  %86 = vmatpush1.msra.mxu0 0.0
  %87 = vmatprep.subr.mxu0 0.0
  %88 = vmatpush1.msra.mxu0 0.0
  %89 = vmatprep.subr.mxu0 0.0
  %90 = vmatpush1.msra.mxu0 0.0
  %91 = vmatprep.subr.mxu0 0.0
  %92 = vmatpush1.msra.mxu0 0.0
  %93 = vmatprep.subr.mxu0 0.0
  %94 = vmatpush1.msra.mxu0 0.0
  %95 = vmatprep.subr.mxu0 0.0
  %96 = vmatpush1.msra.mxu0 0.0
  %97 = vmatprep.subr.mxu0 0.0
  %98 = vmatpush1.msra.mxu0 0.0
  %99 = vmatprep.subr.mxu0 0.0
  %100 = vmatpush1.msra.mxu0 0.0
  %101 = vmatprep.subr.mxu0 0.0
  %102 = vmatpush1.msra.mxu0 0.0
  %103 = vmatprep.subr.mxu0 0.0
  %104 = vmatpush1.msra.mxu0 0.0
  %105 = vmatprep.subr.mxu0 0.0
  %106 = vmatpush1.msra.mxu0 %v74
  %107 = vmatprep.subr.mxu0 0.0
  %108 = vmatpush1.msra.mxu0 %v73
  %109 = vmatprep.subr.mxu0 0.0
  %110 = vmatpush1.msra.mxu0 %v72
  %111 = vmatprep.subr.mxu0 0.0
  %112 = vmatpush1.msra.mxu0 %v71
  %113 = vmatprep.subr.mxu0 0.0
  %114 = vmatpush2.msra.mxu0 0.0
  %115 = vmatprep.subr.mxu0 0.0
  %116 = vmatpush2.msra.mxu0 0.0
  %117 = vmatprep.subr.mxu0 0.0
  %118 = vmatpush2.msra.mxu0 0.0
  %119 = vmatprep.subr.mxu0 0.0
  %120 = vmatpush2.msra.mxu0 0.0
  %121 = vmatprep.subr.mxu0 0.0
  %122 = vmatpush2.msra.mxu0 0.0
  %123 = vmatprep.subr.mxu0 0.0
  %124 = vmatpush2.msra.mxu0 0.0
  %125 = vmatprep.subr.mxu0 0.0
  %126 = vmatpush2.msra.mxu0 0.0
  %127 = vmatprep.subr.mxu0 0.0
  %128 = vmatpush2.msra.mxu0 0.0
  %129 = vmatprep.subr.mxu0 0.0
  %130 = vmatpush2.msra.mxu0 0.0
  %131 = vmatprep.subr.mxu0 0.0
  %132 = vmatpush2.msra.mxu0 0.0
  %133 = vmatprep.subr.mxu0 0.0
  %134 = vmatpush2.msra.mxu0 0.0
  %135 = vmatprep.subr.mxu0 0.0
  %136 = vmatpush2.msra.mxu0 0.0
  %137 = vmatprep.subr.mxu0 0.0
  %138 = vmatpush2.msra.mxu0 0.0
  %139 = vmatprep.subr.mxu0 0.0
  %140 = vmatpush2.msra.mxu0 0.0
  %141 = vmatprep.subr.mxu0 0.0
  %142 = vmatpush2.msra.mxu0 0.0
  %143 = vmatprep.subr.mxu0 0.0
  %144 = vmatpush2.msra.mxu0 0.0
  %145 = vmatprep.mubr.f32.mxu0 0.0
  %146 = vmatmul.mubr.f32.gmra.mxu0 %v76
  %v147 = vpop.f32.mrf.mxu0
  %v148 = vadd.f32 0.0, %v147
  %v149 = vpop.f32.mrf.mxu0
  %150 = vmatprep.mubr.f32.mxu0 0.0
  %151 = vmatmul.mubr.f32.gmra.mxu0 %v79
  %v152 = vpop.f32.mrf.mxu0
  %v153 = vadd.f32 0.0, %v152
  %v154 = vpop.f32.mrf.mxu0
  %155 = vdwg.mxu0
  %157 = vrot.lane.b32.xlu0 %v148, 96
  %v158 = vpop.permute.xlu0 %157
  %vm159 = vcmask 64512
  %v160 = vsel %vm159, %v148, 0
  %v162 = vsel %vm159, %v158, 0
  %164 = vmatprep.subr.mxu0 0.0
  %165 = vmatpush1.xpose.msra.mxu0 0.0
  %166 = vmatprep.subr.mxu0 0.0
  %167 = vmatpush1.xpose.msra.mxu0 0.0
  %168 = vmatprep.subr.mxu0 0.0
  %169 = vmatpush1.xpose.msra.mxu0 0.0
  %170 = vmatprep.subr.mxu0 0.0
  %171 = vmatpush1.xpose.msra.mxu0 0.0
  %172 = vmatprep.subr.mxu0 0.0
  %173 = vmatpush1.xpose.msra.mxu0 0.0
  %174 = vmatprep.subr.mxu0 0.0
  %175 = vmatpush1.xpose.msra.mxu0 0.0
  %176 = vmatprep.subr.mxu0 0.0
  %177 = vmatpush1.xpose.msra.mxu0 0.0
  %178 = vmatprep.subr.mxu0 0.0
  %179 = vmatpush1.xpose.msra.mxu0 0.0
  %180 = vmatprep.subr.mxu0 0.0
  %181 = vmatpush1.xpose.msra.mxu0 0.0
  %182 = vmatprep.subr.mxu0 0.0
  %183 = vmatpush1.xpose.msra.mxu0 0.0
  %184 = vmatprep.subr.mxu0 0.0
  %185 = vmatpush1.xpose.msra.mxu0 0.0
  %186 = vmatprep.subr.mxu0 0.0
  %187 = vmatpush1.xpose.msra.mxu0 0.0
  %188 = vmatprep.subr.mxu0 0.0
  %189 = vmatpush1.xpose.msra.mxu0 0.0
  %190 = vmatprep.subr.mxu0 0.0
  %191 = vmatpush1.xpose.msra.mxu0 0.0
  %192 = vmatprep.subr.mxu0 0.0
  %193 = vmatpush1.xpose.msra.mxu0 0.0
  %194 = vmatprep.subr.mxu0 0.0
  %195 = vmatpush1.xpose.msra.mxu0 %v162
  %196 = vmatprep.subr.mxu0 0.0
  %197 = vmatpush2.xpose.msra.mxu0 0.0
  %198 = vmatprep.subr.mxu0 0.0
  %199 = vmatpush2.xpose.msra.mxu0 0.0
  %200 = vmatprep.subr.mxu0 0.0
  %201 = vmatpush2.xpose.msra.mxu0 0.0
  %202 = vmatprep.subr.mxu0 0.0
  %203 = vmatpush2.xpose.msra.mxu0 0.0
  %204 = vmatprep.subr.mxu0 0.0
  %205 = vmatpush2.xpose.msra.mxu0 0.0
  %206 = vmatprep.subr.mxu0 0.0
  %207 = vmatpush2.xpose.msra.mxu0 0.0
  %208 = vmatprep.subr.mxu0 0.0
  %209 = vmatpush2.xpose.msra.mxu0 0.0
  %210 = vmatprep.subr.mxu0 0.0
  %211 = vmatpush2.xpose.msra.mxu0 0.0
  %212 = vmatprep.subr.mxu0 0.0
  %213 = vmatpush2.xpose.msra.mxu0 0.0
  %214 = vmatprep.subr.mxu0 0.0
  %215 = vmatpush2.xpose.msra.mxu0 0.0
  %216 = vmatprep.subr.mxu0 0.0
  %217 = vmatpush2.xpose.msra.mxu0 0.0
  %218 = vmatprep.subr.mxu0 0.0
  %219 = vmatpush2.xpose.msra.mxu0 0.0
  %220 = vmatprep.subr.mxu0 0.0
  %221 = vmatpush2.xpose.msra.mxu0 0.0
  %222 = vmatprep.subr.mxu0 0.0
  %223 = vmatpush2.xpose.msra.mxu0 0.0
  %224 = vmatprep.subr.mxu0 0.0
  %225 = vmatpush2.xpose.msra.mxu0 0.0
  %226 = vmatprep.subr.mxu0 0.0
  %227 = vmatpush2.xpose.msra.mxu0 0.0
  %228 = vmatprep.mubr.f32.mxu0 0.0
  %229 = vmatmul.mubr.f32.gmra.mxu0 %v160
  %v230 = vpop.f32.mrf.mxu0
  %v231 = vadd.f32 %v37, %v230
  %v232 = vpop.f32.mrf.mxu0
  %233 = vdwg.mxu0
  %v234 = vlaneseq
  %v235 = vshrl.u32 %v234, 7
  %v236 = vsub.s32 0, %v235
  %v237 = vrot.slane %v43, %v236
  %v238 = vadd.f32 %v231, %v237
  %v239 = vsel %vm159, %v238, -inf
  %240 = vmax.xlane.f32.xlu0 %v239
  %v241 = vpop.xlane.xlu0 %240
  %v242 = vsub.f32 %v238, %v241
  %v243 = vmul.f32 %v242, 1.442695
  %v244 = vpow.pop %v243
  %v245 = vsel %vm159, %v244, 0.0
  %246 = vadd.xlane.f32.xlu0 %v245
  %v247 = vpop.xlane.xlu0 %246
  %v248 = vrcp.pop %v247
  %v249 = vmul.f32 %v244, %v248
  %250 = vrot.lane.b32.xlu0 %v148, 64
  %v251 = vpop.permute.xlu0 %250
  %v254 = vsel %vm159, %v249, 0
  %256 = vmatprep.subr.mxu0 0.0
  %257 = vmatpush1.msra.mxu0 0.0
  %258 = vmatprep.subr.mxu0 0.0
  %259 = vmatpush1.msra.mxu0 0.0
  %260 = vmatprep.subr.mxu0 0.0
  %261 = vmatpush1.msra.mxu0 0.0
  %262 = vmatprep.subr.mxu0 0.0
  %263 = vmatpush1.msra.mxu0 0.0
  %264 = vmatprep.subr.mxu0 0.0
  %265 = vmatpush1.msra.mxu0 0.0
  %266 = vmatprep.subr.mxu0 0.0
  %267 = vmatpush1.msra.mxu0 0.0
  %268 = vmatprep.subr.mxu0 0.0
  %269 = vmatpush1.msra.mxu0 0.0
  %270 = vmatprep.subr.mxu0 0.0
  %271 = vmatpush1.msra.mxu0 0.0
  %272 = vmatprep.subr.mxu0 0.0
  %273 = vmatpush1.msra.mxu0 0.0
  %274 = vmatprep.subr.mxu0 0.0
  %275 = vmatpush1.msra.mxu0 0.0
  %276 = vmatprep.subr.mxu0 0.0
  %277 = vmatpush1.msra.mxu0 0.0
  %278 = vmatprep.subr.mxu0 0.0
  %279 = vmatpush1.msra.mxu0 0.0
  %280 = vmatprep.subr.mxu0 0.0
  %281 = vmatpush1.msra.mxu0 0.0
  %282 = vmatprep.subr.mxu0 0.0
  %283 = vmatpush1.msra.mxu0 0.0
  %284 = vmatprep.subr.mxu0 0.0
  %285 = vmatpush1.msra.mxu0 0.0
  %286 = vmatprep.subr.mxu0 0.0
  %287 = vmatpush1.msra.mxu0 %v251
  %288 = vmatprep.subr.mxu0 0.0
  %289 = vmatpush2.msra.mxu0 0.0
  %290 = vmatprep.subr.mxu0 0.0
  %291 = vmatpush2.msra.mxu0 0.0
  %292 = vmatprep.subr.mxu0 0.0
  %293 = vmatpush2.msra.mxu0 0.0
  %294 = vmatprep.subr.mxu0 0.0
  %295 = vmatpush2.msra.mxu0 0.0
  %296 = vmatprep.subr.mxu0 0.0
  %297 = vmatpush2.msra.mxu0 0.0
  %298 = vmatprep.subr.mxu0 0.0
  %299 = vmatpush2.msra.mxu0 0.0
  %300 = vmatprep.subr.mxu0 0.0
  %301 = vmatpush2.msra.mxu0 0.0
  %302 = vmatprep.subr.mxu0 0.0
  %303 = vmatpush2.msra.mxu0 0.0
  %304 = vmatprep.subr.mxu0 0.0
  %305 = vmatpush2.msra.mxu0 0.0
  %306 = vmatprep.subr.mxu0 0.0
  %307 = vmatpush2.msra.mxu0 0.0
  %308 = vmatprep.subr.mxu0 0.0
  %309 = vmatpush2.msra.mxu0 0.0
  %310 = vmatprep.subr.mxu0 0.0
  %311 = vmatpush2.msra.mxu0 0.0
  %312 = vmatprep.subr.mxu0 0.0
  %313 = vmatpush2.msra.mxu0 0.0
  %314 = vmatprep.subr.mxu0 0.0
  %315 = vmatpush2.msra.mxu0 0.0
  %316 = vmatprep.subr.mxu0 0.0
  %317 = vmatpush2.msra.mxu0 0.0
  %318 = vmatprep.subr.mxu0 0.0
  %319 = vmatpush2.msra.mxu0 0.0
  %320 = vmatprep.mubr.f32.mxu0 0.0
  %321 = vmatmul.mubr.f32.gmra.mxu0 %v254
  %v322 = vpop.f32.mrf.mxu0
  %v323 = vadd.f32 0.0, %v322
  %v324 = vpop.f32.mrf.mxu0
  %325 = vdwg.mxu0
  %326 = vrot.lane.b32.xlu0 %v148, 120
  %v327 = vpop.permute.xlu0 %326
  %328 = vrot.lane.b32.xlu0 %v148, 88
  %v329 = vpop.permute.xlu0 %328
  %v330 = vsel %vm159, %v327, 0
  %v332 = vsel %vm159, %v329, 0
  %334 = vmatprep.subr.mxu0 0.0
  %335 = vmatpush1.xpose.msra.mxu0 0.0
  %336 = vmatprep.subr.mxu0 0.0
  %337 = vmatpush1.xpose.msra.mxu0 0.0
  %338 = vmatprep.subr.mxu0 0.0
  %339 = vmatpush1.xpose.msra.mxu0 0.0
  %340 = vmatprep.subr.mxu0 0.0
  %341 = vmatpush1.xpose.msra.mxu0 0.0
  %342 = vmatprep.subr.mxu0 0.0
  %343 = vmatpush1.xpose.msra.mxu0 0.0
  %344 = vmatprep.subr.mxu0 0.0
  %345 = vmatpush1.xpose.msra.mxu0 0.0
  %346 = vmatprep.subr.mxu0 0.0
  %347 = vmatpush1.xpose.msra.mxu0 0.0
  %348 = vmatprep.subr.mxu0 0.0
  %349 = vmatpush1.xpose.msra.mxu0 0.0
  %350 = vmatprep.subr.mxu0 0.0
  %351 = vmatpush1.xpose.msra.mxu0 0.0
  %352 = vmatprep.subr.mxu0 0.0
  %353 = vmatpush1.xpose.msra.mxu0 0.0
  %354 = vmatprep.subr.mxu0 0.0
  %355 = vmatpush1.xpose.msra.mxu0 0.0
  %356 = vmatprep.subr.mxu0 0.0
  %357 = vmatpush1.xpose.msra.mxu0 0.0
  %358 = vmatprep.subr.mxu0 0.0
  %359 = vmatpush1.xpose.msra.mxu0 0.0
  %360 = vmatprep.subr.mxu0 0.0
  %361 = vmatpush1.xpose.msra.mxu0 0.0
  %362 = vmatprep.subr.mxu0 0.0
  %363 = vmatpush1.xpose.msra.mxu0 0.0
  %364 = vmatprep.subr.mxu0 0.0
  %365 = vmatpush1.xpose.msra.mxu0 %v332
  %366 = vmatprep.subr.mxu0 0.0
  %367 = vmatpush2.xpose.msra.mxu0 0.0
  %368 = vmatprep.subr.mxu0 0.0
  %369 = vmatpush2.xpose.msra.mxu0 0.0
  %370 = vmatprep.subr.mxu0 0.0
  %371 = vmatpush2.xpose.msra.mxu0 0.0
  %372 = vmatprep.subr.mxu0 0.0
  %373 = vmatpush2.xpose.msra.mxu0 0.0
  %374 = vmatprep.subr.mxu0 0.0
  %375 = vmatpush2.xpose.msra.mxu0 0.0
  %376 = vmatprep.subr.mxu0 0.0
  %377 = vmatpush2.xpose.msra.mxu0 0.0
  %378 = vmatprep.subr.mxu0 0.0
  %379 = vmatpush2.xpose.msra.mxu0 0.0
  %380 = vmatprep.subr.mxu0 0.0
  %381 = vmatpush2.xpose.msra.mxu0 0.0
  %382 = vmatprep.subr.mxu0 0.0
  %383 = vmatpush2.xpose.msra.mxu0 0.0
  %384 = vmatprep.subr.mxu0 0.0
  %385 = vmatpush2.xpose.msra.mxu0 0.0
  %386 = vmatprep.subr.mxu0 0.0
  %387 = vmatpush2.xpose.msra.mxu0 0.0
  %388 = vmatprep.subr.mxu0 0.0
  %389 = vmatpush2.xpose.msra.mxu0 0.0
  %390 = vmatprep.subr.mxu0 0.0
  %391 = vmatpush2.xpose.msra.mxu0 0.0
  %392 = vmatprep.subr.mxu0 0.0
  %393 = vmatpush2.xpose.msra.mxu0 0.0
  %394 = vmatprep.subr.mxu0 0.0
  %395 = vmatpush2.xpose.msra.mxu0 0.0
  %396 = vmatprep.subr.mxu0 0.0
  %397 = vmatpush2.xpose.msra.mxu0 0.0
  %398 = vmatprep.mubr.f32.mxu0 0.0
  %399 = vmatmul.mubr.f32.gmra.mxu0 %v330
  %v400 = vpop.f32.mrf.mxu0
  %v401 = vadd.f32 %v38, %v400
  %v402 = vpop.f32.mrf.mxu0
  %403 = vdwg.mxu0
  %v404 = vadd.f32 %v401, %v237
  %v405 = vsel %vm159, %v404, -inf
  %406 = vmax.xlane.f32.xlu0 %v405
  %v407 = vpop.xlane.xlu0 %406
  %v408 = vsub.f32 %v404, %v407
  %v409 = vmul.f32 %v408, 1.442695
  %v410 = vpow.pop %v409
  %v411 = vsel %vm159, %v410, 0.0
  %412 = vadd.xlane.f32.xlu0 %v411
  %v413 = vpop.xlane.xlu0 %412
  %v414 = vrcp.pop %v413
  %v415 = vmul.f32 %v410, %v414
  %416 = vrot.lane.b32.xlu0 %v148, 56
  %v417 = vpop.permute.xlu0 %416
  %v420 = vsel %vm159, %v415, 0
  %422 = vmatprep.subr.mxu0 0.0
  %423 = vmatpush1.msra.mxu0 0.0
  %424 = vmatprep.subr.mxu0 0.0
  %425 = vmatpush1.msra.mxu0 0.0
  %426 = vmatprep.subr.mxu0 0.0
  %427 = vmatpush1.msra.mxu0 0.0
  %428 = vmatprep.subr.mxu0 0.0
  %429 = vmatpush1.msra.mxu0 0.0
  %430 = vmatprep.subr.mxu0 0.0
  %431 = vmatpush1.msra.mxu0 0.0
  %432 = vmatprep.subr.mxu0 0.0
  %433 = vmatpush1.msra.mxu0 0.0
  %434 = vmatprep.subr.mxu0 0.0
  %435 = vmatpush1.msra.mxu0 0.0
  %436 = vmatprep.subr.mxu0 0.0
  %437 = vmatpush1.msra.mxu0 0.0
  %438 = vmatprep.subr.mxu0 0.0
  %439 = vmatpush1.msra.mxu0 0.0
  %440 = vmatprep.subr.mxu0 0.0
  %441 = vmatpush1.msra.mxu0 0.0
  %442 = vmatprep.subr.mxu0 0.0
  %443 = vmatpush1.msra.mxu0 0.0
  %444 = vmatprep.subr.mxu0 0.0
  %445 = vmatpush1.msra.mxu0 0.0
  %446 = vmatprep.subr.mxu0 0.0
  %447 = vmatpush1.msra.mxu0 0.0
  %448 = vmatprep.subr.mxu0 0.0
  %449 = vmatpush1.msra.mxu0 0.0
  %450 = vmatprep.subr.mxu0 0.0
  %451 = vmatpush1.msra.mxu0 0.0
  %452 = vmatprep.subr.mxu0 0.0
  %453 = vmatpush1.msra.mxu0 %v417
  %454 = vmatprep.subr.mxu0 0.0
  %455 = vmatpush2.msra.mxu0 0.0
  %456 = vmatprep.subr.mxu0 0.0
  %457 = vmatpush2.msra.mxu0 0.0
  %458 = vmatprep.subr.mxu0 0.0
  %459 = vmatpush2.msra.mxu0 0.0
  %460 = vmatprep.subr.mxu0 0.0
  %461 = vmatpush2.msra.mxu0 0.0
  %462 = vmatprep.subr.mxu0 0.0
  %463 = vmatpush2.msra.mxu0 0.0
  %464 = vmatprep.subr.mxu0 0.0
  %465 = vmatpush2.msra.mxu0 0.0
  %466 = vmatprep.subr.mxu0 0.0
  %467 = vmatpush2.msra.mxu0 0.0
  %468 = vmatprep.subr.mxu0 0.0
  %469 = vmatpush2.msra.mxu0 0.0
  %470 = vmatprep.subr.mxu0 0.0
  %471 = vmatpush2.msra.mxu0 0.0
  %472 = vmatprep.subr.mxu0 0.0
  %473 = vmatpush2.msra.mxu0 0.0
  %474 = vmatprep.subr.mxu0 0.0
  %475 = vmatpush2.msra.mxu0 0.0
  %476 = vmatprep.subr.mxu0 0.0
  %477 = vmatpush2.msra.mxu0 0.0
  %478 = vmatprep.subr.mxu0 0.0
  %479 = vmatpush2.msra.mxu0 0.0
  %480 = vmatprep.subr.mxu0 0.0
  %481 = vmatpush2.msra.mxu0 0.0
  %482 = vmatprep.subr.mxu0 0.0
  %483 = vmatpush2.msra.mxu0 0.0
  %484 = vmatprep.subr.mxu0 0.0
  %485 = vmatpush2.msra.mxu0 0.0
  %486 = vmatprep.mubr.f32.mxu0 0.0
  %487 = vmatmul.mubr.f32.gmra.mxu0 %v420
  %v488 = vpop.f32.mrf.mxu0
  %v489 = vadd.f32 0.0, %v488
  %v490 = vpop.f32.mrf.mxu0
  %491 = vdwg.mxu0
  %492 = vrot.lane.b32.xlu0 %v148, 112
  %v493 = vpop.permute.xlu0 %492
  %494 = vrot.lane.b32.xlu0 %v148, 80
  %v495 = vpop.permute.xlu0 %494
  %v496 = vsel %vm159, %v493, 0
  %v498 = vsel %vm159, %v495, 0
  %500 = vmatprep.subr.mxu0 0.0
  %501 = vmatpush1.xpose.msra.mxu0 0.0
  %502 = vmatprep.subr.mxu0 0.0
  %503 = vmatpush1.xpose.msra.mxu0 0.0
  %504 = vmatprep.subr.mxu0 0.0
  %505 = vmatpush1.xpose.msra.mxu0 0.0
  %506 = vmatprep.subr.mxu0 0.0
  %507 = vmatpush1.xpose.msra.mxu0 0.0
  %508 = vmatprep.subr.mxu0 0.0
  %509 = vmatpush1.xpose.msra.mxu0 0.0
  %510 = vmatprep.subr.mxu0 0.0
  %511 = vmatpush1.xpose.msra.mxu0 0.0
  %512 = vmatprep.subr.mxu0 0.0
  %513 = vmatpush1.xpose.msra.mxu0 0.0
  %514 = vmatprep.subr.mxu0 0.0
  %515 = vmatpush1.xpose.msra.mxu0 0.0
  %516 = vmatprep.subr.mxu0 0.0
  %517 = vmatpush1.xpose.msra.mxu0 0.0
  %518 = vmatprep.subr.mxu0 0.0
  %519 = vmatpush1.xpose.msra.mxu0 0.0
  %520 = vmatprep.subr.mxu0 0.0
  %521 = vmatpush1.xpose.msra.mxu0 0.0
  %522 = vmatprep.subr.mxu0 0.0
  %523 = vmatpush1.xpose.msra.mxu0 0.0
  %524 = vmatprep.subr.mxu0 0.0
  %525 = vmatpush1.xpose.msra.mxu0 0.0
  %526 = vmatprep.subr.mxu0 0.0
  %527 = vmatpush1.xpose.msra.mxu0 0.0
  %528 = vmatprep.subr.mxu0 0.0
  %529 = vmatpush1.xpose.msra.mxu0 0.0
  %530 = vmatprep.subr.mxu0 0.0
  %531 = vmatpush1.xpose.msra.mxu0 %v498
  %532 = vmatprep.subr.mxu0 0.0
  %533 = vmatpush2.xpose.msra.mxu0 0.0
  %534 = vmatprep.subr.mxu0 0.0
  %535 = vmatpush2.xpose.msra.mxu0 0.0
  %536 = vmatprep.subr.mxu0 0.0
  %537 = vmatpush2.xpose.msra.mxu0 0.0
  %538 = vmatprep.subr.mxu0 0.0
  %539 = vmatpush2.xpose.msra.mxu0 0.0
  %540 = vmatprep.subr.mxu0 0.0
  %541 = vmatpush2.xpose.msra.mxu0 0.0
  %542 = vmatprep.subr.mxu0 0.0
  %543 = vmatpush2.xpose.msra.mxu0 0.0
  %544 = vmatprep.subr.mxu0 0.0
  %545 = vmatpush2.xpose.msra.mxu0 0.0
  %546 = vmatprep.subr.mxu0 0.0
  %547 = vmatpush2.xpose.msra.mxu0 0.0
  %548 = vmatprep.subr.mxu0 0.0
  %549 = vmatpush2.xpose.msra.mxu0 0.0
  %550 = vmatprep.subr.mxu0 0.0
  %551 = vmatpush2.xpose.msra.mxu0 0.0
  %552 = vmatprep.subr.mxu0 0.0
  %553 = vmatpush2.xpose.msra.mxu0 0.0
  %554 = vmatprep.subr.mxu0 0.0
  %555 = vmatpush2.xpose.msra.mxu0 0.0
  %556 = vmatprep.subr.mxu0 0.0
  %557 = vmatpush2.xpose.msra.mxu0 0.0
  %558 = vmatprep.subr.mxu0 0.0
  %559 = vmatpush2.xpose.msra.mxu0 0.0
  %560 = vmatprep.subr.mxu0 0.0
  %561 = vmatpush2.xpose.msra.mxu0 0.0
  %562 = vmatprep.subr.mxu0 0.0
  %563 = vmatpush2.xpose.msra.mxu0 0.0
  %564 = vmatprep.mubr.f32.mxu0 0.0
  %565 = vmatmul.mubr.f32.gmra.mxu0 %v496
  %v566 = vpop.f32.mrf.mxu0
  %v567 = vadd.f32 %v39, %v566
  %v568 = vpop.f32.mrf.mxu0
  %569 = vdwg.mxu0
  %v570 = vadd.f32 %v567, %v237
  %v571 = vsel %vm159, %v570, -inf
  %572 = vmax.xlane.f32.xlu0 %v571
  %v573 = vpop.xlane.xlu0 %572
  %v574 = vsub.f32 %v570, %v573
  %v575 = vmul.f32 %v574, 1.442695
  %v576 = vpow.pop %v575
  %v577 = vsel %vm159, %v576, 0.0
  %578 = vadd.xlane.f32.xlu0 %v577
  %v579 = vpop.xlane.xlu0 %578
  %v580 = vrcp.pop %v579
  %v581 = vmul.f32 %v576, %v580
  %582 = vrot.lane.b32.xlu0 %v148, 48
  %v583 = vpop.permute.xlu0 %582
  %v586 = vsel %vm159, %v581, 0
  %588 = vmatprep.subr.mxu0 0.0
  %589 = vmatpush1.msra.mxu0 0.0
  %590 = vmatprep.subr.mxu0 0.0
  %591 = vmatpush1.msra.mxu0 0.0
  %592 = vmatprep.subr.mxu0 0.0
  %593 = vmatpush1.msra.mxu0 0.0
  %594 = vmatprep.subr.mxu0 0.0
  %595 = vmatpush1.msra.mxu0 0.0
  %596 = vmatprep.subr.mxu0 0.0
  %597 = vmatpush1.msra.mxu0 0.0
  %598 = vmatprep.subr.mxu0 0.0
  %599 = vmatpush1.msra.mxu0 0.0
  %600 = vmatprep.subr.mxu0 0.0
  %601 = vmatpush1.msra.mxu0 0.0
  %602 = vmatprep.subr.mxu0 0.0
  %603 = vmatpush1.msra.mxu0 0.0
  %604 = vmatprep.subr.mxu0 0.0
  %605 = vmatpush1.msra.mxu0 0.0
  %606 = vmatprep.subr.mxu0 0.0
  %607 = vmatpush1.msra.mxu0 0.0
  %608 = vmatprep.subr.mxu0 0.0
  %609 = vmatpush1.msra.mxu0 0.0
  %610 = vmatprep.subr.mxu0 0.0
  %611 = vmatpush1.msra.mxu0 0.0
  %612 = vmatprep.subr.mxu0 0.0
  %613 = vmatpush1.msra.mxu0 0.0
  %614 = vmatprep.subr.mxu0 0.0
  %615 = vmatpush1.msra.mxu0 0.0
  %616 = vmatprep.subr.mxu0 0.0
  %617 = vmatpush1.msra.mxu0 0.0
  %618 = vmatprep.subr.mxu0 0.0
  %619 = vmatpush1.msra.mxu0 %v583
  %620 = vmatprep.subr.mxu0 0.0
  %621 = vmatpush2.msra.mxu0 0.0
  %622 = vmatprep.subr.mxu0 0.0
  %623 = vmatpush2.msra.mxu0 0.0
  %624 = vmatprep.subr.mxu0 0.0
  %625 = vmatpush2.msra.mxu0 0.0
  %626 = vmatprep.subr.mxu0 0.0
  %627 = vmatpush2.msra.mxu0 0.0
  %628 = vmatprep.subr.mxu0 0.0
  %629 = vmatpush2.msra.mxu0 0.0
  %630 = vmatprep.subr.mxu0 0.0
  %631 = vmatpush2.msra.mxu0 0.0
  %632 = vmatprep.subr.mxu0 0.0
  %633 = vmatpush2.msra.mxu0 0.0
  %634 = vmatprep.subr.mxu0 0.0
  %635 = vmatpush2.msra.mxu0 0.0
  %636 = vmatprep.subr.mxu0 0.0
  %637 = vmatpush2.msra.mxu0 0.0
  %638 = vmatprep.subr.mxu0 0.0
  %639 = vmatpush2.msra.mxu0 0.0
  %640 = vmatprep.subr.mxu0 0.0
  %641 = vmatpush2.msra.mxu0 0.0
  %642 = vmatprep.subr.mxu0 0.0
  %643 = vmatpush2.msra.mxu0 0.0
  %644 = vmatprep.subr.mxu0 0.0
  %645 = vmatpush2.msra.mxu0 0.0
  %646 = vmatprep.subr.mxu0 0.0
  %647 = vmatpush2.msra.mxu0 0.0
  %648 = vmatprep.subr.mxu0 0.0
  %649 = vmatpush2.msra.mxu0 0.0
  %650 = vmatprep.subr.mxu0 0.0
  %651 = vmatpush2.msra.mxu0 0.0
  %652 = vmatprep.mubr.f32.mxu0 0.0
  %653 = vmatmul.mubr.f32.gmra.mxu0 %v586
  %v654 = vpop.f32.mrf.mxu0
  %v655 = vadd.f32 0.0, %v654
  %v656 = vpop.f32.mrf.mxu0
  %657 = vdwg.mxu0
  %658 = vrot.lane.b32.xlu0 %v148, 104
  %v659 = vpop.permute.xlu0 %658
  %660 = vrot.lane.b32.xlu0 %v148, 72
  %v661 = vpop.permute.xlu0 %660
  %v662 = vsel %vm159, %v659, 0
  %v664 = vsel %vm159, %v661, 0
  %666 = vmatprep.subr.mxu0 0.0
  %667 = vmatpush1.xpose.msra.mxu0 0.0
  %668 = vmatprep.subr.mxu0 0.0
  %669 = vmatpush1.xpose.msra.mxu0 0.0
  %670 = vmatprep.subr.mxu0 0.0
  %671 = vmatpush1.xpose.msra.mxu0 0.0
  %672 = vmatprep.subr.mxu0 0.0
  %673 = vmatpush1.xpose.msra.mxu0 0.0
  %674 = vmatprep.subr.mxu0 0.0
  %675 = vmatpush1.xpose.msra.mxu0 0.0
  %676 = vmatprep.subr.mxu0 0.0
  %677 = vmatpush1.xpose.msra.mxu0 0.0
  %678 = vmatprep.subr.mxu0 0.0
  %679 = vmatpush1.xpose.msra.mxu0 0.0
  %680 = vmatprep.subr.mxu0 0.0
  %681 = vmatpush1.xpose.msra.mxu0 0.0
  %682 = vmatprep.subr.mxu0 0.0
  %683 = vmatpush1.xpose.msra.mxu0 0.0
  %684 = vmatprep.subr.mxu0 0.0
  %685 = vmatpush1.xpose.msra.mxu0 0.0
  %686 = vmatprep.subr.mxu0 0.0
  %687 = vmatpush1.xpose.msra.mxu0 0.0
  %688 = vmatprep.subr.mxu0 0.0
  %689 = vmatpush1.xpose.msra.mxu0 0.0
  %690 = vmatprep.subr.mxu0 0.0
  %691 = vmatpush1.xpose.msra.mxu0 0.0
  %692 = vmatprep.subr.mxu0 0.0
  %693 = vmatpush1.xpose.msra.mxu0 0.0
  %694 = vmatprep.subr.mxu0 0.0
  %695 = vmatpush1.xpose.msra.mxu0 0.0
  %696 = vmatprep.subr.mxu0 0.0
  %697 = vmatpush1.xpose.msra.mxu0 %v664
  %698 = vmatprep.subr.mxu0 0.0
  %699 = vmatpush2.xpose.msra.mxu0 0.0
  %700 = vmatprep.subr.mxu0 0.0
  %701 = vmatpush2.xpose.msra.mxu0 0.0
  %702 = vmatprep.subr.mxu0 0.0
  %703 = vmatpush2.xpose.msra.mxu0 0.0
  %704 = vmatprep.subr.mxu0 0.0
  %705 = vmatpush2.xpose.msra.mxu0 0.0
  %706 = vmatprep.subr.mxu0 0.0
  %707 = vmatpush2.xpose.msra.mxu0 0.0
  %708 = vmatprep.subr.mxu0 0.0
  %709 = vmatpush2.xpose.msra.mxu0 0.0
  %710 = vmatprep.subr.mxu0 0.0
  %711 = vmatpush2.xpose.msra.mxu0 0.0
  %712 = vmatprep.subr.mxu0 0.0
  %713 = vmatpush2.xpose.msra.mxu0 0.0
  %714 = vmatprep.subr.mxu0 0.0
  %715 = vmatpush2.xpose.msra.mxu0 0.0
  %716 = vmatprep.subr.mxu0 0.0
  %717 = vmatpush2.xpose.msra.mxu0 0.0
  %718 = vmatprep.subr.mxu0 0.0
  %719 = vmatpush2.xpose.msra.mxu0 0.0
  %720 = vmatprep.subr.mxu0 0.0
  %721 = vmatpush2.xpose.msra.mxu0 0.0
  %722 = vmatprep.subr.mxu0 0.0
  %723 = vmatpush2.xpose.msra.mxu0 0.0
  %724 = vmatprep.subr.mxu0 0.0
  %725 = vmatpush2.xpose.msra.mxu0 0.0
  %726 = vmatprep.subr.mxu0 0.0
  %727 = vmatpush2.xpose.msra.mxu0 0.0
  %728 = vmatprep.subr.mxu0 0.0
  %729 = vmatpush2.xpose.msra.mxu0 0.0
  %730 = vmatprep.mubr.f32.mxu0 0.0
  %731 = vmatmul.mubr.f32.gmra.mxu0 %v662
  %v732 = vpop.f32.mrf.mxu0
  %v733 = vadd.f32 %v40, %v732
  %v734 = vpop.f32.mrf.mxu0
  %735 = vdwg.mxu0
  %v736 = vadd.f32 %v733, %v237
  %v737 = vsel %vm159, %v736, -inf
  %738 = vmax.xlane.f32.xlu0 %v737
  %v739 = vpop.xlane.xlu0 %738
  %v740 = vsub.f32 %v736, %v739
  %v741 = vmul.f32 %v740, 1.442695
  %v742 = vpow.pop %v741
  %v743 = vsel %vm159, %v742, 0.0
  %744 = vadd.xlane.f32.xlu0 %v743
  %v745 = vpop.xlane.xlu0 %744
  %v746 = vrcp.pop %v745
  %v747 = vmul.f32 %v742, %v746
  %748 = vrot.lane.b32.xlu0 %v148, 40
  %v749 = vpop.permute.xlu0 %748
  %v752 = vsel %vm159, %v747, 0
  %754 = vmatprep.subr.mxu0 0.0
  %755 = vmatpush1.msra.mxu0 0.0
  %756 = vmatprep.subr.mxu0 0.0
  %757 = vmatpush1.msra.mxu0 0.0
  %758 = vmatprep.subr.mxu0 0.0
  %759 = vmatpush1.msra.mxu0 0.0
  %760 = vmatprep.subr.mxu0 0.0
  %761 = vmatpush1.msra.mxu0 0.0
  %762 = vmatprep.subr.mxu0 0.0
  %763 = vmatpush1.msra.mxu0 0.0
  %764 = vmatprep.subr.mxu0 0.0
  %765 = vmatpush1.msra.mxu0 0.0
  %766 = vmatprep.subr.mxu0 0.0
  %767 = vmatpush1.msra.mxu0 0.0
  %768 = vmatprep.subr.mxu0 0.0
  %769 = vmatpush1.msra.mxu0 0.0
  %770 = vmatprep.subr.mxu0 0.0
  %771 = vmatpush1.msra.mxu0 0.0
  %772 = vmatprep.subr.mxu0 0.0
  %773 = vmatpush1.msra.mxu0 0.0
  %774 = vmatprep.subr.mxu0 0.0
  %775 = vmatpush1.msra.mxu0 0.0
  %776 = vmatprep.subr.mxu0 0.0
  %777 = vmatpush1.msra.mxu0 0.0
  %778 = vmatprep.subr.mxu0 0.0
  %779 = vmatpush1.msra.mxu0 0.0
  %780 = vmatprep.subr.mxu0 0.0
  %781 = vmatpush1.msra.mxu0 0.0
  %782 = vmatprep.subr.mxu0 0.0
  %783 = vmatpush1.msra.mxu0 0.0
  %784 = vmatprep.subr.mxu0 0.0
  %785 = vmatpush1.msra.mxu0 %v749
  %786 = vmatprep.subr.mxu0 0.0
  %787 = vmatpush2.msra.mxu0 0.0
  %788 = vmatprep.subr.mxu0 0.0
  %789 = vmatpush2.msra.mxu0 0.0
  %790 = vmatprep.subr.mxu0 0.0
  %791 = vmatpush2.msra.mxu0 0.0
  %792 = vmatprep.subr.mxu0 0.0
  %793 = vmatpush2.msra.mxu0 0.0
  %794 = vmatprep.subr.mxu0 0.0
  %795 = vmatpush2.msra.mxu0 0.0
  %796 = vmatprep.subr.mxu0 0.0
  %797 = vmatpush2.msra.mxu0 0.0
  %798 = vmatprep.subr.mxu0 0.0
  %799 = vmatpush2.msra.mxu0 0.0
  %800 = vmatprep.subr.mxu0 0.0
  %801 = vmatpush2.msra.mxu0 0.0
  %802 = vmatprep.subr.mxu0 0.0
  %803 = vmatpush2.msra.mxu0 0.0
  %804 = vmatprep.subr.mxu0 0.0
  %805 = vmatpush2.msra.mxu0 0.0
  %806 = vmatprep.subr.mxu0 0.0
  %807 = vmatpush2.msra.mxu0 0.0
  %808 = vmatprep.subr.mxu0 0.0
  %809 = vmatpush2.msra.mxu0 0.0
  %810 = vmatprep.subr.mxu0 0.0
  %811 = vmatpush2.msra.mxu0 0.0
  %812 = vmatprep.subr.mxu0 0.0
  %813 = vmatpush2.msra.mxu0 0.0
  %814 = vmatprep.subr.mxu0 0.0
  %815 = vmatpush2.msra.mxu0 0.0
  %816 = vmatprep.subr.mxu0 0.0
  %817 = vmatpush2.msra.mxu0 0.0
  %818 = vmatprep.mubr.f32.mxu0 0.0
  %819 = vmatmul.mubr.f32.gmra.mxu0 %v752
  %v820 = vpop.f32.mrf.mxu0
  %v821 = vadd.f32 0.0, %v820
  %v822 = vpop.f32.mrf.mxu0
  %823 = vdwg.mxu0
  %825 = vrot.lane.b32.xlu0 %v489, 8
  %v826 = vpop.permute.xlu0 %825
  %829 = vrot.lane.b32.xlu0 %v655, 16
  %v830 = vpop.permute.xlu0 %829
  %833 = vrot.lane.b32.xlu0 %v821, 24
  %v834 = vpop.permute.xlu0 %833
  %v836 = vsel %vm159, %v323, %v826
  %vm837 = vcmask 130048
  %v838 = vsel %vm837, %v836, %v830
  %vm839 = vcmask 195584
  %v840 = vsel %vm839, %v838, %v834
  %842 = vrot.lane.b32.xlu0 %v153, 96
  %v843 = vpop.permute.xlu0 %842
  %v844 = vsel %vm159, %v153, 0
  %v846 = vsel %vm159, %v843, 0
  %848 = vmatprep.subr.mxu0 0.0
  %849 = vmatpush1.xpose.msra.mxu0 0.0
  %850 = vmatprep.subr.mxu0 0.0
  %851 = vmatpush1.xpose.msra.mxu0 0.0
  %852 = vmatprep.subr.mxu0 0.0
  %853 = vmatpush1.xpose.msra.mxu0 0.0
  %854 = vmatprep.subr.mxu0 0.0
  %855 = vmatpush1.xpose.msra.mxu0 0.0
  %856 = vmatprep.subr.mxu0 0.0
  %857 = vmatpush1.xpose.msra.mxu0 0.0
  %858 = vmatprep.subr.mxu0 0.0
  %859 = vmatpush1.xpose.msra.mxu0 0.0
  %860 = vmatprep.subr.mxu0 0.0
  %861 = vmatpush1.xpose.msra.mxu0 0.0
  %862 = vmatprep.subr.mxu0 0.0
  %863 = vmatpush1.xpose.msra.mxu0 0.0
  %864 = vmatprep.subr.mxu0 0.0
  %865 = vmatpush1.xpose.msra.mxu0 0.0
  %866 = vmatprep.subr.mxu0 0.0
  %867 = vmatpush1.xpose.msra.mxu0 0.0
  %868 = vmatprep.subr.mxu0 0.0
  %869 = vmatpush1.xpose.msra.mxu0 0.0
  %870 = vmatprep.subr.mxu0 0.0
  %871 = vmatpush1.xpose.msra.mxu0 0.0
  %872 = vmatprep.subr.mxu0 0.0
  %873 = vmatpush1.xpose.msra.mxu0 0.0
  %874 = vmatprep.subr.mxu0 0.0
  %875 = vmatpush1.xpose.msra.mxu0 0.0
  %876 = vmatprep.subr.mxu0 0.0
  %877 = vmatpush1.xpose.msra.mxu0 0.0
  %878 = vmatprep.subr.mxu0 0.0
  %879 = vmatpush1.xpose.msra.mxu0 %v846
  %880 = vmatprep.subr.mxu0 0.0
  %881 = vmatpush2.xpose.msra.mxu0 0.0
  %882 = vmatprep.subr.mxu0 0.0
  %883 = vmatpush2.xpose.msra.mxu0 0.0
  %884 = vmatprep.subr.mxu0 0.0
  %885 = vmatpush2.xpose.msra.mxu0 0.0
  %886 = vmatprep.subr.mxu0 0.0
  %887 = vmatpush2.xpose.msra.mxu0 0.0
  %888 = vmatprep.subr.mxu0 0.0
  %889 = vmatpush2.xpose.msra.mxu0 0.0
  %890 = vmatprep.subr.mxu0 0.0
  %891 = vmatpush2.xpose.msra.mxu0 0.0
  %892 = vmatprep.subr.mxu0 0.0
  %893 = vmatpush2.xpose.msra.mxu0 0.0
  %894 = vmatprep.subr.mxu0 0.0
  %895 = vmatpush2.xpose.msra.mxu0 0.0
  %896 = vmatprep.subr.mxu0 0.0
  %897 = vmatpush2.xpose.msra.mxu0 0.0
  %898 = vmatprep.subr.mxu0 0.0
  %899 = vmatpush2.xpose.msra.mxu0 0.0
  %900 = vmatprep.subr.mxu0 0.0
  %901 = vmatpush2.xpose.msra.mxu0 0.0
  %902 = vmatprep.subr.mxu0 0.0
  %903 = vmatpush2.xpose.msra.mxu0 0.0
  %904 = vmatprep.subr.mxu0 0.0
  %905 = vmatpush2.xpose.msra.mxu0 0.0
  %906 = vmatprep.subr.mxu0 0.0
  %907 = vmatpush2.xpose.msra.mxu0 0.0
  %908 = vmatprep.subr.mxu0 0.0
  %909 = vmatpush2.xpose.msra.mxu0 0.0
  %910 = vmatprep.subr.mxu0 0.0
  %911 = vmatpush2.xpose.msra.mxu0 0.0
  %912 = vmatprep.mubr.f32.mxu0 0.0
  %913 = vmatmul.mubr.f32.gmra.mxu0 %v844
  %v914 = vpop.f32.mrf.mxu0
  %v915 = vadd.f32 %v37, %v914
  %v916 = vpop.f32.mrf.mxu0
  %917 = vdwg.mxu0
  %v918 = vlaneseq
  %v919 = vshrl.u32 %v918, 7
  %v920 = vsub.s32 1, %v919
  %v921 = vrot.slane %v43, %v920
  %v922 = vadd.f32 %v915, %v921
  %v923 = vsel %vm159, %v922, -inf
  %924 = vmax.xlane.f32.xlu0 %v923
  %v925 = vpop.xlane.xlu0 %924
  %v926 = vsub.f32 %v922, %v925
  %v927 = vmul.f32 %v926, 1.442695
  %v928 = vpow.pop %v927
  %v929 = vsel %vm159, %v928, 0.0
  %930 = vadd.xlane.f32.xlu0 %v929
  %v931 = vpop.xlane.xlu0 %930
  %v932 = vrcp.pop %v931
  %v933 = vmul.f32 %v928, %v932
  %934 = vrot.lane.b32.xlu0 %v153, 64
  %v935 = vpop.permute.xlu0 %934
  %v938 = vsel %vm159, %v933, 0
  %940 = vmatprep.subr.mxu0 0.0
  %941 = vmatpush1.msra.mxu0 0.0
  %942 = vmatprep.subr.mxu0 0.0
  %943 = vmatpush1.msra.mxu0 0.0
  %944 = vmatprep.subr.mxu0 0.0
  %945 = vmatpush1.msra.mxu0 0.0
  %946 = vmatprep.subr.mxu0 0.0
  %947 = vmatpush1.msra.mxu0 0.0
  %948 = vmatprep.subr.mxu0 0.0
  %949 = vmatpush1.msra.mxu0 0.0
  %950 = vmatprep.subr.mxu0 0.0
  %951 = vmatpush1.msra.mxu0 0.0
  %952 = vmatprep.subr.mxu0 0.0
  %953 = vmatpush1.msra.mxu0 0.0
  %954 = vmatprep.subr.mxu0 0.0
  %955 = vmatpush1.msra.mxu0 0.0
  %956 = vmatprep.subr.mxu0 0.0
  %957 = vmatpush1.msra.mxu0 0.0
  %958 = vmatprep.subr.mxu0 0.0
  %959 = vmatpush1.msra.mxu0 0.0
  %960 = vmatprep.subr.mxu0 0.0
  %961 = vmatpush1.msra.mxu0 0.0
  %962 = vmatprep.subr.mxu0 0.0
  %963 = vmatpush1.msra.mxu0 0.0
  %964 = vmatprep.subr.mxu0 0.0
  %965 = vmatpush1.msra.mxu0 0.0
  %966 = vmatprep.subr.mxu0 0.0
  %967 = vmatpush1.msra.mxu0 0.0
  %968 = vmatprep.subr.mxu0 0.0
  %969 = vmatpush1.msra.mxu0 0.0
  %970 = vmatprep.subr.mxu0 0.0
  %971 = vmatpush1.msra.mxu0 %v935
  %972 = vmatprep.subr.mxu0 0.0
  %973 = vmatpush2.msra.mxu0 0.0
  %974 = vmatprep.subr.mxu0 0.0
  %975 = vmatpush2.msra.mxu0 0.0
  %976 = vmatprep.subr.mxu0 0.0
  %977 = vmatpush2.msra.mxu0 0.0
  %978 = vmatprep.subr.mxu0 0.0
  %979 = vmatpush2.msra.mxu0 0.0
  %980 = vmatprep.subr.mxu0 0.0
  %981 = vmatpush2.msra.mxu0 0.0
  %982 = vmatprep.subr.mxu0 0.0
  %983 = vmatpush2.msra.mxu0 0.0
  %984 = vmatprep.subr.mxu0 0.0
  %985 = vmatpush2.msra.mxu0 0.0
  %986 = vmatprep.subr.mxu0 0.0
  %987 = vmatpush2.msra.mxu0 0.0
  %988 = vmatprep.subr.mxu0 0.0
  %989 = vmatpush2.msra.mxu0 0.0
  %990 = vmatprep.subr.mxu0 0.0
  %991 = vmatpush2.msra.mxu0 0.0
  %992 = vmatprep.subr.mxu0 0.0
  %993 = vmatpush2.msra.mxu0 0.0
  %994 = vmatprep.subr.mxu0 0.0
  %995 = vmatpush2.msra.mxu0 0.0
  %996 = vmatprep.subr.mxu0 0.0
  %997 = vmatpush2.msra.mxu0 0.0
  %998 = vmatprep.subr.mxu0 0.0
  %999 = vmatpush2.msra.mxu0 0.0
  %1000 = vmatprep.subr.mxu0 0.0
  %1001 = vmatpush2.msra.mxu0 0.0
  %1002 = vmatprep.subr.mxu0 0.0
  %1003 = vmatpush2.msra.mxu0 0.0
  %1004 = vmatprep.mubr.f32.mxu0 0.0
  %1005 = vmatmul.mubr.f32.gmra.mxu0 %v938
  %v1006 = vpop.f32.mrf.mxu0
  %v1007 = vadd.f32 0.0, %v1006
  %v1008 = vpop.f32.mrf.mxu0
  %1009 = vdwg.mxu0
  %1010 = vrot.lane.b32.xlu0 %v153, 120
  %v1011 = vpop.permute.xlu0 %1010
  %1012 = vrot.lane.b32.xlu0 %v153, 88
  %v1013 = vpop.permute.xlu0 %1012
  %v1014 = vsel %vm159, %v1011, 0
  %v1016 = vsel %vm159, %v1013, 0
  %1018 = vmatprep.subr.mxu0 0.0
  %1019 = vmatpush1.xpose.msra.mxu0 0.0
  %1020 = vmatprep.subr.mxu0 0.0
  %1021 = vmatpush1.xpose.msra.mxu0 0.0
  %1022 = vmatprep.subr.mxu0 0.0
  %1023 = vmatpush1.xpose.msra.mxu0 0.0
  %1024 = vmatprep.subr.mxu0 0.0
  %1025 = vmatpush1.xpose.msra.mxu0 0.0
  %1026 = vmatprep.subr.mxu0 0.0
  %1027 = vmatpush1.xpose.msra.mxu0 0.0
  %1028 = vmatprep.subr.mxu0 0.0
  %1029 = vmatpush1.xpose.msra.mxu0 0.0
  %1030 = vmatprep.subr.mxu0 0.0
  %1031 = vmatpush1.xpose.msra.mxu0 0.0
  %1032 = vmatprep.subr.mxu0 0.0
  %1033 = vmatpush1.xpose.msra.mxu0 0.0
  %1034 = vmatprep.subr.mxu0 0.0
  %1035 = vmatpush1.xpose.msra.mxu0 0.0
  %1036 = vmatprep.subr.mxu0 0.0
  %1037 = vmatpush1.xpose.msra.mxu0 0.0
  %1038 = vmatprep.subr.mxu0 0.0
  %1039 = vmatpush1.xpose.msra.mxu0 0.0
  %1040 = vmatprep.subr.mxu0 0.0
  %1041 = vmatpush1.xpose.msra.mxu0 0.0
  %1042 = vmatprep.subr.mxu0 0.0
  %1043 = vmatpush1.xpose.msra.mxu0 0.0
  %1044 = vmatprep.subr.mxu0 0.0
  %1045 = vmatpush1.xpose.msra.mxu0 0.0
  %1046 = vmatprep.subr.mxu0 0.0
  %1047 = vmatpush1.xpose.msra.mxu0 0.0
  %1048 = vmatprep.subr.mxu0 0.0
  %1049 = vmatpush1.xpose.msra.mxu0 %v1016
  %1050 = vmatprep.subr.mxu0 0.0
  %1051 = vmatpush2.xpose.msra.mxu0 0.0
  %1052 = vmatprep.subr.mxu0 0.0
  %1053 = vmatpush2.xpose.msra.mxu0 0.0
  %1054 = vmatprep.subr.mxu0 0.0
  %1055 = vmatpush2.xpose.msra.mxu0 0.0
  %1056 = vmatprep.subr.mxu0 0.0
  %1057 = vmatpush2.xpose.msra.mxu0 0.0
  %1058 = vmatprep.subr.mxu0 0.0
  %1059 = vmatpush2.xpose.msra.mxu0 0.0
  %1060 = vmatprep.subr.mxu0 0.0
  %1061 = vmatpush2.xpose.msra.mxu0 0.0
  %1062 = vmatprep.subr.mxu0 0.0
  %1063 = vmatpush2.xpose.msra.mxu0 0.0
  %1064 = vmatprep.subr.mxu0 0.0
  %1065 = vmatpush2.xpose.msra.mxu0 0.0
  %1066 = vmatprep.subr.mxu0 0.0
  %1067 = vmatpush2.xpose.msra.mxu0 0.0
  %1068 = vmatprep.subr.mxu0 0.0
  %1069 = vmatpush2.xpose.msra.mxu0 0.0
  %1070 = vmatprep.subr.mxu0 0.0
  %1071 = vmatpush2.xpose.msra.mxu0 0.0
  %1072 = vmatprep.subr.mxu0 0.0
  %1073 = vmatpush2.xpose.msra.mxu0 0.0
  %1074 = vmatprep.subr.mxu0 0.0
  %1075 = vmatpush2.xpose.msra.mxu0 0.0
  %1076 = vmatprep.subr.mxu0 0.0
  %1077 = vmatpush2.xpose.msra.mxu0 0.0
  %1078 = vmatprep.subr.mxu0 0.0
  %1079 = vmatpush2.xpose.msra.mxu0 0.0
  %1080 = vmatprep.subr.mxu0 0.0
  %1081 = vmatpush2.xpose.msra.mxu0 0.0
  %1082 = vmatprep.mubr.f32.mxu0 0.0
  %1083 = vmatmul.mubr.f32.gmra.mxu0 %v1014
  %v1084 = vpop.f32.mrf.mxu0
  %v1085 = vadd.f32 %v38, %v1084
  %v1086 = vpop.f32.mrf.mxu0
  %1087 = vdwg.mxu0
  %v1088 = vadd.f32 %v1085, %v921
  %v1089 = vsel %vm159, %v1088, -inf
  %1090 = vmax.xlane.f32.xlu0 %v1089
  %v1091 = vpop.xlane.xlu0 %1090
  %v1092 = vsub.f32 %v1088, %v1091
  %v1093 = vmul.f32 %v1092, 1.442695
  %v1094 = vpow.pop %v1093
  %v1095 = vsel %vm159, %v1094, 0.0
  %1096 = vadd.xlane.f32.xlu0 %v1095
  %v1097 = vpop.xlane.xlu0 %1096
  %v1098 = vrcp.pop %v1097
  %v1099 = vmul.f32 %v1094, %v1098
  %1100 = vrot.lane.b32.xlu0 %v153, 56
  %v1101 = vpop.permute.xlu0 %1100
  %v1104 = vsel %vm159, %v1099, 0
  %1106 = vmatprep.subr.mxu0 0.0
  %1107 = vmatpush1.msra.mxu0 0.0
  %1108 = vmatprep.subr.mxu0 0.0
  %1109 = vmatpush1.msra.mxu0 0.0
  %1110 = vmatprep.subr.mxu0 0.0
  %1111 = vmatpush1.msra.mxu0 0.0
  %1112 = vmatprep.subr.mxu0 0.0
  %1113 = vmatpush1.msra.mxu0 0.0
  %1114 = vmatprep.subr.mxu0 0.0
  %1115 = vmatpush1.msra.mxu0 0.0
  %1116 = vmatprep.subr.mxu0 0.0
  %1117 = vmatpush1.msra.mxu0 0.0
  %1118 = vmatprep.subr.mxu0 0.0
  %1119 = vmatpush1.msra.mxu0 0.0
  %1120 = vmatprep.subr.mxu0 0.0
  %1121 = vmatpush1.msra.mxu0 0.0
  %1122 = vmatprep.subr.mxu0 0.0
  %1123 = vmatpush1.msra.mxu0 0.0
  %1124 = vmatprep.subr.mxu0 0.0
  %1125 = vmatpush1.msra.mxu0 0.0
  %1126 = vmatprep.subr.mxu0 0.0
  %1127 = vmatpush1.msra.mxu0 0.0
  %1128 = vmatprep.subr.mxu0 0.0
  %1129 = vmatpush1.msra.mxu0 0.0
  %1130 = vmatprep.subr.mxu0 0.0
  %1131 = vmatpush1.msra.mxu0 0.0
  %1132 = vmatprep.subr.mxu0 0.0
  %1133 = vmatpush1.msra.mxu0 0.0
  %1134 = vmatprep.subr.mxu0 0.0
  %1135 = vmatpush1.msra.mxu0 0.0
  %1136 = vmatprep.subr.mxu0 0.0
  %1137 = vmatpush1.msra.mxu0 %v1101
  %1138 = vmatprep.subr.mxu0 0.0
  %1139 = vmatpush2.msra.mxu0 0.0
  %1140 = vmatprep.subr.mxu0 0.0
  %1141 = vmatpush2.msra.mxu0 0.0
  %1142 = vmatprep.subr.mxu0 0.0
  %1143 = vmatpush2.msra.mxu0 0.0
  %1144 = vmatprep.subr.mxu0 0.0
  %1145 = vmatpush2.msra.mxu0 0.0
  %1146 = vmatprep.subr.mxu0 0.0
  %1147 = vmatpush2.msra.mxu0 0.0
  %1148 = vmatprep.subr.mxu0 0.0
  %1149 = vmatpush2.msra.mxu0 0.0
  %1150 = vmatprep.subr.mxu0 0.0
  %1151 = vmatpush2.msra.mxu0 0.0
  %1152 = vmatprep.subr.mxu0 0.0
  %1153 = vmatpush2.msra.mxu0 0.0
  %1154 = vmatprep.subr.mxu0 0.0
  %1155 = vmatpush2.msra.mxu0 0.0
  %1156 = vmatprep.subr.mxu0 0.0
  %1157 = vmatpush2.msra.mxu0 0.0
  %1158 = vmatprep.subr.mxu0 0.0
  %1159 = vmatpush2.msra.mxu0 0.0
  %1160 = vmatprep.subr.mxu0 0.0
  %1161 = vmatpush2.msra.mxu0 0.0
  %1162 = vmatprep.subr.mxu0 0.0
  %1163 = vmatpush2.msra.mxu0 0.0
  %1164 = vmatprep.subr.mxu0 0.0
  %1165 = vmatpush2.msra.mxu0 0.0
  %1166 = vmatprep.subr.mxu0 0.0
  %1167 = vmatpush2.msra.mxu0 0.0
  %1168 = vmatprep.subr.mxu0 0.0
  %1169 = vmatpush2.msra.mxu0 0.0
  %1170 = vmatprep.mubr.f32.mxu0 0.0
  %1171 = vmatmul.mubr.f32.gmra.mxu0 %v1104
  %v1172 = vpop.f32.mrf.mxu0
  %v1173 = vadd.f32 0.0, %v1172
  %v1174 = vpop.f32.mrf.mxu0
  %1175 = vdwg.mxu0
  %1176 = vrot.lane.b32.xlu0 %v153, 112
  %v1177 = vpop.permute.xlu0 %1176
  %1178 = vrot.lane.b32.xlu0 %v153, 80
  %v1179 = vpop.permute.xlu0 %1178
  %v1180 = vsel %vm159, %v1177, 0
  %v1182 = vsel %vm159, %v1179, 0
  %1184 = vmatprep.subr.mxu0 0.0
  %1185 = vmatpush1.xpose.msra.mxu0 0.0
  %1186 = vmatprep.subr.mxu0 0.0
  %1187 = vmatpush1.xpose.msra.mxu0 0.0
  %1188 = vmatprep.subr.mxu0 0.0
  %1189 = vmatpush1.xpose.msra.mxu0 0.0
  %1190 = vmatprep.subr.mxu0 0.0
  %1191 = vmatpush1.xpose.msra.mxu0 0.0
  %1192 = vmatprep.subr.mxu0 0.0
  %1193 = vmatpush1.xpose.msra.mxu0 0.0
  %1194 = vmatprep.subr.mxu0 0.0
  %1195 = vmatpush1.xpose.msra.mxu0 0.0
  %1196 = vmatprep.subr.mxu0 0.0
  %1197 = vmatpush1.xpose.msra.mxu0 0.0
  %1198 = vmatprep.subr.mxu0 0.0
  %1199 = vmatpush1.xpose.msra.mxu0 0.0
  %1200 = vmatprep.subr.mxu0 0.0
  %1201 = vmatpush1.xpose.msra.mxu0 0.0
  %1202 = vmatprep.subr.mxu0 0.0
  %1203 = vmatpush1.xpose.msra.mxu0 0.0
  %1204 = vmatprep.subr.mxu0 0.0
  %1205 = vmatpush1.xpose.msra.mxu0 0.0
  %1206 = vmatprep.subr.mxu0 0.0
  %1207 = vmatpush1.xpose.msra.mxu0 0.0
  %1208 = vmatprep.subr.mxu0 0.0
  %1209 = vmatpush1.xpose.msra.mxu0 0.0
  %1210 = vmatprep.subr.mxu0 0.0
  %1211 = vmatpush1.xpose.msra.mxu0 0.0
  %1212 = vmatprep.subr.mxu0 0.0
  %1213 = vmatpush1.xpose.msra.mxu0 0.0
  %1214 = vmatprep.subr.mxu0 0.0
  %1215 = vmatpush1.xpose.msra.mxu0 %v1182
  %1216 = vmatprep.subr.mxu0 0.0
  %1217 = vmatpush2.xpose.msra.mxu0 0.0
  %1218 = vmatprep.subr.mxu0 0.0
  %1219 = vmatpush2.xpose.msra.mxu0 0.0
  %1220 = vmatprep.subr.mxu0 0.0
  %1221 = vmatpush2.xpose.msra.mxu0 0.0
  %1222 = vmatprep.subr.mxu0 0.0
  %1223 = vmatpush2.xpose.msra.mxu0 0.0
  %1224 = vmatprep.subr.mxu0 0.0
  %1225 = vmatpush2.xpose.msra.mxu0 0.0
  %1226 = vmatprep.subr.mxu0 0.0
  %1227 = vmatpush2.xpose.msra.mxu0 0.0
  %1228 = vmatprep.subr.mxu0 0.0
  %1229 = vmatpush2.xpose.msra.mxu0 0.0
  %1230 = vmatprep.subr.mxu0 0.0
  %1231 = vmatpush2.xpose.msra.mxu0 0.0
  %1232 = vmatprep.subr.mxu0 0.0
  %1233 = vmatpush2.xpose.msra.mxu0 0.0
  %1234 = vmatprep.subr.mxu0 0.0
  %1235 = vmatpush2.xpose.msra.mxu0 0.0
  %1236 = vmatprep.subr.mxu0 0.0
  %1237 = vmatpush2.xpose.msra.mxu0 0.0
  %1238 = vmatprep.subr.mxu0 0.0
  %1239 = vmatpush2.xpose.msra.mxu0 0.0
  %1240 = vmatprep.subr.mxu0 0.0
  %1241 = vmatpush2.xpose.msra.mxu0 0.0
  %1242 = vmatprep.subr.mxu0 0.0
  %1243 = vmatpush2.xpose.msra.mxu0 0.0
  %1244 = vmatprep.subr.mxu0 0.0
  %1245 = vmatpush2.xpose.msra.mxu0 0.0
  %1246 = vmatprep.subr.mxu0 0.0
  %1247 = vmatpush2.xpose.msra.mxu0 0.0
  %1248 = vmatprep.mubr.f32.mxu0 0.0
  %1249 = vmatmul.mubr.f32.gmra.mxu0 %v1180
  %v1250 = vpop.f32.mrf.mxu0
  %v1251 = vadd.f32 %v39, %v1250
  %v1252 = vpop.f32.mrf.mxu0
  %1253 = vdwg.mxu0
  %v1254 = vadd.f32 %v1251, %v921
  %v1255 = vsel %vm159, %v1254, -inf
  %1256 = vmax.xlane.f32.xlu0 %v1255
  %v1257 = vpop.xlane.xlu0 %1256
  %v1258 = vsub.f32 %v1254, %v1257
  %v1259 = vmul.f32 %v1258, 1.442695
  %v1260 = vpow.pop %v1259
  %v1261 = vsel %vm159, %v1260, 0.0
  %1262 = vadd.xlane.f32.xlu0 %v1261
  %v1263 = vpop.xlane.xlu0 %1262
  %v1264 = vrcp.pop %v1263
  %v1265 = vmul.f32 %v1260, %v1264
  %1266 = vrot.lane.b32.xlu0 %v153, 48
  %v1267 = vpop.permute.xlu0 %1266
  %v1270 = vsel %vm159, %v1265, 0
  %1272 = vmatprep.subr.mxu0 0.0
  %1273 = vmatpush1.msra.mxu0 0.0
  %1274 = vmatprep.subr.mxu0 0.0
  %1275 = vmatpush1.msra.mxu0 0.0
  %1276 = vmatprep.subr.mxu0 0.0
  %1277 = vmatpush1.msra.mxu0 0.0
  %1278 = vmatprep.subr.mxu0 0.0
  %1279 = vmatpush1.msra.mxu0 0.0
  %1280 = vmatprep.subr.mxu0 0.0
  %1281 = vmatpush1.msra.mxu0 0.0
  %1282 = vmatprep.subr.mxu0 0.0
  %1283 = vmatpush1.msra.mxu0 0.0
  %1284 = vmatprep.subr.mxu0 0.0
  %1285 = vmatpush1.msra.mxu0 0.0
  %1286 = vmatprep.subr.mxu0 0.0
  %1287 = vmatpush1.msra.mxu0 0.0
  %1288 = vmatprep.subr.mxu0 0.0
  %1289 = vmatpush1.msra.mxu0 0.0
  %1290 = vmatprep.subr.mxu0 0.0
  %1291 = vmatpush1.msra.mxu0 0.0
  %1292 = vmatprep.subr.mxu0 0.0
  %1293 = vmatpush1.msra.mxu0 0.0
  %1294 = vmatprep.subr.mxu0 0.0
  %1295 = vmatpush1.msra.mxu0 0.0
  %1296 = vmatprep.subr.mxu0 0.0
  %1297 = vmatpush1.msra.mxu0 0.0
  %1298 = vmatprep.subr.mxu0 0.0
  %1299 = vmatpush1.msra.mxu0 0.0
  %1300 = vmatprep.subr.mxu0 0.0
  %1301 = vmatpush1.msra.mxu0 0.0
  %1302 = vmatprep.subr.mxu0 0.0
  %1303 = vmatpush1.msra.mxu0 %v1267
  %1304 = vmatprep.subr.mxu0 0.0
  %1305 = vmatpush2.msra.mxu0 0.0
  %1306 = vmatprep.subr.mxu0 0.0
  %1307 = vmatpush2.msra.mxu0 0.0
  %1308 = vmatprep.subr.mxu0 0.0
  %1309 = vmatpush2.msra.mxu0 0.0
  %1310 = vmatprep.subr.mxu0 0.0
  %1311 = vmatpush2.msra.mxu0 0.0
  %1312 = vmatprep.subr.mxu0 0.0
  %1313 = vmatpush2.msra.mxu0 0.0
  %1314 = vmatprep.subr.mxu0 0.0
  %1315 = vmatpush2.msra.mxu0 0.0
  %1316 = vmatprep.subr.mxu0 0.0
  %1317 = vmatpush2.msra.mxu0 0.0
  %1318 = vmatprep.subr.mxu0 0.0
  %1319 = vmatpush2.msra.mxu0 0.0
  %1320 = vmatprep.subr.mxu0 0.0
  %1321 = vmatpush2.msra.mxu0 0.0
  %1322 = vmatprep.subr.mxu0 0.0
  %1323 = vmatpush2.msra.mxu0 0.0
  %1324 = vmatprep.subr.mxu0 0.0
  %1325 = vmatpush2.msra.mxu0 0.0
  %1326 = vmatprep.subr.mxu0 0.0
  %1327 = vmatpush2.msra.mxu0 0.0
  %1328 = vmatprep.subr.mxu0 0.0
  %1329 = vmatpush2.msra.mxu0 0.0
  %1330 = vmatprep.subr.mxu0 0.0
  %1331 = vmatpush2.msra.mxu0 0.0
  %1332 = vmatprep.subr.mxu0 0.0
  %1333 = vmatpush2.msra.mxu0 0.0
  %1334 = vmatprep.subr.mxu0 0.0
  %1335 = vmatpush2.msra.mxu0 0.0
  %1336 = vmatprep.mubr.f32.mxu0 0.0
  %1337 = vmatmul.mubr.f32.gmra.mxu0 %v1270
  %v1338 = vpop.f32.mrf.mxu0
  %v1339 = vadd.f32 0.0, %v1338
  %v1340 = vpop.f32.mrf.mxu0
  %1341 = vdwg.mxu0
  %1342 = vrot.lane.b32.xlu0 %v153, 104
  %v1343 = vpop.permute.xlu0 %1342
  %1344 = vrot.lane.b32.xlu0 %v153, 72
  %v1345 = vpop.permute.xlu0 %1344
  %v1346 = vsel %vm159, %v1343, 0
  %v1348 = vsel %vm159, %v1345, 0
  %1350 = vmatprep.subr.mxu0 0.0
  %1351 = vmatpush1.xpose.msra.mxu0 0.0
  %1352 = vmatprep.subr.mxu0 0.0
  %1353 = vmatpush1.xpose.msra.mxu0 0.0
  %1354 = vmatprep.subr.mxu0 0.0
  %1355 = vmatpush1.xpose.msra.mxu0 0.0
  %1356 = vmatprep.subr.mxu0 0.0
  %1357 = vmatpush1.xpose.msra.mxu0 0.0
  %1358 = vmatprep.subr.mxu0 0.0
  %1359 = vmatpush1.xpose.msra.mxu0 0.0
  %1360 = vmatprep.subr.mxu0 0.0
  %1361 = vmatpush1.xpose.msra.mxu0 0.0
  %1362 = vmatprep.subr.mxu0 0.0
  %1363 = vmatpush1.xpose.msra.mxu0 0.0
  %1364 = vmatprep.subr.mxu0 0.0
  %1365 = vmatpush1.xpose.msra.mxu0 0.0
  %1366 = vmatprep.subr.mxu0 0.0
  %1367 = vmatpush1.xpose.msra.mxu0 0.0
  %1368 = vmatprep.subr.mxu0 0.0
  %1369 = vmatpush1.xpose.msra.mxu0 0.0
  %1370 = vmatprep.subr.mxu0 0.0
  %1371 = vmatpush1.xpose.msra.mxu0 0.0
  %1372 = vmatprep.subr.mxu0 0.0
  %1373 = vmatpush1.xpose.msra.mxu0 0.0
  %1374 = vmatprep.subr.mxu0 0.0
  %1375 = vmatpush1.xpose.msra.mxu0 0.0
  %1376 = vmatprep.subr.mxu0 0.0
  %1377 = vmatpush1.xpose.msra.mxu0 0.0
  %1378 = vmatprep.subr.mxu0 0.0
  %1379 = vmatpush1.xpose.msra.mxu0 0.0
  %1380 = vmatprep.subr.mxu0 0.0
  %1381 = vmatpush1.xpose.msra.mxu0 %v1348
  %1382 = vmatprep.subr.mxu0 0.0
  %1383 = vmatpush2.xpose.msra.mxu0 0.0
  %1384 = vmatprep.subr.mxu0 0.0
  %1385 = vmatpush2.xpose.msra.mxu0 0.0
  %1386 = vmatprep.subr.mxu0 0.0
  %1387 = vmatpush2.xpose.msra.mxu0 0.0
  %1388 = vmatprep.subr.mxu0 0.0
  %1389 = vmatpush2.xpose.msra.mxu0 0.0
  %1390 = vmatprep.subr.mxu0 0.0
  %1391 = vmatpush2.xpose.msra.mxu0 0.0
  %1392 = vmatprep.subr.mxu0 0.0
  %1393 = vmatpush2.xpose.msra.mxu0 0.0
  %1394 = vmatprep.subr.mxu0 0.0
  %1395 = vmatpush2.xpose.msra.mxu0 0.0
  %1396 = vmatprep.subr.mxu0 0.0
  %1397 = vmatpush2.xpose.msra.mxu0 0.0
  %1398 = vmatprep.subr.mxu0 0.0
  %1399 = vmatpush2.xpose.msra.mxu0 0.0
  %1400 = vmatprep.subr.mxu0 0.0
  %1401 = vmatpush2.xpose.msra.mxu0 0.0
  %1402 = vmatprep.subr.mxu0 0.0
  %1403 = vmatpush2.xpose.msra.mxu0 0.0
  %1404 = vmatprep.subr.mxu0 0.0
  %1405 = vmatpush2.xpose.msra.mxu0 0.0
  %1406 = vmatprep.subr.mxu0 0.0
  %1407 = vmatpush2.xpose.msra.mxu0 0.0
  %1408 = vmatprep.subr.mxu0 0.0
  %1409 = vmatpush2.xpose.msra.mxu0 0.0
  %1410 = vmatprep.subr.mxu0 0.0
  %1411 = vmatpush2.xpose.msra.mxu0 0.0
  %1412 = vmatprep.subr.mxu0 0.0
  %1413 = vmatpush2.xpose.msra.mxu0 0.0
  %1414 = vmatprep.mubr.f32.mxu0 0.0
  %1415 = vmatmul.mubr.f32.gmra.mxu0 %v1346
  %v1416 = vpop.f32.mrf.mxu0
  %v1417 = vadd.f32 %v40, %v1416
  %v1418 = vpop.f32.mrf.mxu0
  %1419 = vdwg.mxu0
  %v1420 = vadd.f32 %v1417, %v921
  %v1421 = vsel %vm159, %v1420, -inf
  %1422 = vmax.xlane.f32.xlu0 %v1421
  %v1423 = vpop.xlane.xlu0 %1422
  %v1424 = vsub.f32 %v1420, %v1423
  %v1425 = vmul.f32 %v1424, 1.442695
  %v1426 = vpow.pop %v1425
  %v1427 = vsel %vm159, %v1426, 0.0
  %1428 = vadd.xlane.f32.xlu0 %v1427
  %v1429 = vpop.xlane.xlu0 %1428
  %v1430 = vrcp.pop %v1429
  %v1431 = vmul.f32 %v1426, %v1430
  %1432 = vrot.lane.b32.xlu0 %v153, 40
  %v1433 = vpop.permute.xlu0 %1432
  %v1436 = vsel %vm159, %v1431, 0
  %1438 = vmatprep.subr.mxu0 0.0
  %1439 = vmatpush1.msra.mxu0 0.0
  %1440 = vmatprep.subr.mxu0 0.0
  %1441 = vmatpush1.msra.mxu0 0.0
  %1442 = vmatprep.subr.mxu0 0.0
  %1443 = vmatpush1.msra.mxu0 0.0
  %1444 = vmatprep.subr.mxu0 0.0
  %1445 = vmatpush1.msra.mxu0 0.0
  %1446 = vmatprep.subr.mxu0 0.0
  %1447 = vmatpush1.msra.mxu0 0.0
  %1448 = vmatprep.subr.mxu0 0.0
  %1449 = vmatpush1.msra.mxu0 0.0
  %1450 = vmatprep.subr.mxu0 0.0
  %1451 = vmatpush1.msra.mxu0 0.0
  %1452 = vmatprep.subr.mxu0 0.0
  %1453 = vmatpush1.msra.mxu0 0.0
  %1454 = vmatprep.subr.mxu0 0.0
  %1455 = vmatpush1.msra.mxu0 0.0
  %1456 = vmatprep.subr.mxu0 0.0
  %1457 = vmatpush1.msra.mxu0 0.0
  %1458 = vmatprep.subr.mxu0 0.0
  %1459 = vmatpush1.msra.mxu0 0.0
  %1460 = vmatprep.subr.mxu0 0.0
  %1461 = vmatpush1.msra.mxu0 0.0
  %1462 = vmatprep.subr.mxu0 0.0
  %1463 = vmatpush1.msra.mxu0 0.0
  %1464 = vmatprep.subr.mxu0 0.0
  %1465 = vmatpush1.msra.mxu0 0.0
  %1466 = vmatprep.subr.mxu0 0.0
  %1467 = vmatpush1.msra.mxu0 0.0
  %1468 = vmatprep.subr.mxu0 0.0
  %1469 = vmatpush1.msra.mxu0 %v1433
  %1470 = vmatprep.subr.mxu0 0.0
  %1471 = vmatpush2.msra.mxu0 0.0
  %1472 = vmatprep.subr.mxu0 0.0
  %1473 = vmatpush2.msra.mxu0 0.0
  %1474 = vmatprep.subr.mxu0 0.0
  %1475 = vmatpush2.msra.mxu0 0.0
  %1476 = vmatprep.subr.mxu0 0.0
  %1477 = vmatpush2.msra.mxu0 0.0
  %1478 = vmatprep.subr.mxu0 0.0
  %1479 = vmatpush2.msra.mxu0 0.0
  %1480 = vmatprep.subr.mxu0 0.0
  %1481 = vmatpush2.msra.mxu0 0.0
  %1482 = vmatprep.subr.mxu0 0.0
  %1483 = vmatpush2.msra.mxu0 0.0
  %1484 = vmatprep.subr.mxu0 0.0
  %1485 = vmatpush2.msra.mxu0 0.0
  %1486 = vmatprep.subr.mxu0 0.0
  %1487 = vmatpush2.msra.mxu0 0.0
  %1488 = vmatprep.subr.mxu0 0.0
  %1489 = vmatpush2.msra.mxu0 0.0
  %1490 = vmatprep.subr.mxu0 0.0
  %1491 = vmatpush2.msra.mxu0 0.0
  %1492 = vmatprep.subr.mxu0 0.0
  %1493 = vmatpush2.msra.mxu0 0.0
  %1494 = vmatprep.subr.mxu0 0.0
  %1495 = vmatpush2.msra.mxu0 0.0
  %1496 = vmatprep.subr.mxu0 0.0
  %1497 = vmatpush2.msra.mxu0 0.0
  %1498 = vmatprep.subr.mxu0 0.0
  %1499 = vmatpush2.msra.mxu0 0.0
  %1500 = vmatprep.subr.mxu0 0.0
  %1501 = vmatpush2.msra.mxu0 0.0
  %1502 = vmatprep.mubr.f32.mxu0 0.0
  %1503 = vmatmul.mubr.f32.gmra.mxu0 %v1436
  %v1504 = vpop.f32.mrf.mxu0
  %v1505 = vadd.f32 0.0, %v1504
  %v1506 = vpop.f32.mrf.mxu0
  %1507 = vdwg.mxu0
  %1509 = vrot.lane.b32.xlu0 %v1173, 8
  %v1510 = vpop.permute.xlu0 %1509
  %1513 = vrot.lane.b32.xlu0 %v1339, 16
  %v1514 = vpop.permute.xlu0 %1513
  %1517 = vrot.lane.b32.xlu0 %v1505, 24
  %v1518 = vpop.permute.xlu0 %1517
  %v1520 = vsel %vm159, %v1007, %v1510
  %v1521 = vsel %vm837, %v1520, %v1514
  %v1522 = vsel %vm839, %v1521, %v1518
  %v1523 = vld [vmem:[%s5] sm:$0xff]
  %v1524 = vld [vmem:[%s5 + $0x8] sm:$0xff]
  %v1525 = vld [vmem:[%s5 + $0x10] sm:$0xff]
  %v1526 = vld [vmem:[%s5 + $0x18] sm:$0xff]
  %v1528 = vsel %vm47, %v840, 0
  %v1531 = vsel %vm47, %v1522, 0
  %1533 = vmatprep.subr.mxu0 0.0
  %1534 = vmatpush1.msra.mxu0 0.0
  %1535 = vmatprep.subr.mxu0 0.0
  %1536 = vmatpush1.msra.mxu0 0.0
  %1537 = vmatprep.subr.mxu0 0.0
  %1538 = vmatpush1.msra.mxu0 0.0
  %1539 = vmatprep.subr.mxu0 0.0
  %1540 = vmatpush1.msra.mxu0 0.0
  %1541 = vmatprep.subr.mxu0 0.0
  %1542 = vmatpush1.msra.mxu0 0.0
  %1543 = vmatprep.subr.mxu0 0.0
  %1544 = vmatpush1.msra.mxu0 0.0
  %1545 = vmatprep.subr.mxu0 0.0
  %1546 = vmatpush1.msra.mxu0 0.0
  %1547 = vmatprep.subr.mxu0 0.0
  %1548 = vmatpush1.msra.mxu0 0.0
  %1549 = vmatprep.subr.mxu0 0.0
  %1550 = vmatpush1.msra.mxu0 0.0
  %1551 = vmatprep.subr.mxu0 0.0
  %1552 = vmatpush1.msra.mxu0 0.0
  %1553 = vmatprep.subr.mxu0 0.0
  %1554 = vmatpush1.msra.mxu0 0.0
  %1555 = vmatprep.subr.mxu0 0.0
  %1556 = vmatpush1.msra.mxu0 0.0
  %1557 = vmatprep.subr.mxu0 0.0
  %1558 = vmatpush1.msra.mxu0 %v1526
  %1559 = vmatprep.subr.mxu0 0.0
  %1560 = vmatpush1.msra.mxu0 %v1525
  %1561 = vmatprep.subr.mxu0 0.0
  %1562 = vmatpush1.msra.mxu0 %v1524
  %1563 = vmatprep.subr.mxu0 0.0
  %1564 = vmatpush1.msra.mxu0 %v1523
  %1565 = vmatprep.subr.mxu0 0.0
  %1566 = vmatpush2.msra.mxu0 0.0
  %1567 = vmatprep.subr.mxu0 0.0
  %1568 = vmatpush2.msra.mxu0 0.0
  %1569 = vmatprep.subr.mxu0 0.0
  %1570 = vmatpush2.msra.mxu0 0.0
  %1571 = vmatprep.subr.mxu0 0.0
  %1572 = vmatpush2.msra.mxu0 0.0
  %1573 = vmatprep.subr.mxu0 0.0
  %1574 = vmatpush2.msra.mxu0 0.0
  %1575 = vmatprep.subr.mxu0 0.0
  %1576 = vmatpush2.msra.mxu0 0.0
  %1577 = vmatprep.subr.mxu0 0.0
  %1578 = vmatpush2.msra.mxu0 0.0
  %1579 = vmatprep.subr.mxu0 0.0
  %1580 = vmatpush2.msra.mxu0 0.0
  %1581 = vmatprep.subr.mxu0 0.0
  %1582 = vmatpush2.msra.mxu0 0.0
  %1583 = vmatprep.subr.mxu0 0.0
  %1584 = vmatpush2.msra.mxu0 0.0
  %1585 = vmatprep.subr.mxu0 0.0
  %1586 = vmatpush2.msra.mxu0 0.0
  %1587 = vmatprep.subr.mxu0 0.0
  %1588 = vmatpush2.msra.mxu0 0.0
  %1589 = vmatprep.subr.mxu0 0.0
  %1590 = vmatpush2.msra.mxu0 0.0
  %1591 = vmatprep.subr.mxu0 0.0
  %1592 = vmatpush2.msra.mxu0 0.0
  %1593 = vmatprep.subr.mxu0 0.0
  %1594 = vmatpush2.msra.mxu0 0.0
  %1595 = vmatprep.subr.mxu0 0.0
  %1596 = vmatpush2.msra.mxu0 0.0
  %1597 = vmatprep.mubr.f32.mxu0 0.0
  %1598 = vmatmul.mubr.f32.gmra.mxu0 %v1528
  %v1599 = vpop.f32.mrf.mxu0
  %v1600 = vadd.f32 0.0, %v1599
  %v1601 = vpop.f32.mrf.mxu0
  %1602 = vmatprep.mubr.f32.mxu0 0.0
  %1603 = vmatmul.mubr.f32.gmra.mxu0 %v1531
  %v1604 = vpop.f32.mrf.mxu0
  %v1605 = vadd.f32 0.0, %v1604
  %v1606 = vpop.f32.mrf.mxu0
  %1607 = vdwg.mxu0
  %v1608 = vadd.f32 %v35, %v1600
  %v1609 = vadd.f32 %v36, %v1605
  %v1610 = vld [vmem:[%s6] sm:$0x1]
  %v1611 = vmul.f32 %v1608, %v1608
  %v1612 = vmul.f32 %v1609, %v1609
  %v1613 = vsel %vm47, %v1611, 0.0
  %1614 = vadd.xlane.f32.xlu0 %v1613
  %v1615 = vpop.xlane.xlu0 %1614
  %v1616 = vsel %vm47, %v1612, 0.0
  %1617 = vadd.xlane.f32.xlu0 %v1616
  %v1618 = vpop.xlane.xlu0 %1617
  %v1619 = vmul.f32 %v1615, %v54
  %v1620 = vmul.f32 %v1618, %v54
  %v1621 = vadd.f32 %v1619, 1e-06
  %v1622 = vadd.f32 %v1620, 1e-06
  %v1623 = vrsqrt.pop %v1621
  %v1624 = vrsqrt.pop %v1622
  %v1625 = vmul.f32 %v1608, %v1623
  %v1626 = vmul.f32 %v1609, %v1624
  %v1628 = vlaneseq
  %v1629 = vshrl.u32 %v1628, 7
  %v1630 = vsub.s32 0, %v1629
  %v1631 = vrot.slane %v1610, %v1630
  %v1633 = vmul.f32 %v1625, %v1631
  %v1634 = vmul.f32 %v1626, %v1631
  %v1635 = vld [vmem:[%s7] sm:$0xff]
  %v1636 = vld [vmem:[%s7 + $0x8] sm:$0xff]
  %v1637 = vld [vmem:[%s7 + $0x10] sm:$0xff]
  %v1638 = vld [vmem:[%s7 + $0x18] sm:$0xff]
  %v1640 = vsel %vm47, %v1633, 0
  %v1643 = vsel %vm47, %v1634, 0
  %1645 = vmatprep.subr.mxu0 0.0
  %1646 = vmatpush1.msra.mxu0 0.0
  %1647 = vmatprep.subr.mxu0 0.0
  %1648 = vmatpush1.msra.mxu0 0.0
  %1649 = vmatprep.subr.mxu0 0.0
  %1650 = vmatpush1.msra.mxu0 0.0
  %1651 = vmatprep.subr.mxu0 0.0
  %1652 = vmatpush1.msra.mxu0 0.0
  %1653 = vmatprep.subr.mxu0 0.0
  %1654 = vmatpush1.msra.mxu0 0.0
  %1655 = vmatprep.subr.mxu0 0.0
  %1656 = vmatpush1.msra.mxu0 0.0
  %1657 = vmatprep.subr.mxu0 0.0
  %1658 = vmatpush1.msra.mxu0 0.0
  %1659 = vmatprep.subr.mxu0 0.0
  %1660 = vmatpush1.msra.mxu0 0.0
  %1661 = vmatprep.subr.mxu0 0.0
  %1662 = vmatpush1.msra.mxu0 0.0
  %1663 = vmatprep.subr.mxu0 0.0
  %1664 = vmatpush1.msra.mxu0 0.0
  %1665 = vmatprep.subr.mxu0 0.0
  %1666 = vmatpush1.msra.mxu0 0.0
  %1667 = vmatprep.subr.mxu0 0.0
  %1668 = vmatpush1.msra.mxu0 0.0
  %1669 = vmatprep.subr.mxu0 0.0
  %1670 = vmatpush1.msra.mxu0 %v1638
  %1671 = vmatprep.subr.mxu0 0.0
  %1672 = vmatpush1.msra.mxu0 %v1637
  %1673 = vmatprep.subr.mxu0 0.0
  %1674 = vmatpush1.msra.mxu0 %v1636
  %1675 = vmatprep.subr.mxu0 0.0
  %1676 = vmatpush1.msra.mxu0 %v1635
  %1677 = vmatprep.subr.mxu0 0.0
  %1678 = vmatpush2.msra.mxu0 0.0
  %1679 = vmatprep.subr.mxu0 0.0
  %1680 = vmatpush2.msra.mxu0 0.0
  %1681 = vmatprep.subr.mxu0 0.0
  %1682 = vmatpush2.msra.mxu0 0.0
  %1683 = vmatprep.subr.mxu0 0.0
  %1684 = vmatpush2.msra.mxu0 0.0
  %1685 = vmatprep.subr.mxu0 0.0
  %1686 = vmatpush2.msra.mxu0 0.0
  %1687 = vmatprep.subr.mxu0 0.0
  %1688 = vmatpush2.msra.mxu0 0.0
  %1689 = vmatprep.subr.mxu0 0.0
  %1690 = vmatpush2.msra.mxu0 0.0
  %1691 = vmatprep.subr.mxu0 0.0
  %1692 = vmatpush2.msra.mxu0 0.0
  %1693 = vmatprep.subr.mxu0 0.0
  %1694 = vmatpush2.msra.mxu0 0.0
  %1695 = vmatprep.subr.mxu0 0.0
  %1696 = vmatpush2.msra.mxu0 0.0
  %1697 = vmatprep.subr.mxu0 0.0
  %1698 = vmatpush2.msra.mxu0 0.0
  %1699 = vmatprep.subr.mxu0 0.0
  %1700 = vmatpush2.msra.mxu0 0.0
  %1701 = vmatprep.subr.mxu0 0.0
  %1702 = vmatpush2.msra.mxu0 0.0
  %1703 = vmatprep.subr.mxu0 0.0
  %1704 = vmatpush2.msra.mxu0 0.0
  %1705 = vmatprep.subr.mxu0 0.0
  %1706 = vmatpush2.msra.mxu0 0.0
  %1707 = vmatprep.subr.mxu0 0.0
  %1708 = vmatpush2.msra.mxu0 0.0
  %1709 = vmatprep.mubr.f32.mxu0 0.0
  %1710 = vmatmul.mubr.f32.gmra.mxu0 %v1640
  %v1711 = vpop.f32.mrf.mxu0
  %v1712 = vadd.f32 0.0, %v1711
  %v1713 = vpop.f32.mrf.mxu0
  %1714 = vmatprep.mubr.f32.mxu0 0.0
  %1715 = vmatmul.mubr.f32.gmra.mxu0 %v1643
  %v1716 = vpop.f32.mrf.mxu0
  %v1717 = vadd.f32 0.0, %v1716
  %v1718 = vpop.f32.mrf.mxu0
  %1719 = vdwg.mxu0
  %v1720 = vmax.f32 %v1712, 0.0
  %v1721 = vmax.f32 %v1717, 0.0
  %v1722 = vld [vmem:[%s8] sm:$0xff]
  %v1723 = vld [vmem:[%s8 + $0x8] sm:$0xff]
  %v1724 = vld [vmem:[%s8 + $0x10] sm:$0xff]
  %v1725 = vld [vmem:[%s8 + $0x18] sm:$0xff]
  %v1726 = vld [vmem:[%s8 + $0x20] sm:$0xff]
  %v1727 = vld [vmem:[%s8 + $0x28] sm:$0xff]
  %v1728 = vld [vmem:[%s8 + $0x30] sm:$0xff]
  %v1729 = vld [vmem:[%s8 + $0x38] sm:$0xff]
  %vm1730 = vcmask 523264
  %v1732 = vsel %vm1730, %v1720, 0
  %v1735 = vsel %vm1730, %v1721, 0
  %1737 = vmatprep.subr.mxu0 0.0
  %1738 = vmatpush1.msra.mxu0 0.0
  %1739 = vmatprep.subr.mxu0 0.0
  %1740 = vmatpush1.msra.mxu0 0.0
  %1741 = vmatprep.subr.mxu0 0.0
  %1742 = vmatpush1.msra.mxu0 0.0
  %1743 = vmatprep.subr.mxu0 0.0
  %1744 = vmatpush1.msra.mxu0 0.0
  %1745 = vmatprep.subr.mxu0 0.0
  %1746 = vmatpush1.msra.mxu0 0.0
  %1747 = vmatprep.subr.mxu0 0.0
  %1748 = vmatpush1.msra.mxu0 0.0
  %1749 = vmatprep.subr.mxu0 0.0
  %1750 = vmatpush1.msra.mxu0 0.0
  %1751 = vmatprep.subr.mxu0 0.0
  %1752 = vmatpush1.msra.mxu0 0.0
  %1753 = vmatprep.subr.mxu0 0.0
  %1754 = vmatpush1.msra.mxu0 %v1729
  %1755 = vmatprep.subr.mxu0 0.0
  %1756 = vmatpush1.msra.mxu0 %v1728
  %1757 = vmatprep.subr.mxu0 0.0
  %1758 = vmatpush1.msra.mxu0 %v1727
  %1759 = vmatprep.subr.mxu0 0.0
  %1760 = vmatpush1.msra.mxu0 %v1726
  %1761 = vmatprep.subr.mxu0 0.0
  %1762 = vmatpush1.msra.mxu0 %v1725
  %1763 = vmatprep.subr.mxu0 0.0
  %1764 = vmatpush1.msra.mxu0 %v1724
  %1765 = vmatprep.subr.mxu0 0.0
  %1766 = vmatpush1.msra.mxu0 %v1723
  %1767 = vmatprep.subr.mxu0 0.0
  %1768 = vmatpush1.msra.mxu0 %v1722
  %1769 = vmatprep.subr.mxu0 0.0
  %1770 = vmatpush2.msra.mxu0 0.0
  %1771 = vmatprep.subr.mxu0 0.0
  %1772 = vmatpush2.msra.mxu0 0.0
  %1773 = vmatprep.subr.mxu0 0.0
  %1774 = vmatpush2.msra.mxu0 0.0
  %1775 = vmatprep.subr.mxu0 0.0
  %1776 = vmatpush2.msra.mxu0 0.0
  %1777 = vmatprep.subr.mxu0 0.0
  %1778 = vmatpush2.msra.mxu0 0.0
  %1779 = vmatprep.subr.mxu0 0.0
  %1780 = vmatpush2.msra.mxu0 0.0
  %1781 = vmatprep.subr.mxu0 0.0
  %1782 = vmatpush2.msra.mxu0 0.0
  %1783 = vmatprep.subr.mxu0 0.0
  %1784 = vmatpush2.msra.mxu0 0.0
  %1785 = vmatprep.subr.mxu0 0.0
  %1786 = vmatpush2.msra.mxu0 0.0
  %1787 = vmatprep.subr.mxu0 0.0
  %1788 = vmatpush2.msra.mxu0 0.0
  %1789 = vmatprep.subr.mxu0 0.0
  %1790 = vmatpush2.msra.mxu0 0.0
  %1791 = vmatprep.subr.mxu0 0.0
  %1792 = vmatpush2.msra.mxu0 0.0
  %1793 = vmatprep.subr.mxu0 0.0
  %1794 = vmatpush2.msra.mxu0 0.0
  %1795 = vmatprep.subr.mxu0 0.0
  %1796 = vmatpush2.msra.mxu0 0.0
  %1797 = vmatprep.subr.mxu0 0.0
  %1798 = vmatpush2.msra.mxu0 0.0
  %1799 = vmatprep.subr.mxu0 0.0
  %1800 = vmatpush2.msra.mxu0 0.0
  %1801 = vmatprep.mubr.f32.mxu0 0.0
  %1802 = vmatmul.mubr.f32.gmra.mxu0 %v1732
  %v1803 = vpop.f32.mrf.mxu0
  %v1804 = vadd.f32 0.0, %v1803
  %v1805 = vpop.f32.mrf.mxu0
  %1806 = vmatprep.mubr.f32.mxu0 0.0
  %1807 = vmatmul.mubr.f32.gmra.mxu0 %v1735
  %v1808 = vpop.f32.mrf.mxu0
  %v1809 = vadd.f32 0.0, %v1808
  %v1810 = vpop.f32.mrf.mxu0
  %1811 = vdwg.mxu0
  %v1812 = vadd.f32 %v1608, %v1804
  %v1813 = vadd.f32 %v1609, %v1809
  %v1814 = vld [vmem:[%s9] sm:$0x1]
  %v1815 = vmul.f32 %v1812, %v1812
  %v1816 = vmul.f32 %v1813, %v1813
  %v1817 = vsel %vm47, %v1815, 0.0
  %1818 = vadd.xlane.f32.xlu0 %v1817
  %v1819 = vpop.xlane.xlu0 %1818
  %v1820 = vsel %vm47, %v1816, 0.0
  %1821 = vadd.xlane.f32.xlu0 %v1820
  %v1822 = vpop.xlane.xlu0 %1821
  %v1823 = vmul.f32 %v1819, %v54
  %v1824 = vmul.f32 %v1822, %v54
  %v1825 = vadd.f32 %v1823, 1e-06
  %v1826 = vadd.f32 %v1824, 1e-06
  %v1827 = vrsqrt.pop %v1825
  %v1828 = vrsqrt.pop %v1826
  %v1829 = vmul.f32 %v1812, %v1827
  %v1830 = vmul.f32 %v1813, %v1828
  %v1832 = vlaneseq
  %v1833 = vshrl.u32 %v1832, 7
  %v1834 = vsub.s32 0, %v1833
  %v1835 = vrot.slane %v1814, %v1834
  %v1837 = vmul.f32 %v1829, %v1835
  %v1838 = vmul.f32 %v1830, %v1835
  %1839 = vst.msk [vmem:[%s10] sm:$0xff] %vm47, %v1837
  %1840 = vst.msk [vmem:[%s10 + $0x8] sm:$0xff] %vm47, %v1838
  // Predicated region
  $region42: #{_lambda_.6} parent=0 // pred_check
    _
  $region43: #{_lambda_.6} parent=0 // pred_check_branch
    %1842 = sbr.rel (0) target = $region45
  $region44: #{_lambda_.6} parent=0 // pred_region
    _
  $region45: #{_lambda_.6} parent=0 // pred_fallthru
    _
  // Predicated region
  $region46: #{_lambda_.6} parent=0 // pred_check
    _
  $region47: #{_lambda_.6} parent=0 // pred_check_branch
    %1844 = sbr.rel (0) target = $region49
  $region48: #{_lambda_.6} parent=0 // pred_region
    _
  $region49: #{_lambda_.6} parent=0 // pred_fallthru
    _

// kernel: _lambda_.7
$region0: #{_lambda_.7}
  #allocation0 [shape = 'u32[]', space=smem, size = 0x4, offset = 0x4, fixed_abs, tag = 'smem constant byte address 0x4 - core index']
  #allocation1 [shape = 'u32[144,128]{1,0:T(1,128)}', space=vmem, size = 0x12000, scoped, tag = 'internal scratch']
  %s0 = inlined_call_operand.vmem [shape: f32[16,32], index: 0, kind: input, shape index: {}]
  %s1 = inlined_call_operand.vmem [shape: f32[16,32], index: 1, kind: input, shape index: {}]
  %s2 = inlined_call_operand.vmem [shape: f32[2,8], index: 2, kind: input, shape index: {}]
  %s3 = inlined_call_operand.vmem [shape: f32[4,8,8], index: 3, kind: input, shape index: {}]
  %s4 = inlined_call_operand.vmem [shape: f32[1,32], index: 4, kind: input, shape index: {}, may-alias: {4,7,11}]
  %s5 = inlined_call_operand.vmem [shape: f32[32,96], index: 5, kind: input, shape index: {}]
  %s6 = inlined_call_operand.vmem [shape: f32[32,32], index: 6, kind: input, shape index: {}]
  %s7 = inlined_call_operand.vmem [shape: f32[1,32], index: 7, kind: input, shape index: {}, may-alias: {4,7,11}]
  %s8 = inlined_call_operand.vmem [shape: f32[32,32], index: 8, kind: input, shape index: {}]
  %s9 = inlined_call_operand.vmem [shape: f32[32,64], index: 9, kind: input, shape index: {}]
  %s10 = inlined_call_operand.vmem [shape: f32[32,32], index: 10, kind: input, shape index: {}]
  %s11 = inlined_call_operand.vmem [shape: f32[1,32], index: 11, kind: input, shape index: {}, may-alias: {4,7,11}]
  %s12 = inlined_call_operand.vmem [shape: f32[32,64], index: 12, kind: input, shape index: {}]
  %s13 = inlined_call_operand.vmem [shape: f32[64,32], index: 13, kind: input, shape index: {}]
  %s14 = inlined_call_operand.vmem [shape: f32[16,32], index: 14, kind: output, shape index: {}]
  %s15 = sld [smem:[#allocation0]]
  $region66: #{_lambda_.7} parent=0
    _
  %s17 = ssub.s32 1, %s15
  %s18 = scalar_select 0, %s17, %s15
  // Predicated region
  $region2: #{_lambda_.7} parent=0 // pred_check
    _
  $region3: #{_lambda_.7} parent=0 // pred_check_branch
    %20 = sbr.rel (0) target = $region5
  $region4: #{_lambda_.7} parent=0 // pred_region
    _
  $region5: #{_lambda_.7} parent=0 // pred_fallthru
    _
  // Predicated region
  $region6: #{_lambda_.7} parent=0 // pred_check
    _
  $region7: #{_lambda_.7} parent=0 // pred_check_branch
    %22 = sbr.rel (0) target = $region9
  $region8: #{_lambda_.7} parent=0 // pred_region
    _
  $region9: #{_lambda_.7} parent=0 // pred_fallthru
    _
  // Predicated region
  $region10: #{_lambda_.7} parent=0 // pred_check
    _
  $region11: #{_lambda_.7} parent=0 // pred_check_branch
    %24 = sbr.rel (0) target = $region13
  $region12: #{_lambda_.7} parent=0 // pred_region
    _
  $region13: #{_lambda_.7} parent=0 // pred_fallthru
    _
  // Predicated region
  $region14: #{_lambda_.7} parent=0 // pred_check
    _
  $region15: #{_lambda_.7} parent=0 // pred_check_branch
    %26 = sbr.rel (0) target = $region17
  $region16: #{_lambda_.7} parent=0 // pred_region
    _
  $region17: #{_lambda_.7} parent=0 // pred_fallthru
    _
  // Predicated region
  $region18: #{_lambda_.7} parent=0 // pred_check
    _
  $region19: #{_lambda_.7} parent=0 // pred_check_branch
    %28 = sbr.rel (0) target = $region21
  $region20: #{_lambda_.7} parent=0 // pred_region
    _
  $region21: #{_lambda_.7} parent=0 // pred_fallthru
    _
  // Predicated region
  $region22: #{_lambda_.7} parent=0 // pred_check
    _
  $region23: #{_lambda_.7} parent=0 // pred_check_branch
    %30 = sbr.rel (0) target = $region25
  $region24: #{_lambda_.7} parent=0 // pred_region
    _
  $region25: #{_lambda_.7} parent=0 // pred_fallthru
    _
  // Predicated region
  $region26: #{_lambda_.7} parent=0 // pred_check
    _
  $region27: #{_lambda_.7} parent=0 // pred_check_branch
    %32 = sbr.rel (0) target = $region29
  $region28: #{_lambda_.7} parent=0 // pred_region
    _
  $region29: #{_lambda_.7} parent=0 // pred_fallthru
    _
  // Predicated region
  $region30: #{_lambda_.7} parent=0 // pred_check
    _
  $region31: #{_lambda_.7} parent=0 // pred_check_branch
    %34 = sbr.rel (0) target = $region33
  $region32: #{_lambda_.7} parent=0 // pred_region
    _
  $region33: #{_lambda_.7} parent=0 // pred_fallthru
    _
  // Predicated region
  $region34: #{_lambda_.7} parent=0 // pred_check
    _
  $region35: #{_lambda_.7} parent=0 // pred_check_branch
    %36 = sbr.rel (0) target = $region37
  $region36: #{_lambda_.7} parent=0 // pred_region
    _
  $region37: #{_lambda_.7} parent=0 // pred_fallthru
    _
  // Predicated region
  $region38: #{_lambda_.7} parent=0 // pred_check
    _
  $region39: #{_lambda_.7} parent=0 // pred_check_branch
    %38 = sbr.rel (0) target = $region41
  $region40: #{_lambda_.7} parent=0 // pred_region
    _
  $region41: #{_lambda_.7} parent=0 // pred_fallthru
    _
  // Predicated region
  $region42: #{_lambda_.7} parent=0 // pred_check
    _
  $region43: #{_lambda_.7} parent=0 // pred_check_branch
    %40 = sbr.rel (0) target = $region45
  $region44: #{_lambda_.7} parent=0 // pred_region
    _
  $region45: #{_lambda_.7} parent=0 // pred_fallthru
    _
  // Predicated region
  $region46: #{_lambda_.7} parent=0 // pred_check
    _
  $region47: #{_lambda_.7} parent=0 // pred_check_branch
    %42 = sbr.rel (0) target = $region49
  $region48: #{_lambda_.7} parent=0 // pred_region
    _
  $region49: #{_lambda_.7} parent=0 // pred_fallthru
    _
  // Predicated region
  $region50: #{_lambda_.7} parent=0 // pred_check
    _
  $region51: #{_lambda_.7} parent=0 // pred_check_branch
    %44 = sbr.rel (0) target = $region53
  $region52: #{_lambda_.7} parent=0 // pred_region
    _
  $region53: #{_lambda_.7} parent=0 // pred_fallthru
    _
  // Predicated region
  $region54: #{_lambda_.7} parent=0 // pred_check
    _
  $region55: #{_lambda_.7} parent=0 // pred_check_branch
    %46 = sbr.rel (0) target = $region57
  $region56: #{_lambda_.7} parent=0 // pred_region
    _
  $region57: #{_lambda_.7} parent=0 // pred_fallthru
    _
  %v47 = vld [vmem:[%s0] sm:$0xff]
  %v48 = vld [vmem:[%s0 + $0x8] sm:$0xff]
  %v49 = vld [vmem:[%s1] sm:$0xff]
  %v50 = vld [vmem:[%s1 + $0x8] sm:$0xff]
  %v51 = vld [vmem:[%s3] sm:$0xff]
  %v52 = vld [vmem:[%s3 + $0x8] sm:$0xff]
  %v53 = vld [vmem:[%s3 + $0x10] sm:$0xff]
  %v54 = vld [vmem:[%s3 + $0x18] sm:$0xff]
  %v55 = vld [vmem:[%s2] sm:$0x3]
  %v56 = vsub.f32 1.0, %v55
  %v57 = vmul.f32 %v56, -1e+09
  %v58 = vld [vmem:[%s4] sm:$0x1]
  %v59 = vmul.f32 %v47, %v47
  %v60 = vmul.f32 %v48, %v48
  %vm61 = vcmask 261120
  %v62 = vsel %vm61, %v59, 0.0
  %63 = vadd.xlane.f32.xlu0 %v62
  %v64 = vpop.xlane.xlu0 %63
  %v65 = vsel %vm61, %v60, 0.0
  %66 = vadd.xlane.f32.xlu0 %v65
  %v67 = vpop.xlane.xlu0 %66
  %v68 = vrcp.pop 32.0
  %v69 = vmul.f32 %v64, %v68
  %v70 = vmul.f32 %v67, %v68
  %v71 = vadd.f32 %v69, 1e-06
  %v72 = vadd.f32 %v70, 1e-06
  %v73 = vrsqrt.pop %v71
  %v74 = vrsqrt.pop %v72
  %v75 = vmul.f32 %v47, %v73
  %v76 = vmul.f32 %v48, %v74
  %v78 = vlaneseq
  %v79 = vshrl.u32 %v78, 7
  %v80 = vsub.s32 0, %v79
  %v81 = vrot.slane %v58, %v80
  %v83 = vmul.f32 %v75, %v81
  %v84 = vmul.f32 %v76, %v81
  %v85 = vld [vmem:[%s5] sm:$0xff]
  %v86 = vld [vmem:[%s5 + $0x8] sm:$0xff]
  %v87 = vld [vmem:[%s5 + $0x10] sm:$0xff]
  %v88 = vld [vmem:[%s5 + $0x18] sm:$0xff]
  %v90 = vsel %vm61, %v83, 0
  %v93 = vsel %vm61, %v84, 0
  %95 = vmatprep.subr.mxu0 0.0
  %96 = vmatpush1.msra.mxu0 0.0
  %97 = vmatprep.subr.mxu0 0.0
  %98 = vmatpush1.msra.mxu0 0.0
  %99 = vmatprep.subr.mxu0 0.0
  %100 = vmatpush1.msra.mxu0 0.0
  %101 = vmatprep.subr.mxu0 0.0
  %102 = vmatpush1.msra.mxu0 0.0
  %103 = vmatprep.subr.mxu0 0.0
  %104 = vmatpush1.msra.mxu0 0.0
  %105 = vmatprep.subr.mxu0 0.0
  %106 = vmatpush1.msra.mxu0 0.0
  %107 = vmatprep.subr.mxu0 0.0
  %108 = vmatpush1.msra.mxu0 0.0
  %109 = vmatprep.subr.mxu0 0.0
  %110 = vmatpush1.msra.mxu0 0.0
  %111 = vmatprep.subr.mxu0 0.0
  %112 = vmatpush1.msra.mxu0 0.0
  %113 = vmatprep.subr.mxu0 0.0
  %114 = vmatpush1.msra.mxu0 0.0
  %115 = vmatprep.subr.mxu0 0.0
  %116 = vmatpush1.msra.mxu0 0.0
  %117 = vmatprep.subr.mxu0 0.0
  %118 = vmatpush1.msra.mxu0 0.0
  %119 = vmatprep.subr.mxu0 0.0
  %120 = vmatpush1.msra.mxu0 %v88
  %121 = vmatprep.subr.mxu0 0.0
  %122 = vmatpush1.msra.mxu0 %v87
  %123 = vmatprep.subr.mxu0 0.0
  %124 = vmatpush1.msra.mxu0 %v86
  %125 = vmatprep.subr.mxu0 0.0
  %126 = vmatpush1.msra.mxu0 %v85
  %127 = vmatprep.subr.mxu0 0.0
  %128 = vmatpush2.msra.mxu0 0.0
  %129 = vmatprep.subr.mxu0 0.0
  %130 = vmatpush2.msra.mxu0 0.0
  %131 = vmatprep.subr.mxu0 0.0
  %132 = vmatpush2.msra.mxu0 0.0
  %133 = vmatprep.subr.mxu0 0.0
  %134 = vmatpush2.msra.mxu0 0.0
  %135 = vmatprep.subr.mxu0 0.0
  %136 = vmatpush2.msra.mxu0 0.0
  %137 = vmatprep.subr.mxu0 0.0
  %138 = vmatpush2.msra.mxu0 0.0
  %139 = vmatprep.subr.mxu0 0.0
  %140 = vmatpush2.msra.mxu0 0.0
  %141 = vmatprep.subr.mxu0 0.0
  %142 = vmatpush2.msra.mxu0 0.0
  %143 = vmatprep.subr.mxu0 0.0
  %144 = vmatpush2.msra.mxu0 0.0
  %145 = vmatprep.subr.mxu0 0.0
  %146 = vmatpush2.msra.mxu0 0.0
  %147 = vmatprep.subr.mxu0 0.0
  %148 = vmatpush2.msra.mxu0 0.0
  %149 = vmatprep.subr.mxu0 0.0
  %150 = vmatpush2.msra.mxu0 0.0
  %151 = vmatprep.subr.mxu0 0.0
  %152 = vmatpush2.msra.mxu0 0.0
  %153 = vmatprep.subr.mxu0 0.0
  %154 = vmatpush2.msra.mxu0 0.0
  %155 = vmatprep.subr.mxu0 0.0
  %156 = vmatpush2.msra.mxu0 0.0
  %157 = vmatprep.subr.mxu0 0.0
  %158 = vmatpush2.msra.mxu0 0.0
  %159 = vmatprep.mubr.f32.mxu0 0.0
  %160 = vmatmul.mubr.f32.gmra.mxu0 %v90
  %v161 = vpop.f32.mrf.mxu0
  %v162 = vadd.f32 0.0, %v161
  %v163 = vpop.f32.mrf.mxu0
  %164 = vmatprep.mubr.f32.mxu0 0.0
  %165 = vmatmul.mubr.f32.gmra.mxu0 %v93
  %v166 = vpop.f32.mrf.mxu0
  %v167 = vadd.f32 0.0, %v166
  %v168 = vpop.f32.mrf.mxu0
  %169 = vdwg.mxu0
  %171 = vrot.lane.b32.xlu0 %v162, 96
  %v172 = vpop.permute.xlu0 %171
  %vm173 = vcmask 64512
  %v174 = vsel %vm173, %v162, 0
  %v176 = vsel %vm173, %v172, 0
  %178 = vmatprep.subr.mxu0 0.0
  %179 = vmatpush1.xpose.msra.mxu0 0.0
  %180 = vmatprep.subr.mxu0 0.0
  %181 = vmatpush1.xpose.msra.mxu0 0.0
  %182 = vmatprep.subr.mxu0 0.0
  %183 = vmatpush1.xpose.msra.mxu0 0.0
  %184 = vmatprep.subr.mxu0 0.0
  %185 = vmatpush1.xpose.msra.mxu0 0.0
  %186 = vmatprep.subr.mxu0 0.0
  %187 = vmatpush1.xpose.msra.mxu0 0.0
  %188 = vmatprep.subr.mxu0 0.0
  %189 = vmatpush1.xpose.msra.mxu0 0.0
  %190 = vmatprep.subr.mxu0 0.0
  %191 = vmatpush1.xpose.msra.mxu0 0.0
  %192 = vmatprep.subr.mxu0 0.0
  %193 = vmatpush1.xpose.msra.mxu0 0.0
  %194 = vmatprep.subr.mxu0 0.0
  %195 = vmatpush1.xpose.msra.mxu0 0.0
  %196 = vmatprep.subr.mxu0 0.0
  %197 = vmatpush1.xpose.msra.mxu0 0.0
  %198 = vmatprep.subr.mxu0 0.0
  %199 = vmatpush1.xpose.msra.mxu0 0.0
  %200 = vmatprep.subr.mxu0 0.0
  %201 = vmatpush1.xpose.msra.mxu0 0.0
  %202 = vmatprep.subr.mxu0 0.0
  %203 = vmatpush1.xpose.msra.mxu0 0.0
  %204 = vmatprep.subr.mxu0 0.0
  %205 = vmatpush1.xpose.msra.mxu0 0.0
  %206 = vmatprep.subr.mxu0 0.0
  %207 = vmatpush1.xpose.msra.mxu0 0.0
  %208 = vmatprep.subr.mxu0 0.0
  %209 = vmatpush1.xpose.msra.mxu0 %v176
  %210 = vmatprep.subr.mxu0 0.0
  %211 = vmatpush2.xpose.msra.mxu0 0.0
  %212 = vmatprep.subr.mxu0 0.0
  %213 = vmatpush2.xpose.msra.mxu0 0.0
  %214 = vmatprep.subr.mxu0 0.0
  %215 = vmatpush2.xpose.msra.mxu0 0.0
  %216 = vmatprep.subr.mxu0 0.0
  %217 = vmatpush2.xpose.msra.mxu0 0.0
  %218 = vmatprep.subr.mxu0 0.0
  %219 = vmatpush2.xpose.msra.mxu0 0.0
  %220 = vmatprep.subr.mxu0 0.0
  %221 = vmatpush2.xpose.msra.mxu0 0.0
  %222 = vmatprep.subr.mxu0 0.0
  %223 = vmatpush2.xpose.msra.mxu0 0.0
  %224 = vmatprep.subr.mxu0 0.0
  %225 = vmatpush2.xpose.msra.mxu0 0.0
  %226 = vmatprep.subr.mxu0 0.0
  %227 = vmatpush2.xpose.msra.mxu0 0.0
  %228 = vmatprep.subr.mxu0 0.0
  %229 = vmatpush2.xpose.msra.mxu0 0.0
  %230 = vmatprep.subr.mxu0 0.0
  %231 = vmatpush2.xpose.msra.mxu0 0.0
  %232 = vmatprep.subr.mxu0 0.0
  %233 = vmatpush2.xpose.msra.mxu0 0.0
  %234 = vmatprep.subr.mxu0 0.0
  %235 = vmatpush2.xpose.msra.mxu0 0.0
  %236 = vmatprep.subr.mxu0 0.0
  %237 = vmatpush2.xpose.msra.mxu0 0.0
  %238 = vmatprep.subr.mxu0 0.0
  %239 = vmatpush2.xpose.msra.mxu0 0.0
  %240 = vmatprep.subr.mxu0 0.0
  %241 = vmatpush2.xpose.msra.mxu0 0.0
  %242 = vmatprep.mubr.f32.mxu0 0.0
  %243 = vmatmul.mubr.f32.gmra.mxu0 %v174
  %v244 = vpop.f32.mrf.mxu0
  %v245 = vadd.f32 %v51, %v244
  %v246 = vpop.f32.mrf.mxu0
  %247 = vdwg.mxu0
  %v248 = vsel %vm173, %v245, -inf
  %249 = vmax.xlane.f32.xlu0 %v248
  %v250 = vpop.xlane.xlu0 %249
  %v251 = vsub.f32 %v245, %v250
  %v252 = vmul.f32 %v251, 1.442695
  %v253 = vpow.pop %v252
  %v254 = vsel %vm173, %v253, 0.0
  %255 = vadd.xlane.f32.xlu0 %v254
  %v256 = vpop.xlane.xlu0 %255
  %v257 = vrcp.pop %v256
  %v258 = vmul.f32 %v253, %v257
  %259 = vrot.lane.b32.xlu0 %v162, 64
  %v260 = vpop.permute.xlu0 %259
  %v263 = vsel %vm173, %v258, 0
  %265 = vmatprep.subr.mxu0 0.0
  %266 = vmatpush1.msra.mxu0 0.0
  %267 = vmatprep.subr.mxu0 0.0
  %268 = vmatpush1.msra.mxu0 0.0
  %269 = vmatprep.subr.mxu0 0.0
  %270 = vmatpush1.msra.mxu0 0.0
  %271 = vmatprep.subr.mxu0 0.0
  %272 = vmatpush1.msra.mxu0 0.0
  %273 = vmatprep.subr.mxu0 0.0
  %274 = vmatpush1.msra.mxu0 0.0
  %275 = vmatprep.subr.mxu0 0.0
  %276 = vmatpush1.msra.mxu0 0.0
  %277 = vmatprep.subr.mxu0 0.0
  %278 = vmatpush1.msra.mxu0 0.0
  %279 = vmatprep.subr.mxu0 0.0
  %280 = vmatpush1.msra.mxu0 0.0
  %281 = vmatprep.subr.mxu0 0.0
  %282 = vmatpush1.msra.mxu0 0.0
  %283 = vmatprep.subr.mxu0 0.0
  %284 = vmatpush1.msra.mxu0 0.0
  %285 = vmatprep.subr.mxu0 0.0
  %286 = vmatpush1.msra.mxu0 0.0
  %287 = vmatprep.subr.mxu0 0.0
  %288 = vmatpush1.msra.mxu0 0.0
  %289 = vmatprep.subr.mxu0 0.0
  %290 = vmatpush1.msra.mxu0 0.0
  %291 = vmatprep.subr.mxu0 0.0
  %292 = vmatpush1.msra.mxu0 0.0
  %293 = vmatprep.subr.mxu0 0.0
  %294 = vmatpush1.msra.mxu0 0.0
  %295 = vmatprep.subr.mxu0 0.0
  %296 = vmatpush1.msra.mxu0 %v260
  %297 = vmatprep.subr.mxu0 0.0
  %298 = vmatpush2.msra.mxu0 0.0
  %299 = vmatprep.subr.mxu0 0.0
  %300 = vmatpush2.msra.mxu0 0.0
  %301 = vmatprep.subr.mxu0 0.0
  %302 = vmatpush2.msra.mxu0 0.0
  %303 = vmatprep.subr.mxu0 0.0
  %304 = vmatpush2.msra.mxu0 0.0
  %305 = vmatprep.subr.mxu0 0.0
  %306 = vmatpush2.msra.mxu0 0.0
  %307 = vmatprep.subr.mxu0 0.0
  %308 = vmatpush2.msra.mxu0 0.0
  %309 = vmatprep.subr.mxu0 0.0
  %310 = vmatpush2.msra.mxu0 0.0
  %311 = vmatprep.subr.mxu0 0.0
  %312 = vmatpush2.msra.mxu0 0.0
  %313 = vmatprep.subr.mxu0 0.0
  %314 = vmatpush2.msra.mxu0 0.0
  %315 = vmatprep.subr.mxu0 0.0
  %316 = vmatpush2.msra.mxu0 0.0
  %317 = vmatprep.subr.mxu0 0.0
  %318 = vmatpush2.msra.mxu0 0.0
  %319 = vmatprep.subr.mxu0 0.0
  %320 = vmatpush2.msra.mxu0 0.0
  %321 = vmatprep.subr.mxu0 0.0
  %322 = vmatpush2.msra.mxu0 0.0
  %323 = vmatprep.subr.mxu0 0.0
  %324 = vmatpush2.msra.mxu0 0.0
  %325 = vmatprep.subr.mxu0 0.0
  %326 = vmatpush2.msra.mxu0 0.0
  %327 = vmatprep.subr.mxu0 0.0
  %328 = vmatpush2.msra.mxu0 0.0
  %329 = vmatprep.mubr.f32.mxu0 0.0
  %330 = vmatmul.mubr.f32.gmra.mxu0 %v263
  %v331 = vpop.f32.mrf.mxu0
  %v332 = vadd.f32 0.0, %v331
  %v333 = vpop.f32.mrf.mxu0
  %334 = vdwg.mxu0
  %335 = vrot.lane.b32.xlu0 %v162, 120
  %v336 = vpop.permute.xlu0 %335
  %337 = vrot.lane.b32.xlu0 %v162, 88
  %v338 = vpop.permute.xlu0 %337
  %v339 = vsel %vm173, %v336, 0
  %v341 = vsel %vm173, %v338, 0
  %343 = vmatprep.subr.mxu0 0.0
  %344 = vmatpush1.xpose.msra.mxu0 0.0
  %345 = vmatprep.subr.mxu0 0.0
  %346 = vmatpush1.xpose.msra.mxu0 0.0
  %347 = vmatprep.subr.mxu0 0.0
  %348 = vmatpush1.xpose.msra.mxu0 0.0
  %349 = vmatprep.subr.mxu0 0.0
  %350 = vmatpush1.xpose.msra.mxu0 0.0
  %351 = vmatprep.subr.mxu0 0.0
  %352 = vmatpush1.xpose.msra.mxu0 0.0
  %353 = vmatprep.subr.mxu0 0.0
  %354 = vmatpush1.xpose.msra.mxu0 0.0
  %355 = vmatprep.subr.mxu0 0.0
  %356 = vmatpush1.xpose.msra.mxu0 0.0
  %357 = vmatprep.subr.mxu0 0.0
  %358 = vmatpush1.xpose.msra.mxu0 0.0
  %359 = vmatprep.subr.mxu0 0.0
  %360 = vmatpush1.xpose.msra.mxu0 0.0
  %361 = vmatprep.subr.mxu0 0.0
  %362 = vmatpush1.xpose.msra.mxu0 0.0
  %363 = vmatprep.subr.mxu0 0.0
  %364 = vmatpush1.xpose.msra.mxu0 0.0
  %365 = vmatprep.subr.mxu0 0.0
  %366 = vmatpush1.xpose.msra.mxu0 0.0
  %367 = vmatprep.subr.mxu0 0.0
  %368 = vmatpush1.xpose.msra.mxu0 0.0
  %369 = vmatprep.subr.mxu0 0.0
  %370 = vmatpush1.xpose.msra.mxu0 0.0
  %371 = vmatprep.subr.mxu0 0.0
  %372 = vmatpush1.xpose.msra.mxu0 0.0
  %373 = vmatprep.subr.mxu0 0.0
  %374 = vmatpush1.xpose.msra.mxu0 %v341
  %375 = vmatprep.subr.mxu0 0.0
  %376 = vmatpush2.xpose.msra.mxu0 0.0
  %377 = vmatprep.subr.mxu0 0.0
  %378 = vmatpush2.xpose.msra.mxu0 0.0
  %379 = vmatprep.subr.mxu0 0.0
  %380 = vmatpush2.xpose.msra.mxu0 0.0
  %381 = vmatprep.subr.mxu0 0.0
  %382 = vmatpush2.xpose.msra.mxu0 0.0
  %383 = vmatprep.subr.mxu0 0.0
  %384 = vmatpush2.xpose.msra.mxu0 0.0
  %385 = vmatprep.subr.mxu0 0.0
  %386 = vmatpush2.xpose.msra.mxu0 0.0
  %387 = vmatprep.subr.mxu0 0.0
  %388 = vmatpush2.xpose.msra.mxu0 0.0
  %389 = vmatprep.subr.mxu0 0.0
  %390 = vmatpush2.xpose.msra.mxu0 0.0
  %391 = vmatprep.subr.mxu0 0.0
  %392 = vmatpush2.xpose.msra.mxu0 0.0
  %393 = vmatprep.subr.mxu0 0.0
  %394 = vmatpush2.xpose.msra.mxu0 0.0
  %395 = vmatprep.subr.mxu0 0.0
  %396 = vmatpush2.xpose.msra.mxu0 0.0
  %397 = vmatprep.subr.mxu0 0.0
  %398 = vmatpush2.xpose.msra.mxu0 0.0
  %399 = vmatprep.subr.mxu0 0.0
  %400 = vmatpush2.xpose.msra.mxu0 0.0
  %401 = vmatprep.subr.mxu0 0.0
  %402 = vmatpush2.xpose.msra.mxu0 0.0
  %403 = vmatprep.subr.mxu0 0.0
  %404 = vmatpush2.xpose.msra.mxu0 0.0
  %405 = vmatprep.subr.mxu0 0.0
  %406 = vmatpush2.xpose.msra.mxu0 0.0
  %407 = vmatprep.mubr.f32.mxu0 0.0
  %408 = vmatmul.mubr.f32.gmra.mxu0 %v339
  %v409 = vpop.f32.mrf.mxu0
  %v410 = vadd.f32 %v52, %v409
  %v411 = vpop.f32.mrf.mxu0
  %412 = vdwg.mxu0
  %v413 = vsel %vm173, %v410, -inf
  %414 = vmax.xlane.f32.xlu0 %v413
  %v415 = vpop.xlane.xlu0 %414
  %v416 = vsub.f32 %v410, %v415
  %v417 = vmul.f32 %v416, 1.442695
  %v418 = vpow.pop %v417
  %v419 = vsel %vm173, %v418, 0.0
  %420 = vadd.xlane.f32.xlu0 %v419
  %v421 = vpop.xlane.xlu0 %420
  %v422 = vrcp.pop %v421
  %v423 = vmul.f32 %v418, %v422
  %424 = vrot.lane.b32.xlu0 %v162, 56
  %v425 = vpop.permute.xlu0 %424
  %v428 = vsel %vm173, %v423, 0
  %430 = vmatprep.subr.mxu0 0.0
  %431 = vmatpush1.msra.mxu0 0.0
  %432 = vmatprep.subr.mxu0 0.0
  %433 = vmatpush1.msra.mxu0 0.0
  %434 = vmatprep.subr.mxu0 0.0
  %435 = vmatpush1.msra.mxu0 0.0
  %436 = vmatprep.subr.mxu0 0.0
  %437 = vmatpush1.msra.mxu0 0.0
  %438 = vmatprep.subr.mxu0 0.0
  %439 = vmatpush1.msra.mxu0 0.0
  %440 = vmatprep.subr.mxu0 0.0
  %441 = vmatpush1.msra.mxu0 0.0
  %442 = vmatprep.subr.mxu0 0.0
  %443 = vmatpush1.msra.mxu0 0.0
  %444 = vmatprep.subr.mxu0 0.0
  %445 = vmatpush1.msra.mxu0 0.0
  %446 = vmatprep.subr.mxu0 0.0
  %447 = vmatpush1.msra.mxu0 0.0
  %448 = vmatprep.subr.mxu0 0.0
  %449 = vmatpush1.msra.mxu0 0.0
  %450 = vmatprep.subr.mxu0 0.0
  %451 = vmatpush1.msra.mxu0 0.0
  %452 = vmatprep.subr.mxu0 0.0
  %453 = vmatpush1.msra.mxu0 0.0
  %454 = vmatprep.subr.mxu0 0.0
  %455 = vmatpush1.msra.mxu0 0.0
  %456 = vmatprep.subr.mxu0 0.0
  %457 = vmatpush1.msra.mxu0 0.0
  %458 = vmatprep.subr.mxu0 0.0
  %459 = vmatpush1.msra.mxu0 0.0
  %460 = vmatprep.subr.mxu0 0.0
  %461 = vmatpush1.msra.mxu0 %v425
  %462 = vmatprep.subr.mxu0 0.0
  %463 = vmatpush2.msra.mxu0 0.0
  %464 = vmatprep.subr.mxu0 0.0
  %465 = vmatpush2.msra.mxu0 0.0
  %466 = vmatprep.subr.mxu0 0.0
  %467 = vmatpush2.msra.mxu0 0.0
  %468 = vmatprep.subr.mxu0 0.0
  %469 = vmatpush2.msra.mxu0 0.0
  %470 = vmatprep.subr.mxu0 0.0
  %471 = vmatpush2.msra.mxu0 0.0
  %472 = vmatprep.subr.mxu0 0.0
  %473 = vmatpush2.msra.mxu0 0.0
  %474 = vmatprep.subr.mxu0 0.0
  %475 = vmatpush2.msra.mxu0 0.0
  %476 = vmatprep.subr.mxu0 0.0
  %477 = vmatpush2.msra.mxu0 0.0
  %478 = vmatprep.subr.mxu0 0.0
  %479 = vmatpush2.msra.mxu0 0.0
  %480 = vmatprep.subr.mxu0 0.0
  %481 = vmatpush2.msra.mxu0 0.0
  %482 = vmatprep.subr.mxu0 0.0
  %483 = vmatpush2.msra.mxu0 0.0
  %484 = vmatprep.subr.mxu0 0.0
  %485 = vmatpush2.msra.mxu0 0.0
  %486 = vmatprep.subr.mxu0 0.0
  %487 = vmatpush2.msra.mxu0 0.0
  %488 = vmatprep.subr.mxu0 0.0
  %489 = vmatpush2.msra.mxu0 0.0
  %490 = vmatprep.subr.mxu0 0.0
  %491 = vmatpush2.msra.mxu0 0.0
  %492 = vmatprep.subr.mxu0 0.0
  %493 = vmatpush2.msra.mxu0 0.0
  %494 = vmatprep.mubr.f32.mxu0 0.0
  %495 = vmatmul.mubr.f32.gmra.mxu0 %v428
  %v496 = vpop.f32.mrf.mxu0
  %v497 = vadd.f32 0.0, %v496
  %v498 = vpop.f32.mrf.mxu0
  %499 = vdwg.mxu0
  %500 = vrot.lane.b32.xlu0 %v162, 112
  %v501 = vpop.permute.xlu0 %500
  %502 = vrot.lane.b32.xlu0 %v162, 80
  %v503 = vpop.permute.xlu0 %502
  %v504 = vsel %vm173, %v501, 0
  %v506 = vsel %vm173, %v503, 0
  %508 = vmatprep.subr.mxu0 0.0
  %509 = vmatpush1.xpose.msra.mxu0 0.0
  %510 = vmatprep.subr.mxu0 0.0
  %511 = vmatpush1.xpose.msra.mxu0 0.0
  %512 = vmatprep.subr.mxu0 0.0
  %513 = vmatpush1.xpose.msra.mxu0 0.0
  %514 = vmatprep.subr.mxu0 0.0
  %515 = vmatpush1.xpose.msra.mxu0 0.0
  %516 = vmatprep.subr.mxu0 0.0
  %517 = vmatpush1.xpose.msra.mxu0 0.0
  %518 = vmatprep.subr.mxu0 0.0
  %519 = vmatpush1.xpose.msra.mxu0 0.0
  %520 = vmatprep.subr.mxu0 0.0
  %521 = vmatpush1.xpose.msra.mxu0 0.0
  %522 = vmatprep.subr.mxu0 0.0
  %523 = vmatpush1.xpose.msra.mxu0 0.0
  %524 = vmatprep.subr.mxu0 0.0
  %525 = vmatpush1.xpose.msra.mxu0 0.0
  %526 = vmatprep.subr.mxu0 0.0
  %527 = vmatpush1.xpose.msra.mxu0 0.0
  %528 = vmatprep.subr.mxu0 0.0
  %529 = vmatpush1.xpose.msra.mxu0 0.0
  %530 = vmatprep.subr.mxu0 0.0
  %531 = vmatpush1.xpose.msra.mxu0 0.0
  %532 = vmatprep.subr.mxu0 0.0
  %533 = vmatpush1.xpose.msra.mxu0 0.0
  %534 = vmatprep.subr.mxu0 0.0
  %535 = vmatpush1.xpose.msra.mxu0 0.0
  %536 = vmatprep.subr.mxu0 0.0
  %537 = vmatpush1.xpose.msra.mxu0 0.0
  %538 = vmatprep.subr.mxu0 0.0
  %539 = vmatpush1.xpose.msra.mxu0 %v506
  %540 = vmatprep.subr.mxu0 0.0
  %541 = vmatpush2.xpose.msra.mxu0 0.0
  %542 = vmatprep.subr.mxu0 0.0
  %543 = vmatpush2.xpose.msra.mxu0 0.0
  %544 = vmatprep.subr.mxu0 0.0
  %545 = vmatpush2.xpose.msra.mxu0 0.0
  %546 = vmatprep.subr.mxu0 0.0
  %547 = vmatpush2.xpose.msra.mxu0 0.0
  %548 = vmatprep.subr.mxu0 0.0
  %549 = vmatpush2.xpose.msra.mxu0 0.0
  %550 = vmatprep.subr.mxu0 0.0
  %551 = vmatpush2.xpose.msra.mxu0 0.0
  %552 = vmatprep.subr.mxu0 0.0
  %553 = vmatpush2.xpose.msra.mxu0 0.0
  %554 = vmatprep.subr.mxu0 0.0
  %555 = vmatpush2.xpose.msra.mxu0 0.0
  %556 = vmatprep.subr.mxu0 0.0
  %557 = vmatpush2.xpose.msra.mxu0 0.0
  %558 = vmatprep.subr.mxu0 0.0
  %559 = vmatpush2.xpose.msra.mxu0 0.0
  %560 = vmatprep.subr.mxu0 0.0
  %561 = vmatpush2.xpose.msra.mxu0 0.0
  %562 = vmatprep.subr.mxu0 0.0
  %563 = vmatpush2.xpose.msra.mxu0 0.0
  %564 = vmatprep.subr.mxu0 0.0
  %565 = vmatpush2.xpose.msra.mxu0 0.0
  %566 = vmatprep.subr.mxu0 0.0
  %567 = vmatpush2.xpose.msra.mxu0 0.0
  %568 = vmatprep.subr.mxu0 0.0
  %569 = vmatpush2.xpose.msra.mxu0 0.0
  %570 = vmatprep.subr.mxu0 0.0
  %571 = vmatpush2.xpose.msra.mxu0 0.0
  %572 = vmatprep.mubr.f32.mxu0 0.0
  %573 = vmatmul.mubr.f32.gmra.mxu0 %v504
  %v574 = vpop.f32.mrf.mxu0
  %v575 = vadd.f32 %v53, %v574
  %v576 = vpop.f32.mrf.mxu0
  %577 = vdwg.mxu0
  %v578 = vsel %vm173, %v575, -inf
  %579 = vmax.xlane.f32.xlu0 %v578
  %v580 = vpop.xlane.xlu0 %579
  %v581 = vsub.f32 %v575, %v580
  %v582 = vmul.f32 %v581, 1.442695
  %v583 = vpow.pop %v582
  %v584 = vsel %vm173, %v583, 0.0
  %585 = vadd.xlane.f32.xlu0 %v584
  %v586 = vpop.xlane.xlu0 %585
  %v587 = vrcp.pop %v586
  %v588 = vmul.f32 %v583, %v587
  %589 = vrot.lane.b32.xlu0 %v162, 48
  %v590 = vpop.permute.xlu0 %589
  %v593 = vsel %vm173, %v588, 0
  %595 = vmatprep.subr.mxu0 0.0
  %596 = vmatpush1.msra.mxu0 0.0
  %597 = vmatprep.subr.mxu0 0.0
  %598 = vmatpush1.msra.mxu0 0.0
  %599 = vmatprep.subr.mxu0 0.0
  %600 = vmatpush1.msra.mxu0 0.0
  %601 = vmatprep.subr.mxu0 0.0
  %602 = vmatpush1.msra.mxu0 0.0
  %603 = vmatprep.subr.mxu0 0.0
  %604 = vmatpush1.msra.mxu0 0.0
  %605 = vmatprep.subr.mxu0 0.0
  %606 = vmatpush1.msra.mxu0 0.0
  %607 = vmatprep.subr.mxu0 0.0
  %608 = vmatpush1.msra.mxu0 0.0
  %609 = vmatprep.subr.mxu0 0.0
  %610 = vmatpush1.msra.mxu0 0.0
  %611 = vmatprep.subr.mxu0 0.0
  %612 = vmatpush1.msra.mxu0 0.0
  %613 = vmatprep.subr.mxu0 0.0
  %614 = vmatpush1.msra.mxu0 0.0
  %615 = vmatprep.subr.mxu0 0.0
  %616 = vmatpush1.msra.mxu0 0.0
  %617 = vmatprep.subr.mxu0 0.0
  %618 = vmatpush1.msra.mxu0 0.0
  %619 = vmatprep.subr.mxu0 0.0
  %620 = vmatpush1.msra.mxu0 0.0
  %621 = vmatprep.subr.mxu0 0.0
  %622 = vmatpush1.msra.mxu0 0.0
  %623 = vmatprep.subr.mxu0 0.0
  %624 = vmatpush1.msra.mxu0 0.0
  %625 = vmatprep.subr.mxu0 0.0
  %626 = vmatpush1.msra.mxu0 %v590
  %627 = vmatprep.subr.mxu0 0.0
  %628 = vmatpush2.msra.mxu0 0.0
  %629 = vmatprep.subr.mxu0 0.0
  %630 = vmatpush2.msra.mxu0 0.0
  %631 = vmatprep.subr.mxu0 0.0
  %632 = vmatpush2.msra.mxu0 0.0
  %633 = vmatprep.subr.mxu0 0.0
  %634 = vmatpush2.msra.mxu0 0.0
  %635 = vmatprep.subr.mxu0 0.0
  %636 = vmatpush2.msra.mxu0 0.0
  %637 = vmatprep.subr.mxu0 0.0
  %638 = vmatpush2.msra.mxu0 0.0
  %639 = vmatprep.subr.mxu0 0.0
  %640 = vmatpush2.msra.mxu0 0.0
  %641 = vmatprep.subr.mxu0 0.0
  %642 = vmatpush2.msra.mxu0 0.0
  %643 = vmatprep.subr.mxu0 0.0
  %644 = vmatpush2.msra.mxu0 0.0
  %645 = vmatprep.subr.mxu0 0.0
  %646 = vmatpush2.msra.mxu0 0.0
  %647 = vmatprep.subr.mxu0 0.0
  %648 = vmatpush2.msra.mxu0 0.0
  %649 = vmatprep.subr.mxu0 0.0
  %650 = vmatpush2.msra.mxu0 0.0
  %651 = vmatprep.subr.mxu0 0.0
  %652 = vmatpush2.msra.mxu0 0.0
  %653 = vmatprep.subr.mxu0 0.0
  %654 = vmatpush2.msra.mxu0 0.0
  %655 = vmatprep.subr.mxu0 0.0
  %656 = vmatpush2.msra.mxu0 0.0
  %657 = vmatprep.subr.mxu0 0.0
  %658 = vmatpush2.msra.mxu0 0.0
  %659 = vmatprep.mubr.f32.mxu0 0.0
  %660 = vmatmul.mubr.f32.gmra.mxu0 %v593
  %v661 = vpop.f32.mrf.mxu0
  %v662 = vadd.f32 0.0, %v661
  %v663 = vpop.f32.mrf.mxu0
  %664 = vdwg.mxu0
  %665 = vrot.lane.b32.xlu0 %v162, 104
  %v666 = vpop.permute.xlu0 %665
  %667 = vrot.lane.b32.xlu0 %v162, 72
  %v668 = vpop.permute.xlu0 %667
  %v669 = vsel %vm173, %v666, 0
  %v671 = vsel %vm173, %v668, 0
  %673 = vmatprep.subr.mxu0 0.0
  %674 = vmatpush1.xpose.msra.mxu0 0.0
  %675 = vmatprep.subr.mxu0 0.0
  %676 = vmatpush1.xpose.msra.mxu0 0.0
  %677 = vmatprep.subr.mxu0 0.0
  %678 = vmatpush1.xpose.msra.mxu0 0.0
  %679 = vmatprep.subr.mxu0 0.0
  %680 = vmatpush1.xpose.msra.mxu0 0.0
  %681 = vmatprep.subr.mxu0 0.0
  %682 = vmatpush1.xpose.msra.mxu0 0.0
  %683 = vmatprep.subr.mxu0 0.0
  %684 = vmatpush1.xpose.msra.mxu0 0.0
  %685 = vmatprep.subr.mxu0 0.0
  %686 = vmatpush1.xpose.msra.mxu0 0.0
  %687 = vmatprep.subr.mxu0 0.0
  %688 = vmatpush1.xpose.msra.mxu0 0.0
  %689 = vmatprep.subr.mxu0 0.0
  %690 = vmatpush1.xpose.msra.mxu0 0.0
  %691 = vmatprep.subr.mxu0 0.0
  %692 = vmatpush1.xpose.msra.mxu0 0.0
  %693 = vmatprep.subr.mxu0 0.0
  %694 = vmatpush1.xpose.msra.mxu0 0.0
  %695 = vmatprep.subr.mxu0 0.0
  %696 = vmatpush1.xpose.msra.mxu0 0.0
  %697 = vmatprep.subr.mxu0 0.0
  %698 = vmatpush1.xpose.msra.mxu0 0.0
  %699 = vmatprep.subr.mxu0 0.0
  %700 = vmatpush1.xpose.msra.mxu0 0.0
  %701 = vmatprep.subr.mxu0 0.0
  %702 = vmatpush1.xpose.msra.mxu0 0.0
  %703 = vmatprep.subr.mxu0 0.0
  %704 = vmatpush1.xpose.msra.mxu0 %v671
  %705 = vmatprep.subr.mxu0 0.0
  %706 = vmatpush2.xpose.msra.mxu0 0.0
  %707 = vmatprep.subr.mxu0 0.0
  %708 = vmatpush2.xpose.msra.mxu0 0.0
  %709 = vmatprep.subr.mxu0 0.0
  %710 = vmatpush2.xpose.msra.mxu0 0.0
  %711 = vmatprep.subr.mxu0 0.0
  %712 = vmatpush2.xpose.msra.mxu0 0.0
  %713 = vmatprep.subr.mxu0 0.0
  %714 = vmatpush2.xpose.msra.mxu0 0.0
  %715 = vmatprep.subr.mxu0 0.0
  %716 = vmatpush2.xpose.msra.mxu0 0.0
  %717 = vmatprep.subr.mxu0 0.0
  %718 = vmatpush2.xpose.msra.mxu0 0.0
  %719 = vmatprep.subr.mxu0 0.0
  %720 = vmatpush2.xpose.msra.mxu0 0.0
  %721 = vmatprep.subr.mxu0 0.0
  %722 = vmatpush2.xpose.msra.mxu0 0.0
  %723 = vmatprep.subr.mxu0 0.0
  %724 = vmatpush2.xpose.msra.mxu0 0.0
  %725 = vmatprep.subr.mxu0 0.0
  %726 = vmatpush2.xpose.msra.mxu0 0.0
  %727 = vmatprep.subr.mxu0 0.0
  %728 = vmatpush2.xpose.msra.mxu0 0.0
  %729 = vmatprep.subr.mxu0 0.0
  %730 = vmatpush2.xpose.msra.mxu0 0.0
  %731 = vmatprep.subr.mxu0 0.0
  %732 = vmatpush2.xpose.msra.mxu0 0.0
  %733 = vmatprep.subr.mxu0 0.0
  %734 = vmatpush2.xpose.msra.mxu0 0.0
  %735 = vmatprep.subr.mxu0 0.0
  %736 = vmatpush2.xpose.msra.mxu0 0.0
  %737 = vmatprep.mubr.f32.mxu0 0.0
  %738 = vmatmul.mubr.f32.gmra.mxu0 %v669
  %v739 = vpop.f32.mrf.mxu0
  %v740 = vadd.f32 %v54, %v739
  %v741 = vpop.f32.mrf.mxu0
  %742 = vdwg.mxu0
  %v743 = vsel %vm173, %v740, -inf
  %744 = vmax.xlane.f32.xlu0 %v743
  %v745 = vpop.xlane.xlu0 %744
  %v746 = vsub.f32 %v740, %v745
  %v747 = vmul.f32 %v746, 1.442695
  %v748 = vpow.pop %v747
  %v749 = vsel %vm173, %v748, 0.0
  %750 = vadd.xlane.f32.xlu0 %v749
  %v751 = vpop.xlane.xlu0 %750
  %v752 = vrcp.pop %v751
  %v753 = vmul.f32 %v748, %v752
  %754 = vrot.lane.b32.xlu0 %v162, 40
  %v755 = vpop.permute.xlu0 %754
  %v758 = vsel %vm173, %v753, 0
  %760 = vmatprep.subr.mxu0 0.0
  %761 = vmatpush1.msra.mxu0 0.0
  %762 = vmatprep.subr.mxu0 0.0
  %763 = vmatpush1.msra.mxu0 0.0
  %764 = vmatprep.subr.mxu0 0.0
  %765 = vmatpush1.msra.mxu0 0.0
  %766 = vmatprep.subr.mxu0 0.0
  %767 = vmatpush1.msra.mxu0 0.0
  %768 = vmatprep.subr.mxu0 0.0
  %769 = vmatpush1.msra.mxu0 0.0
  %770 = vmatprep.subr.mxu0 0.0
  %771 = vmatpush1.msra.mxu0 0.0
  %772 = vmatprep.subr.mxu0 0.0
  %773 = vmatpush1.msra.mxu0 0.0
  %774 = vmatprep.subr.mxu0 0.0
  %775 = vmatpush1.msra.mxu0 0.0
  %776 = vmatprep.subr.mxu0 0.0
  %777 = vmatpush1.msra.mxu0 0.0
  %778 = vmatprep.subr.mxu0 0.0
  %779 = vmatpush1.msra.mxu0 0.0
  %780 = vmatprep.subr.mxu0 0.0
  %781 = vmatpush1.msra.mxu0 0.0
  %782 = vmatprep.subr.mxu0 0.0
  %783 = vmatpush1.msra.mxu0 0.0
  %784 = vmatprep.subr.mxu0 0.0
  %785 = vmatpush1.msra.mxu0 0.0
  %786 = vmatprep.subr.mxu0 0.0
  %787 = vmatpush1.msra.mxu0 0.0
  %788 = vmatprep.subr.mxu0 0.0
  %789 = vmatpush1.msra.mxu0 0.0
  %790 = vmatprep.subr.mxu0 0.0
  %791 = vmatpush1.msra.mxu0 %v755
  %792 = vmatprep.subr.mxu0 0.0
  %793 = vmatpush2.msra.mxu0 0.0
  %794 = vmatprep.subr.mxu0 0.0
  %795 = vmatpush2.msra.mxu0 0.0
  %796 = vmatprep.subr.mxu0 0.0
  %797 = vmatpush2.msra.mxu0 0.0
  %798 = vmatprep.subr.mxu0 0.0
  %799 = vmatpush2.msra.mxu0 0.0
  %800 = vmatprep.subr.mxu0 0.0
  %801 = vmatpush2.msra.mxu0 0.0
  %802 = vmatprep.subr.mxu0 0.0
  %803 = vmatpush2.msra.mxu0 0.0
  %804 = vmatprep.subr.mxu0 0.0
  %805 = vmatpush2.msra.mxu0 0.0
  %806 = vmatprep.subr.mxu0 0.0
  %807 = vmatpush2.msra.mxu0 0.0
  %808 = vmatprep.subr.mxu0 0.0
  %809 = vmatpush2.msra.mxu0 0.0
  %810 = vmatprep.subr.mxu0 0.0
  %811 = vmatpush2.msra.mxu0 0.0
  %812 = vmatprep.subr.mxu0 0.0
  %813 = vmatpush2.msra.mxu0 0.0
  %814 = vmatprep.subr.mxu0 0.0
  %815 = vmatpush2.msra.mxu0 0.0
  %816 = vmatprep.subr.mxu0 0.0
  %817 = vmatpush2.msra.mxu0 0.0
  %818 = vmatprep.subr.mxu0 0.0
  %819 = vmatpush2.msra.mxu0 0.0
  %820 = vmatprep.subr.mxu0 0.0
  %821 = vmatpush2.msra.mxu0 0.0
  %822 = vmatprep.subr.mxu0 0.0
  %823 = vmatpush2.msra.mxu0 0.0
  %824 = vmatprep.mubr.f32.mxu0 0.0
  %825 = vmatmul.mubr.f32.gmra.mxu0 %v758
  %v826 = vpop.f32.mrf.mxu0
  %v827 = vadd.f32 0.0, %v826
  %v828 = vpop.f32.mrf.mxu0
  %829 = vdwg.mxu0
  %831 = vrot.lane.b32.xlu0 %v497, 8
  %v832 = vpop.permute.xlu0 %831
  %835 = vrot.lane.b32.xlu0 %v662, 16
  %v836 = vpop.permute.xlu0 %835
  %839 = vrot.lane.b32.xlu0 %v827, 24
  %v840 = vpop.permute.xlu0 %839
  %v842 = vsel %vm173, %v332, %v832
  %vm843 = vcmask 130048
  %v844 = vsel %vm843, %v842, %v836
  %vm845 = vcmask 195584
  %v846 = vsel %vm845, %v844, %v840
  %848 = vrot.lane.b32.xlu0 %v167, 96
  %v849 = vpop.permute.xlu0 %848
  %v850 = vsel %vm173, %v167, 0
  %v852 = vsel %vm173, %v849, 0
  %854 = vmatprep.subr.mxu0 0.0
  %855 = vmatpush1.xpose.msra.mxu0 0.0
  %856 = vmatprep.subr.mxu0 0.0
  %857 = vmatpush1.xpose.msra.mxu0 0.0
  %858 = vmatprep.subr.mxu0 0.0
  %859 = vmatpush1.xpose.msra.mxu0 0.0
  %860 = vmatprep.subr.mxu0 0.0
  %861 = vmatpush1.xpose.msra.mxu0 0.0
  %862 = vmatprep.subr.mxu0 0.0
  %863 = vmatpush1.xpose.msra.mxu0 0.0
  %864 = vmatprep.subr.mxu0 0.0
  %865 = vmatpush1.xpose.msra.mxu0 0.0
  %866 = vmatprep.subr.mxu0 0.0
  %867 = vmatpush1.xpose.msra.mxu0 0.0
  %868 = vmatprep.subr.mxu0 0.0
  %869 = vmatpush1.xpose.msra.mxu0 0.0
  %870 = vmatprep.subr.mxu0 0.0
  %871 = vmatpush1.xpose.msra.mxu0 0.0
  %872 = vmatprep.subr.mxu0 0.0
  %873 = vmatpush1.xpose.msra.mxu0 0.0
  %874 = vmatprep.subr.mxu0 0.0
  %875 = vmatpush1.xpose.msra.mxu0 0.0
  %876 = vmatprep.subr.mxu0 0.0
  %877 = vmatpush1.xpose.msra.mxu0 0.0
  %878 = vmatprep.subr.mxu0 0.0
  %879 = vmatpush1.xpose.msra.mxu0 0.0
  %880 = vmatprep.subr.mxu0 0.0
  %881 = vmatpush1.xpose.msra.mxu0 0.0
  %882 = vmatprep.subr.mxu0 0.0
  %883 = vmatpush1.xpose.msra.mxu0 0.0
  %884 = vmatprep.subr.mxu0 0.0
  %885 = vmatpush1.xpose.msra.mxu0 %v852
  %886 = vmatprep.subr.mxu0 0.0
  %887 = vmatpush2.xpose.msra.mxu0 0.0
  %888 = vmatprep.subr.mxu0 0.0
  %889 = vmatpush2.xpose.msra.mxu0 0.0
  %890 = vmatprep.subr.mxu0 0.0
  %891 = vmatpush2.xpose.msra.mxu0 0.0
  %892 = vmatprep.subr.mxu0 0.0
  %893 = vmatpush2.xpose.msra.mxu0 0.0
  %894 = vmatprep.subr.mxu0 0.0
  %895 = vmatpush2.xpose.msra.mxu0 0.0
  %896 = vmatprep.subr.mxu0 0.0
  %897 = vmatpush2.xpose.msra.mxu0 0.0
  %898 = vmatprep.subr.mxu0 0.0
  %899 = vmatpush2.xpose.msra.mxu0 0.0
  %900 = vmatprep.subr.mxu0 0.0
  %901 = vmatpush2.xpose.msra.mxu0 0.0
  %902 = vmatprep.subr.mxu0 0.0
  %903 = vmatpush2.xpose.msra.mxu0 0.0
  %904 = vmatprep.subr.mxu0 0.0
  %905 = vmatpush2.xpose.msra.mxu0 0.0
  %906 = vmatprep.subr.mxu0 0.0
  %907 = vmatpush2.xpose.msra.mxu0 0.0
  %908 = vmatprep.subr.mxu0 0.0
  %909 = vmatpush2.xpose.msra.mxu0 0.0
  %910 = vmatprep.subr.mxu0 0.0
  %911 = vmatpush2.xpose.msra.mxu0 0.0
  %912 = vmatprep.subr.mxu0 0.0
  %913 = vmatpush2.xpose.msra.mxu0 0.0
  %914 = vmatprep.subr.mxu0 0.0
  %915 = vmatpush2.xpose.msra.mxu0 0.0
  %916 = vmatprep.subr.mxu0 0.0
  %917 = vmatpush2.xpose.msra.mxu0 0.0
  %918 = vmatprep.mubr.f32.mxu0 0.0
  %919 = vmatmul.mubr.f32.gmra.mxu0 %v850
  %v920 = vpop.f32.mrf.mxu0
  %v921 = vadd.f32 %v51, %v920
  %v922 = vpop.f32.mrf.mxu0
  %923 = vdwg.mxu0
  %v924 = vsel %vm173, %v921, -inf
  %925 = vmax.xlane.f32.xlu0 %v924
  %v926 = vpop.xlane.xlu0 %925
  %v927 = vsub.f32 %v921, %v926
  %v928 = vmul.f32 %v927, 1.442695
  %v929 = vpow.pop %v928
  %v930 = vsel %vm173, %v929, 0.0
  %931 = vadd.xlane.f32.xlu0 %v930
  %v932 = vpop.xlane.xlu0 %931
  %v933 = vrcp.pop %v932
  %v934 = vmul.f32 %v929, %v933
  %935 = vrot.lane.b32.xlu0 %v167, 64
  %v936 = vpop.permute.xlu0 %935
  %v939 = vsel %vm173, %v934, 0
  %941 = vmatprep.subr.mxu0 0.0
  %942 = vmatpush1.msra.mxu0 0.0
  %943 = vmatprep.subr.mxu0 0.0
  %944 = vmatpush1.msra.mxu0 0.0
  %945 = vmatprep.subr.mxu0 0.0
  %946 = vmatpush1.msra.mxu0 0.0
  %947 = vmatprep.subr.mxu0 0.0
  %948 = vmatpush1.msra.mxu0 0.0
  %949 = vmatprep.subr.mxu0 0.0
  %950 = vmatpush1.msra.mxu0 0.0
  %951 = vmatprep.subr.mxu0 0.0
  %952 = vmatpush1.msra.mxu0 0.0
  %953 = vmatprep.subr.mxu0 0.0
  %954 = vmatpush1.msra.mxu0 0.0
  %955 = vmatprep.subr.mxu0 0.0
  %956 = vmatpush1.msra.mxu0 0.0
  %957 = vmatprep.subr.mxu0 0.0
  %958 = vmatpush1.msra.mxu0 0.0
  %959 = vmatprep.subr.mxu0 0.0
  %960 = vmatpush1.msra.mxu0 0.0
  %961 = vmatprep.subr.mxu0 0.0
  %962 = vmatpush1.msra.mxu0 0.0
  %963 = vmatprep.subr.mxu0 0.0
  %964 = vmatpush1.msra.mxu0 0.0
  %965 = vmatprep.subr.mxu0 0.0
  %966 = vmatpush1.msra.mxu0 0.0
  %967 = vmatprep.subr.mxu0 0.0
  %968 = vmatpush1.msra.mxu0 0.0
  %969 = vmatprep.subr.mxu0 0.0
  %970 = vmatpush1.msra.mxu0 0.0
  %971 = vmatprep.subr.mxu0 0.0
  %972 = vmatpush1.msra.mxu0 %v936
  %973 = vmatprep.subr.mxu0 0.0
  %974 = vmatpush2.msra.mxu0 0.0
  %975 = vmatprep.subr.mxu0 0.0
  %976 = vmatpush2.msra.mxu0 0.0
  %977 = vmatprep.subr.mxu0 0.0
  %978 = vmatpush2.msra.mxu0 0.0
  %979 = vmatprep.subr.mxu0 0.0
  %980 = vmatpush2.msra.mxu0 0.0
  %981 = vmatprep.subr.mxu0 0.0
  %982 = vmatpush2.msra.mxu0 0.0
  %983 = vmatprep.subr.mxu0 0.0
  %984 = vmatpush2.msra.mxu0 0.0
  %985 = vmatprep.subr.mxu0 0.0
  %986 = vmatpush2.msra.mxu0 0.0
  %987 = vmatprep.subr.mxu0 0.0
  %988 = vmatpush2.msra.mxu0 0.0
  %989 = vmatprep.subr.mxu0 0.0
  %990 = vmatpush2.msra.mxu0 0.0
  %991 = vmatprep.subr.mxu0 0.0
  %992 = vmatpush2.msra.mxu0 0.0
  %993 = vmatprep.subr.mxu0 0.0
  %994 = vmatpush2.msra.mxu0 0.0
  %995 = vmatprep.subr.mxu0 0.0
  %996 = vmatpush2.msra.mxu0 0.0
  %997 = vmatprep.subr.mxu0 0.0
  %998 = vmatpush2.msra.mxu0 0.0
  %999 = vmatprep.subr.mxu0 0.0
  %1000 = vmatpush2.msra.mxu0 0.0
  %1001 = vmatprep.subr.mxu0 0.0
  %1002 = vmatpush2.msra.mxu0 0.0
  %1003 = vmatprep.subr.mxu0 0.0
  %1004 = vmatpush2.msra.mxu0 0.0
  %1005 = vmatprep.mubr.f32.mxu0 0.0
  %1006 = vmatmul.mubr.f32.gmra.mxu0 %v939
  %v1007 = vpop.f32.mrf.mxu0
  %v1008 = vadd.f32 0.0, %v1007
  %v1009 = vpop.f32.mrf.mxu0
  %1010 = vdwg.mxu0
  %1011 = vrot.lane.b32.xlu0 %v167, 120
  %v1012 = vpop.permute.xlu0 %1011
  %1013 = vrot.lane.b32.xlu0 %v167, 88
  %v1014 = vpop.permute.xlu0 %1013
  %v1015 = vsel %vm173, %v1012, 0
  %v1017 = vsel %vm173, %v1014, 0
  %1019 = vmatprep.subr.mxu0 0.0
  %1020 = vmatpush1.xpose.msra.mxu0 0.0
  %1021 = vmatprep.subr.mxu0 0.0
  %1022 = vmatpush1.xpose.msra.mxu0 0.0
  %1023 = vmatprep.subr.mxu0 0.0
  %1024 = vmatpush1.xpose.msra.mxu0 0.0
  %1025 = vmatprep.subr.mxu0 0.0
  %1026 = vmatpush1.xpose.msra.mxu0 0.0
  %1027 = vmatprep.subr.mxu0 0.0
  %1028 = vmatpush1.xpose.msra.mxu0 0.0
  %1029 = vmatprep.subr.mxu0 0.0
  %1030 = vmatpush1.xpose.msra.mxu0 0.0
  %1031 = vmatprep.subr.mxu0 0.0
  %1032 = vmatpush1.xpose.msra.mxu0 0.0
  %1033 = vmatprep.subr.mxu0 0.0
  %1034 = vmatpush1.xpose.msra.mxu0 0.0
  %1035 = vmatprep.subr.mxu0 0.0
  %1036 = vmatpush1.xpose.msra.mxu0 0.0
  %1037 = vmatprep.subr.mxu0 0.0
  %1038 = vmatpush1.xpose.msra.mxu0 0.0
  %1039 = vmatprep.subr.mxu0 0.0
  %1040 = vmatpush1.xpose.msra.mxu0 0.0
  %1041 = vmatprep.subr.mxu0 0.0
  %1042 = vmatpush1.xpose.msra.mxu0 0.0
  %1043 = vmatprep.subr.mxu0 0.0
  %1044 = vmatpush1.xpose.msra.mxu0 0.0
  %1045 = vmatprep.subr.mxu0 0.0
  %1046 = vmatpush1.xpose.msra.mxu0 0.0
  %1047 = vmatprep.subr.mxu0 0.0
  %1048 = vmatpush1.xpose.msra.mxu0 0.0
  %1049 = vmatprep.subr.mxu0 0.0
  %1050 = vmatpush1.xpose.msra.mxu0 %v1017
  %1051 = vmatprep.subr.mxu0 0.0
  %1052 = vmatpush2.xpose.msra.mxu0 0.0
  %1053 = vmatprep.subr.mxu0 0.0
  %1054 = vmatpush2.xpose.msra.mxu0 0.0
  %1055 = vmatprep.subr.mxu0 0.0
  %1056 = vmatpush2.xpose.msra.mxu0 0.0
  %1057 = vmatprep.subr.mxu0 0.0
  %1058 = vmatpush2.xpose.msra.mxu0 0.0
  %1059 = vmatprep.subr.mxu0 0.0
  %1060 = vmatpush2.xpose.msra.mxu0 0.0
  %1061 = vmatprep.subr.mxu0 0.0
  %1062 = vmatpush2.xpose.msra.mxu0 0.0
  %1063 = vmatprep.subr.mxu0 0.0
  %1064 = vmatpush2.xpose.msra.mxu0 0.0
  %1065 = vmatprep.subr.mxu0 0.0
  %1066 = vmatpush2.xpose.msra.mxu0 0.0
  %1067 = vmatprep.subr.mxu0 0.0
  %1068 = vmatpush2.xpose.msra.mxu0 0.0
  %1069 = vmatprep.subr.mxu0 0.0
  %1070 = vmatpush2.xpose.msra.mxu0 0.0
  %1071 = vmatprep.subr.mxu0 0.0
  %1072 = vmatpush2.xpose.msra.mxu0 0.0
  %1073 = vmatprep.subr.mxu0 0.0
  %1074 = vmatpush2.xpose.msra.mxu0 0.0
  %1075 = vmatprep.subr.mxu0 0.0
  %1076 = vmatpush2.xpose.msra.mxu0 0.0
  %1077 = vmatprep.subr.mxu0 0.0
  %1078 = vmatpush2.xpose.msra.mxu0 0.0
  %1079 = vmatprep.subr.mxu0 0.0
  %1080 = vmatpush2.xpose.msra.mxu0 0.0
  %1081 = vmatprep.subr.mxu0 0.0
  %1082 = vmatpush2.xpose.msra.mxu0 0.0
  %1083 = vmatprep.mubr.f32.mxu0 0.0
  %1084 = vmatmul.mubr.f32.gmra.mxu0 %v1015
  %v1085 = vpop.f32.mrf.mxu0
  %v1086 = vadd.f32 %v52, %v1085
  %v1087 = vpop.f32.mrf.mxu0
  %1088 = vdwg.mxu0
  %v1089 = vsel %vm173, %v1086, -inf
  %1090 = vmax.xlane.f32.xlu0 %v1089
  %v1091 = vpop.xlane.xlu0 %1090
  %v1092 = vsub.f32 %v1086, %v1091
  %v1093 = vmul.f32 %v1092, 1.442695
  %v1094 = vpow.pop %v1093
  %v1095 = vsel %vm173, %v1094, 0.0
  %1096 = vadd.xlane.f32.xlu0 %v1095
  %v1097 = vpop.xlane.xlu0 %1096
  %v1098 = vrcp.pop %v1097
  %v1099 = vmul.f32 %v1094, %v1098
  %1100 = vrot.lane.b32.xlu0 %v167, 56
  %v1101 = vpop.permute.xlu0 %1100
  %v1104 = vsel %vm173, %v1099, 0
  %1106 = vmatprep.subr.mxu0 0.0
  %1107 = vmatpush1.msra.mxu0 0.0
  %1108 = vmatprep.subr.mxu0 0.0
  %1109 = vmatpush1.msra.mxu0 0.0
  %1110 = vmatprep.subr.mxu0 0.0
  %1111 = vmatpush1.msra.mxu0 0.0
  %1112 = vmatprep.subr.mxu0 0.0
  %1113 = vmatpush1.msra.mxu0 0.0
  %1114 = vmatprep.subr.mxu0 0.0
  %1115 = vmatpush1.msra.mxu0 0.0
  %1116 = vmatprep.subr.mxu0 0.0
  %1117 = vmatpush1.msra.mxu0 0.0
  %1118 = vmatprep.subr.mxu0 0.0
  %1119 = vmatpush1.msra.mxu0 0.0
  %1120 = vmatprep.subr.mxu0 0.0
  %1121 = vmatpush1.msra.mxu0 0.0
  %1122 = vmatprep.subr.mxu0 0.0
  %1123 = vmatpush1.msra.mxu0 0.0
  %1124 = vmatprep.subr.mxu0 0.0
  %1125 = vmatpush1.msra.mxu0 0.0
  %1126 = vmatprep.subr.mxu0 0.0
  %1127 = vmatpush1.msra.mxu0 0.0
  %1128 = vmatprep.subr.mxu0 0.0
  %1129 = vmatpush1.msra.mxu0 0.0
  %1130 = vmatprep.subr.mxu0 0.0
  %1131 = vmatpush1.msra.mxu0 0.0
  %1132 = vmatprep.subr.mxu0 0.0
  %1133 = vmatpush1.msra.mxu0 0.0
  %1134 = vmatprep.subr.mxu0 0.0
  %1135 = vmatpush1.msra.mxu0 0.0
  %1136 = vmatprep.subr.mxu0 0.0
  %1137 = vmatpush1.msra.mxu0 %v1101
  %1138 = vmatprep.subr.mxu0 0.0
  %1139 = vmatpush2.msra.mxu0 0.0
  %1140 = vmatprep.subr.mxu0 0.0
  %1141 = vmatpush2.msra.mxu0 0.0
  %1142 = vmatprep.subr.mxu0 0.0
  %1143 = vmatpush2.msra.mxu0 0.0
  %1144 = vmatprep.subr.mxu0 0.0
  %1145 = vmatpush2.msra.mxu0 0.0
  %1146 = vmatprep.subr.mxu0 0.0
  %1147 = vmatpush2.msra.mxu0 0.0
  %1148 = vmatprep.subr.mxu0 0.0
  %1149 = vmatpush2.msra.mxu0 0.0
  %1150 = vmatprep.subr.mxu0 0.0
  %1151 = vmatpush2.msra.mxu0 0.0
  %1152 = vmatprep.subr.mxu0 0.0
  %1153 = vmatpush2.msra.mxu0 0.0
  %1154 = vmatprep.subr.mxu0 0.0
  %1155 = vmatpush2.msra.mxu0 0.0
  %1156 = vmatprep.subr.mxu0 0.0
  %1157 = vmatpush2.msra.mxu0 0.0
  %1158 = vmatprep.subr.mxu0 0.0
  %1159 = vmatpush2.msra.mxu0 0.0
  %1160 = vmatprep.subr.mxu0 0.0
  %1161 = vmatpush2.msra.mxu0 0.0
  %1162 = vmatprep.subr.mxu0 0.0
  %1163 = vmatpush2.msra.mxu0 0.0
  %1164 = vmatprep.subr.mxu0 0.0
  %1165 = vmatpush2.msra.mxu0 0.0
  %1166 = vmatprep.subr.mxu0 0.0
  %1167 = vmatpush2.msra.mxu0 0.0
  %1168 = vmatprep.subr.mxu0 0.0
  %1169 = vmatpush2.msra.mxu0 0.0
  %1170 = vmatprep.mubr.f32.mxu0 0.0
  %1171 = vmatmul.mubr.f32.gmra.mxu0 %v1104
  %v1172 = vpop.f32.mrf.mxu0
  %v1173 = vadd.f32 0.0, %v1172
  %v1174 = vpop.f32.mrf.mxu0
  %1175 = vdwg.mxu0
  %1176 = vrot.lane.b32.xlu0 %v167, 112
  %v1177 = vpop.permute.xlu0 %1176
  %1178 = vrot.lane.b32.xlu0 %v167, 80
  %v1179 = vpop.permute.xlu0 %1178
  %v1180 = vsel %vm173, %v1177, 0
  %v1182 = vsel %vm173, %v1179, 0
  %1184 = vmatprep.subr.mxu0 0.0
  %1185 = vmatpush1.xpose.msra.mxu0 0.0
  %1186 = vmatprep.subr.mxu0 0.0
  %1187 = vmatpush1.xpose.msra.mxu0 0.0
  %1188 = vmatprep.subr.mxu0 0.0
  %1189 = vmatpush1.xpose.msra.mxu0 0.0
  %1190 = vmatprep.subr.mxu0 0.0
  %1191 = vmatpush1.xpose.msra.mxu0 0.0
  %1192 = vmatprep.subr.mxu0 0.0
  %1193 = vmatpush1.xpose.msra.mxu0 0.0
  %1194 = vmatprep.subr.mxu0 0.0
  %1195 = vmatpush1.xpose.msra.mxu0 0.0
  %1196 = vmatprep.subr.mxu0 0.0
  %1197 = vmatpush1.xpose.msra.mxu0 0.0
  %1198 = vmatprep.subr.mxu0 0.0
  %1199 = vmatpush1.xpose.msra.mxu0 0.0
  %1200 = vmatprep.subr.mxu0 0.0
  %1201 = vmatpush1.xpose.msra.mxu0 0.0
  %1202 = vmatprep.subr.mxu0 0.0
  %1203 = vmatpush1.xpose.msra.mxu0 0.0
  %1204 = vmatprep.subr.mxu0 0.0
  %1205 = vmatpush1.xpose.msra.mxu0 0.0
  %1206 = vmatprep.subr.mxu0 0.0
  %1207 = vmatpush1.xpose.msra.mxu0 0.0
  %1208 = vmatprep.subr.mxu0 0.0
  %1209 = vmatpush1.xpose.msra.mxu0 0.0
  %1210 = vmatprep.subr.mxu0 0.0
  %1211 = vmatpush1.xpose.msra.mxu0 0.0
  %1212 = vmatprep.subr.mxu0 0.0
  %1213 = vmatpush1.xpose.msra.mxu0 0.0
  %1214 = vmatprep.subr.mxu0 0.0
  %1215 = vmatpush1.xpose.msra.mxu0 %v1182
  %1216 = vmatprep.subr.mxu0 0.0
  %1217 = vmatpush2.xpose.msra.mxu0 0.0
  %1218 = vmatprep.subr.mxu0 0.0
  %1219 = vmatpush2.xpose.msra.mxu0 0.0
  %1220 = vmatprep.subr.mxu0 0.0
  %1221 = vmatpush2.xpose.msra.mxu0 0.0
  %1222 = vmatprep.subr.mxu0 0.0
  %1223 = vmatpush2.xpose.msra.mxu0 0.0
  %1224 = vmatprep.subr.mxu0 0.0
  %1225 = vmatpush2.xpose.msra.mxu0 0.0
  %1226 = vmatprep.subr.mxu0 0.0
  %1227 = vmatpush2.xpose.msra.mxu0 0.0
  %1228 = vmatprep.subr.mxu0 0.0
  %1229 = vmatpush2.xpose.msra.mxu0 0.0
  %1230 = vmatprep.subr.mxu0 0.0
  %1231 = vmatpush2.xpose.msra.mxu0 0.0
  %1232 = vmatprep.subr.mxu0 0.0
  %1233 = vmatpush2.xpose.msra.mxu0 0.0
  %1234 = vmatprep.subr.mxu0 0.0
  %1235 = vmatpush2.xpose.msra.mxu0 0.0
  %1236 = vmatprep.subr.mxu0 0.0
  %1237 = vmatpush2.xpose.msra.mxu0 0.0
  %1238 = vmatprep.subr.mxu0 0.0
  %1239 = vmatpush2.xpose.msra.mxu0 0.0
  %1240 = vmatprep.subr.mxu0 0.0
  %1241 = vmatpush2.xpose.msra.mxu0 0.0
  %1242 = vmatprep.subr.mxu0 0.0
  %1243 = vmatpush2.xpose.msra.mxu0 0.0
  %1244 = vmatprep.subr.mxu0 0.0
  %1245 = vmatpush2.xpose.msra.mxu0 0.0
  %1246 = vmatprep.subr.mxu0 0.0
  %1247 = vmatpush2.xpose.msra.mxu0 0.0
  %1248 = vmatprep.mubr.f32.mxu0 0.0
  %1249 = vmatmul.mubr.f32.gmra.mxu0 %v1180
  %v1250 = vpop.f32.mrf.mxu0
  %v1251 = vadd.f32 %v53, %v1250
  %v1252 = vpop.f32.mrf.mxu0
  %1253 = vdwg.mxu0
  %v1254 = vsel %vm173, %v1251, -inf
  %1255 = vmax.xlane.f32.xlu0 %v1254
  %v1256 = vpop.xlane.xlu0 %1255
  %v1257 = vsub.f32 %v1251, %v1256
  %v1258 = vmul.f32 %v1257, 1.442695
  %v1259 = vpow.pop %v1258
  %v1260 = vsel %vm173, %v1259, 0.0
  %1261 = vadd.xlane.f32.xlu0 %v1260
  %v1262 = vpop.xlane.xlu0 %1261
  %v1263 = vrcp.pop %v1262
  %v1264 = vmul.f32 %v1259, %v1263
  %1265 = vrot.lane.b32.xlu0 %v167, 48
  %v1266 = vpop.permute.xlu0 %1265
  %v1269 = vsel %vm173, %v1264, 0
  %1271 = vmatprep.subr.mxu0 0.0
  %1272 = vmatpush1.msra.mxu0 0.0
  %1273 = vmatprep.subr.mxu0 0.0
  %1274 = vmatpush1.msra.mxu0 0.0
  %1275 = vmatprep.subr.mxu0 0.0
  %1276 = vmatpush1.msra.mxu0 0.0
  %1277 = vmatprep.subr.mxu0 0.0
  %1278 = vmatpush1.msra.mxu0 0.0
  %1279 = vmatprep.subr.mxu0 0.0
  %1280 = vmatpush1.msra.mxu0 0.0
  %1281 = vmatprep.subr.mxu0 0.0
  %1282 = vmatpush1.msra.mxu0 0.0
  %1283 = vmatprep.subr.mxu0 0.0
  %1284 = vmatpush1.msra.mxu0 0.0
  %1285 = vmatprep.subr.mxu0 0.0
  %1286 = vmatpush1.msra.mxu0 0.0
  %1287 = vmatprep.subr.mxu0 0.0
  %1288 = vmatpush1.msra.mxu0 0.0
  %1289 = vmatprep.subr.mxu0 0.0
  %1290 = vmatpush1.msra.mxu0 0.0
  %1291 = vmatprep.subr.mxu0 0.0
  %1292 = vmatpush1.msra.mxu0 0.0
  %1293 = vmatprep.subr.mxu0 0.0
  %1294 = vmatpush1.msra.mxu0 0.0
  %1295 = vmatprep.subr.mxu0 0.0
  %1296 = vmatpush1.msra.mxu0 0.0
  %1297 = vmatprep.subr.mxu0 0.0
  %1298 = vmatpush1.msra.mxu0 0.0
  %1299 = vmatprep.subr.mxu0 0.0
  %1300 = vmatpush1.msra.mxu0 0.0
  %1301 = vmatprep.subr.mxu0 0.0
  %1302 = vmatpush1.msra.mxu0 %v1266
  %1303 = vmatprep.subr.mxu0 0.0
  %1304 = vmatpush2.msra.mxu0 0.0
  %1305 = vmatprep.subr.mxu0 0.0
  %1306 = vmatpush2.msra.mxu0 0.0
  %1307 = vmatprep.subr.mxu0 0.0
  %1308 = vmatpush2.msra.mxu0 0.0
  %1309 = vmatprep.subr.mxu0 0.0
  %1310 = vmatpush2.msra.mxu0 0.0
  %1311 = vmatprep.subr.mxu0 0.0
  %1312 = vmatpush2.msra.mxu0 0.0
  %1313 = vmatprep.subr.mxu0 0.0
  %1314 = vmatpush2.msra.mxu0 0.0
  %1315 = vmatprep.subr.mxu0 0.0
  %1316 = vmatpush2.msra.mxu0 0.0
  %1317 = vmatprep.subr.mxu0 0.0
  %1318 = vmatpush2.msra.mxu0 0.0
  %1319 = vmatprep.subr.mxu0 0.0
  %1320 = vmatpush2.msra.mxu0 0.0
  %1321 = vmatprep.subr.mxu0 0.0
  %1322 = vmatpush2.msra.mxu0 0.0
  %1323 = vmatprep.subr.mxu0 0.0
  %1324 = vmatpush2.msra.mxu0 0.0
  %1325 = vmatprep.subr.mxu0 0.0
  %1326 = vmatpush2.msra.mxu0 0.0
  %1327 = vmatprep.subr.mxu0 0.0
  %1328 = vmatpush2.msra.mxu0 0.0
  %1329 = vmatprep.subr.mxu0 0.0
  %1330 = vmatpush2.msra.mxu0 0.0
  %1331 = vmatprep.subr.mxu0 0.0
  %1332 = vmatpush2.msra.mxu0 0.0
  %1333 = vmatprep.subr.mxu0 0.0
  %1334 = vmatpush2.msra.mxu0 0.0
  %1335 = vmatprep.mubr.f32.mxu0 0.0
  %1336 = vmatmul.mubr.f32.gmra.mxu0 %v1269
  %v1337 = vpop.f32.mrf.mxu0
  %v1338 = vadd.f32 0.0, %v1337
  %v1339 = vpop.f32.mrf.mxu0
  %1340 = vdwg.mxu0
  %1341 = vrot.lane.b32.xlu0 %v167, 104
  %v1342 = vpop.permute.xlu0 %1341
  %1343 = vrot.lane.b32.xlu0 %v167, 72
  %v1344 = vpop.permute.xlu0 %1343
  %v1345 = vsel %vm173, %v1342, 0
  %v1347 = vsel %vm173, %v1344, 0
  %1349 = vmatprep.subr.mxu0 0.0
  %1350 = vmatpush1.xpose.msra.mxu0 0.0
  %1351 = vmatprep.subr.mxu0 0.0
  %1352 = vmatpush1.xpose.msra.mxu0 0.0
  %1353 = vmatprep.subr.mxu0 0.0
  %1354 = vmatpush1.xpose.msra.mxu0 0.0
  %1355 = vmatprep.subr.mxu0 0.0
  %1356 = vmatpush1.xpose.msra.mxu0 0.0
  %1357 = vmatprep.subr.mxu0 0.0
  %1358 = vmatpush1.xpose.msra.mxu0 0.0
  %1359 = vmatprep.subr.mxu0 0.0
  %1360 = vmatpush1.xpose.msra.mxu0 0.0
  %1361 = vmatprep.subr.mxu0 0.0
  %1362 = vmatpush1.xpose.msra.mxu0 0.0
  %1363 = vmatprep.subr.mxu0 0.0
  %1364 = vmatpush1.xpose.msra.mxu0 0.0
  %1365 = vmatprep.subr.mxu0 0.0
  %1366 = vmatpush1.xpose.msra.mxu0 0.0
  %1367 = vmatprep.subr.mxu0 0.0
  %1368 = vmatpush1.xpose.msra.mxu0 0.0
  %1369 = vmatprep.subr.mxu0 0.0
  %1370 = vmatpush1.xpose.msra.mxu0 0.0
  %1371 = vmatprep.subr.mxu0 0.0
  %1372 = vmatpush1.xpose.msra.mxu0 0.0
  %1373 = vmatprep.subr.mxu0 0.0
  %1374 = vmatpush1.xpose.msra.mxu0 0.0
  %1375 = vmatprep.subr.mxu0 0.0
  %1376 = vmatpush1.xpose.msra.mxu0 0.0
  %1377 = vmatprep.subr.mxu0 0.0
  %1378 = vmatpush1.xpose.msra.mxu0 0.0
  %1379 = vmatprep.subr.mxu0 0.0
  %1380 = vmatpush1.xpose.msra.mxu0 %v1347
  %1381 = vmatprep.subr.mxu0 0.0
  %1382 = vmatpush2.xpose.msra.mxu0 0.0
  %1383 = vmatprep.subr.mxu0 0.0
  %1384 = vmatpush2.xpose.msra.mxu0 0.0
  %1385 = vmatprep.subr.mxu0 0.0
  %1386 = vmatpush2.xpose.msra.mxu0 0.0
  %1387 = vmatprep.subr.mxu0 0.0
  %1388 = vmatpush2.xpose.msra.mxu0 0.0
  %1389 = vmatprep.subr.mxu0 0.0
  %1390 = vmatpush2.xpose.msra.mxu0 0.0
  %1391 = vmatprep.subr.mxu0 0.0
  %1392 = vmatpush2.xpose.msra.mxu0 0.0
  %1393 = vmatprep.subr.mxu0 0.0
  %1394 = vmatpush2.xpose.msra.mxu0 0.0
  %1395 = vmatprep.subr.mxu0 0.0
  %1396 = vmatpush2.xpose.msra.mxu0 0.0
  %1397 = vmatprep.subr.mxu0 0.0
  %1398 = vmatpush2.xpose.msra.mxu0 0.0
  %1399 = vmatprep.subr.mxu0 0.0
  %1400 = vmatpush2.xpose.msra.mxu0 0.0
  %1401 = vmatprep.subr.mxu0 0.0
  %1402 = vmatpush2.xpose.msra.mxu0 0.0
  %1403 = vmatprep.subr.mxu0 0.0
  %1404 = vmatpush2.xpose.msra.mxu0 0.0
  %1405 = vmatprep.subr.mxu0 0.0
  %1406 = vmatpush2.xpose.msra.mxu0 0.0
  %1407 = vmatprep.subr.mxu0 0.0
  %1408 = vmatpush2.xpose.msra.mxu0 0.0
  %1409 = vmatprep.subr.mxu0 0.0
  %1410 = vmatpush2.xpose.msra.mxu0 0.0
  %1411 = vmatprep.subr.mxu0 0.0
  %1412 = vmatpush2.xpose.msra.mxu0 0.0
  %1413 = vmatprep.mubr.f32.mxu0 0.0
  %1414 = vmatmul.mubr.f32.gmra.mxu0 %v1345
  %v1415 = vpop.f32.mrf.mxu0
  %v1416 = vadd.f32 %v54, %v1415
  %v1417 = vpop.f32.mrf.mxu0
  %1418 = vdwg.mxu0
  %v1419 = vsel %vm173, %v1416, -inf
  %1420 = vmax.xlane.f32.xlu0 %v1419
  %v1421 = vpop.xlane.xlu0 %1420
  %v1422 = vsub.f32 %v1416, %v1421
  %v1423 = vmul.f32 %v1422, 1.442695
  %v1424 = vpow.pop %v1423
  %v1425 = vsel %vm173, %v1424, 0.0
  %1426 = vadd.xlane.f32.xlu0 %v1425
  %v1427 = vpop.xlane.xlu0 %1426
  %v1428 = vrcp.pop %v1427
  %v1429 = vmul.f32 %v1424, %v1428
  %1430 = vrot.lane.b32.xlu0 %v167, 40
  %v1431 = vpop.permute.xlu0 %1430
  %v1434 = vsel %vm173, %v1429, 0
  %1436 = vmatprep.subr.mxu0 0.0
  %1437 = vmatpush1.msra.mxu0 0.0
  %1438 = vmatprep.subr.mxu0 0.0
  %1439 = vmatpush1.msra.mxu0 0.0
  %1440 = vmatprep.subr.mxu0 0.0
  %1441 = vmatpush1.msra.mxu0 0.0
  %1442 = vmatprep.subr.mxu0 0.0
  %1443 = vmatpush1.msra.mxu0 0.0
  %1444 = vmatprep.subr.mxu0 0.0
  %1445 = vmatpush1.msra.mxu0 0.0
  %1446 = vmatprep.subr.mxu0 0.0
  %1447 = vmatpush1.msra.mxu0 0.0
  %1448 = vmatprep.subr.mxu0 0.0
  %1449 = vmatpush1.msra.mxu0 0.0
  %1450 = vmatprep.subr.mxu0 0.0
  %1451 = vmatpush1.msra.mxu0 0.0
  %1452 = vmatprep.subr.mxu0 0.0
  %1453 = vmatpush1.msra.mxu0 0.0
  %1454 = vmatprep.subr.mxu0 0.0
  %1455 = vmatpush1.msra.mxu0 0.0
  %1456 = vmatprep.subr.mxu0 0.0
  %1457 = vmatpush1.msra.mxu0 0.0
  %1458 = vmatprep.subr.mxu0 0.0
  %1459 = vmatpush1.msra.mxu0 0.0
  %1460 = vmatprep.subr.mxu0 0.0
  %1461 = vmatpush1.msra.mxu0 0.0
  %1462 = vmatprep.subr.mxu0 0.0
  %1463 = vmatpush1.msra.mxu0 0.0
  %1464 = vmatprep.subr.mxu0 0.0
  %1465 = vmatpush1.msra.mxu0 0.0
  %1466 = vmatprep.subr.mxu0 0.0
  %1467 = vmatpush1.msra.mxu0 %v1431
  %1468 = vmatprep.subr.mxu0 0.0
  %1469 = vmatpush2.msra.mxu0 0.0
  %1470 = vmatprep.subr.mxu0 0.0
  %1471 = vmatpush2.msra.mxu0 0.0
  %1472 = vmatprep.subr.mxu0 0.0
  %1473 = vmatpush2.msra.mxu0 0.0
  %1474 = vmatprep.subr.mxu0 0.0
  %1475 = vmatpush2.msra.mxu0 0.0
  %1476 = vmatprep.subr.mxu0 0.0
  %1477 = vmatpush2.msra.mxu0 0.0
  %1478 = vmatprep.subr.mxu0 0.0
  %1479 = vmatpush2.msra.mxu0 0.0
  %1480 = vmatprep.subr.mxu0 0.0
  %1481 = vmatpush2.msra.mxu0 0.0
  %1482 = vmatprep.subr.mxu0 0.0
  %1483 = vmatpush2.msra.mxu0 0.0
  %1484 = vmatprep.subr.mxu0 0.0
  %1485 = vmatpush2.msra.mxu0 0.0
  %1486 = vmatprep.subr.mxu0 0.0
  %1487 = vmatpush2.msra.mxu0 0.0
  %1488 = vmatprep.subr.mxu0 0.0
  %1489 = vmatpush2.msra.mxu0 0.0
  %1490 = vmatprep.subr.mxu0 0.0
  %1491 = vmatpush2.msra.mxu0 0.0
  %1492 = vmatprep.subr.mxu0 0.0
  %1493 = vmatpush2.msra.mxu0 0.0
  %1494 = vmatprep.subr.mxu0 0.0
  %1495 = vmatpush2.msra.mxu0 0.0
  %1496 = vmatprep.subr.mxu0 0.0
  %1497 = vmatpush2.msra.mxu0 0.0
  %1498 = vmatprep.subr.mxu0 0.0
  %1499 = vmatpush2.msra.mxu0 0.0
  %1500 = vmatprep.mubr.f32.mxu0 0.0
  %1501 = vmatmul.mubr.f32.gmra.mxu0 %v1434
  %v1502 = vpop.f32.mrf.mxu0
  %v1503 = vadd.f32 0.0, %v1502
  %v1504 = vpop.f32.mrf.mxu0
  %1505 = vdwg.mxu0
  %1507 = vrot.lane.b32.xlu0 %v1173, 8
  %v1508 = vpop.permute.xlu0 %1507
  %1511 = vrot.lane.b32.xlu0 %v1338, 16
  %v1512 = vpop.permute.xlu0 %1511
  %1515 = vrot.lane.b32.xlu0 %v1503, 24
  %v1516 = vpop.permute.xlu0 %1515
  %v1518 = vsel %vm173, %v1008, %v1508
  %v1519 = vsel %vm843, %v1518, %v1512
  %v1520 = vsel %vm845, %v1519, %v1516
  %v1521 = vld [vmem:[%s6] sm:$0xff]
  %v1522 = vld [vmem:[%s6 + $0x8] sm:$0xff]
  %v1523 = vld [vmem:[%s6 + $0x10] sm:$0xff]
  %v1524 = vld [vmem:[%s6 + $0x18] sm:$0xff]
  %v1526 = vsel %vm61, %v846, 0
  %v1529 = vsel %vm61, %v1520, 0
  %1531 = vmatprep.subr.mxu0 0.0
  %1532 = vmatpush1.msra.mxu0 0.0
  %1533 = vmatprep.subr.mxu0 0.0
  %1534 = vmatpush1.msra.mxu0 0.0
  %1535 = vmatprep.subr.mxu0 0.0
  %1536 = vmatpush1.msra.mxu0 0.0
  %1537 = vmatprep.subr.mxu0 0.0
  %1538 = vmatpush1.msra.mxu0 0.0
  %1539 = vmatprep.subr.mxu0 0.0
  %1540 = vmatpush1.msra.mxu0 0.0
  %1541 = vmatprep.subr.mxu0 0.0
  %1542 = vmatpush1.msra.mxu0 0.0
  %1543 = vmatprep.subr.mxu0 0.0
  %1544 = vmatpush1.msra.mxu0 0.0
  %1545 = vmatprep.subr.mxu0 0.0
  %1546 = vmatpush1.msra.mxu0 0.0
  %1547 = vmatprep.subr.mxu0 0.0
  %1548 = vmatpush1.msra.mxu0 0.0
  %1549 = vmatprep.subr.mxu0 0.0
  %1550 = vmatpush1.msra.mxu0 0.0
  %1551 = vmatprep.subr.mxu0 0.0
  %1552 = vmatpush1.msra.mxu0 0.0
  %1553 = vmatprep.subr.mxu0 0.0
  %1554 = vmatpush1.msra.mxu0 0.0
  %1555 = vmatprep.subr.mxu0 0.0
  %1556 = vmatpush1.msra.mxu0 %v1524
  %1557 = vmatprep.subr.mxu0 0.0
  %1558 = vmatpush1.msra.mxu0 %v1523
  %1559 = vmatprep.subr.mxu0 0.0
  %1560 = vmatpush1.msra.mxu0 %v1522
  %1561 = vmatprep.subr.mxu0 0.0
  %1562 = vmatpush1.msra.mxu0 %v1521
  %1563 = vmatprep.subr.mxu0 0.0
  %1564 = vmatpush2.msra.mxu0 0.0
  %1565 = vmatprep.subr.mxu0 0.0
  %1566 = vmatpush2.msra.mxu0 0.0
  %1567 = vmatprep.subr.mxu0 0.0
  %1568 = vmatpush2.msra.mxu0 0.0
  %1569 = vmatprep.subr.mxu0 0.0
  %1570 = vmatpush2.msra.mxu0 0.0
  %1571 = vmatprep.subr.mxu0 0.0
  %1572 = vmatpush2.msra.mxu0 0.0
  %1573 = vmatprep.subr.mxu0 0.0
  %1574 = vmatpush2.msra.mxu0 0.0
  %1575 = vmatprep.subr.mxu0 0.0
  %1576 = vmatpush2.msra.mxu0 0.0
  %1577 = vmatprep.subr.mxu0 0.0
  %1578 = vmatpush2.msra.mxu0 0.0
  %1579 = vmatprep.subr.mxu0 0.0
  %1580 = vmatpush2.msra.mxu0 0.0
  %1581 = vmatprep.subr.mxu0 0.0
  %1582 = vmatpush2.msra.mxu0 0.0
  %1583 = vmatprep.subr.mxu0 0.0
  %1584 = vmatpush2.msra.mxu0 0.0
  %1585 = vmatprep.subr.mxu0 0.0
  %1586 = vmatpush2.msra.mxu0 0.0
  %1587 = vmatprep.subr.mxu0 0.0
  %1588 = vmatpush2.msra.mxu0 0.0
  %1589 = vmatprep.subr.mxu0 0.0
  %1590 = vmatpush2.msra.mxu0 0.0
  %1591 = vmatprep.subr.mxu0 0.0
  %1592 = vmatpush2.msra.mxu0 0.0
  %1593 = vmatprep.subr.mxu0 0.0
  %1594 = vmatpush2.msra.mxu0 0.0
  %1595 = vmatprep.mubr.f32.mxu0 0.0
  %1596 = vmatmul.mubr.f32.gmra.mxu0 %v1526
  %v1597 = vpop.f32.mrf.mxu0
  %v1598 = vadd.f32 0.0, %v1597
  %v1599 = vpop.f32.mrf.mxu0
  %1600 = vmatprep.mubr.f32.mxu0 0.0
  %1601 = vmatmul.mubr.f32.gmra.mxu0 %v1529
  %v1602 = vpop.f32.mrf.mxu0
  %v1603 = vadd.f32 0.0, %v1602
  %v1604 = vpop.f32.mrf.mxu0
  %1605 = vdwg.mxu0
  %v1606 = vadd.f32 %v47, %v1598
  %v1607 = vadd.f32 %v48, %v1603
  %v1608 = vld [vmem:[%s7] sm:$0x1]
  %v1609 = vmul.f32 %v1606, %v1606
  %v1610 = vmul.f32 %v1607, %v1607
  %v1611 = vsel %vm61, %v1609, 0.0
  %1612 = vadd.xlane.f32.xlu0 %v1611
  %v1613 = vpop.xlane.xlu0 %1612
  %v1614 = vsel %vm61, %v1610, 0.0
  %1615 = vadd.xlane.f32.xlu0 %v1614
  %v1616 = vpop.xlane.xlu0 %1615
  %v1617 = vmul.f32 %v1613, %v68
  %v1618 = vmul.f32 %v1616, %v68
  %v1619 = vadd.f32 %v1617, 1e-06
  %v1620 = vadd.f32 %v1618, 1e-06
  %v1621 = vrsqrt.pop %v1619
  %v1622 = vrsqrt.pop %v1620
  %v1623 = vmul.f32 %v1606, %v1621
  %v1624 = vmul.f32 %v1607, %v1622
  %v1626 = vlaneseq
  %v1627 = vshrl.u32 %v1626, 7
  %v1628 = vsub.s32 0, %v1627
  %v1629 = vrot.slane %v1608, %v1628
  %v1631 = vmul.f32 %v1623, %v1629
  %v1632 = vmul.f32 %v1624, %v1629
  %v1633 = vld [vmem:[%s8] sm:$0xff]
  %v1634 = vld [vmem:[%s8 + $0x8] sm:$0xff]
  %v1635 = vld [vmem:[%s8 + $0x10] sm:$0xff]
  %v1636 = vld [vmem:[%s8 + $0x18] sm:$0xff]
  %v1638 = vsel %vm61, %v1631, 0
  %v1641 = vsel %vm61, %v1632, 0
  %1643 = vmatprep.subr.mxu0 0.0
  %1644 = vmatpush1.msra.mxu0 0.0
  %1645 = vmatprep.subr.mxu0 0.0
  %1646 = vmatpush1.msra.mxu0 0.0
  %1647 = vmatprep.subr.mxu0 0.0
  %1648 = vmatpush1.msra.mxu0 0.0
  %1649 = vmatprep.subr.mxu0 0.0
  %1650 = vmatpush1.msra.mxu0 0.0
  %1651 = vmatprep.subr.mxu0 0.0
  %1652 = vmatpush1.msra.mxu0 0.0
  %1653 = vmatprep.subr.mxu0 0.0
  %1654 = vmatpush1.msra.mxu0 0.0
  %1655 = vmatprep.subr.mxu0 0.0
  %1656 = vmatpush1.msra.mxu0 0.0
  %1657 = vmatprep.subr.mxu0 0.0
  %1658 = vmatpush1.msra.mxu0 0.0
  %1659 = vmatprep.subr.mxu0 0.0
  %1660 = vmatpush1.msra.mxu0 0.0
  %1661 = vmatprep.subr.mxu0 0.0
  %1662 = vmatpush1.msra.mxu0 0.0
  %1663 = vmatprep.subr.mxu0 0.0
  %1664 = vmatpush1.msra.mxu0 0.0
  %1665 = vmatprep.subr.mxu0 0.0
  %1666 = vmatpush1.msra.mxu0 0.0
  %1667 = vmatprep.subr.mxu0 0.0
  %1668 = vmatpush1.msra.mxu0 %v1636
  %1669 = vmatprep.subr.mxu0 0.0
  %1670 = vmatpush1.msra.mxu0 %v1635
  %1671 = vmatprep.subr.mxu0 0.0
  %1672 = vmatpush1.msra.mxu0 %v1634
  %1673 = vmatprep.subr.mxu0 0.0
  %1674 = vmatpush1.msra.mxu0 %v1633
  %1675 = vmatprep.subr.mxu0 0.0
  %1676 = vmatpush2.msra.mxu0 0.0
  %1677 = vmatprep.subr.mxu0 0.0
  %1678 = vmatpush2.msra.mxu0 0.0
  %1679 = vmatprep.subr.mxu0 0.0
  %1680 = vmatpush2.msra.mxu0 0.0
  %1681 = vmatprep.subr.mxu0 0.0
  %1682 = vmatpush2.msra.mxu0 0.0
  %1683 = vmatprep.subr.mxu0 0.0
  %1684 = vmatpush2.msra.mxu0 0.0
  %1685 = vmatprep.subr.mxu0 0.0
  %1686 = vmatpush2.msra.mxu0 0.0
  %1687 = vmatprep.subr.mxu0 0.0
  %1688 = vmatpush2.msra.mxu0 0.0
  %1689 = vmatprep.subr.mxu0 0.0
  %1690 = vmatpush2.msra.mxu0 0.0
  %1691 = vmatprep.subr.mxu0 0.0
  %1692 = vmatpush2.msra.mxu0 0.0
  %1693 = vmatprep.subr.mxu0 0.0
  %1694 = vmatpush2.msra.mxu0 0.0
  %1695 = vmatprep.subr.mxu0 0.0
  %1696 = vmatpush2.msra.mxu0 0.0
  %1697 = vmatprep.subr.mxu0 0.0
  %1698 = vmatpush2.msra.mxu0 0.0
  %1699 = vmatprep.subr.mxu0 0.0
  %1700 = vmatpush2.msra.mxu0 0.0
  %1701 = vmatprep.subr.mxu0 0.0
  %1702 = vmatpush2.msra.mxu0 0.0
  %1703 = vmatprep.subr.mxu0 0.0
  %1704 = vmatpush2.msra.mxu0 0.0
  %1705 = vmatprep.subr.mxu0 0.0
  %1706 = vmatpush2.msra.mxu0 0.0
  %1707 = vmatprep.mubr.f32.mxu0 0.0
  %1708 = vmatmul.mubr.f32.gmra.mxu0 %v1638
  %v1709 = vpop.f32.mrf.mxu0
  %v1710 = vadd.f32 0.0, %v1709
  %v1711 = vpop.f32.mrf.mxu0
  %1712 = vmatprep.mubr.f32.mxu0 0.0
  %1713 = vmatmul.mubr.f32.gmra.mxu0 %v1641
  %v1714 = vpop.f32.mrf.mxu0
  %v1715 = vadd.f32 0.0, %v1714
  %v1716 = vpop.f32.mrf.mxu0
  %1717 = vdwg.mxu0
  %v1718 = vld [vmem:[%s9] sm:$0xff]
  %v1719 = vld [vmem:[%s9 + $0x8] sm:$0xff]
  %v1720 = vld [vmem:[%s9 + $0x10] sm:$0xff]
  %v1721 = vld [vmem:[%s9 + $0x18] sm:$0xff]
  %v1723 = vsel %vm61, %v49, 0
  %v1726 = vsel %vm61, %v50, 0
  %1728 = vmatprep.subr.mxu0 0.0
  %1729 = vmatpush1.msra.mxu0 0.0
  %1730 = vmatprep.subr.mxu0 0.0
  %1731 = vmatpush1.msra.mxu0 0.0
  %1732 = vmatprep.subr.mxu0 0.0
  %1733 = vmatpush1.msra.mxu0 0.0
  %1734 = vmatprep.subr.mxu0 0.0
  %1735 = vmatpush1.msra.mxu0 0.0
  %1736 = vmatprep.subr.mxu0 0.0
  %1737 = vmatpush1.msra.mxu0 0.0
  %1738 = vmatprep.subr.mxu0 0.0
  %1739 = vmatpush1.msra.mxu0 0.0
  %1740 = vmatprep.subr.mxu0 0.0
  %1741 = vmatpush1.msra.mxu0 0.0
  %1742 = vmatprep.subr.mxu0 0.0
  %1743 = vmatpush1.msra.mxu0 0.0
  %1744 = vmatprep.subr.mxu0 0.0
  %1745 = vmatpush1.msra.mxu0 0.0
  %1746 = vmatprep.subr.mxu0 0.0
  %1747 = vmatpush1.msra.mxu0 0.0
  %1748 = vmatprep.subr.mxu0 0.0
  %1749 = vmatpush1.msra.mxu0 0.0
  %1750 = vmatprep.subr.mxu0 0.0
  %1751 = vmatpush1.msra.mxu0 0.0
  %1752 = vmatprep.subr.mxu0 0.0
  %1753 = vmatpush1.msra.mxu0 %v1721
  %1754 = vmatprep.subr.mxu0 0.0
  %1755 = vmatpush1.msra.mxu0 %v1720
  %1756 = vmatprep.subr.mxu0 0.0
  %1757 = vmatpush1.msra.mxu0 %v1719
  %1758 = vmatprep.subr.mxu0 0.0
  %1759 = vmatpush1.msra.mxu0 %v1718
  %1760 = vmatprep.subr.mxu0 0.0
  %1761 = vmatpush2.msra.mxu0 0.0
  %1762 = vmatprep.subr.mxu0 0.0
  %1763 = vmatpush2.msra.mxu0 0.0
  %1764 = vmatprep.subr.mxu0 0.0
  %1765 = vmatpush2.msra.mxu0 0.0
  %1766 = vmatprep.subr.mxu0 0.0
  %1767 = vmatpush2.msra.mxu0 0.0
  %1768 = vmatprep.subr.mxu0 0.0
  %1769 = vmatpush2.msra.mxu0 0.0
  %1770 = vmatprep.subr.mxu0 0.0
  %1771 = vmatpush2.msra.mxu0 0.0
  %1772 = vmatprep.subr.mxu0 0.0
  %1773 = vmatpush2.msra.mxu0 0.0
  %1774 = vmatprep.subr.mxu0 0.0
  %1775 = vmatpush2.msra.mxu0 0.0
  %1776 = vmatprep.subr.mxu0 0.0
  %1777 = vmatpush2.msra.mxu0 0.0
  %1778 = vmatprep.subr.mxu0 0.0
  %1779 = vmatpush2.msra.mxu0 0.0
  %1780 = vmatprep.subr.mxu0 0.0
  %1781 = vmatpush2.msra.mxu0 0.0
  %1782 = vmatprep.subr.mxu0 0.0
  %1783 = vmatpush2.msra.mxu0 0.0
  %1784 = vmatprep.subr.mxu0 0.0
  %1785 = vmatpush2.msra.mxu0 0.0
  %1786 = vmatprep.subr.mxu0 0.0
  %1787 = vmatpush2.msra.mxu0 0.0
  %1788 = vmatprep.subr.mxu0 0.0
  %1789 = vmatpush2.msra.mxu0 0.0
  %1790 = vmatprep.subr.mxu0 0.0
  %1791 = vmatpush2.msra.mxu0 0.0
  %1792 = vmatprep.mubr.f32.mxu0 0.0
  %1793 = vmatmul.mubr.f32.gmra.mxu0 %v1723
  %v1794 = vpop.f32.mrf.mxu0
  %v1795 = vadd.f32 0.0, %v1794
  %v1796 = vpop.f32.mrf.mxu0
  %1797 = vmatprep.mubr.f32.mxu0 0.0
  %1798 = vmatmul.mubr.f32.gmra.mxu0 %v1726
  %v1799 = vpop.f32.mrf.mxu0
  %v1800 = vadd.f32 0.0, %v1799
  %v1801 = vpop.f32.mrf.mxu0
  %1802 = vdwg.mxu0
  %v1803 = vlaneseq
  %v1804 = vshrl.u32 %v1803, 7
  %v1805 = vsub.s32 0, %v1804
  %v1806 = vrot.slane %v57, %v1805
  %v1808 = vsel %vm173, %v1710, 0
  %v1811 = vsel %vm173, %v1795, 0
  %1813 = vmatprep.subr.mxu0 0.0
  %1814 = vmatpush1.xpose.msra.mxu0 0.0
  %1815 = vmatprep.subr.mxu0 0.0
  %1816 = vmatpush1.xpose.msra.mxu0 0.0
  %1817 = vmatprep.subr.mxu0 0.0
  %1818 = vmatpush1.xpose.msra.mxu0 0.0
  %1819 = vmatprep.subr.mxu0 0.0
  %1820 = vmatpush1.xpose.msra.mxu0 0.0
  %1821 = vmatprep.subr.mxu0 0.0
  %1822 = vmatpush1.xpose.msra.mxu0 0.0
  %1823 = vmatprep.subr.mxu0 0.0
  %1824 = vmatpush1.xpose.msra.mxu0 0.0
  %1825 = vmatprep.subr.mxu0 0.0
  %1826 = vmatpush1.xpose.msra.mxu0 0.0
  %1827 = vmatprep.subr.mxu0 0.0
  %1828 = vmatpush1.xpose.msra.mxu0 0.0
  %1829 = vmatprep.subr.mxu0 0.0
  %1830 = vmatpush1.xpose.msra.mxu0 0.0
  %1831 = vmatprep.subr.mxu0 0.0
  %1832 = vmatpush1.xpose.msra.mxu0 0.0
  %1833 = vmatprep.subr.mxu0 0.0
  %1834 = vmatpush1.xpose.msra.mxu0 0.0
  %1835 = vmatprep.subr.mxu0 0.0
  %1836 = vmatpush1.xpose.msra.mxu0 0.0
  %1837 = vmatprep.subr.mxu0 0.0
  %1838 = vmatpush1.xpose.msra.mxu0 0.0
  %1839 = vmatprep.subr.mxu0 0.0
  %1840 = vmatpush1.xpose.msra.mxu0 0.0
  %1841 = vmatprep.subr.mxu0 0.0
  %1842 = vmatpush1.xpose.msra.mxu0 0.0
  %1843 = vmatprep.subr.mxu0 0.0
  %1844 = vmatpush1.xpose.msra.mxu0 %v1811
  %1845 = vmatprep.subr.mxu0 0.0
  %1846 = vmatpush2.xpose.msra.mxu0 0.0
  %1847 = vmatprep.subr.mxu0 0.0
  %1848 = vmatpush2.xpose.msra.mxu0 0.0
  %1849 = vmatprep.subr.mxu0 0.0
  %1850 = vmatpush2.xpose.msra.mxu0 0.0
  %1851 = vmatprep.subr.mxu0 0.0
  %1852 = vmatpush2.xpose.msra.mxu0 0.0
  %1853 = vmatprep.subr.mxu0 0.0
  %1854 = vmatpush2.xpose.msra.mxu0 0.0
  %1855 = vmatprep.subr.mxu0 0.0
  %1856 = vmatpush2.xpose.msra.mxu0 0.0
  %1857 = vmatprep.subr.mxu0 0.0
  %1858 = vmatpush2.xpose.msra.mxu0 0.0
  %1859 = vmatprep.subr.mxu0 0.0
  %1860 = vmatpush2.xpose.msra.mxu0 0.0
  %1861 = vmatprep.subr.mxu0 0.0
  %1862 = vmatpush2.xpose.msra.mxu0 0.0
  %1863 = vmatprep.subr.mxu0 0.0
  %1864 = vmatpush2.xpose.msra.mxu0 0.0
  %1865 = vmatprep.subr.mxu0 0.0
  %1866 = vmatpush2.xpose.msra.mxu0 0.0
  %1867 = vmatprep.subr.mxu0 0.0
  %1868 = vmatpush2.xpose.msra.mxu0 0.0
  %1869 = vmatprep.subr.mxu0 0.0
  %1870 = vmatpush2.xpose.msra.mxu0 0.0
  %1871 = vmatprep.subr.mxu0 0.0
  %1872 = vmatpush2.xpose.msra.mxu0 0.0
  %1873 = vmatprep.subr.mxu0 0.0
  %1874 = vmatpush2.xpose.msra.mxu0 0.0
  %1875 = vmatprep.subr.mxu0 0.0
  %1876 = vmatpush2.xpose.msra.mxu0 0.0
  %1877 = vmatprep.mubr.f32.mxu0 0.0
  %1878 = vmatmul.mubr.f32.gmra.mxu0 %v1808
  %v1879 = vpop.f32.mrf.mxu0
  %v1880 = vadd.f32 %v1806, %v1879
  %v1881 = vpop.f32.mrf.mxu0
  %1882 = vdwg.mxu0
  %v1883 = vsel %vm173, %v1880, -inf
  %1884 = vmax.xlane.f32.xlu0 %v1883
  %v1885 = vpop.xlane.xlu0 %1884
  %v1886 = vsub.f32 %v1880, %v1885
  %v1887 = vmul.f32 %v1886, 1.442695
  %v1888 = vpow.pop %v1887
  %v1889 = vsel %vm173, %v1888, 0.0
  %1890 = vadd.xlane.f32.xlu0 %v1889
  %v1891 = vpop.xlane.xlu0 %1890
  %v1892 = vrcp.pop %v1891
  %v1893 = vmul.f32 %v1888, %v1892
  %1894 = vrot.lane.b32.xlu0 %v1795, 96
  %v1895 = vpop.permute.xlu0 %1894
  %v1898 = vsel %vm173, %v1893, 0
  %1900 = vmatprep.subr.mxu0 0.0
  %1901 = vmatpush1.msra.mxu0 0.0
  %1902 = vmatprep.subr.mxu0 0.0
  %1903 = vmatpush1.msra.mxu0 0.0
  %1904 = vmatprep.subr.mxu0 0.0
  %1905 = vmatpush1.msra.mxu0 0.0
  %1906 = vmatprep.subr.mxu0 0.0
  %1907 = vmatpush1.msra.mxu0 0.0
  %1908 = vmatprep.subr.mxu0 0.0
  %1909 = vmatpush1.msra.mxu0 0.0
  %1910 = vmatprep.subr.mxu0 0.0
  %1911 = vmatpush1.msra.mxu0 0.0
  %1912 = vmatprep.subr.mxu0 0.0
  %1913 = vmatpush1.msra.mxu0 0.0
  %1914 = vmatprep.subr.mxu0 0.0
  %1915 = vmatpush1.msra.mxu0 0.0
  %1916 = vmatprep.subr.mxu0 0.0
  %1917 = vmatpush1.msra.mxu0 0.0
  %1918 = vmatprep.subr.mxu0 0.0
  %1919 = vmatpush1.msra.mxu0 0.0
  %1920 = vmatprep.subr.mxu0 0.0
  %1921 = vmatpush1.msra.mxu0 0.0
  %1922 = vmatprep.subr.mxu0 0.0
  %1923 = vmatpush1.msra.mxu0 0.0
  %1924 = vmatprep.subr.mxu0 0.0
  %1925 = vmatpush1.msra.mxu0 0.0
  %1926 = vmatprep.subr.mxu0 0.0
  %1927 = vmatpush1.msra.mxu0 0.0
  %1928 = vmatprep.subr.mxu0 0.0
  %1929 = vmatpush1.msra.mxu0 0.0
  %1930 = vmatprep.subr.mxu0 0.0
  %1931 = vmatpush1.msra.mxu0 %v1895
  %1932 = vmatprep.subr.mxu0 0.0
  %1933 = vmatpush2.msra.mxu0 0.0
  %1934 = vmatprep.subr.mxu0 0.0
  %1935 = vmatpush2.msra.mxu0 0.0
  %1936 = vmatprep.subr.mxu0 0.0
  %1937 = vmatpush2.msra.mxu0 0.0
  %1938 = vmatprep.subr.mxu0 0.0
  %1939 = vmatpush2.msra.mxu0 0.0
  %1940 = vmatprep.subr.mxu0 0.0
  %1941 = vmatpush2.msra.mxu0 0.0
  %1942 = vmatprep.subr.mxu0 0.0
  %1943 = vmatpush2.msra.mxu0 0.0
  %1944 = vmatprep.subr.mxu0 0.0
  %1945 = vmatpush2.msra.mxu0 0.0
  %1946 = vmatprep.subr.mxu0 0.0
  %1947 = vmatpush2.msra.mxu0 0.0
  %1948 = vmatprep.subr.mxu0 0.0
  %1949 = vmatpush2.msra.mxu0 0.0
  %1950 = vmatprep.subr.mxu0 0.0
  %1951 = vmatpush2.msra.mxu0 0.0
  %1952 = vmatprep.subr.mxu0 0.0
  %1953 = vmatpush2.msra.mxu0 0.0
  %1954 = vmatprep.subr.mxu0 0.0
  %1955 = vmatpush2.msra.mxu0 0.0
  %1956 = vmatprep.subr.mxu0 0.0
  %1957 = vmatpush2.msra.mxu0 0.0
  %1958 = vmatprep.subr.mxu0 0.0
  %1959 = vmatpush2.msra.mxu0 0.0
  %1960 = vmatprep.subr.mxu0 0.0
  %1961 = vmatpush2.msra.mxu0 0.0
  %1962 = vmatprep.subr.mxu0 0.0
  %1963 = vmatpush2.msra.mxu0 0.0
  %1964 = vmatprep.mubr.f32.mxu0 0.0
  %1965 = vmatmul.mubr.f32.gmra.mxu0 %v1898
  %v1966 = vpop.f32.mrf.mxu0
  %v1967 = vadd.f32 0.0, %v1966
  %v1968 = vpop.f32.mrf.mxu0
  %1969 = vdwg.mxu0
  %1970 = vrot.lane.b32.xlu0 %v1710, 120
  %v1971 = vpop.permute.xlu0 %1970
  %1972 = vrot.lane.b32.xlu0 %v1795, 120
  %v1973 = vpop.permute.xlu0 %1972
  %v1974 = vsel %vm173, %v1971, 0
  %v1976 = vsel %vm173, %v1973, 0
  %1978 = vmatprep.subr.mxu0 0.0
  %1979 = vmatpush1.xpose.msra.mxu0 0.0
  %1980 = vmatprep.subr.mxu0 0.0
  %1981 = vmatpush1.xpose.msra.mxu0 0.0
  %1982 = vmatprep.subr.mxu0 0.0
  %1983 = vmatpush1.xpose.msra.mxu0 0.0
  %1984 = vmatprep.subr.mxu0 0.0
  %1985 = vmatpush1.xpose.msra.mxu0 0.0
  %1986 = vmatprep.subr.mxu0 0.0
  %1987 = vmatpush1.xpose.msra.mxu0 0.0
  %1988 = vmatprep.subr.mxu0 0.0
  %1989 = vmatpush1.xpose.msra.mxu0 0.0
  %1990 = vmatprep.subr.mxu0 0.0
  %1991 = vmatpush1.xpose.msra.mxu0 0.0
  %1992 = vmatprep.subr.mxu0 0.0
  %1993 = vmatpush1.xpose.msra.mxu0 0.0
  %1994 = vmatprep.subr.mxu0 0.0
  %1995 = vmatpush1.xpose.msra.mxu0 0.0
  %1996 = vmatprep.subr.mxu0 0.0
  %1997 = vmatpush1.xpose.msra.mxu0 0.0
  %1998 = vmatprep.subr.mxu0 0.0
  %1999 = vmatpush1.xpose.msra.mxu0 0.0
  %2000 = vmatprep.subr.mxu0 0.0
  %2001 = vmatpush1.xpose.msra.mxu0 0.0
  %2002 = vmatprep.subr.mxu0 0.0
  %2003 = vmatpush1.xpose.msra.mxu0 0.0
  %2004 = vmatprep.subr.mxu0 0.0
  %2005 = vmatpush1.xpose.msra.mxu0 0.0
  %2006 = vmatprep.subr.mxu0 0.0
  %2007 = vmatpush1.xpose.msra.mxu0 0.0
  %2008 = vmatprep.subr.mxu0 0.0
  %2009 = vmatpush1.xpose.msra.mxu0 %v1976
  %2010 = vmatprep.subr.mxu0 0.0
  %2011 = vmatpush2.xpose.msra.mxu0 0.0
  %2012 = vmatprep.subr.mxu0 0.0
  %2013 = vmatpush2.xpose.msra.mxu0 0.0
  %2014 = vmatprep.subr.mxu0 0.0
  %2015 = vmatpush2.xpose.msra.mxu0 0.0
  %2016 = vmatprep.subr.mxu0 0.0
  %2017 = vmatpush2.xpose.msra.mxu0 0.0
  %2018 = vmatprep.subr.mxu0 0.0
  %2019 = vmatpush2.xpose.msra.mxu0 0.0
  %2020 = vmatprep.subr.mxu0 0.0
  %2021 = vmatpush2.xpose.msra.mxu0 0.0
  %2022 = vmatprep.subr.mxu0 0.0
  %2023 = vmatpush2.xpose.msra.mxu0 0.0
  %2024 = vmatprep.subr.mxu0 0.0
  %2025 = vmatpush2.xpose.msra.mxu0 0.0
  %2026 = vmatprep.subr.mxu0 0.0
  %2027 = vmatpush2.xpose.msra.mxu0 0.0
  %2028 = vmatprep.subr.mxu0 0.0
  %2029 = vmatpush2.xpose.msra.mxu0 0.0
  %2030 = vmatprep.subr.mxu0 0.0
  %2031 = vmatpush2.xpose.msra.mxu0 0.0
  %2032 = vmatprep.subr.mxu0 0.0
  %2033 = vmatpush2.xpose.msra.mxu0 0.0
  %2034 = vmatprep.subr.mxu0 0.0
  %2035 = vmatpush2.xpose.msra.mxu0 0.0
  %2036 = vmatprep.subr.mxu0 0.0
  %2037 = vmatpush2.xpose.msra.mxu0 0.0
  %2038 = vmatprep.subr.mxu0 0.0
  %2039 = vmatpush2.xpose.msra.mxu0 0.0
  %2040 = vmatprep.subr.mxu0 0.0
  %2041 = vmatpush2.xpose.msra.mxu0 0.0
  %2042 = vmatprep.mubr.f32.mxu0 0.0
  %2043 = vmatmul.mubr.f32.gmra.mxu0 %v1974
  %v2044 = vpop.f32.mrf.mxu0
  %v2045 = vadd.f32 %v1806, %v2044
  %v2046 = vpop.f32.mrf.mxu0
  %2047 = vdwg.mxu0
  %v2048 = vsel %vm173, %v2045, -inf
  %2049 = vmax.xlane.f32.xlu0 %v2048
  %v2050 = vpop.xlane.xlu0 %2049
  %v2051 = vsub.f32 %v2045, %v2050
  %v2052 = vmul.f32 %v2051, 1.442695
  %v2053 = vpow.pop %v2052
  %v2054 = vsel %vm173, %v2053, 0.0
  %2055 = vadd.xlane.f32.xlu0 %v2054
  %v2056 = vpop.xlane.xlu0 %2055
  %v2057 = vrcp.pop %v2056
  %v2058 = vmul.f32 %v2053, %v2057
  %2059 = vrot.lane.b32.xlu0 %v1795, 88
  %v2060 = vpop.permute.xlu0 %2059
  %v2063 = vsel %vm173, %v2058, 0
  %2065 = vmatprep.subr.mxu0 0.0
  %2066 = vmatpush1.msra.mxu0 0.0
  %2067 = vmatprep.subr.mxu0 0.0
  %2068 = vmatpush1.msra.mxu0 0.0
  %2069 = vmatprep.subr.mxu0 0.0
  %2070 = vmatpush1.msra.mxu0 0.0
  %2071 = vmatprep.subr.mxu0 0.0
  %2072 = vmatpush1.msra.mxu0 0.0
  %2073 = vmatprep.subr.mxu0 0.0
  %2074 = vmatpush1.msra.mxu0 0.0
  %2075 = vmatprep.subr.mxu0 0.0
  %2076 = vmatpush1.msra.mxu0 0.0
  %2077 = vmatprep.subr.mxu0 0.0
  %2078 = vmatpush1.msra.mxu0 0.0
  %2079 = vmatprep.subr.mxu0 0.0
  %2080 = vmatpush1.msra.mxu0 0.0
  %2081 = vmatprep.subr.mxu0 0.0
  %2082 = vmatpush1.msra.mxu0 0.0
  %2083 = vmatprep.subr.mxu0 0.0
  %2084 = vmatpush1.msra.mxu0 0.0
  %2085 = vmatprep.subr.mxu0 0.0
  %2086 = vmatpush1.msra.mxu0 0.0
  %2087 = vmatprep.subr.mxu0 0.0
  %2088 = vmatpush1.msra.mxu0 0.0
  %2089 = vmatprep.subr.mxu0 0.0
  %2090 = vmatpush1.msra.mxu0 0.0
  %2091 = vmatprep.subr.mxu0 0.0
  %2092 = vmatpush1.msra.mxu0 0.0
  %2093 = vmatprep.subr.mxu0 0.0
  %2094 = vmatpush1.msra.mxu0 0.0
  %2095 = vmatprep.subr.mxu0 0.0
  %2096 = vmatpush1.msra.mxu0 %v2060
  %2097 = vmatprep.subr.mxu0 0.0
  %2098 = vmatpush2.msra.mxu0 0.0
  %2099 = vmatprep.subr.mxu0 0.0
  %2100 = vmatpush2.msra.mxu0 0.0
  %2101 = vmatprep.subr.mxu0 0.0
  %2102 = vmatpush2.msra.mxu0 0.0
  %2103 = vmatprep.subr.mxu0 0.0
  %2104 = vmatpush2.msra.mxu0 0.0
  %2105 = vmatprep.subr.mxu0 0.0
  %2106 = vmatpush2.msra.mxu0 0.0
  %2107 = vmatprep.subr.mxu0 0.0
  %2108 = vmatpush2.msra.mxu0 0.0
  %2109 = vmatprep.subr.mxu0 0.0
  %2110 = vmatpush2.msra.mxu0 0.0
  %2111 = vmatprep.subr.mxu0 0.0
  %2112 = vmatpush2.msra.mxu0 0.0
  %2113 = vmatprep.subr.mxu0 0.0
  %2114 = vmatpush2.msra.mxu0 0.0
  %2115 = vmatprep.subr.mxu0 0.0
  %2116 = vmatpush2.msra.mxu0 0.0
  %2117 = vmatprep.subr.mxu0 0.0
  %2118 = vmatpush2.msra.mxu0 0.0
  %2119 = vmatprep.subr.mxu0 0.0
  %2120 = vmatpush2.msra.mxu0 0.0
  %2121 = vmatprep.subr.mxu0 0.0
  %2122 = vmatpush2.msra.mxu0 0.0
  %2123 = vmatprep.subr.mxu0 0.0
  %2124 = vmatpush2.msra.mxu0 0.0
  %2125 = vmatprep.subr.mxu0 0.0
  %2126 = vmatpush2.msra.mxu0 0.0
  %2127 = vmatprep.subr.mxu0 0.0
  %2128 = vmatpush2.msra.mxu0 0.0
  %2129 = vmatprep.mubr.f32.mxu0 0.0
  %2130 = vmatmul.mubr.f32.gmra.mxu0 %v2063
  %v2131 = vpop.f32.mrf.mxu0
  %v2132 = vadd.f32 0.0, %v2131
  %v2133 = vpop.f32.mrf.mxu0
  %2134 = vdwg.mxu0
  %2135 = vrot.lane.b32.xlu0 %v1710, 112
  %v2136 = vpop.permute.xlu0 %2135
  %2137 = vrot.lane.b32.xlu0 %v1795, 112
  %v2138 = vpop.permute.xlu0 %2137
  %v2139 = vsel %vm173, %v2136, 0
  %v2141 = vsel %vm173, %v2138, 0
  %2143 = vmatprep.subr.mxu0 0.0
  %2144 = vmatpush1.xpose.msra.mxu0 0.0
  %2145 = vmatprep.subr.mxu0 0.0
  %2146 = vmatpush1.xpose.msra.mxu0 0.0
  %2147 = vmatprep.subr.mxu0 0.0
  %2148 = vmatpush1.xpose.msra.mxu0 0.0
  %2149 = vmatprep.subr.mxu0 0.0
  %2150 = vmatpush1.xpose.msra.mxu0 0.0
  %2151 = vmatprep.subr.mxu0 0.0
  %2152 = vmatpush1.xpose.msra.mxu0 0.0
  %2153 = vmatprep.subr.mxu0 0.0
  %2154 = vmatpush1.xpose.msra.mxu0 0.0
  %2155 = vmatprep.subr.mxu0 0.0
  %2156 = vmatpush1.xpose.msra.mxu0 0.0
  %2157 = vmatprep.subr.mxu0 0.0
  %2158 = vmatpush1.xpose.msra.mxu0 0.0
  %2159 = vmatprep.subr.mxu0 0.0
  %2160 = vmatpush1.xpose.msra.mxu0 0.0
  %2161 = vmatprep.subr.mxu0 0.0
  %2162 = vmatpush1.xpose.msra.mxu0 0.0
  %2163 = vmatprep.subr.mxu0 0.0
  %2164 = vmatpush1.xpose.msra.mxu0 0.0
  %2165 = vmatprep.subr.mxu0 0.0
  %2166 = vmatpush1.xpose.msra.mxu0 0.0
  %2167 = vmatprep.subr.mxu0 0.0
  %2168 = vmatpush1.xpose.msra.mxu0 0.0
  %2169 = vmatprep.subr.mxu0 0.0
  %2170 = vmatpush1.xpose.msra.mxu0 0.0
  %2171 = vmatprep.subr.mxu0 0.0
  %2172 = vmatpush1.xpose.msra.mxu0 0.0
  %2173 = vmatprep.subr.mxu0 0.0
  %2174 = vmatpush1.xpose.msra.mxu0 %v2141
  %2175 = vmatprep.subr.mxu0 0.0
  %2176 = vmatpush2.xpose.msra.mxu0 0.0
  %2177 = vmatprep.subr.mxu0 0.0
  %2178 = vmatpush2.xpose.msra.mxu0 0.0
  %2179 = vmatprep.subr.mxu0 0.0
  %2180 = vmatpush2.xpose.msra.mxu0 0.0
  %2181 = vmatprep.subr.mxu0 0.0
  %2182 = vmatpush2.xpose.msra.mxu0 0.0
  %2183 = vmatprep.subr.mxu0 0.0
  %2184 = vmatpush2.xpose.msra.mxu0 0.0
  %2185 = vmatprep.subr.mxu0 0.0
  %2186 = vmatpush2.xpose.msra.mxu0 0.0
  %2187 = vmatprep.subr.mxu0 0.0
  %2188 = vmatpush2.xpose.msra.mxu0 0.0
  %2189 = vmatprep.subr.mxu0 0.0
  %2190 = vmatpush2.xpose.msra.mxu0 0.0
  %2191 = vmatprep.subr.mxu0 0.0
  %2192 = vmatpush2.xpose.msra.mxu0 0.0
  %2193 = vmatprep.subr.mxu0 0.0
  %2194 = vmatpush2.xpose.msra.mxu0 0.0
  %2195 = vmatprep.subr.mxu0 0.0
  %2196 = vmatpush2.xpose.msra.mxu0 0.0
  %2197 = vmatprep.subr.mxu0 0.0
  %2198 = vmatpush2.xpose.msra.mxu0 0.0
  %2199 = vmatprep.subr.mxu0 0.0
  %2200 = vmatpush2.xpose.msra.mxu0 0.0
  %2201 = vmatprep.subr.mxu0 0.0
  %2202 = vmatpush2.xpose.msra.mxu0 0.0
  %2203 = vmatprep.subr.mxu0 0.0
  %2204 = vmatpush2.xpose.msra.mxu0 0.0
  %2205 = vmatprep.subr.mxu0 0.0
  %2206 = vmatpush2.xpose.msra.mxu0 0.0
  %2207 = vmatprep.mubr.f32.mxu0 0.0
  %2208 = vmatmul.mubr.f32.gmra.mxu0 %v2139
  %v2209 = vpop.f32.mrf.mxu0
  %v2210 = vadd.f32 %v1806, %v2209
  %v2211 = vpop.f32.mrf.mxu0
  %2212 = vdwg.mxu0
  %v2213 = vsel %vm173, %v2210, -inf
  %2214 = vmax.xlane.f32.xlu0 %v2213
  %v2215 = vpop.xlane.xlu0 %2214
  %v2216 = vsub.f32 %v2210, %v2215
  %v2217 = vmul.f32 %v2216, 1.442695
  %v2218 = vpow.pop %v2217
  %v2219 = vsel %vm173, %v2218, 0.0
  %2220 = vadd.xlane.f32.xlu0 %v2219
  %v2221 = vpop.xlane.xlu0 %2220
  %v2222 = vrcp.pop %v2221
  %v2223 = vmul.f32 %v2218, %v2222
  %2224 = vrot.lane.b32.xlu0 %v1795, 80
  %v2225 = vpop.permute.xlu0 %2224
  %v2228 = vsel %vm173, %v2223, 0
  %2230 = vmatprep.subr.mxu0 0.0
  %2231 = vmatpush1.msra.mxu0 0.0
  %2232 = vmatprep.subr.mxu0 0.0
  %2233 = vmatpush1.msra.mxu0 0.0
  %2234 = vmatprep.subr.mxu0 0.0
  %2235 = vmatpush1.msra.mxu0 0.0
  %2236 = vmatprep.subr.mxu0 0.0
  %2237 = vmatpush1.msra.mxu0 0.0
  %2238 = vmatprep.subr.mxu0 0.0
  %2239 = vmatpush1.msra.mxu0 0.0
  %2240 = vmatprep.subr.mxu0 0.0
  %2241 = vmatpush1.msra.mxu0 0.0
  %2242 = vmatprep.subr.mxu0 0.0
  %2243 = vmatpush1.msra.mxu0 0.0
  %2244 = vmatprep.subr.mxu0 0.0
  %2245 = vmatpush1.msra.mxu0 0.0
  %2246 = vmatprep.subr.mxu0 0.0
  %2247 = vmatpush1.msra.mxu0 0.0
  %2248 = vmatprep.subr.mxu0 0.0
  %2249 = vmatpush1.msra.mxu0 0.0
  %2250 = vmatprep.subr.mxu0 0.0
  %2251 = vmatpush1.msra.mxu0 0.0
  %2252 = vmatprep.subr.mxu0 0.0
  %2253 = vmatpush1.msra.mxu0 0.0
  %2254 = vmatprep.subr.mxu0 0.0
  %2255 = vmatpush1.msra.mxu0 0.0
  %2256 = vmatprep.subr.mxu0 0.0
  %2257 = vmatpush1.msra.mxu0 0.0
  %2258 = vmatprep.subr.mxu0 0.0
  %2259 = vmatpush1.msra.mxu0 0.0
  %2260 = vmatprep.subr.mxu0 0.0
  %2261 = vmatpush1.msra.mxu0 %v2225
  %2262 = vmatprep.subr.mxu0 0.0
  %2263 = vmatpush2.msra.mxu0 0.0
  %2264 = vmatprep.subr.mxu0 0.0
  %2265 = vmatpush2.msra.mxu0 0.0
  %2266 = vmatprep.subr.mxu0 0.0
  %2267 = vmatpush2.msra.mxu0 0.0
  %2268 = vmatprep.subr.mxu0 0.0
  %2269 = vmatpush2.msra.mxu0 0.0
  %2270 = vmatprep.subr.mxu0 0.0
  %2271 = vmatpush2.msra.mxu0 0.0
  %2272 = vmatprep.subr.mxu0 0.0
  %2273 = vmatpush2.msra.mxu0 0.0
  %2274 = vmatprep.subr.mxu0 0.0
  %2275 = vmatpush2.msra.mxu0 0.0
  %2276 = vmatprep.subr.mxu0 0.0
  %2277 = vmatpush2.msra.mxu0 0.0
  %2278 = vmatprep.subr.mxu0 0.0
  %2279 = vmatpush2.msra.mxu0 0.0
  %2280 = vmatprep.subr.mxu0 0.0
  %2281 = vmatpush2.msra.mxu0 0.0
  %2282 = vmatprep.subr.mxu0 0.0
  %2283 = vmatpush2.msra.mxu0 0.0
  %2284 = vmatprep.subr.mxu0 0.0
  %2285 = vmatpush2.msra.mxu0 0.0
  %2286 = vmatprep.subr.mxu0 0.0
  %2287 = vmatpush2.msra.mxu0 0.0
  %2288 = vmatprep.subr.mxu0 0.0
  %2289 = vmatpush2.msra.mxu0 0.0
  %2290 = vmatprep.subr.mxu0 0.0
  %2291 = vmatpush2.msra.mxu0 0.0
  %2292 = vmatprep.subr.mxu0 0.0
  %2293 = vmatpush2.msra.mxu0 0.0
  %2294 = vmatprep.mubr.f32.mxu0 0.0
  %2295 = vmatmul.mubr.f32.gmra.mxu0 %v2228
  %v2296 = vpop.f32.mrf.mxu0
  %v2297 = vadd.f32 0.0, %v2296
  %v2298 = vpop.f32.mrf.mxu0
  %2299 = vdwg.mxu0
  %2300 = vrot.lane.b32.xlu0 %v1710, 104
  %v2301 = vpop.permute.xlu0 %2300
  %2302 = vrot.lane.b32.xlu0 %v1795, 104
  %v2303 = vpop.permute.xlu0 %2302
  %v2304 = vsel %vm173, %v2301, 0
  %v2306 = vsel %vm173, %v2303, 0
  %2308 = vmatprep.subr.mxu0 0.0
  %2309 = vmatpush1.xpose.msra.mxu0 0.0
  %2310 = vmatprep.subr.mxu0 0.0
  %2311 = vmatpush1.xpose.msra.mxu0 0.0
  %2312 = vmatprep.subr.mxu0 0.0
  %2313 = vmatpush1.xpose.msra.mxu0 0.0
  %2314 = vmatprep.subr.mxu0 0.0
  %2315 = vmatpush1.xpose.msra.mxu0 0.0
  %2316 = vmatprep.subr.mxu0 0.0
  %2317 = vmatpush1.xpose.msra.mxu0 0.0
  %2318 = vmatprep.subr.mxu0 0.0
  %2319 = vmatpush1.xpose.msra.mxu0 0.0
  %2320 = vmatprep.subr.mxu0 0.0
  %2321 = vmatpush1.xpose.msra.mxu0 0.0
  %2322 = vmatprep.subr.mxu0 0.0
  %2323 = vmatpush1.xpose.msra.mxu0 0.0
  %2324 = vmatprep.subr.mxu0 0.0
  %2325 = vmatpush1.xpose.msra.mxu0 0.0
  %2326 = vmatprep.subr.mxu0 0.0
  %2327 = vmatpush1.xpose.msra.mxu0 0.0
  %2328 = vmatprep.subr.mxu0 0.0
  %2329 = vmatpush1.xpose.msra.mxu0 0.0
  %2330 = vmatprep.subr.mxu0 0.0
  %2331 = vmatpush1.xpose.msra.mxu0 0.0
  %2332 = vmatprep.subr.mxu0 0.0
  %2333 = vmatpush1.xpose.msra.mxu0 0.0
  %2334 = vmatprep.subr.mxu0 0.0
  %2335 = vmatpush1.xpose.msra.mxu0 0.0
  %2336 = vmatprep.subr.mxu0 0.0
  %2337 = vmatpush1.xpose.msra.mxu0 0.0
  %2338 = vmatprep.subr.mxu0 0.0
  %2339 = vmatpush1.xpose.msra.mxu0 %v2306
  %2340 = vmatprep.subr.mxu0 0.0
  %2341 = vmatpush2.xpose.msra.mxu0 0.0
  %2342 = vmatprep.subr.mxu0 0.0
  %2343 = vmatpush2.xpose.msra.mxu0 0.0
  %2344 = vmatprep.subr.mxu0 0.0
  %2345 = vmatpush2.xpose.msra.mxu0 0.0
  %2346 = vmatprep.subr.mxu0 0.0
  %2347 = vmatpush2.xpose.msra.mxu0 0.0
  %2348 = vmatprep.subr.mxu0 0.0
  %2349 = vmatpush2.xpose.msra.mxu0 0.0
  %2350 = vmatprep.subr.mxu0 0.0
  %2351 = vmatpush2.xpose.msra.mxu0 0.0
  %2352 = vmatprep.subr.mxu0 0.0
  %2353 = vmatpush2.xpose.msra.mxu0 0.0
  %2354 = vmatprep.subr.mxu0 0.0
  %2355 = vmatpush2.xpose.msra.mxu0 0.0
  %2356 = vmatprep.subr.mxu0 0.0
  %2357 = vmatpush2.xpose.msra.mxu0 0.0
  %2358 = vmatprep.subr.mxu0 0.0
  %2359 = vmatpush2.xpose.msra.mxu0 0.0
  %2360 = vmatprep.subr.mxu0 0.0
  %2361 = vmatpush2.xpose.msra.mxu0 0.0
  %2362 = vmatprep.subr.mxu0 0.0
  %2363 = vmatpush2.xpose.msra.mxu0 0.0
  %2364 = vmatprep.subr.mxu0 0.0
  %2365 = vmatpush2.xpose.msra.mxu0 0.0
  %2366 = vmatprep.subr.mxu0 0.0
  %2367 = vmatpush2.xpose.msra.mxu0 0.0
  %2368 = vmatprep.subr.mxu0 0.0
  %2369 = vmatpush2.xpose.msra.mxu0 0.0
  %2370 = vmatprep.subr.mxu0 0.0
  %2371 = vmatpush2.xpose.msra.mxu0 0.0
  %2372 = vmatprep.mubr.f32.mxu0 0.0
  %2373 = vmatmul.mubr.f32.gmra.mxu0 %v2304
  %v2374 = vpop.f32.mrf.mxu0
  %v2375 = vadd.f32 %v1806, %v2374
  %v2376 = vpop.f32.mrf.mxu0
  %2377 = vdwg.mxu0
  %v2378 = vsel %vm173, %v2375, -inf
  %2379 = vmax.xlane.f32.xlu0 %v2378
  %v2380 = vpop.xlane.xlu0 %2379
  %v2381 = vsub.f32 %v2375, %v2380
  %v2382 = vmul.f32 %v2381, 1.442695
  %v2383 = vpow.pop %v2382
  %v2384 = vsel %vm173, %v2383, 0.0
  %2385 = vadd.xlane.f32.xlu0 %v2384
  %v2386 = vpop.xlane.xlu0 %2385
  %v2387 = vrcp.pop %v2386
  %v2388 = vmul.f32 %v2383, %v2387
  %2389 = vrot.lane.b32.xlu0 %v1795, 72
  %v2390 = vpop.permute.xlu0 %2389
  %v2393 = vsel %vm173, %v2388, 0
  %2395 = vmatprep.subr.mxu0 0.0
  %2396 = vmatpush1.msra.mxu0 0.0
  %2397 = vmatprep.subr.mxu0 0.0
  %2398 = vmatpush1.msra.mxu0 0.0
  %2399 = vmatprep.subr.mxu0 0.0
  %2400 = vmatpush1.msra.mxu0 0.0
  %2401 = vmatprep.subr.mxu0 0.0
  %2402 = vmatpush1.msra.mxu0 0.0
  %2403 = vmatprep.subr.mxu0 0.0
  %2404 = vmatpush1.msra.mxu0 0.0
  %2405 = vmatprep.subr.mxu0 0.0
  %2406 = vmatpush1.msra.mxu0 0.0
  %2407 = vmatprep.subr.mxu0 0.0
  %2408 = vmatpush1.msra.mxu0 0.0
  %2409 = vmatprep.subr.mxu0 0.0
  %2410 = vmatpush1.msra.mxu0 0.0
  %2411 = vmatprep.subr.mxu0 0.0
  %2412 = vmatpush1.msra.mxu0 0.0
  %2413 = vmatprep.subr.mxu0 0.0
  %2414 = vmatpush1.msra.mxu0 0.0
  %2415 = vmatprep.subr.mxu0 0.0
  %2416 = vmatpush1.msra.mxu0 0.0
  %2417 = vmatprep.subr.mxu0 0.0
  %2418 = vmatpush1.msra.mxu0 0.0
  %2419 = vmatprep.subr.mxu0 0.0
  %2420 = vmatpush1.msra.mxu0 0.0
  %2421 = vmatprep.subr.mxu0 0.0
  %2422 = vmatpush1.msra.mxu0 0.0
  %2423 = vmatprep.subr.mxu0 0.0
  %2424 = vmatpush1.msra.mxu0 0.0
  %2425 = vmatprep.subr.mxu0 0.0
  %2426 = vmatpush1.msra.mxu0 %v2390
  %2427 = vmatprep.subr.mxu0 0.0
  %2428 = vmatpush2.msra.mxu0 0.0
  %2429 = vmatprep.subr.mxu0 0.0
  %2430 = vmatpush2.msra.mxu0 0.0
  %2431 = vmatprep.subr.mxu0 0.0
  %2432 = vmatpush2.msra.mxu0 0.0
  %2433 = vmatprep.subr.mxu0 0.0
  %2434 = vmatpush2.msra.mxu0 0.0
  %2435 = vmatprep.subr.mxu0 0.0
  %2436 = vmatpush2.msra.mxu0 0.0
  %2437 = vmatprep.subr.mxu0 0.0
  %2438 = vmatpush2.msra.mxu0 0.0
  %2439 = vmatprep.subr.mxu0 0.0
  %2440 = vmatpush2.msra.mxu0 0.0
  %2441 = vmatprep.subr.mxu0 0.0
  %2442 = vmatpush2.msra.mxu0 0.0
  %2443 = vmatprep.subr.mxu0 0.0
  %2444 = vmatpush2.msra.mxu0 0.0
  %2445 = vmatprep.subr.mxu0 0.0
  %2446 = vmatpush2.msra.mxu0 0.0
  %2447 = vmatprep.subr.mxu0 0.0
  %2448 = vmatpush2.msra.mxu0 0.0
  %2449 = vmatprep.subr.mxu0 0.0
  %2450 = vmatpush2.msra.mxu0 0.0
  %2451 = vmatprep.subr.mxu0 0.0
  %2452 = vmatpush2.msra.mxu0 0.0
  %2453 = vmatprep.subr.mxu0 0.0
  %2454 = vmatpush2.msra.mxu0 0.0
  %2455 = vmatprep.subr.mxu0 0.0
  %2456 = vmatpush2.msra.mxu0 0.0
  %2457 = vmatprep.subr.mxu0 0.0
  %2458 = vmatpush2.msra.mxu0 0.0
  %2459 = vmatprep.mubr.f32.mxu0 0.0
  %2460 = vmatmul.mubr.f32.gmra.mxu0 %v2393
  %v2461 = vpop.f32.mrf.mxu0
  %v2462 = vadd.f32 0.0, %v2461
  %v2463 = vpop.f32.mrf.mxu0
  %2464 = vdwg.mxu0
  %2466 = vrot.lane.b32.xlu0 %v2132, 8
  %v2467 = vpop.permute.xlu0 %2466
  %2470 = vrot.lane.b32.xlu0 %v2297, 16
  %v2471 = vpop.permute.xlu0 %2470
  %2474 = vrot.lane.b32.xlu0 %v2462, 24
  %v2475 = vpop.permute.xlu0 %2474
  %v2477 = vsel %vm173, %v1967, %v2467
  %v2478 = vsel %vm843, %v2477, %v2471
  %v2479 = vsel %vm845, %v2478, %v2475
  %v2480 = vlaneseq
  %v2481 = vshrl.u32 %v2480, 7
  %v2482 = vsub.s32 1, %v2481
  %v2483 = vrot.slane %v57, %v2482
  %v2485 = vsel %vm173, %v1715, 0
  %v2488 = vsel %vm173, %v1800, 0
  %2490 = vmatprep.subr.mxu0 0.0
  %2491 = vmatpush1.xpose.msra.mxu0 0.0
  %2492 = vmatprep.subr.mxu0 0.0
  %2493 = vmatpush1.xpose.msra.mxu0 0.0
  %2494 = vmatprep.subr.mxu0 0.0
  %2495 = vmatpush1.xpose.msra.mxu0 0.0
  %2496 = vmatprep.subr.mxu0 0.0
  %2497 = vmatpush1.xpose.msra.mxu0 0.0
  %2498 = vmatprep.subr.mxu0 0.0
  %2499 = vmatpush1.xpose.msra.mxu0 0.0
  %2500 = vmatprep.subr.mxu0 0.0
  %2501 = vmatpush1.xpose.msra.mxu0 0.0
  %2502 = vmatprep.subr.mxu0 0.0
  %2503 = vmatpush1.xpose.msra.mxu0 0.0
  %2504 = vmatprep.subr.mxu0 0.0
  %2505 = vmatpush1.xpose.msra.mxu0 0.0
  %2506 = vmatprep.subr.mxu0 0.0
  %2507 = vmatpush1.xpose.msra.mxu0 0.0
  %2508 = vmatprep.subr.mxu0 0.0
  %2509 = vmatpush1.xpose.msra.mxu0 0.0
  %2510 = vmatprep.subr.mxu0 0.0
  %2511 = vmatpush1.xpose.msra.mxu0 0.0
  %2512 = vmatprep.subr.mxu0 0.0
  %2513 = vmatpush1.xpose.msra.mxu0 0.0
  %2514 = vmatprep.subr.mxu0 0.0
  %2515 = vmatpush1.xpose.msra.mxu0 0.0
  %2516 = vmatprep.subr.mxu0 0.0
  %2517 = vmatpush1.xpose.msra.mxu0 0.0
  %2518 = vmatprep.subr.mxu0 0.0
  %2519 = vmatpush1.xpose.msra.mxu0 0.0
  %2520 = vmatprep.subr.mxu0 0.0
  %2521 = vmatpush1.xpose.msra.mxu0 %v2488
  %2522 = vmatprep.subr.mxu0 0.0
  %2523 = vmatpush2.xpose.msra.mxu0 0.0
  %2524 = vmatprep.subr.mxu0 0.0
  %2525 = vmatpush2.xpose.msra.mxu0 0.0
  %2526 = vmatprep.subr.mxu0 0.0
  %2527 = vmatpush2.xpose.msra.mxu0 0.0
  %2528 = vmatprep.subr.mxu0 0.0
  %2529 = vmatpush2.xpose.msra.mxu0 0.0
  %2530 = vmatprep.subr.mxu0 0.0
  %2531 = vmatpush2.xpose.msra.mxu0 0.0
  %2532 = vmatprep.subr.mxu0 0.0
  %2533 = vmatpush2.xpose.msra.mxu0 0.0
  %2534 = vmatprep.subr.mxu0 0.0
  %2535 = vmatpush2.xpose.msra.mxu0 0.0
  %2536 = vmatprep.subr.mxu0 0.0
  %2537 = vmatpush2.xpose.msra.mxu0 0.0
  %2538 = vmatprep.subr.mxu0 0.0
  %2539 = vmatpush2.xpose.msra.mxu0 0.0
  %2540 = vmatprep.subr.mxu0 0.0
  %2541 = vmatpush2.xpose.msra.mxu0 0.0
  %2542 = vmatprep.subr.mxu0 0.0
  %2543 = vmatpush2.xpose.msra.mxu0 0.0
  %2544 = vmatprep.subr.mxu0 0.0
  %2545 = vmatpush2.xpose.msra.mxu0 0.0
  %2546 = vmatprep.subr.mxu0 0.0
  %2547 = vmatpush2.xpose.msra.mxu0 0.0
  %2548 = vmatprep.subr.mxu0 0.0
  %2549 = vmatpush2.xpose.msra.mxu0 0.0
  %2550 = vmatprep.subr.mxu0 0.0
  %2551 = vmatpush2.xpose.msra.mxu0 0.0
  %2552 = vmatprep.subr.mxu0 0.0
  %2553 = vmatpush2.xpose.msra.mxu0 0.0
  %2554 = vmatprep.mubr.f32.mxu0 0.0
  %2555 = vmatmul.mubr.f32.gmra.mxu0 %v2485
  %v2556 = vpop.f32.mrf.mxu0
  %v2557 = vadd.f32 %v2483, %v2556
  %v2558 = vpop.f32.mrf.mxu0
  %2559 = vdwg.mxu0
  %v2560 = vsel %vm173, %v2557, -inf
  %2561 = vmax.xlane.f32.xlu0 %v2560
  %v2562 = vpop.xlane.xlu0 %2561
  %v2563 = vsub.f32 %v2557, %v2562
  %v2564 = vmul.f32 %v2563, 1.442695
  %v2565 = vpow.pop %v2564
  %v2566 = vsel %vm173, %v2565, 0.0
  %2567 = vadd.xlane.f32.xlu0 %v2566
  %v2568 = vpop.xlane.xlu0 %2567
  %v2569 = vrcp.pop %v2568
  %v2570 = vmul.f32 %v2565, %v2569
  %2571 = vrot.lane.b32.xlu0 %v1800, 96
  %v2572 = vpop.permute.xlu0 %2571
  %v2575 = vsel %vm173, %v2570, 0
  %2577 = vmatprep.subr.mxu0 0.0
  %2578 = vmatpush1.msra.mxu0 0.0
  %2579 = vmatprep.subr.mxu0 0.0
  %2580 = vmatpush1.msra.mxu0 0.0
  %2581 = vmatprep.subr.mxu0 0.0
  %2582 = vmatpush1.msra.mxu0 0.0
  %2583 = vmatprep.subr.mxu0 0.0
  %2584 = vmatpush1.msra.mxu0 0.0
  %2585 = vmatprep.subr.mxu0 0.0
  %2586 = vmatpush1.msra.mxu0 0.0
  %2587 = vmatprep.subr.mxu0 0.0
  %2588 = vmatpush1.msra.mxu0 0.0
  %2589 = vmatprep.subr.mxu0 0.0
  %2590 = vmatpush1.msra.mxu0 0.0
  %2591 = vmatprep.subr.mxu0 0.0
  %2592 = vmatpush1.msra.mxu0 0.0
  %2593 = vmatprep.subr.mxu0 0.0
  %2594 = vmatpush1.msra.mxu0 0.0
  %2595 = vmatprep.subr.mxu0 0.0
  %2596 = vmatpush1.msra.mxu0 0.0
  %2597 = vmatprep.subr.mxu0 0.0
  %2598 = vmatpush1.msra.mxu0 0.0
  %2599 = vmatprep.subr.mxu0 0.0
  %2600 = vmatpush1.msra.mxu0 0.0
  %2601 = vmatprep.subr.mxu0 0.0
  %2602 = vmatpush1.msra.mxu0 0.0
  %2603 = vmatprep.subr.mxu0 0.0
  %2604 = vmatpush1.msra.mxu0 0.0
  %2605 = vmatprep.subr.mxu0 0.0
  %2606 = vmatpush1.msra.mxu0 0.0
  %2607 = vmatprep.subr.mxu0 0.0
  %2608 = vmatpush1.msra.mxu0 %v2572
  %2609 = vmatprep.subr.mxu0 0.0
  %2610 = vmatpush2.msra.mxu0 0.0
  %2611 = vmatprep.subr.mxu0 0.0
  %2612 = vmatpush2.msra.mxu0 0.0
  %2613 = vmatprep.subr.mxu0 0.0
  %2614 = vmatpush2.msra.mxu0 0.0
  %2615 = vmatprep.subr.mxu0 0.0
  %2616 = vmatpush2.msra.mxu0 0.0
  %2617 = vmatprep.subr.mxu0 0.0
  %2618 = vmatpush2.msra.mxu0 0.0
  %2619 = vmatprep.subr.mxu0 0.0
  %2620 = vmatpush2.msra.mxu0 0.0
  %2621 = vmatprep.subr.mxu0 0.0
  %2622 = vmatpush2.msra.mxu0 0.0
  %2623 = vmatprep.subr.mxu0 0.0
  %2624 = vmatpush2.msra.mxu0 0.0
  %2625 = vmatprep.subr.mxu0 0.0
  %2626 = vmatpush2.msra.mxu0 0.0
  %2627 = vmatprep.subr.mxu0 0.0
  %2628 = vmatpush2.msra.mxu0 0.0
  %2629 = vmatprep.subr.mxu0 0.0
  %2630 = vmatpush2.msra.mxu0 0.0
  %2631 = vmatprep.subr.mxu0 0.0
  %2632 = vmatpush2.msra.mxu0 0.0
  %2633 = vmatprep.subr.mxu0 0.0
  %2634 = vmatpush2.msra.mxu0 0.0
  %2635 = vmatprep.subr.mxu0 0.0
  %2636 = vmatpush2.msra.mxu0 0.0
  %2637 = vmatprep.subr.mxu0 0.0
  %2638 = vmatpush2.msra.mxu0 0.0
  %2639 = vmatprep.subr.mxu0 0.0
  %2640 = vmatpush2.msra.mxu0 0.0
  %2641 = vmatprep.mubr.f32.mxu0 0.0
  %2642 = vmatmul.mubr.f32.gmra.mxu0 %v2575
  %v2643 = vpop.f32.mrf.mxu0
  %v2644 = vadd.f32 0.0, %v2643
  %v2645 = vpop.f32.mrf.mxu0
  %2646 = vdwg.mxu0
  %2647 = vrot.lane.b32.xlu0 %v1715, 120
  %v2648 = vpop.permute.xlu0 %2647
  %2649 = vrot.lane.b32.xlu0 %v1800, 120
  %v2650 = vpop.permute.xlu0 %2649
  %v2651 = vsel %vm173, %v2648, 0
  %v2653 = vsel %vm173, %v2650, 0
  %2655 = vmatprep.subr.mxu0 0.0
  %2656 = vmatpush1.xpose.msra.mxu0 0.0
  %2657 = vmatprep.subr.mxu0 0.0
  %2658 = vmatpush1.xpose.msra.mxu0 0.0
  %2659 = vmatprep.subr.mxu0 0.0
  %2660 = vmatpush1.xpose.msra.mxu0 0.0
  %2661 = vmatprep.subr.mxu0 0.0
  %2662 = vmatpush1.xpose.msra.mxu0 0.0
  %2663 = vmatprep.subr.mxu0 0.0
  %2664 = vmatpush1.xpose.msra.mxu0 0.0
  %2665 = vmatprep.subr.mxu0 0.0
  %2666 = vmatpush1.xpose.msra.mxu0 0.0
  %2667 = vmatprep.subr.mxu0 0.0
  %2668 = vmatpush1.xpose.msra.mxu0 0.0
  %2669 = vmatprep.subr.mxu0 0.0
  %2670 = vmatpush1.xpose.msra.mxu0 0.0
  %2671 = vmatprep.subr.mxu0 0.0
  %2672 = vmatpush1.xpose.msra.mxu0 0.0
  %2673 = vmatprep.subr.mxu0 0.0
  %2674 = vmatpush1.xpose.msra.mxu0 0.0
  %2675 = vmatprep.subr.mxu0 0.0
  %2676 = vmatpush1.xpose.msra.mxu0 0.0
  %2677 = vmatprep.subr.mxu0 0.0
  %2678 = vmatpush1.xpose.msra.mxu0 0.0
  %2679 = vmatprep.subr.mxu0 0.0
  %2680 = vmatpush1.xpose.msra.mxu0 0.0
  %2681 = vmatprep.subr.mxu0 0.0
  %2682 = vmatpush1.xpose.msra.mxu0 0.0
  %2683 = vmatprep.subr.mxu0 0.0
  %2684 = vmatpush1.xpose.msra.mxu0 0.0
  %2685 = vmatprep.subr.mxu0 0.0
  %2686 = vmatpush1.xpose.msra.mxu0 %v2653
  %2687 = vmatprep.subr.mxu0 0.0
  %2688 = vmatpush2.xpose.msra.mxu0 0.0
  %2689 = vmatprep.subr.mxu0 0.0
  %2690 = vmatpush2.xpose.msra.mxu0 0.0
  %2691 = vmatprep.subr.mxu0 0.0
  %2692 = vmatpush2.xpose.msra.mxu0 0.0
  %2693 = vmatprep.subr.mxu0 0.0
  %2694 = vmatpush2.xpose.msra.mxu0 0.0
  %2695 = vmatprep.subr.mxu0 0.0
  %2696 = vmatpush2.xpose.msra.mxu0 0.0
  %2697 = vmatprep.subr.mxu0 0.0
  %2698 = vmatpush2.xpose.msra.mxu0 0.0
  %2699 = vmatprep.subr.mxu0 0.0
  %2700 = vmatpush2.xpose.msra.mxu0 0.0
  %2701 = vmatprep.subr.mxu0 0.0
  %2702 = vmatpush2.xpose.msra.mxu0 0.0
  %2703 = vmatprep.subr.mxu0 0.0
  %2704 = vmatpush2.xpose.msra.mxu0 0.0
  %2705 = vmatprep.subr.mxu0 0.0
  %2706 = vmatpush2.xpose.msra.mxu0 0.0
  %2707 = vmatprep.subr.mxu0 0.0
  %2708 = vmatpush2.xpose.msra.mxu0 0.0
  %2709 = vmatprep.subr.mxu0 0.0
  %2710 = vmatpush2.xpose.msra.mxu0 0.0
  %2711 = vmatprep.subr.mxu0 0.0
  %2712 = vmatpush2.xpose.msra.mxu0 0.0
  %2713 = vmatprep.subr.mxu0 0.0
  %2714 = vmatpush2.xpose.msra.mxu0 0.0
  %2715 = vmatprep.subr.mxu0 0.0
  %2716 = vmatpush2.xpose.msra.mxu0 0.0
  %2717 = vmatprep.subr.mxu0 0.0
  %2718 = vmatpush2.xpose.msra.mxu0 0.0
  %2719 = vmatprep.mubr.f32.mxu0 0.0
  %2720 = vmatmul.mubr.f32.gmra.mxu0 %v2651
  %v2721 = vpop.f32.mrf.mxu0
  %v2722 = vadd.f32 %v2483, %v2721
  %v2723 = vpop.f32.mrf.mxu0
  %2724 = vdwg.mxu0
  %v2725 = vsel %vm173, %v2722, -inf
  %2726 = vmax.xlane.f32.xlu0 %v2725
  %v2727 = vpop.xlane.xlu0 %2726
  %v2728 = vsub.f32 %v2722, %v2727
  %v2729 = vmul.f32 %v2728, 1.442695
  %v2730 = vpow.pop %v2729
  %v2731 = vsel %vm173, %v2730, 0.0
  %2732 = vadd.xlane.f32.xlu0 %v2731
  %v2733 = vpop.xlane.xlu0 %2732
  %v2734 = vrcp.pop %v2733
  %v2735 = vmul.f32 %v2730, %v2734
  %2736 = vrot.lane.b32.xlu0 %v1800, 88
  %v2737 = vpop.permute.xlu0 %2736
  %v2740 = vsel %vm173, %v2735, 0
  %2742 = vmatprep.subr.mxu0 0.0
  %2743 = vmatpush1.msra.mxu0 0.0
  %2744 = vmatprep.subr.mxu0 0.0
  %2745 = vmatpush1.msra.mxu0 0.0
  %2746 = vmatprep.subr.mxu0 0.0
  %2747 = vmatpush1.msra.mxu0 0.0
  %2748 = vmatprep.subr.mxu0 0.0
  %2749 = vmatpush1.msra.mxu0 0.0
  %2750 = vmatprep.subr.mxu0 0.0
  %2751 = vmatpush1.msra.mxu0 0.0
  %2752 = vmatprep.subr.mxu0 0.0
  %2753 = vmatpush1.msra.mxu0 0.0
  %2754 = vmatprep.subr.mxu0 0.0
  %2755 = vmatpush1.msra.mxu0 0.0
  %2756 = vmatprep.subr.mxu0 0.0
  %2757 = vmatpush1.msra.mxu0 0.0
  %2758 = vmatprep.subr.mxu0 0.0
  %2759 = vmatpush1.msra.mxu0 0.0
  %2760 = vmatprep.subr.mxu0 0.0
  %2761 = vmatpush1.msra.mxu0 0.0
  %2762 = vmatprep.subr.mxu0 0.0
  %2763 = vmatpush1.msra.mxu0 0.0
  %2764 = vmatprep.subr.mxu0 0.0
  %2765 = vmatpush1.msra.mxu0 0.0
  %2766 = vmatprep.subr.mxu0 0.0
  %2767 = vmatpush1.msra.mxu0 0.0
  %2768 = vmatprep.subr.mxu0 0.0
  %2769 = vmatpush1.msra.mxu0 0.0
  %2770 = vmatprep.subr.mxu0 0.0
  %2771 = vmatpush1.msra.mxu0 0.0
  %2772 = vmatprep.subr.mxu0 0.0
  %2773 = vmatpush1.msra.mxu0 %v2737
  %2774 = vmatprep.subr.mxu0 0.0
  %2775 = vmatpush2.msra.mxu0 0.0
  %2776 = vmatprep.subr.mxu0 0.0
  %2777 = vmatpush2.msra.mxu0 0.0
  %2778 = vmatprep.subr.mxu0 0.0
  %2779 = vmatpush2.msra.mxu0 0.0
  %2780 = vmatprep.subr.mxu0 0.0
  %2781 = vmatpush2.msra.mxu0 0.0
  %2782 = vmatprep.subr.mxu0 0.0
  %2783 = vmatpush2.msra.mxu0 0.0
  %2784 = vmatprep.subr.mxu0 0.0
  %2785 = vmatpush2.msra.mxu0 0.0
  %2786 = vmatprep.subr.mxu0 0.0
  %2787 = vmatpush2.msra.mxu0 0.0
  %2788 = vmatprep.subr.mxu0 0.0
  %2789 = vmatpush2.msra.mxu0 0.0
  %2790 = vmatprep.subr.mxu0 0.0
  %2791 = vmatpush2.msra.mxu0 0.0
  %2792 = vmatprep.subr.mxu0 0.0
  %2793 = vmatpush2.msra.mxu0 0.0
  %2794 = vmatprep.subr.mxu0 0.0
  %2795 = vmatpush2.msra.mxu0 0.0
  %2796 = vmatprep.subr.mxu0 0.0
  %2797 = vmatpush2.msra.mxu0 0.0
  %2798 = vmatprep.subr.mxu0 0.0
  %2799 = vmatpush2.msra.mxu0 0.0
  %2800 = vmatprep.subr.mxu0 0.0
  %2801 = vmatpush2.msra.mxu0 0.0
  %2802 = vmatprep.subr.mxu0 0.0
  %2803 = vmatpush2.msra.mxu0 0.0
  %2804 = vmatprep.subr.mxu0 0.0
  %2805 = vmatpush2.msra.mxu0 0.0
  %2806 = vmatprep.mubr.f32.mxu0 0.0
  %2807 = vmatmul.mubr.f32.gmra.mxu0 %v2740
  %v2808 = vpop.f32.mrf.mxu0
  %v2809 = vadd.f32 0.0, %v2808
  %v2810 = vpop.f32.mrf.mxu0
  %2811 = vdwg.mxu0
  %2812 = vrot.lane.b32.xlu0 %v1715, 112
  %v2813 = vpop.permute.xlu0 %2812
  %2814 = vrot.lane.b32.xlu0 %v1800, 112
  %v2815 = vpop.permute.xlu0 %2814
  %v2816 = vsel %vm173, %v2813, 0
  %v2818 = vsel %vm173, %v2815, 0
  %2820 = vmatprep.subr.mxu0 0.0
  %2821 = vmatpush1.xpose.msra.mxu0 0.0
  %2822 = vmatprep.subr.mxu0 0.0
  %2823 = vmatpush1.xpose.msra.mxu0 0.0
  %2824 = vmatprep.subr.mxu0 0.0
  %2825 = vmatpush1.xpose.msra.mxu0 0.0
  %2826 = vmatprep.subr.mxu0 0.0
  %2827 = vmatpush1.xpose.msra.mxu0 0.0
  %2828 = vmatprep.subr.mxu0 0.0
  %2829 = vmatpush1.xpose.msra.mxu0 0.0
  %2830 = vmatprep.subr.mxu0 0.0
  %2831 = vmatpush1.xpose.msra.mxu0 0.0
  %2832 = vmatprep.subr.mxu0 0.0
  %2833 = vmatpush1.xpose.msra.mxu0 0.0
  %2834 = vmatprep.subr.mxu0 0.0
  %2835 = vmatpush1.xpose.msra.mxu0 0.0
  %2836 = vmatprep.subr.mxu0 0.0
  %2837 = vmatpush1.xpose.msra.mxu0 0.0
  %2838 = vmatprep.subr.mxu0 0.0
  %2839 = vmatpush1.xpose.msra.mxu0 0.0
  %2840 = vmatprep.subr.mxu0 0.0
  %2841 = vmatpush1.xpose.msra.mxu0 0.0
  %2842 = vmatprep.subr.mxu0 0.0
  %2843 = vmatpush1.xpose.msra.mxu0 0.0
  %2844 = vmatprep.subr.mxu0 0.0
  %2845 = vmatpush1.xpose.msra.mxu0 0.0
  %2846 = vmatprep.subr.mxu0 0.0
  %2847 = vmatpush1.xpose.msra.mxu0 0.0
  %2848 = vmatprep.subr.mxu0 0.0
  %2849 = vmatpush1.xpose.msra.mxu0 0.0
  %2850 = vmatprep.subr.mxu0 0.0
  %2851 = vmatpush1.xpose.msra.mxu0 %v2818
  %2852 = vmatprep.subr.mxu0 0.0
  %2853 = vmatpush2.xpose.msra.mxu0 0.0
  %2854 = vmatprep.subr.mxu0 0.0
  %2855 = vmatpush2.xpose.msra.mxu0 0.0
  %2856 = vmatprep.subr.mxu0 0.0
  %2857 = vmatpush2.xpose.msra.mxu0 0.0
  %2858 = vmatprep.subr.mxu0 0.0
  %2859 = vmatpush2.xpose.msra.mxu0 0.0
  %2860 = vmatprep.subr.mxu0 0.0
  %2861 = vmatpush2.xpose.msra.mxu0 0.0
  %2862 = vmatprep.subr.mxu0 0.0
  %2863 = vmatpush2.xpose.msra.mxu0 0.0
  %2864 = vmatprep.subr.mxu0 0.0
  %2865 = vmatpush2.xpose.msra.mxu0 0.0
  %2866 = vmatprep.subr.mxu0 0.0
  %2867 = vmatpush2.xpose.msra.mxu0 0.0
  %2868 = vmatprep.subr.mxu0 0.0
  %2869 = vmatpush2.xpose.msra.mxu0 0.0
  %2870 = vmatprep.subr.mxu0 0.0
  %2871 = vmatpush2.xpose.msra.mxu0 0.0
  %2872 = vmatprep.subr.mxu0 0.0
  %2873 = vmatpush2.xpose.msra.mxu0 0.0
  %2874 = vmatprep.subr.mxu0 0.0
  %2875 = vmatpush2.xpose.msra.mxu0 0.0
  %2876 = vmatprep.subr.mxu0 0.0
  %2877 = vmatpush2.xpose.msra.mxu0 0.0
  %2878 = vmatprep.subr.mxu0 0.0
  %2879 = vmatpush2.xpose.msra.mxu0 0.0
  %2880 = vmatprep.subr.mxu0 0.0
  %2881 = vmatpush2.xpose.msra.mxu0 0.0
  %2882 = vmatprep.subr.mxu0 0.0
  %2883 = vmatpush2.xpose.msra.mxu0 0.0
  %2884 = vmatprep.mubr.f32.mxu0 0.0
  %2885 = vmatmul.mubr.f32.gmra.mxu0 %v2816
  %v2886 = vpop.f32.mrf.mxu0
  %v2887 = vadd.f32 %v2483, %v2886
  %v2888 = vpop.f32.mrf.mxu0
  %2889 = vdwg.mxu0
  %v2890 = vsel %vm173, %v2887, -inf
  %2891 = vmax.xlane.f32.xlu0 %v2890
  %v2892 = vpop.xlane.xlu0 %2891
  %v2893 = vsub.f32 %v2887, %v2892
  %v2894 = vmul.f32 %v2893, 1.442695
  %v2895 = vpow.pop %v2894
  %v2896 = vsel %vm173, %v2895, 0.0
  %2897 = vadd.xlane.f32.xlu0 %v2896
  %v2898 = vpop.xlane.xlu0 %2897
  %v2899 = vrcp.pop %v2898
  %v2900 = vmul.f32 %v2895, %v2899
  %2901 = vrot.lane.b32.xlu0 %v1800, 80
  %v2902 = vpop.permute.xlu0 %2901
  %v2905 = vsel %vm173, %v2900, 0
  %2907 = vmatprep.subr.mxu0 0.0
  %2908 = vmatpush1.msra.mxu0 0.0
  %2909 = vmatprep.subr.mxu0 0.0
  %2910 = vmatpush1.msra.mxu0 0.0
  %2911 = vmatprep.subr.mxu0 0.0
  %2912 = vmatpush1.msra.mxu0 0.0
  %2913 = vmatprep.subr.mxu0 0.0
  %2914 = vmatpush1.msra.mxu0 0.0
  %2915 = vmatprep.subr.mxu0 0.0
  %2916 = vmatpush1.msra.mxu0 0.0
  %2917 = vmatprep.subr.mxu0 0.0
  %2918 = vmatpush1.msra.mxu0 0.0
  %2919 = vmatprep.subr.mxu0 0.0
  %2920 = vmatpush1.msra.mxu0 0.0
  %2921 = vmatprep.subr.mxu0 0.0
  %2922 = vmatpush1.msra.mxu0 0.0
  %2923 = vmatprep.subr.mxu0 0.0
  %2924 = vmatpush1.msra.mxu0 0.0
  %2925 = vmatprep.subr.mxu0 0.0
  %2926 = vmatpush1.msra.mxu0 0.0
  %2927 = vmatprep.subr.mxu0 0.0
  %2928 = vmatpush1.msra.mxu0 0.0
  %2929 = vmatprep.subr.mxu0 0.0
  %2930 = vmatpush1.msra.mxu0 0.0
  %2931 = vmatprep.subr.mxu0 0.0
  %2932 = vmatpush1.msra.mxu0 0.0
  %2933 = vmatprep.subr.mxu0 0.0
  %2934 = vmatpush1.msra.mxu0 0.0
  %2935 = vmatprep.subr.mxu0 0.0
  %2936 = vmatpush1.msra.mxu0 0.0
  %2937 = vmatprep.subr.mxu0 0.0
  %2938 = vmatpush1.msra.mxu0 %v2902
  %2939 = vmatprep.subr.mxu0 0.0
  %2940 = vmatpush2.msra.mxu0 0.0
  %2941 = vmatprep.subr.mxu0 0.0
  %2942 = vmatpush2.msra.mxu0 0.0
  %2943 = vmatprep.subr.mxu0 0.0
  %2944 = vmatpush2.msra.mxu0 0.0
  %2945 = vmatprep.subr.mxu0 0.0
  %2946 = vmatpush2.msra.mxu0 0.0
  %2947 = vmatprep.subr.mxu0 0.0
  %2948 = vmatpush2.msra.mxu0 0.0
  %2949 = vmatprep.subr.mxu0 0.0
  %2950 = vmatpush2.msra.mxu0 0.0
  %2951 = vmatprep.subr.mxu0 0.0
  %2952 = vmatpush2.msra.mxu0 0.0
  %2953 = vmatprep.subr.mxu0 0.0
  %2954 = vmatpush2.msra.mxu0 0.0
  %2955 = vmatprep.subr.mxu0 0.0
  %2956 = vmatpush2.msra.mxu0 0.0
  %2957 = vmatprep.subr.mxu0 0.0
  %2958 = vmatpush2.msra.mxu0 0.0
  %2959 = vmatprep.subr.mxu0 0.0
  %2960 = vmatpush2.msra.mxu0 0.0
  %2961 = vmatprep.subr.mxu0 0.0
  %2962 = vmatpush2.msra.mxu0 0.0
  %2963 = vmatprep.subr.mxu0 0.0
  %2964 = vmatpush2.msra.mxu0 0.0
  %2965 = vmatprep.subr.mxu0 0.0
  %2966 = vmatpush2.msra.mxu0 0.0
  %2967 = vmatprep.subr.mxu0 0.0
  %2968 = vmatpush2.msra.mxu0 0.0
  %2969 = vmatprep.subr.mxu0 0.0
  %2970 = vmatpush2.msra.mxu0 0.0
  %2971 = vmatprep.mubr.f32.mxu0 0.0
  %2972 = vmatmul.mubr.f32.gmra.mxu0 %v2905
  %v2973 = vpop.f32.mrf.mxu0
  %v2974 = vadd.f32 0.0, %v2973
  %v2975 = vpop.f32.mrf.mxu0
  %2976 = vdwg.mxu0
  %2977 = vrot.lane.b32.xlu0 %v1715, 104
  %v2978 = vpop.permute.xlu0 %2977
  %2979 = vrot.lane.b32.xlu0 %v1800, 104
  %v2980 = vpop.permute.xlu0 %2979
  %v2981 = vsel %vm173, %v2978, 0
  %v2983 = vsel %vm173, %v2980, 0
  %2985 = vmatprep.subr.mxu0 0.0
  %2986 = vmatpush1.xpose.msra.mxu0 0.0
  %2987 = vmatprep.subr.mxu0 0.0
  %2988 = vmatpush1.xpose.msra.mxu0 0.0
  %2989 = vmatprep.subr.mxu0 0.0
  %2990 = vmatpush1.xpose.msra.mxu0 0.0
  %2991 = vmatprep.subr.mxu0 0.0
  %2992 = vmatpush1.xpose.msra.mxu0 0.0
  %2993 = vmatprep.subr.mxu0 0.0
  %2994 = vmatpush1.xpose.msra.mxu0 0.0
  %2995 = vmatprep.subr.mxu0 0.0
  %2996 = vmatpush1.xpose.msra.mxu0 0.0
  %2997 = vmatprep.subr.mxu0 0.0
  %2998 = vmatpush1.xpose.msra.mxu0 0.0
  %2999 = vmatprep.subr.mxu0 0.0
  %3000 = vmatpush1.xpose.msra.mxu0 0.0
  %3001 = vmatprep.subr.mxu0 0.0
  %3002 = vmatpush1.xpose.msra.mxu0 0.0
  %3003 = vmatprep.subr.mxu0 0.0
  %3004 = vmatpush1.xpose.msra.mxu0 0.0
  %3005 = vmatprep.subr.mxu0 0.0
  %3006 = vmatpush1.xpose.msra.mxu0 0.0
  %3007 = vmatprep.subr.mxu0 0.0
  %3008 = vmatpush1.xpose.msra.mxu0 0.0
  %3009 = vmatprep.subr.mxu0 0.0
  %3010 = vmatpush1.xpose.msra.mxu0 0.0
  %3011 = vmatprep.subr.mxu0 0.0
  %3012 = vmatpush1.xpose.msra.mxu0 0.0
  %3013 = vmatprep.subr.mxu0 0.0
  %3014 = vmatpush1.xpose.msra.mxu0 0.0
  %3015 = vmatprep.subr.mxu0 0.0
  %3016 = vmatpush1.xpose.msra.mxu0 %v2983
  %3017 = vmatprep.subr.mxu0 0.0
  %3018 = vmatpush2.xpose.msra.mxu0 0.0
  %3019 = vmatprep.subr.mxu0 0.0
  %3020 = vmatpush2.xpose.msra.mxu0 0.0
  %3021 = vmatprep.subr.mxu0 0.0
  %3022 = vmatpush2.xpose.msra.mxu0 0.0
  %3023 = vmatprep.subr.mxu0 0.0
  %3024 = vmatpush2.xpose.msra.mxu0 0.0
  %3025 = vmatprep.subr.mxu0 0.0
  %3026 = vmatpush2.xpose.msra.mxu0 0.0
  %3027 = vmatprep.subr.mxu0 0.0
  %3028 = vmatpush2.xpose.msra.mxu0 0.0
  %3029 = vmatprep.subr.mxu0 0.0
  %3030 = vmatpush2.xpose.msra.mxu0 0.0
  %3031 = vmatprep.subr.mxu0 0.0
  %3032 = vmatpush2.xpose.msra.mxu0 0.0
  %3033 = vmatprep.subr.mxu0 0.0
  %3034 = vmatpush2.xpose.msra.mxu0 0.0
  %3035 = vmatprep.subr.mxu0 0.0
  %3036 = vmatpush2.xpose.msra.mxu0 0.0
  %3037 = vmatprep.subr.mxu0 0.0
  %3038 = vmatpush2.xpose.msra.mxu0 0.0
  %3039 = vmatprep.subr.mxu0 0.0
  %3040 = vmatpush2.xpose.msra.mxu0 0.0
  %3041 = vmatprep.subr.mxu0 0.0
  %3042 = vmatpush2.xpose.msra.mxu0 0.0
  %3043 = vmatprep.subr.mxu0 0.0
  %3044 = vmatpush2.xpose.msra.mxu0 0.0
  %3045 = vmatprep.subr.mxu0 0.0
  %3046 = vmatpush2.xpose.msra.mxu0 0.0
  %3047 = vmatprep.subr.mxu0 0.0
  %3048 = vmatpush2.xpose.msra.mxu0 0.0
  %3049 = vmatprep.mubr.f32.mxu0 0.0
  %3050 = vmatmul.mubr.f32.gmra.mxu0 %v2981
  %v3051 = vpop.f32.mrf.mxu0
  %v3052 = vadd.f32 %v2483, %v3051
  %v3053 = vpop.f32.mrf.mxu0
  %3054 = vdwg.mxu0
  %v3055 = vsel %vm173, %v3052, -inf
  %3056 = vmax.xlane.f32.xlu0 %v3055
  %v3057 = vpop.xlane.xlu0 %3056
  %v3058 = vsub.f32 %v3052, %v3057
  %v3059 = vmul.f32 %v3058, 1.442695
  %v3060 = vpow.pop %v3059
  %v3061 = vsel %vm173, %v3060, 0.0
  %3062 = vadd.xlane.f32.xlu0 %v3061
  %v3063 = vpop.xlane.xlu0 %3062
  %v3064 = vrcp.pop %v3063
  %v3065 = vmul.f32 %v3060, %v3064
  %3066 = vrot.lane.b32.xlu0 %v1800, 72
  %v3067 = vpop.permute.xlu0 %3066
  %v3070 = vsel %vm173, %v3065, 0
  %3072 = vmatprep.subr.mxu0 0.0
  %3073 = vmatpush1.msra.mxu0 0.0
  %3074 = vmatprep.subr.mxu0 0.0
  %3075 = vmatpush1.msra.mxu0 0.0
  %3076 = vmatprep.subr.mxu0 0.0
  %3077 = vmatpush1.msra.mxu0 0.0
  %3078 = vmatprep.subr.mxu0 0.0
  %3079 = vmatpush1.msra.mxu0 0.0
  %3080 = vmatprep.subr.mxu0 0.0
  %3081 = vmatpush1.msra.mxu0 0.0
  %3082 = vmatprep.subr.mxu0 0.0
  %3083 = vmatpush1.msra.mxu0 0.0
  %3084 = vmatprep.subr.mxu0 0.0
  %3085 = vmatpush1.msra.mxu0 0.0
  %3086 = vmatprep.subr.mxu0 0.0
  %3087 = vmatpush1.msra.mxu0 0.0
  %3088 = vmatprep.subr.mxu0 0.0
  %3089 = vmatpush1.msra.mxu0 0.0
  %3090 = vmatprep.subr.mxu0 0.0
  %3091 = vmatpush1.msra.mxu0 0.0
  %3092 = vmatprep.subr.mxu0 0.0
  %3093 = vmatpush1.msra.mxu0 0.0
  %3094 = vmatprep.subr.mxu0 0.0
  %3095 = vmatpush1.msra.mxu0 0.0
  %3096 = vmatprep.subr.mxu0 0.0
  %3097 = vmatpush1.msra.mxu0 0.0
  %3098 = vmatprep.subr.mxu0 0.0
  %3099 = vmatpush1.msra.mxu0 0.0
  %3100 = vmatprep.subr.mxu0 0.0
  %3101 = vmatpush1.msra.mxu0 0.0
  %3102 = vmatprep.subr.mxu0 0.0
  %3103 = vmatpush1.msra.mxu0 %v3067
  %3104 = vmatprep.subr.mxu0 0.0
  %3105 = vmatpush2.msra.mxu0 0.0
  %3106 = vmatprep.subr.mxu0 0.0
  %3107 = vmatpush2.msra.mxu0 0.0
  %3108 = vmatprep.subr.mxu0 0.0
  %3109 = vmatpush2.msra.mxu0 0.0
  %3110 = vmatprep.subr.mxu0 0.0
  %3111 = vmatpush2.msra.mxu0 0.0
  %3112 = vmatprep.subr.mxu0 0.0
  %3113 = vmatpush2.msra.mxu0 0.0
  %3114 = vmatprep.subr.mxu0 0.0
  %3115 = vmatpush2.msra.mxu0 0.0
  %3116 = vmatprep.subr.mxu0 0.0
  %3117 = vmatpush2.msra.mxu0 0.0
  %3118 = vmatprep.subr.mxu0 0.0
  %3119 = vmatpush2.msra.mxu0 0.0
  %3120 = vmatprep.subr.mxu0 0.0
  %3121 = vmatpush2.msra.mxu0 0.0
  %3122 = vmatprep.subr.mxu0 0.0
  %3123 = vmatpush2.msra.mxu0 0.0
  %3124 = vmatprep.subr.mxu0 0.0
  %3125 = vmatpush2.msra.mxu0 0.0
  %3126 = vmatprep.subr.mxu0 0.0
  %3127 = vmatpush2.msra.mxu0 0.0
  %3128 = vmatprep.subr.mxu0 0.0
  %3129 = vmatpush2.msra.mxu0 0.0
  %3130 = vmatprep.subr.mxu0 0.0
  %3131 = vmatpush2.msra.mxu0 0.0
  %3132 = vmatprep.subr.mxu0 0.0
  %3133 = vmatpush2.msra.mxu0 0.0
  %3134 = vmatprep.subr.mxu0 0.0
  %3135 = vmatpush2.msra.mxu0 0.0
  %3136 = vmatprep.mubr.f32.mxu0 0.0
  %3137 = vmatmul.mubr.f32.gmra.mxu0 %v3070
  %v3138 = vpop.f32.mrf.mxu0
  %v3139 = vadd.f32 0.0, %v3138
  %v3140 = vpop.f32.mrf.mxu0
  %3141 = vdwg.mxu0
  %3143 = vrot.lane.b32.xlu0 %v2809, 8
  %v3144 = vpop.permute.xlu0 %3143
  %3147 = vrot.lane.b32.xlu0 %v2974, 16
  %v3148 = vpop.permute.xlu0 %3147
  %3151 = vrot.lane.b32.xlu0 %v3139, 24
  %v3152 = vpop.permute.xlu0 %3151
  %v3154 = vsel %vm173, %v2644, %v3144
  %v3155 = vsel %vm843, %v3154, %v3148
  %v3156 = vsel %vm845, %v3155, %v3152
  %v3157 = vld [vmem:[%s10] sm:$0xff]
  %v3158 = vld [vmem:[%s10 + $0x8] sm:$0xff]
  %v3159 = vld [vmem:[%s10 + $0x10] sm:$0xff]
  %v3160 = vld [vmem:[%s10 + $0x18] sm:$0xff]
  %v3162 = vsel %vm61, %v2479, 0
  %v3165 = vsel %vm61, %v3156, 0
  %3167 = vmatprep.subr.mxu0 0.0
  %3168 = vmatpush1.msra.mxu0 0.0
  %3169 = vmatprep.subr.mxu0 0.0
  %3170 = vmatpush1.msra.mxu0 0.0
  %3171 = vmatprep.subr.mxu0 0.0
  %3172 = vmatpush1.msra.mxu0 0.0
  %3173 = vmatprep.subr.mxu0 0.0
  %3174 = vmatpush1.msra.mxu0 0.0
  %3175 = vmatprep.subr.mxu0 0.0
  %3176 = vmatpush1.msra.mxu0 0.0
  %3177 = vmatprep.subr.mxu0 0.0
  %3178 = vmatpush1.msra.mxu0 0.0
  %3179 = vmatprep.subr.mxu0 0.0
  %3180 = vmatpush1.msra.mxu0 0.0
  %3181 = vmatprep.subr.mxu0 0.0
  %3182 = vmatpush1.msra.mxu0 0.0
  %3183 = vmatprep.subr.mxu0 0.0
  %3184 = vmatpush1.msra.mxu0 0.0
  %3185 = vmatprep.subr.mxu0 0.0
  %3186 = vmatpush1.msra.mxu0 0.0
  %3187 = vmatprep.subr.mxu0 0.0
  %3188 = vmatpush1.msra.mxu0 0.0
  %3189 = vmatprep.subr.mxu0 0.0
  %3190 = vmatpush1.msra.mxu0 0.0
  %3191 = vmatprep.subr.mxu0 0.0
  %3192 = vmatpush1.msra.mxu0 %v3160
  %3193 = vmatprep.subr.mxu0 0.0
  %3194 = vmatpush1.msra.mxu0 %v3159
  %3195 = vmatprep.subr.mxu0 0.0
  %3196 = vmatpush1.msra.mxu0 %v3158
  %3197 = vmatprep.subr.mxu0 0.0
  %3198 = vmatpush1.msra.mxu0 %v3157
  %3199 = vmatprep.subr.mxu0 0.0
  %3200 = vmatpush2.msra.mxu0 0.0
  %3201 = vmatprep.subr.mxu0 0.0
  %3202 = vmatpush2.msra.mxu0 0.0
  %3203 = vmatprep.subr.mxu0 0.0
  %3204 = vmatpush2.msra.mxu0 0.0
  %3205 = vmatprep.subr.mxu0 0.0
  %3206 = vmatpush2.msra.mxu0 0.0
  %3207 = vmatprep.subr.mxu0 0.0
  %3208 = vmatpush2.msra.mxu0 0.0
  %3209 = vmatprep.subr.mxu0 0.0
  %3210 = vmatpush2.msra.mxu0 0.0
  %3211 = vmatprep.subr.mxu0 0.0
  %3212 = vmatpush2.msra.mxu0 0.0
  %3213 = vmatprep.subr.mxu0 0.0
  %3214 = vmatpush2.msra.mxu0 0.0
  %3215 = vmatprep.subr.mxu0 0.0
  %3216 = vmatpush2.msra.mxu0 0.0
  %3217 = vmatprep.subr.mxu0 0.0
  %3218 = vmatpush2.msra.mxu0 0.0
  %3219 = vmatprep.subr.mxu0 0.0
  %3220 = vmatpush2.msra.mxu0 0.0
  %3221 = vmatprep.subr.mxu0 0.0
  %3222 = vmatpush2.msra.mxu0 0.0
  %3223 = vmatprep.subr.mxu0 0.0
  %3224 = vmatpush2.msra.mxu0 0.0
  %3225 = vmatprep.subr.mxu0 0.0
  %3226 = vmatpush2.msra.mxu0 0.0
  %3227 = vmatprep.subr.mxu0 0.0
  %3228 = vmatpush2.msra.mxu0 0.0
  %3229 = vmatprep.subr.mxu0 0.0
  %3230 = vmatpush2.msra.mxu0 0.0
  %3231 = vmatprep.mubr.f32.mxu0 0.0
  %3232 = vmatmul.mubr.f32.gmra.mxu0 %v3162
  %v3233 = vpop.f32.mrf.mxu0
  %v3234 = vadd.f32 0.0, %v3233
  %v3235 = vpop.f32.mrf.mxu0
  %3236 = vmatprep.mubr.f32.mxu0 0.0
  %3237 = vmatmul.mubr.f32.gmra.mxu0 %v3165
  %v3238 = vpop.f32.mrf.mxu0
  %v3239 = vadd.f32 0.0, %v3238
  %v3240 = vpop.f32.mrf.mxu0
  %3241 = vdwg.mxu0
  %v3242 = vadd.f32 %v1606, %v3234
  %v3243 = vadd.f32 %v1607, %v3239
  %v3244 = vld [vmem:[%s11] sm:$0x1]
  %v3245 = vmul.f32 %v3242, %v3242
  %v3246 = vmul.f32 %v3243, %v3243
  %v3247 = vsel %vm61, %v3245, 0.0
  %3248 = vadd.xlane.f32.xlu0 %v3247
  %v3249 = vpop.xlane.xlu0 %3248
  %v3250 = vsel %vm61, %v3246, 0.0
  %3251 = vadd.xlane.f32.xlu0 %v3250
  %v3252 = vpop.xlane.xlu0 %3251
  %v3253 = vmul.f32 %v3249, %v68
  %v3254 = vmul.f32 %v3252, %v68
  %v3255 = vadd.f32 %v3253, 1e-06
  %v3256 = vadd.f32 %v3254, 1e-06
  %v3257 = vrsqrt.pop %v3255
  %v3258 = vrsqrt.pop %v3256
  %v3259 = vmul.f32 %v3242, %v3257
  %v3260 = vmul.f32 %v3243, %v3258
  %v3262 = vlaneseq
  %v3263 = vshrl.u32 %v3262, 7
  %v3264 = vsub.s32 0, %v3263
  %v3265 = vrot.slane %v3244, %v3264
  %v3267 = vmul.f32 %v3259, %v3265
  %v3268 = vmul.f32 %v3260, %v3265
  %v3269 = vld [vmem:[%s12] sm:$0xff]
  %v3270 = vld [vmem:[%s12 + $0x8] sm:$0xff]
  %v3271 = vld [vmem:[%s12 + $0x10] sm:$0xff]
  %v3272 = vld [vmem:[%s12 + $0x18] sm:$0xff]
  %v3274 = vsel %vm61, %v3267, 0
  %v3277 = vsel %vm61, %v3268, 0
  %3279 = vmatprep.subr.mxu0 0.0
  %3280 = vmatpush1.msra.mxu0 0.0
  %3281 = vmatprep.subr.mxu0 0.0
  %3282 = vmatpush1.msra.mxu0 0.0
  %3283 = vmatprep.subr.mxu0 0.0
  %3284 = vmatpush1.msra.mxu0 0.0
  %3285 = vmatprep.subr.mxu0 0.0
  %3286 = vmatpush1.msra.mxu0 0.0
  %3287 = vmatprep.subr.mxu0 0.0
  %3288 = vmatpush1.msra.mxu0 0.0
  %3289 = vmatprep.subr.mxu0 0.0
  %3290 = vmatpush1.msra.mxu0 0.0
  %3291 = vmatprep.subr.mxu0 0.0
  %3292 = vmatpush1.msra.mxu0 0.0
  %3293 = vmatprep.subr.mxu0 0.0
  %3294 = vmatpush1.msra.mxu0 0.0
  %3295 = vmatprep.subr.mxu0 0.0
  %3296 = vmatpush1.msra.mxu0 0.0
  %3297 = vmatprep.subr.mxu0 0.0
  %3298 = vmatpush1.msra.mxu0 0.0
  %3299 = vmatprep.subr.mxu0 0.0
  %3300 = vmatpush1.msra.mxu0 0.0
  %3301 = vmatprep.subr.mxu0 0.0
  %3302 = vmatpush1.msra.mxu0 0.0
  %3303 = vmatprep.subr.mxu0 0.0
  %3304 = vmatpush1.msra.mxu0 %v3272
  %3305 = vmatprep.subr.mxu0 0.0
  %3306 = vmatpush1.msra.mxu0 %v3271
  %3307 = vmatprep.subr.mxu0 0.0
  %3308 = vmatpush1.msra.mxu0 %v3270
  %3309 = vmatprep.subr.mxu0 0.0
  %3310 = vmatpush1.msra.mxu0 %v3269
  %3311 = vmatprep.subr.mxu0 0.0
  %3312 = vmatpush2.msra.mxu0 0.0
  %3313 = vmatprep.subr.mxu0 0.0
  %3314 = vmatpush2.msra.mxu0 0.0
  %3315 = vmatprep.subr.mxu0 0.0
  %3316 = vmatpush2.msra.mxu0 0.0
  %3317 = vmatprep.subr.mxu0 0.0
  %3318 = vmatpush2.msra.mxu0 0.0
  %3319 = vmatprep.subr.mxu0 0.0
  %3320 = vmatpush2.msra.mxu0 0.0
  %3321 = vmatprep.subr.mxu0 0.0
  %3322 = vmatpush2.msra.mxu0 0.0
  %3323 = vmatprep.subr.mxu0 0.0
  %3324 = vmatpush2.msra.mxu0 0.0
  %3325 = vmatprep.subr.mxu0 0.0
  %3326 = vmatpush2.msra.mxu0 0.0
  %3327 = vmatprep.subr.mxu0 0.0
  %3328 = vmatpush2.msra.mxu0 0.0
  %3329 = vmatprep.subr.mxu0 0.0
  %3330 = vmatpush2.msra.mxu0 0.0
  %3331 = vmatprep.subr.mxu0 0.0
  %3332 = vmatpush2.msra.mxu0 0.0
  %3333 = vmatprep.subr.mxu0 0.0
  %3334 = vmatpush2.msra.mxu0 0.0
  %3335 = vmatprep.subr.mxu0 0.0
  %3336 = vmatpush2.msra.mxu0 0.0
  %3337 = vmatprep.subr.mxu0 0.0
  %3338 = vmatpush2.msra.mxu0 0.0
  %3339 = vmatprep.subr.mxu0 0.0
  %3340 = vmatpush2.msra.mxu0 0.0
  %3341 = vmatprep.subr.mxu0 0.0
  %3342 = vmatpush2.msra.mxu0 0.0
  %3343 = vmatprep.mubr.f32.mxu0 0.0
  %3344 = vmatmul.mubr.f32.gmra.mxu0 %v3274
  %v3345 = vpop.f32.mrf.mxu0
  %v3346 = vadd.f32 0.0, %v3345
  %v3347 = vpop.f32.mrf.mxu0
  %3348 = vmatprep.mubr.f32.mxu0 0.0
  %3349 = vmatmul.mubr.f32.gmra.mxu0 %v3277
  %v3350 = vpop.f32.mrf.mxu0
  %v3351 = vadd.f32 0.0, %v3350
  %v3352 = vpop.f32.mrf.mxu0
  %3353 = vdwg.mxu0
  %v3354 = vmax.f32 %v3346, 0.0
  %v3355 = vmax.f32 %v3351, 0.0
  %v3356 = vld [vmem:[%s13] sm:$0xff]
  %v3357 = vld [vmem:[%s13 + $0x8] sm:$0xff]
  %v3358 = vld [vmem:[%s13 + $0x10] sm:$0xff]
  %v3359 = vld [vmem:[%s13 + $0x18] sm:$0xff]
  %v3360 = vld [vmem:[%s13 + $0x20] sm:$0xff]
  %v3361 = vld [vmem:[%s13 + $0x28] sm:$0xff]
  %v3362 = vld [vmem:[%s13 + $0x30] sm:$0xff]
  %v3363 = vld [vmem:[%s13 + $0x38] sm:$0xff]
  %vm3364 = vcmask 523264
  %v3366 = vsel %vm3364, %v3354, 0
  %v3369 = vsel %vm3364, %v3355, 0
  %3371 = vmatprep.subr.mxu0 0.0
  %3372 = vmatpush1.msra.mxu0 0.0
  %3373 = vmatprep.subr.mxu0 0.0
  %3374 = vmatpush1.msra.mxu0 0.0
  %3375 = vmatprep.subr.mxu0 0.0
  %3376 = vmatpush1.msra.mxu0 0.0
  %3377 = vmatprep.subr.mxu0 0.0
  %3378 = vmatpush1.msra.mxu0 0.0
  %3379 = vmatprep.subr.mxu0 0.0
  %3380 = vmatpush1.msra.mxu0 0.0
  %3381 = vmatprep.subr.mxu0 0.0
  %3382 = vmatpush1.msra.mxu0 0.0
  %3383 = vmatprep.subr.mxu0 0.0
  %3384 = vmatpush1.msra.mxu0 0.0
  %3385 = vmatprep.subr.mxu0 0.0
  %3386 = vmatpush1.msra.mxu0 0.0
  %3387 = vmatprep.subr.mxu0 0.0
  %3388 = vmatpush1.msra.mxu0 %v3363
  %3389 = vmatprep.subr.mxu0 0.0
  %3390 = vmatpush1.msra.mxu0 %v3362
  %3391 = vmatprep.subr.mxu0 0.0
  %3392 = vmatpush1.msra.mxu0 %v3361
  %3393 = vmatprep.subr.mxu0 0.0
  %3394 = vmatpush1.msra.mxu0 %v3360
  %3395 = vmatprep.subr.mxu0 0.0
  %3396 = vmatpush1.msra.mxu0 %v3359
  %3397 = vmatprep.subr.mxu0 0.0
  %3398 = vmatpush1.msra.mxu0 %v3358
  %3399 = vmatprep.subr.mxu0 0.0
  %3400 = vmatpush1.msra.mxu0 %v3357
  %3401 = vmatprep.subr.mxu0 0.0
  %3402 = vmatpush1.msra.mxu0 %v3356
  %3403 = vmatprep.subr.mxu0 0.0
  %3404 = vmatpush2.msra.mxu0 0.0
  %3405 = vmatprep.subr.mxu0 0.0
  %3406 = vmatpush2.msra.mxu0 0.0
  %3407 = vmatprep.subr.mxu0 0.0
  %3408 = vmatpush2.msra.mxu0 0.0
  %3409 = vmatprep.subr.mxu0 0.0
  %3410 = vmatpush2.msra.mxu0 0.0
  %3411 = vmatprep.subr.mxu0 0.0
  %3412 = vmatpush2.msra.mxu0 0.0
  %3413 = vmatprep.subr.mxu0 0.0
  %3414 = vmatpush2.msra.mxu0 0.0
  %3415 = vmatprep.subr.mxu0 0.0
  %3416 = vmatpush2.msra.mxu0 0.0
  %3417 = vmatprep.subr.mxu0 0.0
  %3418 = vmatpush2.msra.mxu0 0.0
  %3419 = vmatprep.subr.mxu0 0.0
  %3420 = vmatpush2.msra.mxu0 0.0
  %3421 = vmatprep.subr.mxu0 0.0
  %3422 = vmatpush2.msra.mxu0 0.0
  %3423 = vmatprep.subr.mxu0 0.0
  %3424 = vmatpush2.msra.mxu0 0.0
  %3425 = vmatprep.subr.mxu0 0.0
  %3426 = vmatpush2.msra.mxu0 0.0
  %3427 = vmatprep.subr.mxu0 0.0
  %3428 = vmatpush2.msra.mxu0 0.0
  %3429 = vmatprep.subr.mxu0 0.0
  %3430 = vmatpush2.msra.mxu0 0.0
  %3431 = vmatprep.subr.mxu0 0.0
  %3432 = vmatpush2.msra.mxu0 0.0
  %3433 = vmatprep.subr.mxu0 0.0
  %3434 = vmatpush2.msra.mxu0 0.0
  %3435 = vmatprep.mubr.f32.mxu0 0.0
  %3436 = vmatmul.mubr.f32.gmra.mxu0 %v3366
  %v3437 = vpop.f32.mrf.mxu0
  %v3438 = vadd.f32 0.0, %v3437
  %v3439 = vpop.f32.mrf.mxu0
  %3440 = vmatprep.mubr.f32.mxu0 0.0
  %3441 = vmatmul.mubr.f32.gmra.mxu0 %v3369
  %v3442 = vpop.f32.mrf.mxu0
  %v3443 = vadd.f32 0.0, %v3442
  %v3444 = vpop.f32.mrf.mxu0
  %3445 = vdwg.mxu0
  %v3446 = vadd.f32 %v3242, %v3438
  %v3447 = vadd.f32 %v3243, %v3443
  %3448 = vst.msk [vmem:[%s14] sm:$0xff] %vm61, %v3446
  %3449 = vst.msk [vmem:[%s14 + $0x8] sm:$0xff] %vm61, %v3447
  // Predicated region
  $region58: #{_lambda_.7} parent=0 // pred_check
    _
  $region59: #{_lambda_.7} parent=0 // pred_check_branch
    %3451 = sbr.rel (0) target = $region61
  $region60: #{_lambda_.7} parent=0 // pred_region
    _
  $region61: #{_lambda_.7} parent=0 // pred_fallthru
    _
  // Predicated region
  $region62: #{_lambda_.7} parent=0 // pred_check
    _
  $region63: #{_lambda_.7} parent=0 // pred_check_branch
    %3453 = sbr.rel (0) target = $region65
  $region64: #{_lambda_.7} parent=0 // pred_region
    _
  $region65: #{_lambda_.7} parent=0 // pred_fallthru
    _

</llo_original>
